<compile_context>
chip_gen: v7x
topology: tpu7x:2x2x1
jax: 0.10.0
libtpu: 0.0.40
codegen_flags: <defaults>
</compile_context>

<pallas_src>
import functools

import jax
import jax.numpy as jnp
from jax.experimental import pallas as pl
from jax.experimental.pallas import tpu as pltpu


def _round_up(x, m):
    return (x + m - 1) // m * m


_COMPILER_PARAMS = pltpu.CompilerParams(
    dimension_semantics=("parallel",),      # shard the M-grid across TCs (v7x)
    vmem_limit_bytes=32 * 1024 * 1024,
)

# pool parity p=(hi,wi), conv tap t=(kh,kw) -> shifted-view index (hi+kh)*4+(wi+kw)
_VIDX16 = tuple(
    tuple((hi + kh) * 4 + (wi + kw) for kh in range(3) for kw in range(3))
    for hi in range(2) for wi in range(2)
)
_VIDX_SINGLE = ((0,), (1,), (2,), (3,))     # conv1: one fused 9-tap slab per parity


# ---------------------------------------------------------------------------
# Pallas kernels
# ---------------------------------------------------------------------------
def _conv_relu_pool_kernel(views_ref, w_ref, b_ref, o_ref, *, vidx):
    """o = relu(max_p(sum_t views[vidx[p][t]] @ w[t]) + b)   (fused conv+pool).

    views_ref: (NV, TM, K)   bf16  shifted-view matrices, rows = pooled pixels
    w_ref:     (NT, K, Cout) bf16  per-tap weight slabs
    b_ref:     (1, Cout)     f32
    o_ref:     (TM, Cout)    bf16
    """
    views = [views_ref[v] for v in range(views_ref.shape[0])]
    taps = [w_ref[t] for t in range(w_ref.shape[0])]
    best = None
    for view_ids in vidx:                       # 4 pool parities
        acc = None
        for t, v in enumerate(view_ids):        # 3x3 taps (or 1 packed slab)
            c = jnp.dot(views[v], taps[t], preferred_element_type=jnp.float32)
            acc = c if acc is None else acc + c
        best = acc if best is None else jnp.maximum(best, acc)
    # max and ReLU commute: relu(max(z_p) + b) == maxpool(relu(conv + b)).
    o_ref[...] = jnp.maximum(best + b_ref[...], 0.0).astype(o_ref.dtype)


def _mlp_head_kernel(x_ref, w1_ref, b1_ref, w2_ref, b2_ref, o_ref):
    """o = relu(x @ W1 + b1) @ W2 + b2  — fc1+fc2 fused, hidden stays in VMEM."""
    h = jnp.dot(x_ref[...], w1_ref[...], preferred_element_type=jnp.float32)
    h = jnp.maximum(h + b1_ref[...], 0.0)
    acc = jnp.dot(h.astype(w2_ref.dtype), w2_ref[...],
                  preferred_element_type=jnp.float32)
    o_ref[...] = (acc + b2_ref[...]).astype(o_ref.dtype)


# ---------------------------------------------------------------------------
# pallas_call wrappers (tiled over M, bf16 inputs, f32 accumulation)
# ---------------------------------------------------------------------------
def conv_relu_pool(views, w_taps, bias, *, vidx, tile_m=256,
                   out_dtype=jnp.bfloat16):
    """Fused 3x3 conv (pad=1) + bias + ReLU + 2x2 maxpool.

    views: (NV, M, K), w_taps: (NT, K, Cout), bias: (Cout,)
    Returns (M, Cout) out_dtype, rows ordered (b, ho, wo).
    """
    NV, M, K = views.shape
    NT, _, Cout = w_taps.shape
    TM = min(tile_m, _round_up(M, 8))
    Mp = _round_up(M, TM)
    views = views.astype(jnp.bfloat16)
    if Mp != M:
        views = jnp.pad(views, ((0, 0), (0, Mp - M), (0, 0)))
    out = pl.pallas_call(
        functools.partial(_conv_relu_pool_kernel, vidx=vidx),
        out_shape=jax.ShapeDtypeStruct((Mp, Cout), out_dtype),
        grid=(Mp // TM,),
        in_specs=[
            pl.BlockSpec((NV, TM, K), lambda i: (0, i, 0)),
            pl.BlockSpec((NT, K, Cout), lambda i: (0, 0, 0)),
            pl.BlockSpec((1, Cout), lambda i: (0, 0)),
        ],
        out_specs=pl.BlockSpec((TM, Cout), lambda i: (i, 0)),
        compiler_params=_COMPILER_PARAMS,
    )(views, w_taps.astype(jnp.bfloat16), bias.reshape(1, Cout).astype(jnp.float32))
    return out[:M] if Mp != M else out


def mlp_head(x, w1, b1, w2, b2, *, tile_m=512):
    """Fused fc1(+ReLU)+fc2: x:(M,K), W1:(K,H), W2:(H,N) pre-laid-out -> (M,N) f32."""
    M, K = x.shape
    H = w1.shape[1]
    N = w2.shape[1]
    TM = min(tile_m, _round_up(M, 8))
    Mp = _round_up(M, TM)
    x = x.astype(jnp.bfloat16)
    if Mp != M:
        x = jnp.pad(x, ((0, Mp - M), (0, 0)))
    out = pl.pallas_call(
        _mlp_head_kernel,
        out_shape=jax.ShapeDtypeStruct((Mp, N), jnp.float32),
        grid=(Mp // TM,),
        in_specs=[
            pl.BlockSpec((TM, K), lambda i: (i, 0)),
            pl.BlockSpec((K, H), lambda i: (0, 0)),
            pl.BlockSpec((1, H), lambda i: (0, 0)),
            pl.BlockSpec((H, N), lambda i: (0, 0)),
            pl.BlockSpec((1, N), lambda i: (0, 0)),
        ],
        out_specs=pl.BlockSpec((TM, N), lambda i: (i, 0)),
        compiler_params=_COMPILER_PARAMS,
    )(x, w1.astype(jnp.bfloat16), b1.reshape(1, H).astype(jnp.float32),
      w2.astype(jnp.bfloat16), b2.reshape(1, N).astype(jnp.float32))
    return out[:M] if Mp != M else out


# ---------------------------------------------------------------------------
# XLA-side layout helpers (pure data movement, no compute)
# ---------------------------------------------------------------------------
def _shift_views(x_nhwc):
    """16 stride-2 shifted views of the zero-padded input.

    view[r*4+s][b, ho, wo, :] = x_pad[b, 2*ho + r, 2*wo + s, :], r,s in 0..3.
    Returns (16, B*Ho*Wo, Cin) — 4x the activation volume (vs 9x full im2col).
    """
    B, H, W, C = x_nhwc.shape
    Ho, Wo = H // 2, W // 2
    xp = jnp.pad(x_nhwc, ((0, 0), (1, 1), (1, 1), (0, 0)))
    views = []
    for r in range(4):
        for s in range(4):
            v = xp[:, r:r + 2 * Ho:2, s:s + 2 * Wo:2, :]
            views.append(v.reshape(B * Ho * Wo, C))
    return jnp.stack(views, axis=0)


def _patch_views_cin1(x_nhw1):
    """conv1 special case (Cin=1): one (M, 9) tap-packed slab per pool parity."""
    B, H, W, _ = x_nhw1.shape
    Ho, Wo = H // 2, W // 2
    xp = jnp.pad(x_nhw1[..., 0], ((0, 0), (1, 1), (1, 1)))
    slabs = []
    for hi in range(2):
        for wi in range(2):
            cols = [
                xp[:, hi + kh:hi + kh + 2 * Ho:2, wi + kw:wi + kw + 2 * Wo:2]
                for kh in range(3) for kw in range(3)
            ]
            slabs.append(jnp.stack(cols, axis=-1).reshape(B * Ho * Wo, 9))
    return jnp.stack(slabs, axis=0)                      # (4, M, 9)


# ---------------------------------------------------------------------------
# Parameters (torch layouts) + one-time kernel-friendly re-layout
# ---------------------------------------------------------------------------
def init_params(key):
    """Deterministic PyTorch-style (kaiming-uniform-ish) init, torch layouts."""
    ks = jax.random.split(key, 8)

    def unif(k, shape, fan_in):
        bound = 1.0 / jnp.sqrt(fan_in)
        return jax.random.uniform(k, shape, jnp.float32, -bound, bound)

    return {
        "conv1_w": unif(ks[0], (32, 1, 3, 3), 1 * 3 * 3),
        "conv1_b": unif(ks[1], (32,), 1 * 3 * 3),
        "conv2_w": unif(ks[2], (64, 32, 3, 3), 32 * 3 * 3),
        "conv2_b": unif(ks[3], (64,), 32 * 3 * 3),
        "fc1_w": unif(ks[4], (128, 64 * 7 * 7), 64 * 7 * 7),  # torch Linear: (out, in)
        "fc1_b": unif(ks[5], (128,), 64 * 7 * 7),
        "fc2_w": unif(ks[6], (10, 128), 128),
        "fc2_b": unif(ks[7], (10,), 128),
    }


def prepare_params(tp):
    """One-time (outside jit) weight re-layout for the Pallas kernels."""
    p = {}
    # conv1 (32,1,3,3) -> single (1, 9, 32) slab, rows ordered t = kh*3 + kw.
    p["conv1_w"] = tp["conv1_w"].reshape(32, 9).T.reshape(1, 9, 32)
    p["conv1_b"] = tp["conv1_b"]
    # conv2 (64,32,3,3) -> (9, 32, 64) per-tap slabs, tap t = kh*3 + kw.
    p["conv2_w"] = jnp.transpose(tp["conv2_w"], (2, 3, 1, 0)).reshape(9, 32, 64)
    p["conv2_b"] = tp["conv2_b"]
    # fc1 (128, 64*7*7 CHW) -> (3136, 128) with rows permuted to HWC order so no
    # activation transpose is needed before the matmul.
    fc1 = tp["fc1_w"].reshape(128, 64, 7, 7)
    p["fc1_w"] = jnp.transpose(fc1, (2, 3, 1, 0)).reshape(64 * 7 * 7, 128)
    p["fc1_b"] = tp["fc1_b"]
    # fc2 (10,128) -> (128,128): transpose + zero-pad N 10->128 for lane-dense
    # output stores; real logits are columns [:10].
    p["fc2_w"] = jnp.pad(tp["fc2_w"].T, ((0, 0), (0, 128 - 10)))
    p["fc2_b"] = jnp.pad(tp["fc2_b"], (0, 128 - 10))
    return p


# ---------------------------------------------------------------------------
# Forward pass
# ---------------------------------------------------------------------------
@jax.jit
def cnn_forward(x_nchw, p):
    B = x_nchw.shape[0]
    x = jnp.transpose(x_nchw, (0, 2, 3, 1)).astype(jnp.bfloat16)     # (B,28,28,1)

    # conv1 + ReLU + maxpool: one fused Pallas kernel, bf16 activations out.
    v1 = _patch_views_cin1(x)                                        # (4, B*196, 9)
    h1 = conv_relu_pool(v1, p["conv1_w"], p["conv1_b"], vidx=_VIDX_SINGLE)
    h1 = h1.reshape(B, 14, 14, 32)

    # conv2 + ReLU + maxpool: one fused Pallas kernel (9 accumulated per-tap
    # matmuls of shifted views against (32,64) slabs, max over pool parities).
    # TODO(synk): slice the 3x3 windows straight from a padded NHWC block in
    # VMEM to drop the remaining 4x shifted-view materialization (needs robust
    # in-kernel (H,W,C)->(H*W,C) reshapes).
    v2 = _shift_views(h1)                                            # (16, B*49, 32)
    h2 = conv_relu_pool(v2, p["conv2_w"], p["conv2_b"], vidx=_VIDX16)  # (B*49, 64)

    # rows of h2 are (b, ho, wo) -> HWC flatten; fc1_w rows were pre-permuted to
    # match torch's CHW .view(-1, 64*7*7), so no activation transpose here.
    feat = h2.reshape(B, 7 * 7 * 64)
    # fc1 + ReLU + fc2: single fused Pallas kernel (hidden never leaves VMEM).
    logits = mlp_head(feat, p["fc1_w"], p["fc1_b"], p["fc2_w"], p["fc2_b"])
    return logits[:, :10]


def _reference_forward(x_nchw, tp):
    """Pure-JAX f32 reference mirroring the PyTorch module."""
    x = jnp.transpose(x_nchw.astype(jnp.float32), (0, 2, 3, 1))

    def conv(x, w, b):
        y = jax.lax.conv_general_dilated(
            x, jnp.transpose(w, (2, 3, 1, 0)), (1, 1), "SAME",
            dimension_numbers=("NHWC", "HWIO", "NHWC"))
        return jax.nn.relu(y + b)

    def pool(x):
        B, H, W, C = x.shape
        return x.reshape(B, H // 2, 2, W // 2, 2, C).max(axis=(2, 4))

    x = pool(conv(x, tp["conv1_w"], tp["conv1_b"]))
    x = pool(conv(x, tp["conv2_w"], tp["conv2_b"]))
    feat = jnp.transpose(x, (0, 3, 1, 2)).reshape(x.shape[0], 64 * 7 * 7)
    h = jax.nn.relu(feat @ tp["fc1_w"].T + tp["fc1_b"])
    return h @ tp["fc2_w"].T + tp["fc2_b"]


if __name__ == "__main__":
    key = jax.random.PRNGKey(0)
    k_x, k_p = jax.random.split(key)
    # MNIST-shaped input implied by fc1 = Linear(64*7*7, 128): (B, 1, 28, 28)
    x = jax.random.normal(k_x, (2, 1, 28, 28), dtype=jnp.float32)
    torch_params = init_params(k_p)
    params = prepare_params(torch_params)      # one-time weight re-layout

    logits = cnn_forward(x, params)
    jax.block_until_ready(logits)
    assert logits.shape == (2, 10), logits.shape

    # Sanity-check against the f32 XLA reference (bf16 matmuls -> loose bound).
    ref = _reference_forward(x, torch_params)
    err = float(jnp.max(jnp.abs(logits - ref)))
    assert err < 2e-2, f"mismatch vs f32 reference: max abs err {err}"
    print("KERNEL_OK")
</pallas_src>

<mosaic_0001>
module attributes {stable_mosaic.version = 11 : i64} {
  func.func @_conv_relu_pool_kernel(%arg0: i32, %arg1: memref<4x256x9xbf16, #tpu.memory_space<vmem>>, %arg2: memref<1x9x32xbf16, #tpu.memory_space<vmem>>, %arg3: memref<1x32xf32, #tpu.memory_space<vmem>>, %arg4: memref<256x32xbf16, #tpu.memory_space<vmem>>) attributes {dimension_semantics = [#tpu.dimension_semantics<parallel>], iteration_bounds = array<i64: 2>, scalar_prefetch = 0 : i64, scratch_operands = 0 : i64, tpu.core_type = #tpu.core_type<tc>, window_params = [{transform_indices = @transform_0, window_bounds = array<i64: 4, 256, 9>}, {pipeline_mode = #tpu.pipeline_mode<synchronous>, transform_indices = @transform_1, window_bounds = array<i64: 1, 9, 32>}, {pipeline_mode = #tpu.pipeline_mode<synchronous>, transform_indices = @transform_2, window_bounds = array<i64: 1, 32>}, {transform_indices = @transform_3, window_bounds = array<i64: 256, 32>}]} {
    %c0 = arith.constant 0 : index
    %c0_0 = arith.constant 0 : index
    %c0_1 = arith.constant 0 : index
    %0 = vector.load %arg1[%c0, %c0_0, %c0_1] : memref<4x256x9xbf16, #tpu.memory_space<vmem>>, vector<1x256x9xbf16>
    %1 = vector.shape_cast %0 : vector<1x256x9xbf16> to vector<256x9xbf16>
    %c1 = arith.constant 1 : index
    %c0_2 = arith.constant 0 : index
    %c0_3 = arith.constant 0 : index
    %2 = vector.load %arg1[%c1, %c0_2, %c0_3] : memref<4x256x9xbf16, #tpu.memory_space<vmem>>, vector<1x256x9xbf16>
    %3 = vector.shape_cast %2 : vector<1x256x9xbf16> to vector<256x9xbf16>
    %c2 = arith.constant 2 : index
    %c0_4 = arith.constant 0 : index
    %c0_5 = arith.constant 0 : index
    %4 = vector.load %arg1[%c2, %c0_4, %c0_5] : memref<4x256x9xbf16, #tpu.memory_space<vmem>>, vector<1x256x9xbf16>
    %5 = vector.shape_cast %4 : vector<1x256x9xbf16> to vector<256x9xbf16>
    %c3 = arith.constant 3 : index
    %c0_6 = arith.constant 0 : index
    %c0_7 = arith.constant 0 : index
    %6 = vector.load %arg1[%c3, %c0_6, %c0_7] : memref<4x256x9xbf16, #tpu.memory_space<vmem>>, vector<1x256x9xbf16>
    %7 = vector.shape_cast %6 : vector<1x256x9xbf16> to vector<256x9xbf16>
    %c0_8 = arith.constant 0 : index
    %c0_9 = arith.constant 0 : index
    %c0_10 = arith.constant 0 : index
    %8 = vector.load %arg2[%c0_8, %c0_9, %c0_10] : memref<1x9x32xbf16, #tpu.memory_space<vmem>>, vector<1x9x32xbf16>
    %9 = vector.shape_cast %8 : vector<1x9x32xbf16> to vector<9x32xbf16>
    %cst = arith.constant dense<0.000000e+00> : vector<256x32xf32>
    %10 = tpu.matmul %1, %9, %cst {dimension_numbers = #tpu.dot_dimension_numbers<[1], [0], [0], [1], [0, 0, 1, 1], [], []>} : vector<256x9xbf16>, vector<9x32xbf16>, vector<256x32xf32> -> vector<256x32xf32>
    %cst_11 = arith.constant dense<0.000000e+00> : vector<256x32xf32>
    %11 = tpu.matmul %3, %9, %cst_11 {dimension_numbers = #tpu.dot_dimension_numbers<[1], [0], [0], [1], [0, 0, 1, 1], [], []>} : vector<256x9xbf16>, vector<9x32xbf16>, vector<256x32xf32> -> vector<256x32xf32>
    %12 = arith.maximumf %10, %11 : vector<256x32xf32>
    %cst_12 = arith.constant dense<0.000000e+00> : vector<256x32xf32>
    %13 = tpu.matmul %5, %9, %cst_12 {dimension_numbers = #tpu.dot_dimension_numbers<[1], [0], [0], [1], [0, 0, 1, 1], [], []>} : vector<256x9xbf16>, vector<9x32xbf16>, vector<256x32xf32> -> vector<256x32xf32>
    %14 = arith.maximumf %12, %13 : vector<256x32xf32>
    %cst_13 = arith.constant dense<0.000000e+00> : vector<256x32xf32>
    %15 = tpu.matmul %7, %9, %cst_13 {dimension_numbers = #tpu.dot_dimension_numbers<[1], [0], [0], [1], [0, 0, 1, 1], [], []>} : vector<256x9xbf16>, vector<9x32xbf16>, vector<256x32xf32> -> vector<256x32xf32>
    %16 = arith.maximumf %14, %15 : vector<256x32xf32>
    %c0_14 = arith.constant 0 : index
    %c0_15 = arith.constant 0 : index
    %17 = vector.load %arg3[%c0_14, %c0_15] : memref<1x32xf32, #tpu.memory_space<vmem>>, vector<1x32xf32>
    %18 = vector.broadcast %17 : vector<1x32xf32> to vector<256x32xf32>
    %19 = arith.addf %16, %18 : vector<256x32xf32>
    %cst_16 = arith.constant 0.000000e+00 : f32
    %20 = vector.broadcast %cst_16 : f32 to vector<256x32xf32>
    %21 = arith.maximumf %19, %20 : vector<256x32xf32>
    %22 = arith.truncf %21 : vector<256x32xf32> to vector<256x32xbf16>
    %c0_17 = arith.constant 0 : index
    %c0_18 = arith.constant 0 : index
    %23 = vector.load %arg4[%c0_17, %c0_18] : memref<256x32xbf16, #tpu.memory_space<vmem>>, vector<256x32xbf16>
    tpu.vector_store %arg4[%c0_17, %c0_18], %22 {strides = array<i32>} : memref<256x32xbf16, #tpu.memory_space<vmem>>, vector<256x32xbf16>,
    return
  }
  func.func @transform_0(%arg0: i32) -> (i32, i32, i32) {
    %c0_i32 = arith.constant 0 : i32
    %c0_i32_0 = arith.constant 0 : i32
    %c0_i32_1 = arith.constant 0 : i32
    return %c0_i32, %arg0, %c0_i32_0 : i32, i32, i32
  }
  func.func @transform_1(%arg0: i32) -> (i32, i32, i32) {
    %c0_i32 = arith.constant 0 : i32
    %c0_i32_0 = arith.constant 0 : i32
    %c0_i32_1 = arith.constant 0 : i32
    %c0_i32_2 = arith.constant 0 : i32
    return %c0_i32, %c0_i32_0, %c0_i32_1 : i32, i32, i32
  }
  func.func @transform_2(%arg0: i32) -> (i32, i32) {
    %c0_i32 = arith.constant 0 : i32
    %c0_i32_0 = arith.constant 0 : i32
    %c0_i32_1 = arith.constant 0 : i32
    return %c0_i32, %c0_i32_0 : i32, i32
  }
  func.func @transform_3(%arg0: i32) -> (i32, i32) {
    %c0_i32 = arith.constant 0 : i32
    %c0_i32_0 = arith.constant 0 : i32
    return %arg0, %c0_i32 : i32, i32
  }
}

module attributes {stable_mosaic.version = 11 : i64} {
  func.func @_conv_relu_pool_kernel(%arg0: i32, %arg1: memref<16x104x32xbf16, #tpu.memory_space<vmem>>, %arg2: memref<9x32x64xbf16, #tpu.memory_space<vmem>>, %arg3: memref<1x64xf32, #tpu.memory_space<vmem>>, %arg4: memref<104x64xbf16, #tpu.memory_space<vmem>>) attributes {dimension_semantics = [#tpu.dimension_semantics<parallel>], iteration_bounds = array<i64: 1>, scalar_prefetch = 0 : i64, scratch_operands = 0 : i64, tpu.core_type = #tpu.core_type<tc>, window_params = [{transform_indices = @transform_0, window_bounds = array<i64: 16, 104, 32>}, {pipeline_mode = #tpu.pipeline_mode<synchronous>, transform_indices = @transform_1, window_bounds = array<i64: 9, 32, 64>}, {pipeline_mode = #tpu.pipeline_mode<synchronous>, transform_indices = @transform_2, window_bounds = array<i64: 1, 64>}, {transform_indices = @transform_3, window_bounds = array<i64: 104, 64>}]} {
    %c0 = arith.constant 0 : index
    %c0_0 = arith.constant 0 : index
    %c0_1 = arith.constant 0 : index
    %0 = vector.load %arg1[%c0, %c0_0, %c0_1] : memref<16x104x32xbf16, #tpu.memory_space<vmem>>, vector<1x104x32xbf16>
    %1 = vector.shape_cast %0 : vector<1x104x32xbf16> to vector<104x32xbf16>
    %c1 = arith.constant 1 : index
    %c0_2 = arith.constant 0 : index
    %c0_3 = arith.constant 0 : index
    %2 = vector.load %arg1[%c1, %c0_2, %c0_3] : memref<16x104x32xbf16, #tpu.memory_space<vmem>>, vector<1x104x32xbf16>
    %3 = vector.shape_cast %2 : vector<1x104x32xbf16> to vector<104x32xbf16>
    %c2 = arith.constant 2 : index
    %c0_4 = arith.constant 0 : index
    %c0_5 = arith.constant 0 : index
    %4 = vector.load %arg1[%c2, %c0_4, %c0_5] : memref<16x104x32xbf16, #tpu.memory_space<vmem>>, vector<1x104x32xbf16>
    %5 = vector.shape_cast %4 : vector<1x104x32xbf16> to vector<104x32xbf16>
    %c3 = arith.constant 3 : index
    %c0_6 = arith.constant 0 : index
    %c0_7 = arith.constant 0 : index
    %6 = vector.load %arg1[%c3, %c0_6, %c0_7] : memref<16x104x32xbf16, #tpu.memory_space<vmem>>, vector<1x104x32xbf16>
    %7 = vector.shape_cast %6 : vector<1x104x32xbf16> to vector<104x32xbf16>
    %c4 = arith.constant 4 : index
    %c0_8 = arith.constant 0 : index
    %c0_9 = arith.constant 0 : index
    %8 = vector.load %arg1[%c4, %c0_8, %c0_9] : memref<16x104x32xbf16, #tpu.memory_space<vmem>>, vector<1x104x32xbf16>
    %9 = vector.shape_cast %8 : vector<1x104x32xbf16> to vector<104x32xbf16>
    %c5 = arith.constant 5 : index
    %c0_10 = arith.constant 0 : index
    %c0_11 = arith.constant 0 : index
    %10 = vector.load %arg1[%c5, %c0_10, %c0_11] : memref<16x104x32xbf16, #tpu.memory_space<vmem>>, vector<1x104x32xbf16>
    %11 = vector.shape_cast %10 : vector<1x104x32xbf16> to vector<104x32xbf16>
    %c6 = arith.constant 6 : index
    %c0_12 = arith.constant 0 : index
    %c0_13 = arith.constant 0 : index
    %12 = vector.load %arg1[%c6, %c0_12, %c0_13] : memref<16x104x32xbf16, #tpu.memory_space<vmem>>, vector<1x104x32xbf16>
    %13 = vector.shape_cast %12 : vector<1x104x32xbf16> to vector<104x32xbf16>
    %c7 = arith.constant 7 : index
    %c0_14 = arith.constant 0 : index
    %c0_15 = arith.constant 0 : index
    %14 = vector.load %arg1[%c7, %c0_14, %c0_15] : memref<16x104x32xbf16, #tpu.memory_space<vmem>>, vector<1x104x32xbf16>
    %15 = vector.shape_cast %14 : vector<1x104x32xbf16> to vector<104x32xbf16>
    %c8 = arith.constant 8 : index
    %c0_16 = arith.constant 0 : index
    %c0_17 = arith.constant 0 : index
    %16 = vector.load %arg1[%c8, %c0_16, %c0_17] : memref<16x104x32xbf16, #tpu.memory_space<vmem>>, vector<1x104x32xbf16>
    %17 = vector.shape_cast %16 : vector<1x104x32xbf16> to vector<104x32xbf16>
    %c9 = arith.constant 9 : index
    %c0_18 = arith.constant 0 : index
    %c0_19 = arith.constant 0 : index
    %18 = vector.load %arg1[%c9, %c0_18, %c0_19] : memref<16x104x32xbf16, #tpu.memory_space<vmem>>, vector<1x104x32xbf16>
    %19 = vector.shape_cast %18 : vector<1x104x32xbf16> to vector<104x32xbf16>
    %c10 = arith.constant 10 : index
    %c0_20 = arith.constant 0 : index
    %c0_21 = arith.constant 0 : index
    %20 = vector.load %arg1[%c10, %c0_20, %c0_21] : memref<16x104x32xbf16, #tpu.memory_space<vmem>>, vector<1x104x32xbf16>
    %21 = vector.shape_cast %20 : vector<1x104x32xbf16> to vector<104x32xbf16>
    %c11 = arith.constant 11 : index
    %c0_22 = arith.constant 0 : index
    %c0_23 = arith.constant 0 : index
    %22 = vector.load %arg1[%c11, %c0_22, %c0_23] : memref<16x104x32xbf16, #tpu.memory_space<vmem>>, vector<1x104x32xbf16>
    %23 = vector.shape_cast %22 : vector<1x104x32xbf16> to vector<104x32xbf16>
    %c12 = arith.constant 12 : index
    %c0_24 = arith.constant 0 : index
    %c0_25 = arith.constant 0 : index
    %24 = vector.load %arg1[%c12, %c0_24, %c0_25] : memref<16x104x32xbf16, #tpu.memory_space<vmem>>, vector<1x104x32xbf16>
    %25 = vector.shape_cast %24 : vector<1x104x32xbf16> to vector<104x32xbf16>
    %c13 = arith.constant 13 : index
    %c0_26 = arith.constant 0 : index
    %c0_27 = arith.constant 0 : index
    %26 = vector.load %arg1[%c13, %c0_26, %c0_27] : memref<16x104x32xbf16, #tpu.memory_space<vmem>>, vector<1x104x32xbf16>
    %27 = vector.shape_cast %26 : vector<1x104x32xbf16> to vector<104x32xbf16>
    %c14 = arith.constant 14 : index
    %c0_28 = arith.constant 0 : index
    %c0_29 = arith.constant 0 : index
    %28 = vector.load %arg1[%c14, %c0_28, %c0_29] : memref<16x104x32xbf16, #tpu.memory_space<vmem>>, vector<1x104x32xbf16>
    %29 = vector.shape_cast %28 : vector<1x104x32xbf16> to vector<104x32xbf16>
    %c15 = arith.constant 15 : index
    %c0_30 = arith.constant 0 : index
    %c0_31 = arith.constant 0 : index
    %30 = vector.load %arg1[%c15, %c0_30, %c0_31] : memref<16x104x32xbf16, #tpu.memory_space<vmem>>, vector<1x104x32xbf16>
    %31 = vector.shape_cast %30 : vector<1x104x32xbf16> to vector<104x32xbf16>
    %c0_32 = arith.constant 0 : index
    %c0_33 = arith.constant 0 : index
    %c0_34 = arith.constant 0 : index
    %32 = vector.load %arg2[%c0_32, %c0_33, %c0_34] : memref<9x32x64xbf16, #tpu.memory_space<vmem>>, vector<1x32x64xbf16>
    %33 = vector.shape_cast %32 : vector<1x32x64xbf16> to vector<32x64xbf16>
    %c1_35 = arith.constant 1 : index
    %c0_36 = arith.constant 0 : index
    %c0_37 = arith.constant 0 : index
    %34 = vector.load %arg2[%c1_35, %c0_36, %c0_37] : memref<9x32x64xbf16, #tpu.memory_space<vmem>>, vector<1x32x64xbf16>
    %35 = vector.shape_cast %34 : vector<1x32x64xbf16> to vector<32x64xbf16>
    %c2_38 = arith.constant 2 : index
    %c0_39 = arith.constant 0 : index
    %c0_40 = arith.constant 0 : index
    %36 = vector.load %arg2[%c2_38, %c0_39, %c0_40] : memref<9x32x64xbf16, #tpu.memory_space<vmem>>, vector<1x32x64xbf16>
    %37 = vector.shape_cast %36 : vector<1x32x64xbf16> to vector<32x64xbf16>
    %c3_41 = arith.constant 3 : index
    %c0_42 = arith.constant 0 : index
    %c0_43 = arith.constant 0 : index
    %38 = vector.load %arg2[%c3_41, %c0_42, %c0_43] : memref<9x32x64xbf16, #tpu.memory_space<vmem>>, vector<1x32x64xbf16>
    %39 = vector.shape_cast %38 : vector<1x32x64xbf16> to vector<32x64xbf16>
    %c4_44 = arith.constant 4 : index
    %c0_45 = arith.constant 0 : index
    %c0_46 = arith.constant 0 : index
    %40 = vector.load %arg2[%c4_44, %c0_45, %c0_46] : memref<9x32x64xbf16, #tpu.memory_space<vmem>>, vector<1x32x64xbf16>
    %41 = vector.shape_cast %40 : vector<1x32x64xbf16> to vector<32x64xbf16>
    %c5_47 = arith.constant 5 : index
    %c0_48 = arith.constant 0 : index
    %c0_49 = arith.constant 0 : index
    %42 = vector.load %arg2[%c5_47, %c0_48, %c0_49] : memref<9x32x64xbf16, #tpu.memory_space<vmem>>, vector<1x32x64xbf16>
    %43 = vector.shape_cast %42 : vector<1x32x64xbf16> to vector<32x64xbf16>
    %c6_50 = arith.constant 6 : index
    %c0_51 = arith.constant 0 : index
    %c0_52 = arith.constant 0 : index
    %44 = vector.load %arg2[%c6_50, %c0_51, %c0_52] : memref<9x32x64xbf16, #tpu.memory_space<vmem>>, vector<1x32x64xbf16>
    %45 = vector.shape_cast %44 : vector<1x32x64xbf16> to vector<32x64xbf16>
    %c7_53 = arith.constant 7 : index
    %c0_54 = arith.constant 0 : index
    %c0_55 = arith.constant 0 : index
    %46 = vector.load %arg2[%c7_53, %c0_54, %c0_55] : memref<9x32x64xbf16, #tpu.memory_space<vmem>>, vector<1x32x64xbf16>
    %47 = vector.shape_cast %46 : vector<1x32x64xbf16> to vector<32x64xbf16>
    %c8_56 = arith.constant 8 : index
    %c0_57 = arith.constant 0 : index
    %c0_58 = arith.constant 0 : index
    %48 = vector.load %arg2[%c8_56, %c0_57, %c0_58] : memref<9x32x64xbf16, #tpu.memory_space<vmem>>, vector<1x32x64xbf16>
    %49 = vector.shape_cast %48 : vector<1x32x64xbf16> to vector<32x64xbf16>
    %cst = arith.constant dense<0.000000e+00> : vector<104x64xf32>
    %50 = tpu.matmul %1, %33, %cst {dimension_numbers = #tpu.dot_dimension_numbers<[1], [0], [0], [1], [0, 0, 1, 1], [], []>} : vector<104x32xbf16>, vector<32x64xbf16>, vector<104x64xf32> -> vector<104x64xf32>
    %cst_59 = arith.constant dense<0.000000e+00> : vector<104x64xf32>
    %51 = tpu.matmul %3, %35, %cst_59 {dimension_numbers = #tpu.dot_dimension_numbers<[1], [0], [0], [1], [0, 0, 1, 1], [], []>} : vector<104x32xbf16>, vector<32x64xbf16>, vector<104x64xf32> -> vector<104x64xf32>
    %52 = arith.addf %50, %51 : vector<104x64xf32>
    %cst_60 = arith.constant dense<0.000000e+00> : vector<104x64xf32>
    %53 = tpu.matmul %5, %37, %cst_60 {dimension_numbers = #tpu.dot_dimension_numbers<[1], [0], [0], [1], [0, 0, 1, 1], [], []>} : vector<104x32xbf16>, vector<32x64xbf16>, vector<104x64xf32> -> vector<104x64xf32>
    %54 = arith.addf %52, %53 : vector<104x64xf32>
    %cst_61 = arith.constant dense<0.000000e+00> : vector<104x64xf32>
    %55 = tpu.matmul %9, %39, %cst_61 {dimension_numbers = #tpu.dot_dimension_numbers<[1], [0], [0], [1], [0, 0, 1, 1], [], []>} : vector<104x32xbf16>, vector<32x64xbf16>, vector<104x64xf32> -> vector<104x64xf32>
    %56 = arith.addf %54, %55 : vector<104x64xf32>
    %cst_62 = arith.constant dense<0.000000e+00> : vector<104x64xf32>
    %57 = tpu.matmul %11, %41, %cst_62 {dimension_numbers = #tpu.dot_dimension_numbers<[1], [0], [0], [1], [0, 0, 1, 1], [], []>} : vector<104x32xbf16>, vector<32x64xbf16>, vector<104x64xf32> -> vector<104x64xf32>
    %58 = arith.addf %56, %57 : vector<104x64xf32>
    %cst_63 = arith.constant dense<0.000000e+00> : vector<104x64xf32>
    %59 = tpu.matmul %13, %43, %cst_63 {dimension_numbers = #tpu.dot_dimension_numbers<[1], [0], [0], [1], [0, 0, 1, 1], [], []>} : vector<104x32xbf16>, vector<32x64xbf16>, vector<104x64xf32> -> vector<104x64xf32>
    %60 = arith.addf %58, %59 : vector<104x64xf32>
    %cst_64 = arith.constant dense<0.000000e+00> : vector<104x64xf32>
    %61 = tpu.matmul %17, %45, %cst_64 {dimension_numbers = #tpu.dot_dimension_numbers<[1], [0], [0], [1], [0, 0, 1, 1], [], []>} : vector<104x32xbf16>, vector<32x64xbf16>, vector<104x64xf32> -> vector<104x64xf32>
    %62 = arith.addf %60, %61 : vector<104x64xf32>
    %cst_65 = arith.constant dense<0.000000e+00> : vector<104x64xf32>
    %63 = tpu.matmul %19, %47, %cst_65 {dimension_numbers = #tpu.dot_dimension_numbers<[1], [0], [0], [1], [0, 0, 1, 1], [], []>} : vector<104x32xbf16>, vector<32x64xbf16>, vector<104x64xf32> -> vector<104x64xf32>
    %64 = arith.addf %62, %63 : vector<104x64xf32>
    %cst_66 = arith.constant dense<0.000000e+00> : vector<104x64xf32>
    %65 = tpu.matmul %21, %49, %cst_66 {dimension_numbers = #tpu.dot_dimension_numbers<[1], [0], [0], [1], [0, 0, 1, 1], [], []>} : vector<104x32xbf16>, vector<32x64xbf16>, vector<104x64xf32> -> vector<104x64xf32>
    %66 = arith.addf %64, %65 : vector<104x64xf32>
    %cst_67 = arith.constant dense<0.000000e+00> : vector<104x64xf32>
    %67 = tpu.matmul %3, %33, %cst_67 {dimension_numbers = #tpu.dot_dimension_numbers<[1], [0], [0], [1], [0, 0, 1, 1], [], []>} : vector<104x32xbf16>, vector<32x64xbf16>, vector<104x64xf32> -> vector<104x64xf32>
    %cst_68 = arith.constant dense<0.000000e+00> : vector<104x64xf32>
    %68 = tpu.matmul %5, %35, %cst_68 {dimension_numbers = #tpu.dot_dimension_numbers<[1], [0], [0], [1], [0, 0, 1, 1], [], []>} : vector<104x32xbf16>, vector<32x64xbf16>, vector<104x64xf32> -> vector<104x64xf32>
    %69 = arith.addf %67, %68 : vector<104x64xf32>
    %cst_69 = arith.constant dense<0.000000e+00> : vector<104x64xf32>
    %70 = tpu.matmul %7, %37, %cst_69 {dimension_numbers = #tpu.dot_dimension_numbers<[1], [0], [0], [1], [0, 0, 1, 1], [], []>} : vector<104x32xbf16>, vector<32x64xbf16>, vector<104x64xf32> -> vector<104x64xf32>
    %71 = arith.addf %69, %70 : vector<104x64xf32>
    %cst_70 = arith.constant dense<0.000000e+00> : vector<104x64xf32>
    %72 = tpu.matmul %11, %39, %cst_70 {dimension_numbers = #tpu.dot_dimension_numbers<[1], [0], [0], [1], [0, 0, 1, 1], [], []>} : vector<104x32xbf16>, vector<32x64xbf16>, vector<104x64xf32> -> vector<104x64xf32>
    %73 = arith.addf %71, %72 : vector<104x64xf32>
    %cst_71 = arith.constant dense<0.000000e+00> : vector<104x64xf32>
    %74 = tpu.matmul %13, %41, %cst_71 {dimension_numbers = #tpu.dot_dimension_numbers<[1], [0], [0], [1], [0, 0, 1, 1], [], []>} : vector<104x32xbf16>, vector<32x64xbf16>, vector<104x64xf32> -> vector<104x64xf32>
    %75 = arith.addf %73, %74 : vector<104x64xf32>
    %cst_72 = arith.constant dense<0.000000e+00> : vector<104x64xf32>
    %76 = tpu.matmul %15, %43, %cst_72 {dimension_numbers = #tpu.dot_dimension_numbers<[1], [0], [0], [1], [0, 0, 1, 1], [], []>} : vector<104x32xbf16>, vector<32x64xbf16>, vector<104x64xf32> -> vector<104x64xf32>
    %77 = arith.addf %75, %76 : vector<104x64xf32>
    %cst_73 = arith.constant dense<0.000000e+00> : vector<104x64xf32>
    %78 = tpu.matmul %19, %45, %cst_73 {dimension_numbers = #tpu.dot_dimension_numbers<[1], [0], [0], [1], [0, 0, 1, 1], [], []>} : vector<104x32xbf16>, vector<32x64xbf16>, vector<104x64xf32> -> vector<104x64xf32>
    %79 = arith.addf %77, %78 : vector<104x64xf32>
    %cst_74 = arith.constant dense<0.000000e+00> : vector<104x64xf32>
    %80 = tpu.matmul %21, %47, %cst_74 {dimension_numbers = #tpu.dot_dimension_numbers<[1], [0], [0], [1], [0, 0, 1, 1], [], []>} : vector<104x32xbf16>, vector<32x64xbf16>, vector<104x64xf32> -> vector<104x64xf32>
    %81 = arith.addf %79, %80 : vector<104x64xf32>
    %cst_75 = arith.constant dense<0.000000e+00> : vector<104x64xf32>
    %82 = tpu.matmul %23, %49, %cst_75 {dimension_numbers = #tpu.dot_dimension_numbers<[1], [0], [0], [1], [0, 0, 1, 1], [], []>} : vector<104x32xbf16>, vector<32x64xbf16>, vector<104x64xf32> -> vector<104x64xf32>
    %83 = arith.addf %81, %82 : vector<104x64xf32>
    %84 = arith.maximumf %66, %83 : vector<104x64xf32>
    %cst_76 = arith.constant dense<0.000000e+00> : vector<104x64xf32>
    %85 = tpu.matmul %9, %33, %cst_76 {dimension_numbers = #tpu.dot_dimension_numbers<[1], [0], [0], [1], [0, 0, 1, 1], [], []>} : vector<104x32xbf16>, vector<32x64xbf16>, vector<104x64xf32> -> vector<104x64xf32>
    %cst_77 = arith.constant dense<0.000000e+00> : vector<104x64xf32>
    %86 = tpu.matmul %11, %35, %cst_77 {dimension_numbers = #tpu.dot_dimension_numbers<[1], [0], [0], [1], [0, 0, 1, 1], [], []>} : vector<104x32xbf16>, vector<32x64xbf16>, vector<104x64xf32> -> vector<104x64xf32>
    %87 = arith.addf %85, %86 : vector<104x64xf32>
    %cst_78 = arith.constant dense<0.000000e+00> : vector<104x64xf32>
    %88 = tpu.matmul %13, %37, %cst_78 {dimension_numbers = #tpu.dot_dimension_numbers<[1], [0], [0], [1], [0, 0, 1, 1], [], []>} : vector<104x32xbf16>, vector<32x64xbf16>, vector<104x64xf32> -> vector<104x64xf32>
    %89 = arith.addf %87, %88 : vector<104x64xf32>
    %cst_79 = arith.constant dense<0.000000e+00> : vector<104x64xf32>
    %90 = tpu.matmul %17, %39, %cst_79 {dimension_numbers = #tpu.dot_dimension_numbers<[1], [0], [0], [1], [0, 0, 1, 1], [], []>} : vector<104x32xbf16>, vector<32x64xbf16>, vector<104x64xf32> -> vector<104x64xf32>
    %91 = arith.addf %89, %90 : vector<104x64xf32>
    %cst_80 = arith.constant dense<0.000000e+00> : vector<104x64xf32>
    %92 = tpu.matmul %19, %41, %cst_80 {dimension_numbers = #tpu.dot_dimension_numbers<[1], [0], [0], [1], [0, 0, 1, 1], [], []>} : vector<104x32xbf16>, vector<32x64xbf16>, vector<104x64xf32> -> vector<104x64xf32>
    %93 = arith.addf %91, %92 : vector<104x64xf32>
    %cst_81 = arith.constant dense<0.000000e+00> : vector<104x64xf32>
    %94 = tpu.matmul %21, %43, %cst_81 {dimension_numbers = #tpu.dot_dimension_numbers<[1], [0], [0], [1], [0, 0, 1, 1], [], []>} : vector<104x32xbf16>, vector<32x64xbf16>, vector<104x64xf32> -> vector<104x64xf32>
    %95 = arith.addf %93, %94 : vector<104x64xf32>
    %cst_82 = arith.constant dense<0.000000e+00> : vector<104x64xf32>
    %96 = tpu.matmul %25, %45, %cst_82 {dimension_numbers = #tpu.dot_dimension_numbers<[1], [0], [0], [1], [0, 0, 1, 1], [], []>} : vector<104x32xbf16>, vector<32x64xbf16>, vector<104x64xf32> -> vector<104x64xf32>
    %97 = arith.addf %95, %96 : vector<104x64xf32>
    %cst_83 = arith.constant dense<0.000000e+00> : vector<104x64xf32>
    %98 = tpu.matmul %27, %47, %cst_83 {dimension_numbers = #tpu.dot_dimension_numbers<[1], [0], [0], [1], [0, 0, 1, 1], [], []>} : vector<104x32xbf16>, vector<32x64xbf16>, vector<104x64xf32> -> vector<104x64xf32>
    %99 = arith.addf %97, %98 : vector<104x64xf32>
    %cst_84 = arith.constant dense<0.000000e+00> : vector<104x64xf32>
    %100 = tpu.matmul %29, %49, %cst_84 {dimension_numbers = #tpu.dot_dimension_numbers<[1], [0], [0], [1], [0, 0, 1, 1], [], []>} : vector<104x32xbf16>, vector<32x64xbf16>, vector<104x64xf32> -> vector<104x64xf32>
    %101 = arith.addf %99, %100 : vector<104x64xf32>
    %102 = arith.maximumf %84, %101 : vector<104x64xf32>
    %cst_85 = arith.constant dense<0.000000e+00> : vector<104x64xf32>
    %103 = tpu.matmul %11, %33, %cst_85 {dimension_numbers = #tpu.dot_dimension_numbers<[1], [0], [0], [1], [0, 0, 1, 1], [], []>} : vector<104x32xbf16>, vector<32x64xbf16>, vector<104x64xf32> -> vector<104x64xf32>
    %cst_86 = arith.constant dense<0.000000e+00> : vector<104x64xf32>
    %104 = tpu.matmul %13, %35, %cst_86 {dimension_numbers = #tpu.dot_dimension_numbers<[1], [0], [0], [1], [0, 0, 1, 1], [], []>} : vector<104x32xbf16>, vector<32x64xbf16>, vector<104x64xf32> -> vector<104x64xf32>
    %105 = arith.addf %103, %104 : vector<104x64xf32>
    %cst_87 = arith.constant dense<0.000000e+00> : vector<104x64xf32>
    %106 = tpu.matmul %15, %37, %cst_87 {dimension_numbers = #tpu.dot_dimension_numbers<[1], [0], [0], [1], [0, 0, 1, 1], [], []>} : vector<104x32xbf16>, vector<32x64xbf16>, vector<104x64xf32> -> vector<104x64xf32>
    %107 = arith.addf %105, %106 : vector<104x64xf32>
    %cst_88 = arith.constant dense<0.000000e+00> : vector<104x64xf32>
    %108 = tpu.matmul %19, %39, %cst_88 {dimension_numbers = #tpu.dot_dimension_numbers<[1], [0], [0], [1], [0, 0, 1, 1], [], []>} : vector<104x32xbf16>, vector<32x64xbf16>, vector<104x64xf32> -> vector<104x64xf32>
    %109 = arith.addf %107, %108 : vector<104x64xf32>
    %cst_89 = arith.constant dense<0.000000e+00> : vector<104x64xf32>
    %110 = tpu.matmul %21, %41, %cst_89 {dimension_numbers = #tpu.dot_dimension_numbers<[1], [0], [0], [1], [0, 0, 1, 1], [], []>} : vector<104x32xbf16>, vector<32x64xbf16>, vector<104x64xf32> -> vector<104x64xf32>
    %111 = arith.addf %109, %110 : vector<104x64xf32>
    %cst_90 = arith.constant dense<0.000000e+00> : vector<104x64xf32>
    %112 = tpu.matmul %23, %43, %cst_90 {dimension_numbers = #tpu.dot_dimension_numbers<[1], [0], [0], [1], [0, 0, 1, 1], [], []>} : vector<104x32xbf16>, vector<32x64xbf16>, vector<104x64xf32> -> vector<104x64xf32>
    %113 = arith.addf %111, %112 : vector<104x64xf32>
    %cst_91 = arith.constant dense<0.000000e+00> : vector<104x64xf32>
    %114 = tpu.matmul %27, %45, %cst_91 {dimension_numbers = #tpu.dot_dimension_numbers<[1], [0], [0], [1], [0, 0, 1, 1], [], []>} : vector<104x32xbf16>, vector<32x64xbf16>, vector<104x64xf32> -> vector<104x64xf32>
    %115 = arith.addf %113, %114 : vector<104x64xf32>
    %cst_92 = arith.constant dense<0.000000e+00> : vector<104x64xf32>
    %116 = tpu.matmul %29, %47, %cst_92 {dimension_numbers = #tpu.dot_dimension_numbers<[1], [0], [0], [1], [0, 0, 1, 1], [], []>} : vector<104x32xbf16>, vector<32x64xbf16>, vector<104x64xf32> -> vector<104x64xf32>
    %117 = arith.addf %115, %116 : vector<104x64xf32>
    %cst_93 = arith.constant dense<0.000000e+00> : vector<104x64xf32>
    %118 = tpu.matmul %31, %49, %cst_93 {dimension_numbers = #tpu.dot_dimension_numbers<[1], [0], [0], [1], [0, 0, 1, 1], [], []>} : vector<104x32xbf16>, vector<32x64xbf16>, vector<104x64xf32> -> vector<104x64xf32>
    %119 = arith.addf %117, %118 : vector<104x64xf32>
    %120 = arith.maximumf %102, %119 : vector<104x64xf32>
    %c0_94 = arith.constant 0 : index
    %c0_95 = arith.constant 0 : index
    %121 = vector.load %arg3[%c0_94, %c0_95] : memref<1x64xf32, #tpu.memory_space<vmem>>, vector<1x64xf32>
    %122 = vector.broadcast %121 : vector<1x64xf32> to vector<104x64xf32>
    %123 = arith.addf %120, %122 : vector<104x64xf32>
    %cst_96 = arith.constant 0.000000e+00 : f32
    %124 = vector.broadcast %cst_96 : f32 to vector<104x64xf32>
    %125 = arith.maximumf %123, %124 : vector<104x64xf32>
    %126 = arith.truncf %125 : vector<104x64xf32> to vector<104x64xbf16>
    %c0_97 = arith.constant 0 : index
    %c0_98 = arith.constant 0 : index
    %127 = vector.load %arg4[%c0_97, %c0_98] : memref<104x64xbf16, #tpu.memory_space<vmem>>, vector<104x64xbf16>
    tpu.vector_store %arg4[%c0_97, %c0_98], %126 {strides = array<i32>} : memref<104x64xbf16, #tpu.memory_space<vmem>>, vector<104x64xbf16>,
    return
  }
  func.func @transform_0(%arg0: i32) -> (i32, i32, i32) {
    %c0_i32 = arith.constant 0 : i32
    %c0_i32_0 = arith.constant 0 : i32
    %c0_i32_1 = arith.constant 0 : i32
    return %c0_i32, %arg0, %c0_i32_0 : i32, i32, i32
  }
  func.func @transform_1(%arg0: i32) -> (i32, i32, i32) {
    %c0_i32 = arith.constant 0 : i32
    %c0_i32_0 = arith.constant 0 : i32
    %c0_i32_1 = arith.constant 0 : i32
    %c0_i32_2 = arith.constant 0 : i32
    return %c0_i32, %c0_i32_0, %c0_i32_1 : i32, i32, i32
  }
  func.func @transform_2(%arg0: i32) -> (i32, i32) {
    %c0_i32 = arith.constant 0 : i32
    %c0_i32_0 = arith.constant 0 : i32
    %c0_i32_1 = arith.constant 0 : i32
    return %c0_i32, %c0_i32_0 : i32, i32
  }
  func.func @transform_3(%arg0: i32) -> (i32, i32) {
    %c0_i32 = arith.constant 0 : i32
    %c0_i32_0 = arith.constant 0 : i32
    return %arg0, %c0_i32 : i32, i32
  }
}

module attributes {stable_mosaic.version = 11 : i64} {
  func.func @_mlp_head_kernel(%arg0: i32, %arg1: memref<8x3136xbf16, #tpu.memory_space<vmem>>, %arg2: memref<3136x128xbf16, #tpu.memory_space<vmem>>, %arg3: memref<1x128xf32, #tpu.memory_space<vmem>>, %arg4: memref<128x128xbf16, #tpu.memory_space<vmem>>, %arg5: memref<1x128xf32, #tpu.memory_space<vmem>>, %arg6: memref<8x128xf32, #tpu.memory_space<vmem>>) attributes {dimension_semantics = [#tpu.dimension_semantics<parallel>], iteration_bounds = array<i64: 1>, scalar_prefetch = 0 : i64, scratch_operands = 0 : i64, tpu.core_type = #tpu.core_type<tc>, window_params = [{transform_indices = @transform_0, window_bounds = array<i64: 8, 3136>}, {pipeline_mode = #tpu.pipeline_mode<synchronous>, transform_indices = @transform_1, window_bounds = array<i64: 3136, 128>}, {pipeline_mode = #tpu.pipeline_mode<synchronous>, transform_indices = @transform_2, window_bounds = array<i64: 1, 128>}, {pipeline_mode = #tpu.pipeline_mode<synchronous>, transform_indices = @transform_3, window_bounds = array<i64: 128, 128>}, {pipeline_mode = #tpu.pipeline_mode<synchronous>, transform_indices = @transform_4, window_bounds = array<i64: 1, 128>}, {transform_indices = @transform_5, window_bounds = array<i64: 8, 128>}]} {
    %c0 = arith.constant 0 : index
    %c0_0 = arith.constant 0 : index
    %0 = vector.load %arg1[%c0, %c0_0] : memref<8x3136xbf16, #tpu.memory_space<vmem>>, vector<8x3136xbf16>
    %c0_1 = arith.constant 0 : index
    %c0_2 = arith.constant 0 : index
    %1 = vector.load %arg2[%c0_1, %c0_2] : memref<3136x128xbf16, #tpu.memory_space<vmem>>, vector<3136x128xbf16>
    %cst = arith.constant dense<0.000000e+00> : vector<8x128xf32>
    %2 = tpu.matmul %0, %1, %cst {dimension_numbers = #tpu.dot_dimension_numbers<[1], [0], [0], [1], [0, 0, 1, 1], [], []>} : vector<8x3136xbf16>, vector<3136x128xbf16>, vector<8x128xf32> -> vector<8x128xf32>
    %c0_3 = arith.constant 0 : index
    %c0_4 = arith.constant 0 : index
    %3 = vector.load %arg3[%c0_3, %c0_4] : memref<1x128xf32, #tpu.memory_space<vmem>>, vector<1x128xf32>
    %4 = vector.broadcast %3 : vector<1x128xf32> to vector<8x128xf32>
    %5 = arith.addf %2, %4 : vector<8x128xf32>
    %cst_5 = arith.constant 0.000000e+00 : f32
    %6 = vector.broadcast %cst_5 : f32 to vector<8x128xf32>
    %7 = arith.maximumf %5, %6 : vector<8x128xf32>
    %8 = arith.truncf %7 : vector<8x128xf32> to vector<8x128xbf16>
    %c0_6 = arith.constant 0 : index
    %c0_7 = arith.constant 0 : index
    %9 = vector.load %arg4[%c0_6, %c0_7] : memref<128x128xbf16, #tpu.memory_space<vmem>>, vector<128x128xbf16>
    %cst_8 = arith.constant dense<0.000000e+00> : vector<8x128xf32>
    %10 = tpu.matmul %8, %9, %cst_8 {dimension_numbers = #tpu.dot_dimension_numbers<[1], [0], [0], [1], [0, 0, 1, 1], [], []>} : vector<8x128xbf16>, vector<128x128xbf16>, vector<8x128xf32> -> vector<8x128xf32>
    %c0_9 = arith.constant 0 : index
    %c0_10 = arith.constant 0 : index
    %11 = vector.load %arg5[%c0_9, %c0_10] : memref<1x128xf32, #tpu.memory_space<vmem>>, vector<1x128xf32>
    %12 = vector.broadcast %11 : vector<1x128xf32> to vector<8x128xf32>
    %13 = arith.addf %10, %12 : vector<8x128xf32>
    %c0_11 = arith.constant 0 : index
    %c0_12 = arith.constant 0 : index
    %14 = vector.load %arg6[%c0_11, %c0_12] : memref<8x128xf32, #tpu.memory_space<vmem>>, vector<8x128xf32>
    tpu.vector_store %arg6[%c0_11, %c0_12], %13 {strides = array<i32>} : memref<8x128xf32, #tpu.memory_space<vmem>>, vector<8x128xf32>,
    return
  }
  func.func @transform_0(%arg0: i32) -> (i32, i32) {
    %c0_i32 = arith.constant 0 : i32
    %c0_i32_0 = arith.constant 0 : i32
    return %arg0, %c0_i32 : i32, i32
  }
  func.func @transform_1(%arg0: i32) -> (i32, i32) {
    %c0_i32 = arith.constant 0 : i32
    %c0_i32_0 = arith.constant 0 : i32
    %c0_i32_1 = arith.constant 0 : i32
    return %c0_i32, %c0_i32_0 : i32, i32
  }
  func.func @transform_2(%arg0: i32) -> (i32, i32) {
    %c0_i32 = arith.constant 0 : i32
    %c0_i32_0 = arith.constant 0 : i32
    %c0_i32_1 = arith.constant 0 : i32
    return %c0_i32, %c0_i32_0 : i32, i32
  }
  func.func @transform_3(%arg0: i32) -> (i32, i32) {
    %c0_i32 = arith.constant 0 : i32
    %c0_i32_0 = arith.constant 0 : i32
    %c0_i32_1 = arith.constant 0 : i32
    return %c0_i32, %c0_i32_0 : i32, i32
  }
  func.func @transform_4(%arg0: i32) -> (i32, i32) {
    %c0_i32 = arith.constant 0 : i32
    %c0_i32_0 = arith.constant 0 : i32
    %c0_i32_1 = arith.constant 0 : i32
    return %c0_i32, %c0_i32_0 : i32, i32
  }
  func.func @transform_5(%arg0: i32) -> (i32, i32) {
    %c0_i32 = arith.constant 0 : i32
    %c0_i32_0 = arith.constant 0 : i32
    return %arg0, %c0_i32 : i32, i32
  }
}

</mosaic_0001>

<llo_original>
// kernel: cnn_forward.3
$region0: #{cnn_forward.3}
  #allocation0 [shape = 'u32[]', space=smem, size = 0x4, offset = 0x4, fixed_abs, tag = 'smem constant byte address 0x4 - core index']
  #allocation1 [shape = 'u32[144,128]{1,0:T(1,128)}', space=vmem, size = 0x12000, scoped, tag = 'internal scratch']
  %s0 = inlined_call_operand.vmem [shape: bf16[4,512,9], index: 0, kind: input, shape index: {}]
  %s1 = inlined_call_operand.vmem [shape: bf16[1,9,32], index: 1, kind: input, shape index: {}]
  %s2 = inlined_call_operand.vmem [shape: f32[1,32], index: 2, kind: input, shape index: {}]
  %s3 = inlined_call_operand.vmem [shape: bf16[512,32], index: 3, kind: output, shape index: {}]
  %s4 = sld [smem:[#allocation0]]
  $region86: #{cnn_forward.3} parent=0
    _
  %s6 = ssub.s32 1, %s4
  %s7 = scalar_select 0, %s6, %s4
  $region1: #{cnn_forward.3} parent=0
    #allocation2 [shape = 'u8[524288]{0}', space=vmem, size = 0x80000, scoped, tag = 'input window, operand 0']
    loop: start=0, step=1, limit=4
    $region2: #{cnn_forward.3} parent=1 // loop_pre_header
      _
    $region3: #{cnn_forward.3} parent=1 // loop_header
      %s9 = sphi 0, %s13
      %p10 = scmp.ge.s32.totalorder %s9, 4
      %s19 = sphi 0, %s21
      %s22 = sphi 0, %s19
      %s23 = sphi 0, %s22
      %s39 = sphi 0, %s23
      %s43 = sphi 0, %s43
      %s45 = sphi 0, %s43
      %s46 = sphi 0, %s45
      %s60 = sphi 0, %s46
      %s64 = sphi 0, %s64
      %s66 = sphi 0, %s64
      %s67 = sphi 0, %s66
      %s81 = sphi 0, %s67
      %s87 = sphi 0, %s89
      %s90 = sphi 0, %s87
      %s91 = sphi 0, %s90
      %s107 = sphi 0, %s91
    $region4: #{cnn_forward.3} parent=1 // loop_header_branch
      %12 = sbr.rel (%p10) target = $region8
    $region5: #{cnn_forward.3} parent=1 // loop_body
      %s14 = ssub.s32 %s9, 1
      %s15 = ssub.s32 %s9, 2
      %s16 = sadd.s32 %s9, 1
      %s17 = ssub.s32 %s9, %s16
      %p18 = scmp.eq.s32.totalorder %s17, 0
      %s20 = sadd.s32 %s19, 1
      %s21 = scalar_select %p18, %s19, %s20
      %p24 = pneg %p18
      %p25 = scmp.eq.s32.totalorder %s9, 1
      %p26 = por %p24, %p25
      %p27 = scmp.ne.s32.totalorder %s19, %s22
      %p28 = scmp.eq.s32.totalorder %s9, 0
      %p29 = por %p27, %p28
      %p30 = scmp.ne.s32.totalorder %s19, %s22
      %p31 = scmp.eq.s32.totalorder %s14, 1
      %p32 = por %p30, %p31
      %p33 = scmp.ne.s32.totalorder %s22, %s23
      %p34 = scmp.eq.s32.totalorder %s14, 0
      %p35 = por %p33, %p34
      %p36 = scmp.ne.s32.totalorder %s22, %s23
      %p37 = scmp.eq.s32.totalorder %s15, 1
      %p38 = por %p36, %p37
      %p40 = scmp.ne.s32.totalorder %s23, %s39
      %p41 = scmp.eq.s32.totalorder %s15, 0
      %p42 = por %p40, %p41
      %s44 = sadd.s32 %s43, 1
      %p47 = scmp.eq.s32.totalorder %s9, 1
      %p48 = scmp.ne.s32.totalorder %s43, %s45
      %p49 = scmp.eq.s32.totalorder %s9, 0
      %p50 = por %p48, %p49
      %p51 = scmp.ne.s32.totalorder %s43, %s45
      %p52 = scmp.eq.s32.totalorder %s14, 1
      %p53 = por %p51, %p52
      %p54 = scmp.ne.s32.totalorder %s45, %s46
      %p55 = scmp.eq.s32.totalorder %s14, 0
      %p56 = por %p54, %p55
      %p57 = scmp.ne.s32.totalorder %s45, %s46
      %p58 = scmp.eq.s32.totalorder %s15, 1
      %p59 = por %p57, %p58
      %p61 = scmp.ne.s32.totalorder %s46, %s60
      %p62 = scmp.eq.s32.totalorder %s15, 0
      %p63 = por %p61, %p62
      %s65 = sadd.s32 %s64, 1
      %p68 = scmp.eq.s32.totalorder %s9, 1
      %p69 = scmp.ne.s32.totalorder %s64, %s66
      %p70 = scmp.eq.s32.totalorder %s9, 0
      %p71 = por %p69, %p70
      %p72 = scmp.ne.s32.totalorder %s64, %s66
      %p73 = scmp.eq.s32.totalorder %s14, 1
      %p74 = por %p72, %p73
      %p75 = scmp.ne.s32.totalorder %s66, %s67
      %p76 = scmp.eq.s32.totalorder %s14, 0
      %p77 = por %p75, %p76
      %p78 = scmp.ne.s32.totalorder %s66, %s67
      %p79 = scmp.eq.s32.totalorder %s15, 1
      %p80 = por %p78, %p79
      %p82 = scmp.ne.s32.totalorder %s67, %s81
      %p83 = scmp.eq.s32.totalorder %s15, 0
      %p84 = por %p82, %p83
      %s85 = ssub.s32 %s9, %s16
      %p86 = scmp.eq.s32.totalorder %s85, 0
      %s88 = sadd.s32 %s87, 1
      %s89 = scalar_select %p86, %s87, %s88
      %p92 = pneg %p86
      %p93 = scmp.eq.s32.totalorder %s9, 1
      %p94 = por %p92, %p93
      %p95 = scmp.ne.s32.totalorder %s87, %s90
      %p96 = scmp.eq.s32.totalorder %s9, 0
      %p97 = por %p95, %p96
      %p98 = scmp.ne.s32.totalorder %s87, %s90
      %p99 = scmp.eq.s32.totalorder %s14, 1
      %p100 = por %p98, %p99
      %p101 = scmp.ne.s32.totalorder %s90, %s91
      %p102 = scmp.eq.s32.totalorder %s14, 0
      %p103 = por %p101, %p102
      %p104 = scmp.ne.s32.totalorder %s90, %s91
      %p105 = scmp.eq.s32.totalorder %s15, 1
      %p106 = por %p104, %p105
      %p108 = scmp.ne.s32.totalorder %s91, %s107
      %p109 = scmp.eq.s32.totalorder %s15, 0
      %p110 = por %p108, %p109
      %p111 = scmp.le.s32.totalorder 1, %s9
      %p112 = scmp.lt.s32.totalorder %s9, 3
      %p113 = pnand %p111, %p112
      %p114 = pneg %p113
      // Predicated region
      $region9: #{cnn_forward.3} parent=5 // pred_check
        _
      $region10: #{cnn_forward.3} parent=5 // pred_check_branch
        %116 = sbr.rel (%p113) target = $region12
      $region11: #{cnn_forward.3} parent=5 // pred_region
        %s117 = ssub.s32 %s9, 1
        // Predicated region
        $region13: #{cnn_forward.3} parent=11 // pred_check
          %p118 = pneg %p56
        $region14: #{cnn_forward.3} parent=11 // pred_check_branch
          %120 = sbr.rel (%p118) target = $region16
        $region15: #{cnn_forward.3} parent=11 // pred_region
          _
        $region16: #{cnn_forward.3} parent=11 // pred_fallthru
          _
        // Predicated region
        $region17: #{cnn_forward.3} parent=11 // pred_check
          %p121 = pneg %p77
        $region18: #{cnn_forward.3} parent=11 // pred_check_branch
          %123 = sbr.rel (%p121) target = $region20
        $region19: #{cnn_forward.3} parent=11 // pred_region
          _
        $region20: #{cnn_forward.3} parent=11 // pred_fallthru
          _
      $region12: #{cnn_forward.3} parent=5 // pred_fallthru
        _
      %p124 = scmp.lt.s32.totalorder %s9, 2
      // Predicated region
      $region21: #{cnn_forward.3} parent=5 // pred_check
        %p125 = pneg %p124
      $region22: #{cnn_forward.3} parent=5 // pred_check_branch
        %127 = sbr.rel (%p125) target = $region24
      $region23: #{cnn_forward.3} parent=5 // pred_region
        // Predicated region
        $region25: #{cnn_forward.3} parent=23 // pred_check
          %p128 = pneg %p29
        $region26: #{cnn_forward.3} parent=23 // pred_check_branch
          %130 = sbr.rel (%p128) target = $region28
        $region27: #{cnn_forward.3} parent=23 // pred_region
          %s131 = sand.u32 %s19, 1
          %s132 = sand.u32 %s19, 1
          %s133 = smul.addr %s132, 512
          %s134 = scalar_lea.vmem [#allocation2], %s133
          %s135 = smul.u32 32, %s9
          %s136 = smul.addr %s135, 4
          %s137 = scalar_lea.vmem %s0, %s136
          // Predicated region
          $region29: #{cnn_forward.3} parent=27 // pred_check
            _
          $region30: #{cnn_forward.3} parent=27 // pred_check_branch
            %139 = sbr.rel (0) target = $region32
          $region31: #{cnn_forward.3} parent=27 // pred_region
            // Predicated region
            $region33: #{cnn_forward.3} parent=31 // pred_check
              _
            $region34: #{cnn_forward.3} parent=31 // pred_check_branch
              %141 = sbr.rel target = $region36
            $region35: #{cnn_forward.3} parent=31 // pred_region
              // Predicated region
              $region48: #{cnn_forward.3} parent=35 // pred_check
                _
              $region49: #{cnn_forward.3} parent=35 // pred_check_branch
                %410 = sbr.rel (0) target = $region51
              $region50: #{cnn_forward.3} parent=35 // pred_region
                loop: start=0, step=1, limit=1
                $region52: #{cnn_forward.3} parent=50 // loop_pre_header
                  _
                $region53: #{cnn_forward.3} parent=50 // loop_header
                  %s412 = sphi 0, %s416
                  %p413 = scmp.ge.s32.totalorder %s412, 1
                  %s417 = sphi %s137, %s137
                  %s418 = sphi %s134, %s134
                $region54: #{cnn_forward.3} parent=50 // loop_header_branch
                  %415 = sbr.rel (%p413) target = $region58
                $region55: #{cnn_forward.3} parent=50 // loop_body
                  _
                $region56: #{cnn_forward.3} parent=50 // loop_footer
                  %s416 = sadd.s32 1, %s412
                $region57: #{cnn_forward.3} parent=50 // loop_footer_branch
                  %411 = sbr.rel target = $region53
                $region58: #{cnn_forward.3} parent=50 // loop_exit
                  _
                loop: start=0, step=1, limit=1
                $region59: #{cnn_forward.3} parent=50 // loop_pre_header
                  _
                $region60: #{cnn_forward.3} parent=50 // loop_header
                  %s421 = sphi 0, %s425
                  %p422 = scmp.ge.s32.totalorder %s421, 1
                  %s426 = sphi %s137, %s137
                  %s427 = sphi %s134, %s134
                $region61: #{cnn_forward.3} parent=50 // loop_header_branch
                  %424 = sbr.rel (%p422) target = $region65
                $region62: #{cnn_forward.3} parent=50 // loop_body
                  %v428 = vld [vmem:[%s426] sm:$0xf]
                  %429 = vst [vmem:[%s427] sm:$0xf] %v428
                  %v430 = vld [vmem:[%s426 + $0x4] sm:$0xf]
                  %431 = vst [vmem:[%s427 + $0x4] sm:$0xf] %v430
                  %v432 = vld [vmem:[%s426 + $0x8] sm:$0xf]
                  %433 = vst [vmem:[%s427 + $0x8] sm:$0xf] %v432
                  %v434 = vld [vmem:[%s426 + $0xc] sm:$0xf]
                  %435 = vst [vmem:[%s427 + $0xc] sm:$0xf] %v434
                  %v436 = vld [vmem:[%s426 + $0x10] sm:$0xf]
                  %437 = vst [vmem:[%s427 + $0x10] sm:$0xf] %v436
                  %v438 = vld [vmem:[%s426 + $0x14] sm:$0xf]
                  %439 = vst [vmem:[%s427 + $0x14] sm:$0xf] %v438
                  %v440 = vld [vmem:[%s426 + $0x18] sm:$0xf]
                  %441 = vst [vmem:[%s427 + $0x18] sm:$0xf] %v440
                  %v442 = vld [vmem:[%s426 + $0x1c] sm:$0xf]
                  %443 = vst [vmem:[%s427 + $0x1c] sm:$0xf] %v442
                  %v444 = vld [vmem:[%s426 + $0x20] sm:$0xf]
                  %445 = vst [vmem:[%s427 + $0x20] sm:$0xf] %v444
                  %v446 = vld [vmem:[%s426 + $0x24] sm:$0xf]
                  %447 = vst [vmem:[%s427 + $0x24] sm:$0xf] %v446
                  %v448 = vld [vmem:[%s426 + $0x28] sm:$0xf]
                  %449 = vst [vmem:[%s427 + $0x28] sm:$0xf] %v448
                  %v450 = vld [vmem:[%s426 + $0x2c] sm:$0xf]
                  %451 = vst [vmem:[%s427 + $0x2c] sm:$0xf] %v450
                  %v452 = vld [vmem:[%s426 + $0x30] sm:$0xf]
                  %453 = vst [vmem:[%s427 + $0x30] sm:$0xf] %v452
                  %v454 = vld [vmem:[%s426 + $0x34] sm:$0xf]
                  %455 = vst [vmem:[%s427 + $0x34] sm:$0xf] %v454
                  %v456 = vld [vmem:[%s426 + $0x38] sm:$0xf]
                  %457 = vst [vmem:[%s427 + $0x38] sm:$0xf] %v456
                  %v458 = vld [vmem:[%s426 + $0x3c] sm:$0xf]
                  %459 = vst [vmem:[%s427 + $0x3c] sm:$0xf] %v458
                  %v460 = vld [vmem:[%s426 + $0x40] sm:$0xf]
                  %461 = vst [vmem:[%s427 + $0x40] sm:$0xf] %v460
                  %v462 = vld [vmem:[%s426 + $0x44] sm:$0xf]
                  %463 = vst [vmem:[%s427 + $0x44] sm:$0xf] %v462
                  %v464 = vld [vmem:[%s426 + $0x48] sm:$0xf]
                  %465 = vst [vmem:[%s427 + $0x48] sm:$0xf] %v464
                  %v466 = vld [vmem:[%s426 + $0x4c] sm:$0xf]
                  %467 = vst [vmem:[%s427 + $0x4c] sm:$0xf] %v466
                  %v468 = vld [vmem:[%s426 + $0x50] sm:$0xf]
                  %469 = vst [vmem:[%s427 + $0x50] sm:$0xf] %v468
                  %v470 = vld [vmem:[%s426 + $0x54] sm:$0xf]
                  %471 = vst [vmem:[%s427 + $0x54] sm:$0xf] %v470
                  %v472 = vld [vmem:[%s426 + $0x58] sm:$0xf]
                  %473 = vst [vmem:[%s427 + $0x58] sm:$0xf] %v472
                  %v474 = vld [vmem:[%s426 + $0x5c] sm:$0xf]
                  %475 = vst [vmem:[%s427 + $0x5c] sm:$0xf] %v474
                  %v476 = vld [vmem:[%s426 + $0x60] sm:$0xf]
                  %477 = vst [vmem:[%s427 + $0x60] sm:$0xf] %v476
                  %v478 = vld [vmem:[%s426 + $0x64] sm:$0xf]
                  %479 = vst [vmem:[%s427 + $0x64] sm:$0xf] %v478
                  %v480 = vld [vmem:[%s426 + $0x68] sm:$0xf]
                  %481 = vst [vmem:[%s427 + $0x68] sm:$0xf] %v480
                  %v482 = vld [vmem:[%s426 + $0x6c] sm:$0xf]
                  %483 = vst [vmem:[%s427 + $0x6c] sm:$0xf] %v482
                  %v484 = vld [vmem:[%s426 + $0x70] sm:$0xf]
                  %485 = vst [vmem:[%s427 + $0x70] sm:$0xf] %v484
                  %v486 = vld [vmem:[%s426 + $0x74] sm:$0xf]
                  %487 = vst [vmem:[%s427 + $0x74] sm:$0xf] %v486
                  %v488 = vld [vmem:[%s426 + $0x78] sm:$0xf]
                  %489 = vst [vmem:[%s427 + $0x78] sm:$0xf] %v488
                  %v490 = vld [vmem:[%s426 + $0x7c] sm:$0xf]
                  %491 = vst [vmem:[%s427 + $0x7c] sm:$0xf] %v490
                  %v492 = vld [vmem:[%s426 + $0x100] sm:$0xf]
                  %493 = vst [vmem:[%s427 + $0x80] sm:$0xf] %v492
                  %v494 = vld [vmem:[%s426 + $0x104] sm:$0xf]
                  %495 = vst [vmem:[%s427 + $0x84] sm:$0xf] %v494
                  %v496 = vld [vmem:[%s426 + $0x108] sm:$0xf]
                  %497 = vst [vmem:[%s427 + $0x88] sm:$0xf] %v496
                  %v498 = vld [vmem:[%s426 + $0x10c] sm:$0xf]
                  %499 = vst [vmem:[%s427 + $0x8c] sm:$0xf] %v498
                  %v500 = vld [vmem:[%s426 + $0x110] sm:$0xf]
                  %501 = vst [vmem:[%s427 + $0x90] sm:$0xf] %v500
                  %v502 = vld [vmem:[%s426 + $0x114] sm:$0xf]
                  %503 = vst [vmem:[%s427 + $0x94] sm:$0xf] %v502
                  %v504 = vld [vmem:[%s426 + $0x118] sm:$0xf]
                  %505 = vst [vmem:[%s427 + $0x98] sm:$0xf] %v504
                  %v506 = vld [vmem:[%s426 + $0x11c] sm:$0xf]
                  %507 = vst [vmem:[%s427 + $0x9c] sm:$0xf] %v506
                  %v508 = vld [vmem:[%s426 + $0x120] sm:$0xf]
                  %509 = vst [vmem:[%s427 + $0xa0] sm:$0xf] %v508
                  %v510 = vld [vmem:[%s426 + $0x124] sm:$0xf]
                  %511 = vst [vmem:[%s427 + $0xa4] sm:$0xf] %v510
                  %v512 = vld [vmem:[%s426 + $0x128] sm:$0xf]
                  %513 = vst [vmem:[%s427 + $0xa8] sm:$0xf] %v512
                  %v514 = vld [vmem:[%s426 + $0x12c] sm:$0xf]
                  %515 = vst [vmem:[%s427 + $0xac] sm:$0xf] %v514
                  %v516 = vld [vmem:[%s426 + $0x130] sm:$0xf]
                  %517 = vst [vmem:[%s427 + $0xb0] sm:$0xf] %v516
                  %v518 = vld [vmem:[%s426 + $0x134] sm:$0xf]
                  %519 = vst [vmem:[%s427 + $0xb4] sm:$0xf] %v518
                  %v520 = vld [vmem:[%s426 + $0x138] sm:$0xf]
                  %521 = vst [vmem:[%s427 + $0xb8] sm:$0xf] %v520
                  %v522 = vld [vmem:[%s426 + $0x13c] sm:$0xf]
                  %523 = vst [vmem:[%s427 + $0xbc] sm:$0xf] %v522
                  %v524 = vld [vmem:[%s426 + $0x140] sm:$0xf]
                  %525 = vst [vmem:[%s427 + $0xc0] sm:$0xf] %v524
                  %v526 = vld [vmem:[%s426 + $0x144] sm:$0xf]
                  %527 = vst [vmem:[%s427 + $0xc4] sm:$0xf] %v526
                  %v528 = vld [vmem:[%s426 + $0x148] sm:$0xf]
                  %529 = vst [vmem:[%s427 + $0xc8] sm:$0xf] %v528
                  %v530 = vld [vmem:[%s426 + $0x14c] sm:$0xf]
                  %531 = vst [vmem:[%s427 + $0xcc] sm:$0xf] %v530
                  %v532 = vld [vmem:[%s426 + $0x150] sm:$0xf]
                  %533 = vst [vmem:[%s427 + $0xd0] sm:$0xf] %v532
                  %v534 = vld [vmem:[%s426 + $0x154] sm:$0xf]
                  %535 = vst [vmem:[%s427 + $0xd4] sm:$0xf] %v534
                  %v536 = vld [vmem:[%s426 + $0x158] sm:$0xf]
                  %537 = vst [vmem:[%s427 + $0xd8] sm:$0xf] %v536
                  %v538 = vld [vmem:[%s426 + $0x15c] sm:$0xf]
                  %539 = vst [vmem:[%s427 + $0xdc] sm:$0xf] %v538
                  %v540 = vld [vmem:[%s426 + $0x160] sm:$0xf]
                  %541 = vst [vmem:[%s427 + $0xe0] sm:$0xf] %v540
                  %v542 = vld [vmem:[%s426 + $0x164] sm:$0xf]
                  %543 = vst [vmem:[%s427 + $0xe4] sm:$0xf] %v542
                  %v544 = vld [vmem:[%s426 + $0x168] sm:$0xf]
                  %545 = vst [vmem:[%s427 + $0xe8] sm:$0xf] %v544
                  %v546 = vld [vmem:[%s426 + $0x16c] sm:$0xf]
                  %547 = vst [vmem:[%s427 + $0xec] sm:$0xf] %v546
                  %v548 = vld [vmem:[%s426 + $0x170] sm:$0xf]
                  %549 = vst [vmem:[%s427 + $0xf0] sm:$0xf] %v548
                  %v550 = vld [vmem:[%s426 + $0x174] sm:$0xf]
                  %551 = vst [vmem:[%s427 + $0xf4] sm:$0xf] %v550
                  %v552 = vld [vmem:[%s426 + $0x178] sm:$0xf]
                  %553 = vst [vmem:[%s427 + $0xf8] sm:$0xf] %v552
                  %v554 = vld [vmem:[%s426 + $0x17c] sm:$0xf]
                  %555 = vst [vmem:[%s427 + $0xfc] sm:$0xf] %v554
                  %v556 = vld [vmem:[%s426 + $0x200] sm:$0xf]
                  %557 = vst [vmem:[%s427 + $0x100] sm:$0xf] %v556
                  %v558 = vld [vmem:[%s426 + $0x204] sm:$0xf]
                  %559 = vst [vmem:[%s427 + $0x104] sm:$0xf] %v558
                  %v560 = vld [vmem:[%s426 + $0x208] sm:$0xf]
                  %561 = vst [vmem:[%s427 + $0x108] sm:$0xf] %v560
                  %v562 = vld [vmem:[%s426 + $0x20c] sm:$0xf]
                  %563 = vst [vmem:[%s427 + $0x10c] sm:$0xf] %v562
                  %v564 = vld [vmem:[%s426 + $0x210] sm:$0xf]
                  %565 = vst [vmem:[%s427 + $0x110] sm:$0xf] %v564
                  %v566 = vld [vmem:[%s426 + $0x214] sm:$0xf]
                  %567 = vst [vmem:[%s427 + $0x114] sm:$0xf] %v566
                  %v568 = vld [vmem:[%s426 + $0x218] sm:$0xf]
                  %569 = vst [vmem:[%s427 + $0x118] sm:$0xf] %v568
                  %v570 = vld [vmem:[%s426 + $0x21c] sm:$0xf]
                  %571 = vst [vmem:[%s427 + $0x11c] sm:$0xf] %v570
                  %v572 = vld [vmem:[%s426 + $0x220] sm:$0xf]
                  %573 = vst [vmem:[%s427 + $0x120] sm:$0xf] %v572
                  %v574 = vld [vmem:[%s426 + $0x224] sm:$0xf]
                  %575 = vst [vmem:[%s427 + $0x124] sm:$0xf] %v574
                  %v576 = vld [vmem:[%s426 + $0x228] sm:$0xf]
                  %577 = vst [vmem:[%s427 + $0x128] sm:$0xf] %v576
                  %v578 = vld [vmem:[%s426 + $0x22c] sm:$0xf]
                  %579 = vst [vmem:[%s427 + $0x12c] sm:$0xf] %v578
                  %v580 = vld [vmem:[%s426 + $0x230] sm:$0xf]
                  %581 = vst [vmem:[%s427 + $0x130] sm:$0xf] %v580
                  %v582 = vld [vmem:[%s426 + $0x234] sm:$0xf]
                  %583 = vst [vmem:[%s427 + $0x134] sm:$0xf] %v582
                  %v584 = vld [vmem:[%s426 + $0x238] sm:$0xf]
                  %585 = vst [vmem:[%s427 + $0x138] sm:$0xf] %v584
                  %v586 = vld [vmem:[%s426 + $0x23c] sm:$0xf]
                  %587 = vst [vmem:[%s427 + $0x13c] sm:$0xf] %v586
                  %v588 = vld [vmem:[%s426 + $0x240] sm:$0xf]
                  %589 = vst [vmem:[%s427 + $0x140] sm:$0xf] %v588
                  %v590 = vld [vmem:[%s426 + $0x244] sm:$0xf]
                  %591 = vst [vmem:[%s427 + $0x144] sm:$0xf] %v590
                  %v592 = vld [vmem:[%s426 + $0x248] sm:$0xf]
                  %593 = vst [vmem:[%s427 + $0x148] sm:$0xf] %v592
                  %v594 = vld [vmem:[%s426 + $0x24c] sm:$0xf]
                  %595 = vst [vmem:[%s427 + $0x14c] sm:$0xf] %v594
                  %v596 = vld [vmem:[%s426 + $0x250] sm:$0xf]
                  %597 = vst [vmem:[%s427 + $0x150] sm:$0xf] %v596
                  %v598 = vld [vmem:[%s426 + $0x254] sm:$0xf]
                  %599 = vst [vmem:[%s427 + $0x154] sm:$0xf] %v598
                  %v600 = vld [vmem:[%s426 + $0x258] sm:$0xf]
                  %601 = vst [vmem:[%s427 + $0x158] sm:$0xf] %v600
                  %v602 = vld [vmem:[%s426 + $0x25c] sm:$0xf]
                  %603 = vst [vmem:[%s427 + $0x15c] sm:$0xf] %v602
                  %v604 = vld [vmem:[%s426 + $0x260] sm:$0xf]
                  %605 = vst [vmem:[%s427 + $0x160] sm:$0xf] %v604
                  %v606 = vld [vmem:[%s426 + $0x264] sm:$0xf]
                  %607 = vst [vmem:[%s427 + $0x164] sm:$0xf] %v606
                  %v608 = vld [vmem:[%s426 + $0x268] sm:$0xf]
                  %609 = vst [vmem:[%s427 + $0x168] sm:$0xf] %v608
                  %v610 = vld [vmem:[%s426 + $0x26c] sm:$0xf]
                  %611 = vst [vmem:[%s427 + $0x16c] sm:$0xf] %v610
                  %v612 = vld [vmem:[%s426 + $0x270] sm:$0xf]
                  %613 = vst [vmem:[%s427 + $0x170] sm:$0xf] %v612
                  %v614 = vld [vmem:[%s426 + $0x274] sm:$0xf]
                  %615 = vst [vmem:[%s427 + $0x174] sm:$0xf] %v614
                  %v616 = vld [vmem:[%s426 + $0x278] sm:$0xf]
                  %617 = vst [vmem:[%s427 + $0x178] sm:$0xf] %v616
                  %v618 = vld [vmem:[%s426 + $0x27c] sm:$0xf]
                  %619 = vst [vmem:[%s427 + $0x17c] sm:$0xf] %v618
                  %v620 = vld [vmem:[%s426 + $0x300] sm:$0xf]
                  %621 = vst [vmem:[%s427 + $0x180] sm:$0xf] %v620
                  %v622 = vld [vmem:[%s426 + $0x304] sm:$0xf]
                  %623 = vst [vmem:[%s427 + $0x184] sm:$0xf] %v622
                  %v624 = vld [vmem:[%s426 + $0x308] sm:$0xf]
                  %625 = vst [vmem:[%s427 + $0x188] sm:$0xf] %v624
                  %v626 = vld [vmem:[%s426 + $0x30c] sm:$0xf]
                  %627 = vst [vmem:[%s427 + $0x18c] sm:$0xf] %v626
                  %v628 = vld [vmem:[%s426 + $0x310] sm:$0xf]
                  %629 = vst [vmem:[%s427 + $0x190] sm:$0xf] %v628
                  %v630 = vld [vmem:[%s426 + $0x314] sm:$0xf]
                  %631 = vst [vmem:[%s427 + $0x194] sm:$0xf] %v630
                  %v632 = vld [vmem:[%s426 + $0x318] sm:$0xf]
                  %633 = vst [vmem:[%s427 + $0x198] sm:$0xf] %v632
                  %v634 = vld [vmem:[%s426 + $0x31c] sm:$0xf]
                  %635 = vst [vmem:[%s427 + $0x19c] sm:$0xf] %v634
                  %v636 = vld [vmem:[%s426 + $0x320] sm:$0xf]
                  %637 = vst [vmem:[%s427 + $0x1a0] sm:$0xf] %v636
                  %v638 = vld [vmem:[%s426 + $0x324] sm:$0xf]
                  %639 = vst [vmem:[%s427 + $0x1a4] sm:$0xf] %v638
                  %v640 = vld [vmem:[%s426 + $0x328] sm:$0xf]
                  %641 = vst [vmem:[%s427 + $0x1a8] sm:$0xf] %v640
                  %v642 = vld [vmem:[%s426 + $0x32c] sm:$0xf]
                  %643 = vst [vmem:[%s427 + $0x1ac] sm:$0xf] %v642
                  %v644 = vld [vmem:[%s426 + $0x330] sm:$0xf]
                  %645 = vst [vmem:[%s427 + $0x1b0] sm:$0xf] %v644
                  %v646 = vld [vmem:[%s426 + $0x334] sm:$0xf]
                  %647 = vst [vmem:[%s427 + $0x1b4] sm:$0xf] %v646
                  %v648 = vld [vmem:[%s426 + $0x338] sm:$0xf]
                  %649 = vst [vmem:[%s427 + $0x1b8] sm:$0xf] %v648
                  %v650 = vld [vmem:[%s426 + $0x33c] sm:$0xf]
                  %651 = vst [vmem:[%s427 + $0x1bc] sm:$0xf] %v650
                  %v652 = vld [vmem:[%s426 + $0x340] sm:$0xf]
                  %653 = vst [vmem:[%s427 + $0x1c0] sm:$0xf] %v652
                  %v654 = vld [vmem:[%s426 + $0x344] sm:$0xf]
                  %655 = vst [vmem:[%s427 + $0x1c4] sm:$0xf] %v654
                  %v656 = vld [vmem:[%s426 + $0x348] sm:$0xf]
                  %657 = vst [vmem:[%s427 + $0x1c8] sm:$0xf] %v656
                  %v658 = vld [vmem:[%s426 + $0x34c] sm:$0xf]
                  %659 = vst [vmem:[%s427 + $0x1cc] sm:$0xf] %v658
                  %v660 = vld [vmem:[%s426 + $0x350] sm:$0xf]
                  %661 = vst [vmem:[%s427 + $0x1d0] sm:$0xf] %v660
                  %v662 = vld [vmem:[%s426 + $0x354] sm:$0xf]
                  %663 = vst [vmem:[%s427 + $0x1d4] sm:$0xf] %v662
                  %v664 = vld [vmem:[%s426 + $0x358] sm:$0xf]
                  %665 = vst [vmem:[%s427 + $0x1d8] sm:$0xf] %v664
                  %v666 = vld [vmem:[%s426 + $0x35c] sm:$0xf]
                  %667 = vst [vmem:[%s427 + $0x1dc] sm:$0xf] %v666
                  %v668 = vld [vmem:[%s426 + $0x360] sm:$0xf]
                  %669 = vst [vmem:[%s427 + $0x1e0] sm:$0xf] %v668
                  %v670 = vld [vmem:[%s426 + $0x364] sm:$0xf]
                  %671 = vst [vmem:[%s427 + $0x1e4] sm:$0xf] %v670
                  %v672 = vld [vmem:[%s426 + $0x368] sm:$0xf]
                  %673 = vst [vmem:[%s427 + $0x1e8] sm:$0xf] %v672
                  %v674 = vld [vmem:[%s426 + $0x36c] sm:$0xf]
                  %675 = vst [vmem:[%s427 + $0x1ec] sm:$0xf] %v674
                  %v676 = vld [vmem:[%s426 + $0x370] sm:$0xf]
                  %677 = vst [vmem:[%s427 + $0x1f0] sm:$0xf] %v676
                  %v678 = vld [vmem:[%s426 + $0x374] sm:$0xf]
                  %679 = vst [vmem:[%s427 + $0x1f4] sm:$0xf] %v678
                  %v680 = vld [vmem:[%s426 + $0x378] sm:$0xf]
                  %681 = vst [vmem:[%s427 + $0x1f8] sm:$0xf] %v680
                  %v682 = vld [vmem:[%s426 + $0x37c] sm:$0xf]
                  %683 = vst [vmem:[%s427 + $0x1fc] sm:$0xf] %v682
                $region63: #{cnn_forward.3} parent=50 // loop_footer
                  %s425 = sadd.s32 1, %s421
                $region64: #{cnn_forward.3} parent=50 // loop_footer_branch
                  %420 = sbr.rel target = $region60
                $region65: #{cnn_forward.3} parent=50 // loop_exit
                  _
              $region51: #{cnn_forward.3} parent=35 // pred_fallthru
                _
            $region36: #{cnn_forward.3} parent=31 // pred_fallthru
              _
            // Predicated region
            $region37: #{cnn_forward.3} parent=31 // pred_check
              _
            $region38: #{cnn_forward.3} parent=31 // pred_check_branch
              %143 = sbr.rel (0) target = $region40
            $region39: #{cnn_forward.3} parent=31 // pred_region
              loop: start=0, step=1, limit=1
              $region41: #{cnn_forward.3} parent=39 // loop_pre_header
                _
              $region42: #{cnn_forward.3} parent=39 // loop_header
                %s146 = sphi 0, %s150
                %p147 = scmp.ge.s32.totalorder %s146, 1
                %s151 = sphi %s137, %s137
                %s152 = sphi %s134, %s134
              $region43: #{cnn_forward.3} parent=39 // loop_header_branch
                %149 = sbr.rel (%p147) target = $region47
              $region44: #{cnn_forward.3} parent=39 // loop_body
                %v153 = vld [vmem:[%s151] sm:$0xf]
                %154 = vst [vmem:[%s152] sm:$0xf] %v153
                %v155 = vld [vmem:[%s151 + $0x4] sm:$0xf]
                %156 = vst [vmem:[%s152 + $0x4] sm:$0xf] %v155
                %v157 = vld [vmem:[%s151 + $0x8] sm:$0xf]
                %158 = vst [vmem:[%s152 + $0x8] sm:$0xf] %v157
                %v159 = vld [vmem:[%s151 + $0xc] sm:$0xf]
                %160 = vst [vmem:[%s152 + $0xc] sm:$0xf] %v159
                %v161 = vld [vmem:[%s151 + $0x10] sm:$0xf]
                %162 = vst [vmem:[%s152 + $0x10] sm:$0xf] %v161
                %v163 = vld [vmem:[%s151 + $0x14] sm:$0xf]
                %164 = vst [vmem:[%s152 + $0x14] sm:$0xf] %v163
                %v165 = vld [vmem:[%s151 + $0x18] sm:$0xf]
                %166 = vst [vmem:[%s152 + $0x18] sm:$0xf] %v165
                %v167 = vld [vmem:[%s151 + $0x1c] sm:$0xf]
                %168 = vst [vmem:[%s152 + $0x1c] sm:$0xf] %v167
                %v169 = vld [vmem:[%s151 + $0x20] sm:$0xf]
                %170 = vst [vmem:[%s152 + $0x20] sm:$0xf] %v169
                %v171 = vld [vmem:[%s151 + $0x24] sm:$0xf]
                %172 = vst [vmem:[%s152 + $0x24] sm:$0xf] %v171
                %v173 = vld [vmem:[%s151 + $0x28] sm:$0xf]
                %174 = vst [vmem:[%s152 + $0x28] sm:$0xf] %v173
                %v175 = vld [vmem:[%s151 + $0x2c] sm:$0xf]
                %176 = vst [vmem:[%s152 + $0x2c] sm:$0xf] %v175
                %v177 = vld [vmem:[%s151 + $0x30] sm:$0xf]
                %178 = vst [vmem:[%s152 + $0x30] sm:$0xf] %v177
                %v179 = vld [vmem:[%s151 + $0x34] sm:$0xf]
                %180 = vst [vmem:[%s152 + $0x34] sm:$0xf] %v179
                %v181 = vld [vmem:[%s151 + $0x38] sm:$0xf]
                %182 = vst [vmem:[%s152 + $0x38] sm:$0xf] %v181
                %v183 = vld [vmem:[%s151 + $0x3c] sm:$0xf]
                %184 = vst [vmem:[%s152 + $0x3c] sm:$0xf] %v183
                %v185 = vld [vmem:[%s151 + $0x40] sm:$0xf]
                %186 = vst [vmem:[%s152 + $0x40] sm:$0xf] %v185
                %v187 = vld [vmem:[%s151 + $0x44] sm:$0xf]
                %188 = vst [vmem:[%s152 + $0x44] sm:$0xf] %v187
                %v189 = vld [vmem:[%s151 + $0x48] sm:$0xf]
                %190 = vst [vmem:[%s152 + $0x48] sm:$0xf] %v189
                %v191 = vld [vmem:[%s151 + $0x4c] sm:$0xf]
                %192 = vst [vmem:[%s152 + $0x4c] sm:$0xf] %v191
                %v193 = vld [vmem:[%s151 + $0x50] sm:$0xf]
                %194 = vst [vmem:[%s152 + $0x50] sm:$0xf] %v193
                %v195 = vld [vmem:[%s151 + $0x54] sm:$0xf]
                %196 = vst [vmem:[%s152 + $0x54] sm:$0xf] %v195
                %v197 = vld [vmem:[%s151 + $0x58] sm:$0xf]
                %198 = vst [vmem:[%s152 + $0x58] sm:$0xf] %v197
                %v199 = vld [vmem:[%s151 + $0x5c] sm:$0xf]
                %200 = vst [vmem:[%s152 + $0x5c] sm:$0xf] %v199
                %v201 = vld [vmem:[%s151 + $0x60] sm:$0xf]
                %202 = vst [vmem:[%s152 + $0x60] sm:$0xf] %v201
                %v203 = vld [vmem:[%s151 + $0x64] sm:$0xf]
                %204 = vst [vmem:[%s152 + $0x64] sm:$0xf] %v203
                %v205 = vld [vmem:[%s151 + $0x68] sm:$0xf]
                %206 = vst [vmem:[%s152 + $0x68] sm:$0xf] %v205
                %v207 = vld [vmem:[%s151 + $0x6c] sm:$0xf]
                %208 = vst [vmem:[%s152 + $0x6c] sm:$0xf] %v207
                %v209 = vld [vmem:[%s151 + $0x70] sm:$0xf]
                %210 = vst [vmem:[%s152 + $0x70] sm:$0xf] %v209
                %v211 = vld [vmem:[%s151 + $0x74] sm:$0xf]
                %212 = vst [vmem:[%s152 + $0x74] sm:$0xf] %v211
                %v213 = vld [vmem:[%s151 + $0x78] sm:$0xf]
                %214 = vst [vmem:[%s152 + $0x78] sm:$0xf] %v213
                %v215 = vld [vmem:[%s151 + $0x7c] sm:$0xf]
                %216 = vst [vmem:[%s152 + $0x7c] sm:$0xf] %v215
                %v217 = vld [vmem:[%s151 + $0x100] sm:$0xf]
                %218 = vst [vmem:[%s152 + $0x80] sm:$0xf] %v217
                %v219 = vld [vmem:[%s151 + $0x104] sm:$0xf]
                %220 = vst [vmem:[%s152 + $0x84] sm:$0xf] %v219
                %v221 = vld [vmem:[%s151 + $0x108] sm:$0xf]
                %222 = vst [vmem:[%s152 + $0x88] sm:$0xf] %v221
                %v223 = vld [vmem:[%s151 + $0x10c] sm:$0xf]
                %224 = vst [vmem:[%s152 + $0x8c] sm:$0xf] %v223
                %v225 = vld [vmem:[%s151 + $0x110] sm:$0xf]
                %226 = vst [vmem:[%s152 + $0x90] sm:$0xf] %v225
                %v227 = vld [vmem:[%s151 + $0x114] sm:$0xf]
                %228 = vst [vmem:[%s152 + $0x94] sm:$0xf] %v227
                %v229 = vld [vmem:[%s151 + $0x118] sm:$0xf]
                %230 = vst [vmem:[%s152 + $0x98] sm:$0xf] %v229
                %v231 = vld [vmem:[%s151 + $0x11c] sm:$0xf]
                %232 = vst [vmem:[%s152 + $0x9c] sm:$0xf] %v231
                %v233 = vld [vmem:[%s151 + $0x120] sm:$0xf]
                %234 = vst [vmem:[%s152 + $0xa0] sm:$0xf] %v233
                %v235 = vld [vmem:[%s151 + $0x124] sm:$0xf]
                %236 = vst [vmem:[%s152 + $0xa4] sm:$0xf] %v235
                %v237 = vld [vmem:[%s151 + $0x128] sm:$0xf]
                %238 = vst [vmem:[%s152 + $0xa8] sm:$0xf] %v237
                %v239 = vld [vmem:[%s151 + $0x12c] sm:$0xf]
                %240 = vst [vmem:[%s152 + $0xac] sm:$0xf] %v239
                %v241 = vld [vmem:[%s151 + $0x130] sm:$0xf]
                %242 = vst [vmem:[%s152 + $0xb0] sm:$0xf] %v241
                %v243 = vld [vmem:[%s151 + $0x134] sm:$0xf]
                %244 = vst [vmem:[%s152 + $0xb4] sm:$0xf] %v243
                %v245 = vld [vmem:[%s151 + $0x138] sm:$0xf]
                %246 = vst [vmem:[%s152 + $0xb8] sm:$0xf] %v245
                %v247 = vld [vmem:[%s151 + $0x13c] sm:$0xf]
                %248 = vst [vmem:[%s152 + $0xbc] sm:$0xf] %v247
                %v249 = vld [vmem:[%s151 + $0x140] sm:$0xf]
                %250 = vst [vmem:[%s152 + $0xc0] sm:$0xf] %v249
                %v251 = vld [vmem:[%s151 + $0x144] sm:$0xf]
                %252 = vst [vmem:[%s152 + $0xc4] sm:$0xf] %v251
                %v253 = vld [vmem:[%s151 + $0x148] sm:$0xf]
                %254 = vst [vmem:[%s152 + $0xc8] sm:$0xf] %v253
                %v255 = vld [vmem:[%s151 + $0x14c] sm:$0xf]
                %256 = vst [vmem:[%s152 + $0xcc] sm:$0xf] %v255
                %v257 = vld [vmem:[%s151 + $0x150] sm:$0xf]
                %258 = vst [vmem:[%s152 + $0xd0] sm:$0xf] %v257
                %v259 = vld [vmem:[%s151 + $0x154] sm:$0xf]
                %260 = vst [vmem:[%s152 + $0xd4] sm:$0xf] %v259
                %v261 = vld [vmem:[%s151 + $0x158] sm:$0xf]
                %262 = vst [vmem:[%s152 + $0xd8] sm:$0xf] %v261
                %v263 = vld [vmem:[%s151 + $0x15c] sm:$0xf]
                %264 = vst [vmem:[%s152 + $0xdc] sm:$0xf] %v263
                %v265 = vld [vmem:[%s151 + $0x160] sm:$0xf]
                %266 = vst [vmem:[%s152 + $0xe0] sm:$0xf] %v265
                %v267 = vld [vmem:[%s151 + $0x164] sm:$0xf]
                %268 = vst [vmem:[%s152 + $0xe4] sm:$0xf] %v267
                %v269 = vld [vmem:[%s151 + $0x168] sm:$0xf]
                %270 = vst [vmem:[%s152 + $0xe8] sm:$0xf] %v269
                %v271 = vld [vmem:[%s151 + $0x16c] sm:$0xf]
                %272 = vst [vmem:[%s152 + $0xec] sm:$0xf] %v271
                %v273 = vld [vmem:[%s151 + $0x170] sm:$0xf]
                %274 = vst [vmem:[%s152 + $0xf0] sm:$0xf] %v273
                %v275 = vld [vmem:[%s151 + $0x174] sm:$0xf]
                %276 = vst [vmem:[%s152 + $0xf4] sm:$0xf] %v275
                %v277 = vld [vmem:[%s151 + $0x178] sm:$0xf]
                %278 = vst [vmem:[%s152 + $0xf8] sm:$0xf] %v277
                %v279 = vld [vmem:[%s151 + $0x17c] sm:$0xf]
                %280 = vst [vmem:[%s152 + $0xfc] sm:$0xf] %v279
                %v281 = vld [vmem:[%s151 + $0x200] sm:$0xf]
                %282 = vst [vmem:[%s152 + $0x100] sm:$0xf] %v281
                %v283 = vld [vmem:[%s151 + $0x204] sm:$0xf]
                %284 = vst [vmem:[%s152 + $0x104] sm:$0xf] %v283
                %v285 = vld [vmem:[%s151 + $0x208] sm:$0xf]
                %286 = vst [vmem:[%s152 + $0x108] sm:$0xf] %v285
                %v287 = vld [vmem:[%s151 + $0x20c] sm:$0xf]
                %288 = vst [vmem:[%s152 + $0x10c] sm:$0xf] %v287
                %v289 = vld [vmem:[%s151 + $0x210] sm:$0xf]
                %290 = vst [vmem:[%s152 + $0x110] sm:$0xf] %v289
                %v291 = vld [vmem:[%s151 + $0x214] sm:$0xf]
                %292 = vst [vmem:[%s152 + $0x114] sm:$0xf] %v291
                %v293 = vld [vmem:[%s151 + $0x218] sm:$0xf]
                %294 = vst [vmem:[%s152 + $0x118] sm:$0xf] %v293
                %v295 = vld [vmem:[%s151 + $0x21c] sm:$0xf]
                %296 = vst [vmem:[%s152 + $0x11c] sm:$0xf] %v295
                %v297 = vld [vmem:[%s151 + $0x220] sm:$0xf]
                %298 = vst [vmem:[%s152 + $0x120] sm:$0xf] %v297
                %v299 = vld [vmem:[%s151 + $0x224] sm:$0xf]
                %300 = vst [vmem:[%s152 + $0x124] sm:$0xf] %v299
                %v301 = vld [vmem:[%s151 + $0x228] sm:$0xf]
                %302 = vst [vmem:[%s152 + $0x128] sm:$0xf] %v301
                %v303 = vld [vmem:[%s151 + $0x22c] sm:$0xf]
                %304 = vst [vmem:[%s152 + $0x12c] sm:$0xf] %v303
                %v305 = vld [vmem:[%s151 + $0x230] sm:$0xf]
                %306 = vst [vmem:[%s152 + $0x130] sm:$0xf] %v305
                %v307 = vld [vmem:[%s151 + $0x234] sm:$0xf]
                %308 = vst [vmem:[%s152 + $0x134] sm:$0xf] %v307
                %v309 = vld [vmem:[%s151 + $0x238] sm:$0xf]
                %310 = vst [vmem:[%s152 + $0x138] sm:$0xf] %v309
                %v311 = vld [vmem:[%s151 + $0x23c] sm:$0xf]
                %312 = vst [vmem:[%s152 + $0x13c] sm:$0xf] %v311
                %v313 = vld [vmem:[%s151 + $0x240] sm:$0xf]
                %314 = vst [vmem:[%s152 + $0x140] sm:$0xf] %v313
                %v315 = vld [vmem:[%s151 + $0x244] sm:$0xf]
                %316 = vst [vmem:[%s152 + $0x144] sm:$0xf] %v315
                %v317 = vld [vmem:[%s151 + $0x248] sm:$0xf]
                %318 = vst [vmem:[%s152 + $0x148] sm:$0xf] %v317
                %v319 = vld [vmem:[%s151 + $0x24c] sm:$0xf]
                %320 = vst [vmem:[%s152 + $0x14c] sm:$0xf] %v319
                %v321 = vld [vmem:[%s151 + $0x250] sm:$0xf]
                %322 = vst [vmem:[%s152 + $0x150] sm:$0xf] %v321
                %v323 = vld [vmem:[%s151 + $0x254] sm:$0xf]
                %324 = vst [vmem:[%s152 + $0x154] sm:$0xf] %v323
                %v325 = vld [vmem:[%s151 + $0x258] sm:$0xf]
                %326 = vst [vmem:[%s152 + $0x158] sm:$0xf] %v325
                %v327 = vld [vmem:[%s151 + $0x25c] sm:$0xf]
                %328 = vst [vmem:[%s152 + $0x15c] sm:$0xf] %v327
                %v329 = vld [vmem:[%s151 + $0x260] sm:$0xf]
                %330 = vst [vmem:[%s152 + $0x160] sm:$0xf] %v329
                %v331 = vld [vmem:[%s151 + $0x264] sm:$0xf]
                %332 = vst [vmem:[%s152 + $0x164] sm:$0xf] %v331
                %v333 = vld [vmem:[%s151 + $0x268] sm:$0xf]
                %334 = vst [vmem:[%s152 + $0x168] sm:$0xf] %v333
                %v335 = vld [vmem:[%s151 + $0x26c] sm:$0xf]
                %336 = vst [vmem:[%s152 + $0x16c] sm:$0xf] %v335
                %v337 = vld [vmem:[%s151 + $0x270] sm:$0xf]
                %338 = vst [vmem:[%s152 + $0x170] sm:$0xf] %v337
                %v339 = vld [vmem:[%s151 + $0x274] sm:$0xf]
                %340 = vst [vmem:[%s152 + $0x174] sm:$0xf] %v339
                %v341 = vld [vmem:[%s151 + $0x278] sm:$0xf]
                %342 = vst [vmem:[%s152 + $0x178] sm:$0xf] %v341
                %v343 = vld [vmem:[%s151 + $0x27c] sm:$0xf]
                %344 = vst [vmem:[%s152 + $0x17c] sm:$0xf] %v343
                %v345 = vld [vmem:[%s151 + $0x300] sm:$0xf]
                %346 = vst [vmem:[%s152 + $0x180] sm:$0xf] %v345
                %v347 = vld [vmem:[%s151 + $0x304] sm:$0xf]
                %348 = vst [vmem:[%s152 + $0x184] sm:$0xf] %v347
                %v349 = vld [vmem:[%s151 + $0x308] sm:$0xf]
                %350 = vst [vmem:[%s152 + $0x188] sm:$0xf] %v349
                %v351 = vld [vmem:[%s151 + $0x30c] sm:$0xf]
                %352 = vst [vmem:[%s152 + $0x18c] sm:$0xf] %v351
                %v353 = vld [vmem:[%s151 + $0x310] sm:$0xf]
                %354 = vst [vmem:[%s152 + $0x190] sm:$0xf] %v353
                %v355 = vld [vmem:[%s151 + $0x314] sm:$0xf]
                %356 = vst [vmem:[%s152 + $0x194] sm:$0xf] %v355
                %v357 = vld [vmem:[%s151 + $0x318] sm:$0xf]
                %358 = vst [vmem:[%s152 + $0x198] sm:$0xf] %v357
                %v359 = vld [vmem:[%s151 + $0x31c] sm:$0xf]
                %360 = vst [vmem:[%s152 + $0x19c] sm:$0xf] %v359
                %v361 = vld [vmem:[%s151 + $0x320] sm:$0xf]
                %362 = vst [vmem:[%s152 + $0x1a0] sm:$0xf] %v361
                %v363 = vld [vmem:[%s151 + $0x324] sm:$0xf]
                %364 = vst [vmem:[%s152 + $0x1a4] sm:$0xf] %v363
                %v365 = vld [vmem:[%s151 + $0x328] sm:$0xf]
                %366 = vst [vmem:[%s152 + $0x1a8] sm:$0xf] %v365
                %v367 = vld [vmem:[%s151 + $0x32c] sm:$0xf]
                %368 = vst [vmem:[%s152 + $0x1ac] sm:$0xf] %v367
                %v369 = vld [vmem:[%s151 + $0x330] sm:$0xf]
                %370 = vst [vmem:[%s152 + $0x1b0] sm:$0xf] %v369
                %v371 = vld [vmem:[%s151 + $0x334] sm:$0xf]
                %372 = vst [vmem:[%s152 + $0x1b4] sm:$0xf] %v371
                %v373 = vld [vmem:[%s151 + $0x338] sm:$0xf]
                %374 = vst [vmem:[%s152 + $0x1b8] sm:$0xf] %v373
                %v375 = vld [vmem:[%s151 + $0x33c] sm:$0xf]
                %376 = vst [vmem:[%s152 + $0x1bc] sm:$0xf] %v375
                %v377 = vld [vmem:[%s151 + $0x340] sm:$0xf]
                %378 = vst [vmem:[%s152 + $0x1c0] sm:$0xf] %v377
                %v379 = vld [vmem:[%s151 + $0x344] sm:$0xf]
                %380 = vst [vmem:[%s152 + $0x1c4] sm:$0xf] %v379
                %v381 = vld [vmem:[%s151 + $0x348] sm:$0xf]
                %382 = vst [vmem:[%s152 + $0x1c8] sm:$0xf] %v381
                %v383 = vld [vmem:[%s151 + $0x34c] sm:$0xf]
                %384 = vst [vmem:[%s152 + $0x1cc] sm:$0xf] %v383
                %v385 = vld [vmem:[%s151 + $0x350] sm:$0xf]
                %386 = vst [vmem:[%s152 + $0x1d0] sm:$0xf] %v385
                %v387 = vld [vmem:[%s151 + $0x354] sm:$0xf]
                %388 = vst [vmem:[%s152 + $0x1d4] sm:$0xf] %v387
                %v389 = vld [vmem:[%s151 + $0x358] sm:$0xf]
                %390 = vst [vmem:[%s152 + $0x1d8] sm:$0xf] %v389
                %v391 = vld [vmem:[%s151 + $0x35c] sm:$0xf]
                %392 = vst [vmem:[%s152 + $0x1dc] sm:$0xf] %v391
                %v393 = vld [vmem:[%s151 + $0x360] sm:$0xf]
                %394 = vst [vmem:[%s152 + $0x1e0] sm:$0xf] %v393
                %v395 = vld [vmem:[%s151 + $0x364] sm:$0xf]
                %396 = vst [vmem:[%s152 + $0x1e4] sm:$0xf] %v395
                %v397 = vld [vmem:[%s151 + $0x368] sm:$0xf]
                %398 = vst [vmem:[%s152 + $0x1e8] sm:$0xf] %v397
                %v399 = vld [vmem:[%s151 + $0x36c] sm:$0xf]
                %400 = vst [vmem:[%s152 + $0x1ec] sm:$0xf] %v399
                %v401 = vld [vmem:[%s151 + $0x370] sm:$0xf]
                %402 = vst [vmem:[%s152 + $0x1f0] sm:$0xf] %v401
                %v403 = vld [vmem:[%s151 + $0x374] sm:$0xf]
                %404 = vst [vmem:[%s152 + $0x1f4] sm:$0xf] %v403
                %v405 = vld [vmem:[%s151 + $0x378] sm:$0xf]
                %406 = vst [vmem:[%s152 + $0x1f8] sm:$0xf] %v405
                %v407 = vld [vmem:[%s151 + $0x37c] sm:$0xf]
                %408 = vst [vmem:[%s152 + $0x1fc] sm:$0xf] %v407
              $region45: #{cnn_forward.3} parent=39 // loop_footer
                %s150 = sadd.s32 1, %s146
              $region46: #{cnn_forward.3} parent=39 // loop_footer_branch
                %145 = sbr.rel target = $region42
              $region47: #{cnn_forward.3} parent=39 // loop_exit
                _
            $region40: #{cnn_forward.3} parent=31 // pred_fallthru
              _
          $region32: #{cnn_forward.3} parent=27 // pred_fallthru
            _
          %684 = vnop
        $region28: #{cnn_forward.3} parent=23 // pred_fallthru
          _
      $region24: #{cnn_forward.3} parent=5 // pred_fallthru
        _
      %p685 = scmp.le.s32.totalorder 1, %s9
      %p686 = scmp.lt.s32.totalorder %s9, 3
      %p687 = pnand %p685, %p686
      %p688 = pneg %p687
      // Predicated region
      $region66: #{cnn_forward.3} parent=5 // pred_check
        _
      $region67: #{cnn_forward.3} parent=5 // pred_check_branch
        %690 = sbr.rel (%p687) target = $region69
      $region68: #{cnn_forward.3} parent=5 // pred_region
        %s691 = ssub.s32 %s9, 1
        %s692 = sand.u32 %s22, 1
        %s693 = sand.u32 %s22, 1
        %s694 = smul.addr %s693, 512
        %s695 = scalar_lea.vmem [#allocation2], %s694
        // Predicated region
        $region70: #{cnn_forward.3} parent=68 // pred_check
          %p696 = pneg %p35
        $region71: #{cnn_forward.3} parent=68 // pred_check_branch
          %698 = sbr.rel (%p696) target = $region73
        $region72: #{cnn_forward.3} parent=68 // pred_region
          _
        $region73: #{cnn_forward.3} parent=68 // pred_fallthru
          _
        %s699 = sand.u32 %s22, 1
        %s700 = sand.u32 %s22, 1
        %s701 = smul.addr %s700, 512
        %s702 = scalar_lea.vmem [#allocation2], %s701
        %p703 = pneg %p35
        %p704 = pneg %p32
        %p705 = pneg %p56
        %p706 = pneg %p53
        %p707 = pneg %p77
        %p708 = pneg %p74
        %p709 = pneg %p103
        %p710 = pneg %p100
        %s711 = smul.u32 32, %s14
        %p712 = scmp.lt.s32.totalorder %s711, 63
        %s713 = scalar_select %p712, %s711, 63
        %s714 = smul.addr %s713, 4
        %s715 = scalar_lea.vmem %s3, %s714
        %s716 = smul.u32 32, %s14
        %s717 = smul.u32 32, %s14
        %p718 = scmp.lt.s32.totalorder %s717, 63
        %s719 = scalar_select %p718, %s717, 63
        %s720 = smul.addr %s719, 4
        %s721 = scalar_lea.vmem %s3, %s720
        %s722 = smul.u32 32, %s14
        %v724 = vld [vmem:[%s695] sm:$0xf]
        %v725 = vld [vmem:[%s695 + $0x4] sm:$0xf]
        %v726 = vld [vmem:[%s695 + $0x8] sm:$0xf]
        %v727 = vld [vmem:[%s695 + $0xc] sm:$0xf]
        %v728 = vld [vmem:[%s695 + $0x10] sm:$0xf]
        %v729 = vld [vmem:[%s695 + $0x14] sm:$0xf]
        %v730 = vld [vmem:[%s695 + $0x18] sm:$0xf]
        %v731 = vld [vmem:[%s695 + $0x1c] sm:$0xf]
        %v732 = vld [vmem:[%s695 + $0x20] sm:$0xf]
        %v733 = vld [vmem:[%s695 + $0x24] sm:$0xf]
        %v734 = vld [vmem:[%s695 + $0x28] sm:$0xf]
        %v735 = vld [vmem:[%s695 + $0x2c] sm:$0xf]
        %v736 = vld [vmem:[%s695 + $0x30] sm:$0xf]
        %v737 = vld [vmem:[%s695 + $0x34] sm:$0xf]
        %v738 = vld [vmem:[%s695 + $0x38] sm:$0xf]
        %v739 = vld [vmem:[%s695 + $0x3c] sm:$0xf]
        %v740 = vld [vmem:[%s695 + $0x40] sm:$0xf]
        %v741 = vld [vmem:[%s695 + $0x44] sm:$0xf]
        %v742 = vld [vmem:[%s695 + $0x48] sm:$0xf]
        %v743 = vld [vmem:[%s695 + $0x4c] sm:$0xf]
        %v744 = vld [vmem:[%s695 + $0x50] sm:$0xf]
        %v745 = vld [vmem:[%s695 + $0x54] sm:$0xf]
        %v746 = vld [vmem:[%s695 + $0x58] sm:$0xf]
        %v747 = vld [vmem:[%s695 + $0x5c] sm:$0xf]
        %v748 = vld [vmem:[%s695 + $0x60] sm:$0xf]
        %v749 = vld [vmem:[%s695 + $0x64] sm:$0xf]
        %v750 = vld [vmem:[%s695 + $0x68] sm:$0xf]
        %v751 = vld [vmem:[%s695 + $0x6c] sm:$0xf]
        %v752 = vld [vmem:[%s695 + $0x70] sm:$0xf]
        %v753 = vld [vmem:[%s695 + $0x74] sm:$0xf]
        %v754 = vld [vmem:[%s695 + $0x78] sm:$0xf]
        %v755 = vld [vmem:[%s695 + $0x7c] sm:$0xf]
        %s756 = scalar_lea.vmem %s695, 128 [#allocation2]
        %v757 = vld [vmem:[%s756] sm:$0xf]
        %v758 = vld [vmem:[%s756 + $0x4] sm:$0xf]
        %v759 = vld [vmem:[%s756 + $0x8] sm:$0xf]
        %v760 = vld [vmem:[%s756 + $0xc] sm:$0xf]
        %v761 = vld [vmem:[%s756 + $0x10] sm:$0xf]
        %v762 = vld [vmem:[%s756 + $0x14] sm:$0xf]
        %v763 = vld [vmem:[%s756 + $0x18] sm:$0xf]
        %v764 = vld [vmem:[%s756 + $0x1c] sm:$0xf]
        %v765 = vld [vmem:[%s756 + $0x20] sm:$0xf]
        %v766 = vld [vmem:[%s756 + $0x24] sm:$0xf]
        %v767 = vld [vmem:[%s756 + $0x28] sm:$0xf]
        %v768 = vld [vmem:[%s756 + $0x2c] sm:$0xf]
        %v769 = vld [vmem:[%s756 + $0x30] sm:$0xf]
        %v770 = vld [vmem:[%s756 + $0x34] sm:$0xf]
        %v771 = vld [vmem:[%s756 + $0x38] sm:$0xf]
        %v772 = vld [vmem:[%s756 + $0x3c] sm:$0xf]
        %v773 = vld [vmem:[%s756 + $0x40] sm:$0xf]
        %v774 = vld [vmem:[%s756 + $0x44] sm:$0xf]
        %v775 = vld [vmem:[%s756 + $0x48] sm:$0xf]
        %v776 = vld [vmem:[%s756 + $0x4c] sm:$0xf]
        %v777 = vld [vmem:[%s756 + $0x50] sm:$0xf]
        %v778 = vld [vmem:[%s756 + $0x54] sm:$0xf]
        %v779 = vld [vmem:[%s756 + $0x58] sm:$0xf]
        %v780 = vld [vmem:[%s756 + $0x5c] sm:$0xf]
        %v781 = vld [vmem:[%s756 + $0x60] sm:$0xf]
        %v782 = vld [vmem:[%s756 + $0x64] sm:$0xf]
        %v783 = vld [vmem:[%s756 + $0x68] sm:$0xf]
        %v784 = vld [vmem:[%s756 + $0x6c] sm:$0xf]
        %v785 = vld [vmem:[%s756 + $0x70] sm:$0xf]
        %v786 = vld [vmem:[%s756 + $0x74] sm:$0xf]
        %v787 = vld [vmem:[%s756 + $0x78] sm:$0xf]
        %v788 = vld [vmem:[%s756 + $0x7c] sm:$0xf]
        %s789 = scalar_lea.vmem %s695, 256 [#allocation2]
        %v790 = vld [vmem:[%s789] sm:$0xf]
        %v791 = vld [vmem:[%s789 + $0x4] sm:$0xf]
        %v792 = vld [vmem:[%s789 + $0x8] sm:$0xf]
        %v793 = vld [vmem:[%s789 + $0xc] sm:$0xf]
        %v794 = vld [vmem:[%s789 + $0x10] sm:$0xf]
        %v795 = vld [vmem:[%s789 + $0x14] sm:$0xf]
        %v796 = vld [vmem:[%s789 + $0x18] sm:$0xf]
        %v797 = vld [vmem:[%s789 + $0x1c] sm:$0xf]
        %v798 = vld [vmem:[%s789 + $0x20] sm:$0xf]
        %v799 = vld [vmem:[%s789 + $0x24] sm:$0xf]
        %v800 = vld [vmem:[%s789 + $0x28] sm:$0xf]
        %v801 = vld [vmem:[%s789 + $0x2c] sm:$0xf]
        %v802 = vld [vmem:[%s789 + $0x30] sm:$0xf]
        %v803 = vld [vmem:[%s789 + $0x34] sm:$0xf]
        %v804 = vld [vmem:[%s789 + $0x38] sm:$0xf]
        %v805 = vld [vmem:[%s789 + $0x3c] sm:$0xf]
        %v806 = vld [vmem:[%s789 + $0x40] sm:$0xf]
        %v807 = vld [vmem:[%s789 + $0x44] sm:$0xf]
        %v808 = vld [vmem:[%s789 + $0x48] sm:$0xf]
        %v809 = vld [vmem:[%s789 + $0x4c] sm:$0xf]
        %v810 = vld [vmem:[%s789 + $0x50] sm:$0xf]
        %v811 = vld [vmem:[%s789 + $0x54] sm:$0xf]
        %v812 = vld [vmem:[%s789 + $0x58] sm:$0xf]
        %v813 = vld [vmem:[%s789 + $0x5c] sm:$0xf]
        %v814 = vld [vmem:[%s789 + $0x60] sm:$0xf]
        %v815 = vld [vmem:[%s789 + $0x64] sm:$0xf]
        %v816 = vld [vmem:[%s789 + $0x68] sm:$0xf]
        %v817 = vld [vmem:[%s789 + $0x6c] sm:$0xf]
        %v818 = vld [vmem:[%s789 + $0x70] sm:$0xf]
        %v819 = vld [vmem:[%s789 + $0x74] sm:$0xf]
        %v820 = vld [vmem:[%s789 + $0x78] sm:$0xf]
        %v821 = vld [vmem:[%s789 + $0x7c] sm:$0xf]
        %s822 = scalar_lea.vmem %s695, 384 [#allocation2]
        %v823 = vld [vmem:[%s822] sm:$0xf]
        %v824 = vld [vmem:[%s822 + $0x4] sm:$0xf]
        %v825 = vld [vmem:[%s822 + $0x8] sm:$0xf]
        %v826 = vld [vmem:[%s822 + $0xc] sm:$0xf]
        %v827 = vld [vmem:[%s822 + $0x10] sm:$0xf]
        %v828 = vld [vmem:[%s822 + $0x14] sm:$0xf]
        %v829 = vld [vmem:[%s822 + $0x18] sm:$0xf]
        %v830 = vld [vmem:[%s822 + $0x1c] sm:$0xf]
        %v831 = vld [vmem:[%s822 + $0x20] sm:$0xf]
        %v832 = vld [vmem:[%s822 + $0x24] sm:$0xf]
        %v833 = vld [vmem:[%s822 + $0x28] sm:$0xf]
        %v834 = vld [vmem:[%s822 + $0x2c] sm:$0xf]
        %v835 = vld [vmem:[%s822 + $0x30] sm:$0xf]
        %v836 = vld [vmem:[%s822 + $0x34] sm:$0xf]
        %v837 = vld [vmem:[%s822 + $0x38] sm:$0xf]
        %v838 = vld [vmem:[%s822 + $0x3c] sm:$0xf]
        %v839 = vld [vmem:[%s822 + $0x40] sm:$0xf]
        %v840 = vld [vmem:[%s822 + $0x44] sm:$0xf]
        %v841 = vld [vmem:[%s822 + $0x48] sm:$0xf]
        %v842 = vld [vmem:[%s822 + $0x4c] sm:$0xf]
        %v843 = vld [vmem:[%s822 + $0x50] sm:$0xf]
        %v844 = vld [vmem:[%s822 + $0x54] sm:$0xf]
        %v845 = vld [vmem:[%s822 + $0x58] sm:$0xf]
        %v846 = vld [vmem:[%s822 + $0x5c] sm:$0xf]
        %v847 = vld [vmem:[%s822 + $0x60] sm:$0xf]
        %v848 = vld [vmem:[%s822 + $0x64] sm:$0xf]
        %v849 = vld [vmem:[%s822 + $0x68] sm:$0xf]
        %v850 = vld [vmem:[%s822 + $0x6c] sm:$0xf]
        %v851 = vld [vmem:[%s822 + $0x70] sm:$0xf]
        %v852 = vld [vmem:[%s822 + $0x74] sm:$0xf]
        %v853 = vld [vmem:[%s822 + $0x78] sm:$0xf]
        %v854 = vld [vmem:[%s822 + $0x7c] sm:$0xf]
        %v855 = vld [vmem:[%s1] sm:$0xf]
        %v856 = vld [vmem:[%s1 + $0x4] sm:$0x1]
        %v889 = vunpack.c.l.b16 %v724
        %v890 = vunpack.c.l.b16 %v725
        %v891 = vunpack.c.l.b16 %v726
        %v892 = vunpack.c.l.b16 %v727
        %v893 = vunpack.c.l.b16 %v728
        %v894 = vunpack.c.l.b16 %v729
        %v895 = vunpack.c.l.b16 %v730
        %v896 = vunpack.c.l.b16 %v731
        %v897 = vunpack.c.l.b16 %v732
        %v898 = vunpack.c.l.b16 %v733
        %v899 = vunpack.c.l.b16 %v734
        %v900 = vunpack.c.l.b16 %v735
        %v901 = vunpack.c.l.b16 %v736
        %v902 = vunpack.c.l.b16 %v737
        %v903 = vunpack.c.l.b16 %v738
        %v904 = vunpack.c.l.b16 %v739
        %v905 = vunpack.c.l.b16 %v740
        %v906 = vunpack.c.l.b16 %v741
        %v907 = vunpack.c.l.b16 %v742
        %v908 = vunpack.c.l.b16 %v743
        %v909 = vunpack.c.l.b16 %v744
        %v910 = vunpack.c.l.b16 %v745
        %v911 = vunpack.c.l.b16 %v746
        %v912 = vunpack.c.l.b16 %v747
        %v913 = vunpack.c.l.b16 %v748
        %v914 = vunpack.c.l.b16 %v749
        %v915 = vunpack.c.l.b16 %v750
        %v916 = vunpack.c.l.b16 %v751
        %v917 = vunpack.c.l.b16 %v752
        %v918 = vunpack.c.l.b16 %v753
        %v919 = vunpack.c.l.b16 %v754
        %v920 = vunpack.c.l.b16 %v755
        %v921 = vpack.c.b16 %v890, %v889
        %v922 = vpack.c.b16 %v892, %v891
        %v923 = vpack.c.b16 %v894, %v893
        %v924 = vpack.c.b16 %v896, %v895
        %v925 = vpack.c.b16 %v898, %v897
        %v926 = vpack.c.b16 %v900, %v899
        %v927 = vpack.c.b16 %v902, %v901
        %v928 = vpack.c.b16 %v904, %v903
        %v929 = vpack.c.b16 %v906, %v905
        %v930 = vpack.c.b16 %v908, %v907
        %v931 = vpack.c.b16 %v910, %v909
        %v932 = vpack.c.b16 %v912, %v911
        %v933 = vpack.c.b16 %v914, %v913
        %v934 = vpack.c.b16 %v916, %v915
        %v935 = vpack.c.b16 %v918, %v917
        %v936 = vpack.c.b16 %v920, %v919
        %v939 = vunpack.c.l.b16 %v855
        %v940 = vunpack.c.l.b16 %v856
        %v941 = vpack.c.b16 %v940, %v939
        %vm942 = vcmask 72704
        %v944 = vsel %vm942, %v921, 0
        %v947 = vsel %vm942, %v922, 0
        %v950 = vsel %vm942, %v923, 0
        %v953 = vsel %vm942, %v924, 0
        %v956 = vsel %vm942, %v925, 0
        %v959 = vsel %vm942, %v926, 0
        %v962 = vsel %vm942, %v927, 0
        %v965 = vsel %vm942, %v928, 0
        %v968 = vsel %vm942, %v929, 0
        %v971 = vsel %vm942, %v930, 0
        %v974 = vsel %vm942, %v931, 0
        %v977 = vsel %vm942, %v932, 0
        %v980 = vsel %vm942, %v933, 0
        %v983 = vsel %vm942, %v934, 0
        %v986 = vsel %vm942, %v935, 0
        %v989 = vsel %vm942, %v936, 0
        %vm991 = vcmask 1043456
        %vm992 = vcmask 1044480
        %v993 = vsel %vm991, 4294967295, 65535
        %v994 = vsel %vm992, %v993, 0
        %v996 = vand.u32 %v941, %v994
        %998 = vmatprep.subr.bf16.mxu0 0
        %999 = vmatpush1.bf16.msra.mxu0 %v996
        %1000 = vmatprep.subr.bf16.mxu0 0
        %1001 = vmatpush1.bf16.msra.mxu0 0
        %1002 = vmatprep.subr.bf16.mxu0 0
        %1003 = vmatpush1.bf16.msra.mxu0 0
        %1004 = vmatprep.subr.bf16.mxu0 0
        %1005 = vmatpush1.bf16.msra.mxu0 0
        %1006 = vmatprep.subr.bf16.mxu0 0
        %1007 = vmatpush1.bf16.msra.mxu0 0
        %1008 = vmatprep.subr.bf16.mxu0 0
        %1009 = vmatpush1.bf16.msra.mxu0 0
        %1010 = vmatprep.subr.bf16.mxu0 0
        %1011 = vmatpush1.bf16.msra.mxu0 0
        %1012 = vmatprep.subr.bf16.mxu0 0
        %1013 = vmatpush1.bf16.msra.mxu0 0
        %1014 = vmatprep.subr.bf16.mxu0 0
        %1015 = vmatpush1.bf16.msra.mxu0 0
        %1016 = vmatprep.subr.bf16.mxu0 0
        %1017 = vmatpush1.bf16.msra.mxu0 0
        %1018 = vmatprep.subr.bf16.mxu0 0
        %1019 = vmatpush1.bf16.msra.mxu0 0
        %1020 = vmatprep.subr.bf16.mxu0 0
        %1021 = vmatpush1.bf16.msra.mxu0 0
        %1022 = vmatprep.subr.bf16.mxu0 0
        %1023 = vmatpush1.bf16.msra.mxu0 0
        %1024 = vmatprep.subr.bf16.mxu0 0
        %1025 = vmatpush1.bf16.msra.mxu0 0
        %1026 = vmatprep.subr.bf16.mxu0 0
        %1027 = vmatpush1.bf16.msra.mxu0 0
        %1028 = vmatprep.subr.bf16.mxu0 0
        %1029 = vmatpush1.bf16.msra.mxu0 0
        %1030 = vmatprep.mubr.bf16.mxu0 0
        %1031 = vmatmul.mubr.bf16.gmra.mrb[0].mxu0 %v944
        %v1032 = vpop.f32.mrb[0].mxu0
        %v1033 = vadd.f32 0.0, %v1032
        %v1034 = vpop.f32.mrb[0].mxu0
        %v1035 = vpop.f32.mrb[0].mxu0
        %v1036 = vadd.f32 0.0, %v1035
        %v1037 = vpop.f32.mrb[0].mxu0
        %1038 = vmatprep.mubr.bf16.mxu0 0
        %1039 = vmatmul.mubr.bf16.gmra.mrb[0].mxu0 %v947
        %v1040 = vpop.f32.mrb[0].mxu0
        %v1041 = vadd.f32 0.0, %v1040
        %v1042 = vpop.f32.mrb[0].mxu0
        %v1043 = vpop.f32.mrb[0].mxu0
        %v1044 = vadd.f32 0.0, %v1043
        %v1045 = vpop.f32.mrb[0].mxu0
        %1046 = vmatprep.mubr.bf16.mxu0 0
        %1047 = vmatmul.mubr.bf16.gmra.mrb[0].mxu0 %v950
        %v1048 = vpop.f32.mrb[0].mxu0
        %v1049 = vadd.f32 0.0, %v1048
        %v1050 = vpop.f32.mrb[0].mxu0
        %v1051 = vpop.f32.mrb[0].mxu0
        %v1052 = vadd.f32 0.0, %v1051
        %v1053 = vpop.f32.mrb[0].mxu0
        %1054 = vmatprep.mubr.bf16.mxu0 0
        %1055 = vmatmul.mubr.bf16.gmra.mrb[0].mxu0 %v953
        %v1056 = vpop.f32.mrb[0].mxu0
        %v1057 = vadd.f32 0.0, %v1056
        %v1058 = vpop.f32.mrb[0].mxu0
        %v1059 = vpop.f32.mrb[0].mxu0
        %v1060 = vadd.f32 0.0, %v1059
        %v1061 = vpop.f32.mrb[0].mxu0
        %1062 = vmatprep.mubr.bf16.mxu0 0
        %1063 = vmatmul.mubr.bf16.gmra.mrb[0].mxu0 %v956
        %v1064 = vpop.f32.mrb[0].mxu0
        %v1065 = vadd.f32 0.0, %v1064
        %v1066 = vpop.f32.mrb[0].mxu0
        %v1067 = vpop.f32.mrb[0].mxu0
        %v1068 = vadd.f32 0.0, %v1067
        %v1069 = vpop.f32.mrb[0].mxu0
        %1070 = vmatprep.mubr.bf16.mxu0 0
        %1071 = vmatmul.mubr.bf16.gmra.mrb[0].mxu0 %v959
        %v1072 = vpop.f32.mrb[0].mxu0
        %v1073 = vadd.f32 0.0, %v1072
        %v1074 = vpop.f32.mrb[0].mxu0
        %v1075 = vpop.f32.mrb[0].mxu0
        %v1076 = vadd.f32 0.0, %v1075
        %v1077 = vpop.f32.mrb[0].mxu0
        %1078 = vmatprep.mubr.bf16.mxu0 0
        %1079 = vmatmul.mubr.bf16.gmra.mrb[0].mxu0 %v962
        %v1080 = vpop.f32.mrb[0].mxu0
        %v1081 = vadd.f32 0.0, %v1080
        %v1082 = vpop.f32.mrb[0].mxu0
        %v1083 = vpop.f32.mrb[0].mxu0
        %v1084 = vadd.f32 0.0, %v1083
        %v1085 = vpop.f32.mrb[0].mxu0
        %1086 = vmatprep.mubr.bf16.mxu0 0
        %1087 = vmatmul.mubr.bf16.gmra.mrb[0].mxu0 %v965
        %v1088 = vpop.f32.mrb[0].mxu0
        %v1089 = vadd.f32 0.0, %v1088
        %v1090 = vpop.f32.mrb[0].mxu0
        %v1091 = vpop.f32.mrb[0].mxu0
        %v1092 = vadd.f32 0.0, %v1091
        %v1093 = vpop.f32.mrb[0].mxu0
        %1094 = vmatprep.mubr.bf16.mxu0 0
        %1095 = vmatmul.mubr.bf16.gmra.mrb[0].mxu0 %v968
        %v1096 = vpop.f32.mrb[0].mxu0
        %v1097 = vadd.f32 0.0, %v1096
        %v1098 = vpop.f32.mrb[0].mxu0
        %v1099 = vpop.f32.mrb[0].mxu0
        %v1100 = vadd.f32 0.0, %v1099
        %v1101 = vpop.f32.mrb[0].mxu0
        %1102 = vmatprep.mubr.bf16.mxu0 0
        %1103 = vmatmul.mubr.bf16.gmra.mrb[0].mxu0 %v971
        %v1104 = vpop.f32.mrb[0].mxu0
        %v1105 = vadd.f32 0.0, %v1104
        %v1106 = vpop.f32.mrb[0].mxu0
        %v1107 = vpop.f32.mrb[0].mxu0
        %v1108 = vadd.f32 0.0, %v1107
        %v1109 = vpop.f32.mrb[0].mxu0
        %1110 = vmatprep.mubr.bf16.mxu0 0
        %1111 = vmatmul.mubr.bf16.gmra.mrb[0].mxu0 %v974
        %v1112 = vpop.f32.mrb[0].mxu0
        %v1113 = vadd.f32 0.0, %v1112
        %v1114 = vpop.f32.mrb[0].mxu0
        %v1115 = vpop.f32.mrb[0].mxu0
        %v1116 = vadd.f32 0.0, %v1115
        %v1117 = vpop.f32.mrb[0].mxu0
        %1118 = vmatprep.mubr.bf16.mxu0 0
        %1119 = vmatmul.mubr.bf16.gmra.mrb[0].mxu0 %v977
        %v1120 = vpop.f32.mrb[0].mxu0
        %v1121 = vadd.f32 0.0, %v1120
        %v1122 = vpop.f32.mrb[0].mxu0
        %v1123 = vpop.f32.mrb[0].mxu0
        %v1124 = vadd.f32 0.0, %v1123
        %v1125 = vpop.f32.mrb[0].mxu0
        %1126 = vmatprep.mubr.bf16.mxu0 0
        %1127 = vmatmul.mubr.bf16.gmra.mrb[0].mxu0 %v980
        %v1128 = vpop.f32.mrb[0].mxu0
        %v1129 = vadd.f32 0.0, %v1128
        %v1130 = vpop.f32.mrb[0].mxu0
        %v1131 = vpop.f32.mrb[0].mxu0
        %v1132 = vadd.f32 0.0, %v1131
        %v1133 = vpop.f32.mrb[0].mxu0
        %1134 = vmatprep.mubr.bf16.mxu0 0
        %1135 = vmatmul.mubr.bf16.gmra.mrb[0].mxu0 %v983
        %v1136 = vpop.f32.mrb[0].mxu0
        %v1137 = vadd.f32 0.0, %v1136
        %v1138 = vpop.f32.mrb[0].mxu0
        %v1139 = vpop.f32.mrb[0].mxu0
        %v1140 = vadd.f32 0.0, %v1139
        %v1141 = vpop.f32.mrb[0].mxu0
        %1142 = vmatprep.mubr.bf16.mxu0 0
        %1143 = vmatmul.mubr.bf16.gmra.mrb[0].mxu0 %v986
        %v1144 = vpop.f32.mrb[0].mxu0
        %v1145 = vadd.f32 0.0, %v1144
        %v1146 = vpop.f32.mrb[0].mxu0
        %v1147 = vpop.f32.mrb[0].mxu0
        %v1148 = vadd.f32 0.0, %v1147
        %v1149 = vpop.f32.mrb[0].mxu0
        %1150 = vmatprep.mubr.bf16.mxu0 0
        %1151 = vmatmul.mubr.bf16.gmra.mrb[0].mxu0 %v989
        %v1152 = vpop.f32.mrb[0].mxu0
        %v1153 = vadd.f32 0.0, %v1152
        %v1154 = vpop.f32.mrb[0].mxu0
        %v1155 = vpop.f32.mrb[0].mxu0
        %v1156 = vadd.f32 0.0, %v1155
        %v1157 = vpop.f32.mrb[0].mxu0
        %1158 = vdwg.mxu0
        %v1191 = vunpack.c.l.b16 %v757
        %v1192 = vunpack.c.l.b16 %v758
        %v1193 = vunpack.c.l.b16 %v759
        %v1194 = vunpack.c.l.b16 %v760
        %v1195 = vunpack.c.l.b16 %v761
        %v1196 = vunpack.c.l.b16 %v762
        %v1197 = vunpack.c.l.b16 %v763
        %v1198 = vunpack.c.l.b16 %v764
        %v1199 = vunpack.c.l.b16 %v765
        %v1200 = vunpack.c.l.b16 %v766
        %v1201 = vunpack.c.l.b16 %v767
        %v1202 = vunpack.c.l.b16 %v768
        %v1203 = vunpack.c.l.b16 %v769
        %v1204 = vunpack.c.l.b16 %v770
        %v1205 = vunpack.c.l.b16 %v771
        %v1206 = vunpack.c.l.b16 %v772
        %v1207 = vunpack.c.l.b16 %v773
        %v1208 = vunpack.c.l.b16 %v774
        %v1209 = vunpack.c.l.b16 %v775
        %v1210 = vunpack.c.l.b16 %v776
        %v1211 = vunpack.c.l.b16 %v777
        %v1212 = vunpack.c.l.b16 %v778
        %v1213 = vunpack.c.l.b16 %v779
        %v1214 = vunpack.c.l.b16 %v780
        %v1215 = vunpack.c.l.b16 %v781
        %v1216 = vunpack.c.l.b16 %v782
        %v1217 = vunpack.c.l.b16 %v783
        %v1218 = vunpack.c.l.b16 %v784
        %v1219 = vunpack.c.l.b16 %v785
        %v1220 = vunpack.c.l.b16 %v786
        %v1221 = vunpack.c.l.b16 %v787
        %v1222 = vunpack.c.l.b16 %v788
        %v1223 = vpack.c.b16 %v1192, %v1191
        %v1224 = vpack.c.b16 %v1194, %v1193
        %v1225 = vpack.c.b16 %v1196, %v1195
        %v1226 = vpack.c.b16 %v1198, %v1197
        %v1227 = vpack.c.b16 %v1200, %v1199
        %v1228 = vpack.c.b16 %v1202, %v1201
        %v1229 = vpack.c.b16 %v1204, %v1203
        %v1230 = vpack.c.b16 %v1206, %v1205
        %v1231 = vpack.c.b16 %v1208, %v1207
        %v1232 = vpack.c.b16 %v1210, %v1209
        %v1233 = vpack.c.b16 %v1212, %v1211
        %v1234 = vpack.c.b16 %v1214, %v1213
        %v1235 = vpack.c.b16 %v1216, %v1215
        %v1236 = vpack.c.b16 %v1218, %v1217
        %v1237 = vpack.c.b16 %v1220, %v1219
        %v1238 = vpack.c.b16 %v1222, %v1221
        %v1240 = vsel %vm942, %v1223, 0
        %v1243 = vsel %vm942, %v1224, 0
        %v1246 = vsel %vm942, %v1225, 0
        %v1249 = vsel %vm942, %v1226, 0
        %v1252 = vsel %vm942, %v1227, 0
        %v1255 = vsel %vm942, %v1228, 0
        %v1258 = vsel %vm942, %v1229, 0
        %v1261 = vsel %vm942, %v1230, 0
        %v1264 = vsel %vm942, %v1231, 0
        %v1267 = vsel %vm942, %v1232, 0
        %v1270 = vsel %vm942, %v1233, 0
        %v1273 = vsel %vm942, %v1234, 0
        %v1276 = vsel %vm942, %v1235, 0
        %v1279 = vsel %vm942, %v1236, 0
        %v1282 = vsel %vm942, %v1237, 0
        %v1285 = vsel %vm942, %v1238, 0
        %1287 = vmatprep.subr.bf16.mxu0 0
        %1288 = vmatpush1.bf16.msra.mxu0 %v996
        %1289 = vmatprep.subr.bf16.mxu0 0
        %1290 = vmatpush1.bf16.msra.mxu0 0
        %1291 = vmatprep.subr.bf16.mxu0 0
        %1292 = vmatpush1.bf16.msra.mxu0 0
        %1293 = vmatprep.subr.bf16.mxu0 0
        %1294 = vmatpush1.bf16.msra.mxu0 0
        %1295 = vmatprep.subr.bf16.mxu0 0
        %1296 = vmatpush1.bf16.msra.mxu0 0
        %1297 = vmatprep.subr.bf16.mxu0 0
        %1298 = vmatpush1.bf16.msra.mxu0 0
        %1299 = vmatprep.subr.bf16.mxu0 0
        %1300 = vmatpush1.bf16.msra.mxu0 0
        %1301 = vmatprep.subr.bf16.mxu0 0
        %1302 = vmatpush1.bf16.msra.mxu0 0
        %1303 = vmatprep.subr.bf16.mxu0 0
        %1304 = vmatpush1.bf16.msra.mxu0 0
        %1305 = vmatprep.subr.bf16.mxu0 0
        %1306 = vmatpush1.bf16.msra.mxu0 0
        %1307 = vmatprep.subr.bf16.mxu0 0
        %1308 = vmatpush1.bf16.msra.mxu0 0
        %1309 = vmatprep.subr.bf16.mxu0 0
        %1310 = vmatpush1.bf16.msra.mxu0 0
        %1311 = vmatprep.subr.bf16.mxu0 0
        %1312 = vmatpush1.bf16.msra.mxu0 0
        %1313 = vmatprep.subr.bf16.mxu0 0
        %1314 = vmatpush1.bf16.msra.mxu0 0
        %1315 = vmatprep.subr.bf16.mxu0 0
        %1316 = vmatpush1.bf16.msra.mxu0 0
        %1317 = vmatprep.subr.bf16.mxu0 0
        %1318 = vmatpush1.bf16.msra.mxu0 0
        %1319 = vmatprep.mubr.bf16.mxu0 0
        %1320 = vmatmul.mubr.bf16.gmra.mrb[0].mxu0 %v1240
        %v1321 = vpop.f32.mrb[0].mxu0
        %v1322 = vadd.f32 0.0, %v1321
        %v1323 = vpop.f32.mrb[0].mxu0
        %v1324 = vpop.f32.mrb[0].mxu0
        %v1325 = vadd.f32 0.0, %v1324
        %v1326 = vpop.f32.mrb[0].mxu0
        %1327 = vmatprep.mubr.bf16.mxu0 0
        %1328 = vmatmul.mubr.bf16.gmra.mrb[0].mxu0 %v1243
        %v1329 = vpop.f32.mrb[0].mxu0
        %v1330 = vadd.f32 0.0, %v1329
        %v1331 = vpop.f32.mrb[0].mxu0
        %v1332 = vpop.f32.mrb[0].mxu0
        %v1333 = vadd.f32 0.0, %v1332
        %v1334 = vpop.f32.mrb[0].mxu0
        %1335 = vmatprep.mubr.bf16.mxu0 0
        %1336 = vmatmul.mubr.bf16.gmra.mrb[0].mxu0 %v1246
        %v1337 = vpop.f32.mrb[0].mxu0
        %v1338 = vadd.f32 0.0, %v1337
        %v1339 = vpop.f32.mrb[0].mxu0
        %v1340 = vpop.f32.mrb[0].mxu0
        %v1341 = vadd.f32 0.0, %v1340
        %v1342 = vpop.f32.mrb[0].mxu0
        %1343 = vmatprep.mubr.bf16.mxu0 0
        %1344 = vmatmul.mubr.bf16.gmra.mrb[0].mxu0 %v1249
        %v1345 = vpop.f32.mrb[0].mxu0
        %v1346 = vadd.f32 0.0, %v1345
        %v1347 = vpop.f32.mrb[0].mxu0
        %v1348 = vpop.f32.mrb[0].mxu0
        %v1349 = vadd.f32 0.0, %v1348
        %v1350 = vpop.f32.mrb[0].mxu0
        %1351 = vmatprep.mubr.bf16.mxu0 0
        %1352 = vmatmul.mubr.bf16.gmra.mrb[0].mxu0 %v1252
        %v1353 = vpop.f32.mrb[0].mxu0
        %v1354 = vadd.f32 0.0, %v1353
        %v1355 = vpop.f32.mrb[0].mxu0
        %v1356 = vpop.f32.mrb[0].mxu0
        %v1357 = vadd.f32 0.0, %v1356
        %v1358 = vpop.f32.mrb[0].mxu0
        %1359 = vmatprep.mubr.bf16.mxu0 0
        %1360 = vmatmul.mubr.bf16.gmra.mrb[0].mxu0 %v1255
        %v1361 = vpop.f32.mrb[0].mxu0
        %v1362 = vadd.f32 0.0, %v1361
        %v1363 = vpop.f32.mrb[0].mxu0
        %v1364 = vpop.f32.mrb[0].mxu0
        %v1365 = vadd.f32 0.0, %v1364
        %v1366 = vpop.f32.mrb[0].mxu0
        %1367 = vmatprep.mubr.bf16.mxu0 0
        %1368 = vmatmul.mubr.bf16.gmra.mrb[0].mxu0 %v1258
        %v1369 = vpop.f32.mrb[0].mxu0
        %v1370 = vadd.f32 0.0, %v1369
        %v1371 = vpop.f32.mrb[0].mxu0
        %v1372 = vpop.f32.mrb[0].mxu0
        %v1373 = vadd.f32 0.0, %v1372
        %v1374 = vpop.f32.mrb[0].mxu0
        %1375 = vmatprep.mubr.bf16.mxu0 0
        %1376 = vmatmul.mubr.bf16.gmra.mrb[0].mxu0 %v1261
        %v1377 = vpop.f32.mrb[0].mxu0
        %v1378 = vadd.f32 0.0, %v1377
        %v1379 = vpop.f32.mrb[0].mxu0
        %v1380 = vpop.f32.mrb[0].mxu0
        %v1381 = vadd.f32 0.0, %v1380
        %v1382 = vpop.f32.mrb[0].mxu0
        %1383 = vmatprep.mubr.bf16.mxu0 0
        %1384 = vmatmul.mubr.bf16.gmra.mrb[0].mxu0 %v1264
        %v1385 = vpop.f32.mrb[0].mxu0
        %v1386 = vadd.f32 0.0, %v1385
        %v1387 = vpop.f32.mrb[0].mxu0
        %v1388 = vpop.f32.mrb[0].mxu0
        %v1389 = vadd.f32 0.0, %v1388
        %v1390 = vpop.f32.mrb[0].mxu0
        %1391 = vmatprep.mubr.bf16.mxu0 0
        %1392 = vmatmul.mubr.bf16.gmra.mrb[0].mxu0 %v1267
        %v1393 = vpop.f32.mrb[0].mxu0
        %v1394 = vadd.f32 0.0, %v1393
        %v1395 = vpop.f32.mrb[0].mxu0
        %v1396 = vpop.f32.mrb[0].mxu0
        %v1397 = vadd.f32 0.0, %v1396
        %v1398 = vpop.f32.mrb[0].mxu0
        %1399 = vmatprep.mubr.bf16.mxu0 0
        %1400 = vmatmul.mubr.bf16.gmra.mrb[0].mxu0 %v1270
        %v1401 = vpop.f32.mrb[0].mxu0
        %v1402 = vadd.f32 0.0, %v1401
        %v1403 = vpop.f32.mrb[0].mxu0
        %v1404 = vpop.f32.mrb[0].mxu0
        %v1405 = vadd.f32 0.0, %v1404
        %v1406 = vpop.f32.mrb[0].mxu0
        %1407 = vmatprep.mubr.bf16.mxu0 0
        %1408 = vmatmul.mubr.bf16.gmra.mrb[0].mxu0 %v1273
        %v1409 = vpop.f32.mrb[0].mxu0
        %v1410 = vadd.f32 0.0, %v1409
        %v1411 = vpop.f32.mrb[0].mxu0
        %v1412 = vpop.f32.mrb[0].mxu0
        %v1413 = vadd.f32 0.0, %v1412
        %v1414 = vpop.f32.mrb[0].mxu0
        %1415 = vmatprep.mubr.bf16.mxu0 0
        %1416 = vmatmul.mubr.bf16.gmra.mrb[0].mxu0 %v1276
        %v1417 = vpop.f32.mrb[0].mxu0
        %v1418 = vadd.f32 0.0, %v1417
        %v1419 = vpop.f32.mrb[0].mxu0
        %v1420 = vpop.f32.mrb[0].mxu0
        %v1421 = vadd.f32 0.0, %v1420
        %v1422 = vpop.f32.mrb[0].mxu0
        %1423 = vmatprep.mubr.bf16.mxu0 0
        %1424 = vmatmul.mubr.bf16.gmra.mrb[0].mxu0 %v1279
        %v1425 = vpop.f32.mrb[0].mxu0
        %v1426 = vadd.f32 0.0, %v1425
        %v1427 = vpop.f32.mrb[0].mxu0
        %v1428 = vpop.f32.mrb[0].mxu0
        %v1429 = vadd.f32 0.0, %v1428
        %v1430 = vpop.f32.mrb[0].mxu0
        %1431 = vmatprep.mubr.bf16.mxu0 0
        %1432 = vmatmul.mubr.bf16.gmra.mrb[0].mxu0 %v1282
        %v1433 = vpop.f32.mrb[0].mxu0
        %v1434 = vadd.f32 0.0, %v1433
        %v1435 = vpop.f32.mrb[0].mxu0
        %v1436 = vpop.f32.mrb[0].mxu0
        %v1437 = vadd.f32 0.0, %v1436
        %v1438 = vpop.f32.mrb[0].mxu0
        %1439 = vmatprep.mubr.bf16.mxu0 0
        %1440 = vmatmul.mubr.bf16.gmra.mrb[0].mxu0 %v1285
        %v1441 = vpop.f32.mrb[0].mxu0
        %v1442 = vadd.f32 0.0, %v1441
        %v1443 = vpop.f32.mrb[0].mxu0
        %v1444 = vpop.f32.mrb[0].mxu0
        %v1445 = vadd.f32 0.0, %v1444
        %v1446 = vpop.f32.mrb[0].mxu0
        %1447 = vdwg.mxu0
        %v1448 = vmax.f32 %v1033, %v1322
        %v1449 = vmax.f32 %v1036, %v1325
        %v1450 = vmax.f32 %v1041, %v1330
        %v1451 = vmax.f32 %v1044, %v1333
        %v1452 = vmax.f32 %v1049, %v1338
        %v1453 = vmax.f32 %v1052, %v1341
        %v1454 = vmax.f32 %v1057, %v1346
        %v1455 = vmax.f32 %v1060, %v1349
        %v1456 = vmax.f32 %v1065, %v1354
        %v1457 = vmax.f32 %v1068, %v1357
        %v1458 = vmax.f32 %v1073, %v1362
        %v1459 = vmax.f32 %v1076, %v1365
        %v1460 = vmax.f32 %v1081, %v1370
        %v1461 = vmax.f32 %v1084, %v1373
        %v1462 = vmax.f32 %v1089, %v1378
        %v1463 = vmax.f32 %v1092, %v1381
        %v1464 = vmax.f32 %v1097, %v1386
        %v1465 = vmax.f32 %v1100, %v1389
        %v1466 = vmax.f32 %v1105, %v1394
        %v1467 = vmax.f32 %v1108, %v1397
        %v1468 = vmax.f32 %v1113, %v1402
        %v1469 = vmax.f32 %v1116, %v1405
        %v1470 = vmax.f32 %v1121, %v1410
        %v1471 = vmax.f32 %v1124, %v1413
        %v1472 = vmax.f32 %v1129, %v1418
        %v1473 = vmax.f32 %v1132, %v1421
        %v1474 = vmax.f32 %v1137, %v1426
        %v1475 = vmax.f32 %v1140, %v1429
        %v1476 = vmax.f32 %v1145, %v1434
        %v1477 = vmax.f32 %v1148, %v1437
        %v1478 = vmax.f32 %v1153, %v1442
        %v1479 = vmax.f32 %v1156, %v1445
        %v1512 = vunpack.c.l.b16 %v790
        %v1513 = vunpack.c.l.b16 %v791
        %v1514 = vunpack.c.l.b16 %v792
        %v1515 = vunpack.c.l.b16 %v793
        %v1516 = vunpack.c.l.b16 %v794
        %v1517 = vunpack.c.l.b16 %v795
        %v1518 = vunpack.c.l.b16 %v796
        %v1519 = vunpack.c.l.b16 %v797
        %v1520 = vunpack.c.l.b16 %v798
        %v1521 = vunpack.c.l.b16 %v799
        %v1522 = vunpack.c.l.b16 %v800
        %v1523 = vunpack.c.l.b16 %v801
        %v1524 = vunpack.c.l.b16 %v802
        %v1525 = vunpack.c.l.b16 %v803
        %v1526 = vunpack.c.l.b16 %v804
        %v1527 = vunpack.c.l.b16 %v805
        %v1528 = vunpack.c.l.b16 %v806
        %v1529 = vunpack.c.l.b16 %v807
        %v1530 = vunpack.c.l.b16 %v808
        %v1531 = vunpack.c.l.b16 %v809
        %v1532 = vunpack.c.l.b16 %v810
        %v1533 = vunpack.c.l.b16 %v811
        %v1534 = vunpack.c.l.b16 %v812
        %v1535 = vunpack.c.l.b16 %v813
        %v1536 = vunpack.c.l.b16 %v814
        %v1537 = vunpack.c.l.b16 %v815
        %v1538 = vunpack.c.l.b16 %v816
        %v1539 = vunpack.c.l.b16 %v817
        %v1540 = vunpack.c.l.b16 %v818
        %v1541 = vunpack.c.l.b16 %v819
        %v1542 = vunpack.c.l.b16 %v820
        %v1543 = vunpack.c.l.b16 %v821
        %v1544 = vpack.c.b16 %v1513, %v1512
        %v1545 = vpack.c.b16 %v1515, %v1514
        %v1546 = vpack.c.b16 %v1517, %v1516
        %v1547 = vpack.c.b16 %v1519, %v1518
        %v1548 = vpack.c.b16 %v1521, %v1520
        %v1549 = vpack.c.b16 %v1523, %v1522
        %v1550 = vpack.c.b16 %v1525, %v1524
        %v1551 = vpack.c.b16 %v1527, %v1526
        %v1552 = vpack.c.b16 %v1529, %v1528
        %v1553 = vpack.c.b16 %v1531, %v1530
        %v1554 = vpack.c.b16 %v1533, %v1532
        %v1555 = vpack.c.b16 %v1535, %v1534
        %v1556 = vpack.c.b16 %v1537, %v1536
        %v1557 = vpack.c.b16 %v1539, %v1538
        %v1558 = vpack.c.b16 %v1541, %v1540
        %v1559 = vpack.c.b16 %v1543, %v1542
        %v1561 = vsel %vm942, %v1544, 0
        %v1564 = vsel %vm942, %v1545, 0
        %v1567 = vsel %vm942, %v1546, 0
        %v1570 = vsel %vm942, %v1547, 0
        %v1573 = vsel %vm942, %v1548, 0
        %v1576 = vsel %vm942, %v1549, 0
        %v1579 = vsel %vm942, %v1550, 0
        %v1582 = vsel %vm942, %v1551, 0
        %v1585 = vsel %vm942, %v1552, 0
        %v1588 = vsel %vm942, %v1553, 0
        %v1591 = vsel %vm942, %v1554, 0
        %v1594 = vsel %vm942, %v1555, 0
        %v1597 = vsel %vm942, %v1556, 0
        %v1600 = vsel %vm942, %v1557, 0
        %v1603 = vsel %vm942, %v1558, 0
        %v1606 = vsel %vm942, %v1559, 0
        %1608 = vmatprep.subr.bf16.mxu0 0
        %1609 = vmatpush1.bf16.msra.mxu0 %v996
        %1610 = vmatprep.subr.bf16.mxu0 0
        %1611 = vmatpush1.bf16.msra.mxu0 0
        %1612 = vmatprep.subr.bf16.mxu0 0
        %1613 = vmatpush1.bf16.msra.mxu0 0
        %1614 = vmatprep.subr.bf16.mxu0 0
        %1615 = vmatpush1.bf16.msra.mxu0 0
        %1616 = vmatprep.subr.bf16.mxu0 0
        %1617 = vmatpush1.bf16.msra.mxu0 0
        %1618 = vmatprep.subr.bf16.mxu0 0
        %1619 = vmatpush1.bf16.msra.mxu0 0
        %1620 = vmatprep.subr.bf16.mxu0 0
        %1621 = vmatpush1.bf16.msra.mxu0 0
        %1622 = vmatprep.subr.bf16.mxu0 0
        %1623 = vmatpush1.bf16.msra.mxu0 0
        %1624 = vmatprep.subr.bf16.mxu0 0
        %1625 = vmatpush1.bf16.msra.mxu0 0
        %1626 = vmatprep.subr.bf16.mxu0 0
        %1627 = vmatpush1.bf16.msra.mxu0 0
        %1628 = vmatprep.subr.bf16.mxu0 0
        %1629 = vmatpush1.bf16.msra.mxu0 0
        %1630 = vmatprep.subr.bf16.mxu0 0
        %1631 = vmatpush1.bf16.msra.mxu0 0
        %1632 = vmatprep.subr.bf16.mxu0 0
        %1633 = vmatpush1.bf16.msra.mxu0 0
        %1634 = vmatprep.subr.bf16.mxu0 0
        %1635 = vmatpush1.bf16.msra.mxu0 0
        %1636 = vmatprep.subr.bf16.mxu0 0
        %1637 = vmatpush1.bf16.msra.mxu0 0
        %1638 = vmatprep.subr.bf16.mxu0 0
        %1639 = vmatpush1.bf16.msra.mxu0 0
        %1640 = vmatprep.mubr.bf16.mxu0 0
        %1641 = vmatmul.mubr.bf16.gmra.mrb[0].mxu0 %v1561
        %v1642 = vpop.f32.mrb[0].mxu0
        %v1643 = vadd.f32 0.0, %v1642
        %v1644 = vpop.f32.mrb[0].mxu0
        %v1645 = vpop.f32.mrb[0].mxu0
        %v1646 = vadd.f32 0.0, %v1645
        %v1647 = vpop.f32.mrb[0].mxu0
        %1648 = vmatprep.mubr.bf16.mxu0 0
        %1649 = vmatmul.mubr.bf16.gmra.mrb[0].mxu0 %v1564
        %v1650 = vpop.f32.mrb[0].mxu0
        %v1651 = vadd.f32 0.0, %v1650
        %v1652 = vpop.f32.mrb[0].mxu0
        %v1653 = vpop.f32.mrb[0].mxu0
        %v1654 = vadd.f32 0.0, %v1653
        %v1655 = vpop.f32.mrb[0].mxu0
        %1656 = vmatprep.mubr.bf16.mxu0 0
        %1657 = vmatmul.mubr.bf16.gmra.mrb[0].mxu0 %v1567
        %v1658 = vpop.f32.mrb[0].mxu0
        %v1659 = vadd.f32 0.0, %v1658
        %v1660 = vpop.f32.mrb[0].mxu0
        %v1661 = vpop.f32.mrb[0].mxu0
        %v1662 = vadd.f32 0.0, %v1661
        %v1663 = vpop.f32.mrb[0].mxu0
        %1664 = vmatprep.mubr.bf16.mxu0 0
        %1665 = vmatmul.mubr.bf16.gmra.mrb[0].mxu0 %v1570
        %v1666 = vpop.f32.mrb[0].mxu0
        %v1667 = vadd.f32 0.0, %v1666
        %v1668 = vpop.f32.mrb[0].mxu0
        %v1669 = vpop.f32.mrb[0].mxu0
        %v1670 = vadd.f32 0.0, %v1669
        %v1671 = vpop.f32.mrb[0].mxu0
        %1672 = vmatprep.mubr.bf16.mxu0 0
        %1673 = vmatmul.mubr.bf16.gmra.mrb[0].mxu0 %v1573
        %v1674 = vpop.f32.mrb[0].mxu0
        %v1675 = vadd.f32 0.0, %v1674
        %v1676 = vpop.f32.mrb[0].mxu0
        %v1677 = vpop.f32.mrb[0].mxu0
        %v1678 = vadd.f32 0.0, %v1677
        %v1679 = vpop.f32.mrb[0].mxu0
        %1680 = vmatprep.mubr.bf16.mxu0 0
        %1681 = vmatmul.mubr.bf16.gmra.mrb[0].mxu0 %v1576
        %v1682 = vpop.f32.mrb[0].mxu0
        %v1683 = vadd.f32 0.0, %v1682
        %v1684 = vpop.f32.mrb[0].mxu0
        %v1685 = vpop.f32.mrb[0].mxu0
        %v1686 = vadd.f32 0.0, %v1685
        %v1687 = vpop.f32.mrb[0].mxu0
        %1688 = vmatprep.mubr.bf16.mxu0 0
        %1689 = vmatmul.mubr.bf16.gmra.mrb[0].mxu0 %v1579
        %v1690 = vpop.f32.mrb[0].mxu0
        %v1691 = vadd.f32 0.0, %v1690
        %v1692 = vpop.f32.mrb[0].mxu0
        %v1693 = vpop.f32.mrb[0].mxu0
        %v1694 = vadd.f32 0.0, %v1693
        %v1695 = vpop.f32.mrb[0].mxu0
        %1696 = vmatprep.mubr.bf16.mxu0 0
        %1697 = vmatmul.mubr.bf16.gmra.mrb[0].mxu0 %v1582
        %v1698 = vpop.f32.mrb[0].mxu0
        %v1699 = vadd.f32 0.0, %v1698
        %v1700 = vpop.f32.mrb[0].mxu0
        %v1701 = vpop.f32.mrb[0].mxu0
        %v1702 = vadd.f32 0.0, %v1701
        %v1703 = vpop.f32.mrb[0].mxu0
        %1704 = vmatprep.mubr.bf16.mxu0 0
        %1705 = vmatmul.mubr.bf16.gmra.mrb[0].mxu0 %v1585
        %v1706 = vpop.f32.mrb[0].mxu0
        %v1707 = vadd.f32 0.0, %v1706
        %v1708 = vpop.f32.mrb[0].mxu0
        %v1709 = vpop.f32.mrb[0].mxu0
        %v1710 = vadd.f32 0.0, %v1709
        %v1711 = vpop.f32.mrb[0].mxu0
        %1712 = vmatprep.mubr.bf16.mxu0 0
        %1713 = vmatmul.mubr.bf16.gmra.mrb[0].mxu0 %v1588
        %v1714 = vpop.f32.mrb[0].mxu0
        %v1715 = vadd.f32 0.0, %v1714
        %v1716 = vpop.f32.mrb[0].mxu0
        %v1717 = vpop.f32.mrb[0].mxu0
        %v1718 = vadd.f32 0.0, %v1717
        %v1719 = vpop.f32.mrb[0].mxu0
        %1720 = vmatprep.mubr.bf16.mxu0 0
        %1721 = vmatmul.mubr.bf16.gmra.mrb[0].mxu0 %v1591
        %v1722 = vpop.f32.mrb[0].mxu0
        %v1723 = vadd.f32 0.0, %v1722
        %v1724 = vpop.f32.mrb[0].mxu0
        %v1725 = vpop.f32.mrb[0].mxu0
        %v1726 = vadd.f32 0.0, %v1725
        %v1727 = vpop.f32.mrb[0].mxu0
        %1728 = vmatprep.mubr.bf16.mxu0 0
        %1729 = vmatmul.mubr.bf16.gmra.mrb[0].mxu0 %v1594
        %v1730 = vpop.f32.mrb[0].mxu0
        %v1731 = vadd.f32 0.0, %v1730
        %v1732 = vpop.f32.mrb[0].mxu0
        %v1733 = vpop.f32.mrb[0].mxu0
        %v1734 = vadd.f32 0.0, %v1733
        %v1735 = vpop.f32.mrb[0].mxu0
        %1736 = vmatprep.mubr.bf16.mxu0 0
        %1737 = vmatmul.mubr.bf16.gmra.mrb[0].mxu0 %v1597
        %v1738 = vpop.f32.mrb[0].mxu0
        %v1739 = vadd.f32 0.0, %v1738
        %v1740 = vpop.f32.mrb[0].mxu0
        %v1741 = vpop.f32.mrb[0].mxu0
        %v1742 = vadd.f32 0.0, %v1741
        %v1743 = vpop.f32.mrb[0].mxu0
        %1744 = vmatprep.mubr.bf16.mxu0 0
        %1745 = vmatmul.mubr.bf16.gmra.mrb[0].mxu0 %v1600
        %v1746 = vpop.f32.mrb[0].mxu0
        %v1747 = vadd.f32 0.0, %v1746
        %v1748 = vpop.f32.mrb[0].mxu0
        %v1749 = vpop.f32.mrb[0].mxu0
        %v1750 = vadd.f32 0.0, %v1749
        %v1751 = vpop.f32.mrb[0].mxu0
        %1752 = vmatprep.mubr.bf16.mxu0 0
        %1753 = vmatmul.mubr.bf16.gmra.mrb[0].mxu0 %v1603
        %v1754 = vpop.f32.mrb[0].mxu0
        %v1755 = vadd.f32 0.0, %v1754
        %v1756 = vpop.f32.mrb[0].mxu0
        %v1757 = vpop.f32.mrb[0].mxu0
        %v1758 = vadd.f32 0.0, %v1757
        %v1759 = vpop.f32.mrb[0].mxu0
        %1760 = vmatprep.mubr.bf16.mxu0 0
        %1761 = vmatmul.mubr.bf16.gmra.mrb[0].mxu0 %v1606
        %v1762 = vpop.f32.mrb[0].mxu0
        %v1763 = vadd.f32 0.0, %v1762
        %v1764 = vpop.f32.mrb[0].mxu0
        %v1765 = vpop.f32.mrb[0].mxu0
        %v1766 = vadd.f32 0.0, %v1765
        %v1767 = vpop.f32.mrb[0].mxu0
        %1768 = vdwg.mxu0
        %v1769 = vmax.f32 %v1448, %v1643
        %v1770 = vmax.f32 %v1449, %v1646
        %v1771 = vmax.f32 %v1450, %v1651
        %v1772 = vmax.f32 %v1451, %v1654
        %v1773 = vmax.f32 %v1452, %v1659
        %v1774 = vmax.f32 %v1453, %v1662
        %v1775 = vmax.f32 %v1454, %v1667
        %v1776 = vmax.f32 %v1455, %v1670
        %v1777 = vmax.f32 %v1456, %v1675
        %v1778 = vmax.f32 %v1457, %v1678
        %v1779 = vmax.f32 %v1458, %v1683
        %v1780 = vmax.f32 %v1459, %v1686
        %v1781 = vmax.f32 %v1460, %v1691
        %v1782 = vmax.f32 %v1461, %v1694
        %v1783 = vmax.f32 %v1462, %v1699
        %v1784 = vmax.f32 %v1463, %v1702
        %v1785 = vmax.f32 %v1464, %v1707
        %v1786 = vmax.f32 %v1465, %v1710
        %v1787 = vmax.f32 %v1466, %v1715
        %v1788 = vmax.f32 %v1467, %v1718
        %v1789 = vmax.f32 %v1468, %v1723
        %v1790 = vmax.f32 %v1469, %v1726
        %v1791 = vmax.f32 %v1470, %v1731
        %v1792 = vmax.f32 %v1471, %v1734
        %v1793 = vmax.f32 %v1472, %v1739
        %v1794 = vmax.f32 %v1473, %v1742
        %v1795 = vmax.f32 %v1474, %v1747
        %v1796 = vmax.f32 %v1475, %v1750
        %v1797 = vmax.f32 %v1476, %v1755
        %v1798 = vmax.f32 %v1477, %v1758
        %v1799 = vmax.f32 %v1478, %v1763
        %v1800 = vmax.f32 %v1479, %v1766
        %v1833 = vunpack.c.l.b16 %v823
        %v1834 = vunpack.c.l.b16 %v824
        %v1835 = vunpack.c.l.b16 %v825
        %v1836 = vunpack.c.l.b16 %v826
        %v1837 = vunpack.c.l.b16 %v827
        %v1838 = vunpack.c.l.b16 %v828
        %v1839 = vunpack.c.l.b16 %v829
        %v1840 = vunpack.c.l.b16 %v830
        %v1841 = vunpack.c.l.b16 %v831
        %v1842 = vunpack.c.l.b16 %v832
        %v1843 = vunpack.c.l.b16 %v833
        %v1844 = vunpack.c.l.b16 %v834
        %v1845 = vunpack.c.l.b16 %v835
        %v1846 = vunpack.c.l.b16 %v836
        %v1847 = vunpack.c.l.b16 %v837
        %v1848 = vunpack.c.l.b16 %v838
        %v1849 = vunpack.c.l.b16 %v839
        %v1850 = vunpack.c.l.b16 %v840
        %v1851 = vunpack.c.l.b16 %v841
        %v1852 = vunpack.c.l.b16 %v842
        %v1853 = vunpack.c.l.b16 %v843
        %v1854 = vunpack.c.l.b16 %v844
        %v1855 = vunpack.c.l.b16 %v845
        %v1856 = vunpack.c.l.b16 %v846
        %v1857 = vunpack.c.l.b16 %v847
        %v1858 = vunpack.c.l.b16 %v848
        %v1859 = vunpack.c.l.b16 %v849
        %v1860 = vunpack.c.l.b16 %v850
        %v1861 = vunpack.c.l.b16 %v851
        %v1862 = vunpack.c.l.b16 %v852
        %v1863 = vunpack.c.l.b16 %v853
        %v1864 = vunpack.c.l.b16 %v854
        %v1865 = vpack.c.b16 %v1834, %v1833
        %v1866 = vpack.c.b16 %v1836, %v1835
        %v1867 = vpack.c.b16 %v1838, %v1837
        %v1868 = vpack.c.b16 %v1840, %v1839
        %v1869 = vpack.c.b16 %v1842, %v1841
        %v1870 = vpack.c.b16 %v1844, %v1843
        %v1871 = vpack.c.b16 %v1846, %v1845
        %v1872 = vpack.c.b16 %v1848, %v1847
        %v1873 = vpack.c.b16 %v1850, %v1849
        %v1874 = vpack.c.b16 %v1852, %v1851
        %v1875 = vpack.c.b16 %v1854, %v1853
        %v1876 = vpack.c.b16 %v1856, %v1855
        %v1877 = vpack.c.b16 %v1858, %v1857
        %v1878 = vpack.c.b16 %v1860, %v1859
        %v1879 = vpack.c.b16 %v1862, %v1861
        %v1880 = vpack.c.b16 %v1864, %v1863
        %v1882 = vsel %vm942, %v1865, 0
        %v1885 = vsel %vm942, %v1866, 0
        %v1888 = vsel %vm942, %v1867, 0
        %v1891 = vsel %vm942, %v1868, 0
        %v1894 = vsel %vm942, %v1869, 0
        %v1897 = vsel %vm942, %v1870, 0
        %v1900 = vsel %vm942, %v1871, 0
        %v1903 = vsel %vm942, %v1872, 0
        %v1906 = vsel %vm942, %v1873, 0
        %v1909 = vsel %vm942, %v1874, 0
        %v1912 = vsel %vm942, %v1875, 0
        %v1915 = vsel %vm942, %v1876, 0
        %v1918 = vsel %vm942, %v1877, 0
        %v1921 = vsel %vm942, %v1878, 0
        %v1924 = vsel %vm942, %v1879, 0
        %v1927 = vsel %vm942, %v1880, 0
        %1929 = vmatprep.subr.bf16.mxu0 0
        %1930 = vmatpush1.bf16.msra.mxu0 %v996
        %1931 = vmatprep.subr.bf16.mxu0 0
        %1932 = vmatpush1.bf16.msra.mxu0 0
        %1933 = vmatprep.subr.bf16.mxu0 0
        %1934 = vmatpush1.bf16.msra.mxu0 0
        %1935 = vmatprep.subr.bf16.mxu0 0
        %1936 = vmatpush1.bf16.msra.mxu0 0
        %1937 = vmatprep.subr.bf16.mxu0 0
        %1938 = vmatpush1.bf16.msra.mxu0 0
        %1939 = vmatprep.subr.bf16.mxu0 0
        %1940 = vmatpush1.bf16.msra.mxu0 0
        %1941 = vmatprep.subr.bf16.mxu0 0
        %1942 = vmatpush1.bf16.msra.mxu0 0
        %1943 = vmatprep.subr.bf16.mxu0 0
        %1944 = vmatpush1.bf16.msra.mxu0 0
        %1945 = vmatprep.subr.bf16.mxu0 0
        %1946 = vmatpush1.bf16.msra.mxu0 0
        %1947 = vmatprep.subr.bf16.mxu0 0
        %1948 = vmatpush1.bf16.msra.mxu0 0
        %1949 = vmatprep.subr.bf16.mxu0 0
        %1950 = vmatpush1.bf16.msra.mxu0 0
        %1951 = vmatprep.subr.bf16.mxu0 0
        %1952 = vmatpush1.bf16.msra.mxu0 0
        %1953 = vmatprep.subr.bf16.mxu0 0
        %1954 = vmatpush1.bf16.msra.mxu0 0
        %1955 = vmatprep.subr.bf16.mxu0 0
        %1956 = vmatpush1.bf16.msra.mxu0 0
        %1957 = vmatprep.subr.bf16.mxu0 0
        %1958 = vmatpush1.bf16.msra.mxu0 0
        %1959 = vmatprep.subr.bf16.mxu0 0
        %1960 = vmatpush1.bf16.msra.mxu0 0
        %1961 = vmatprep.mubr.bf16.mxu0 0
        %1962 = vmatmul.mubr.bf16.gmra.mrb[0].mxu0 %v1882
        %v1963 = vpop.f32.mrb[0].mxu0
        %v1964 = vadd.f32 0.0, %v1963
        %v1965 = vpop.f32.mrb[0].mxu0
        %v1966 = vpop.f32.mrb[0].mxu0
        %v1967 = vadd.f32 0.0, %v1966
        %v1968 = vpop.f32.mrb[0].mxu0
        %1969 = vmatprep.mubr.bf16.mxu0 0
        %1970 = vmatmul.mubr.bf16.gmra.mrb[0].mxu0 %v1885
        %v1971 = vpop.f32.mrb[0].mxu0
        %v1972 = vadd.f32 0.0, %v1971
        %v1973 = vpop.f32.mrb[0].mxu0
        %v1974 = vpop.f32.mrb[0].mxu0
        %v1975 = vadd.f32 0.0, %v1974
        %v1976 = vpop.f32.mrb[0].mxu0
        %1977 = vmatprep.mubr.bf16.mxu0 0
        %1978 = vmatmul.mubr.bf16.gmra.mrb[0].mxu0 %v1888
        %v1979 = vpop.f32.mrb[0].mxu0
        %v1980 = vadd.f32 0.0, %v1979
        %v1981 = vpop.f32.mrb[0].mxu0
        %v1982 = vpop.f32.mrb[0].mxu0
        %v1983 = vadd.f32 0.0, %v1982
        %v1984 = vpop.f32.mrb[0].mxu0
        %1985 = vmatprep.mubr.bf16.mxu0 0
        %1986 = vmatmul.mubr.bf16.gmra.mrb[0].mxu0 %v1891
        %v1987 = vpop.f32.mrb[0].mxu0
        %v1988 = vadd.f32 0.0, %v1987
        %v1989 = vpop.f32.mrb[0].mxu0
        %v1990 = vpop.f32.mrb[0].mxu0
        %v1991 = vadd.f32 0.0, %v1990
        %v1992 = vpop.f32.mrb[0].mxu0
        %1993 = vmatprep.mubr.bf16.mxu0 0
        %1994 = vmatmul.mubr.bf16.gmra.mrb[0].mxu0 %v1894
        %v1995 = vpop.f32.mrb[0].mxu0
        %v1996 = vadd.f32 0.0, %v1995
        %v1997 = vpop.f32.mrb[0].mxu0
        %v1998 = vpop.f32.mrb[0].mxu0
        %v1999 = vadd.f32 0.0, %v1998
        %v2000 = vpop.f32.mrb[0].mxu0
        %2001 = vmatprep.mubr.bf16.mxu0 0
        %2002 = vmatmul.mubr.bf16.gmra.mrb[0].mxu0 %v1897
        %v2003 = vpop.f32.mrb[0].mxu0
        %v2004 = vadd.f32 0.0, %v2003
        %v2005 = vpop.f32.mrb[0].mxu0
        %v2006 = vpop.f32.mrb[0].mxu0
        %v2007 = vadd.f32 0.0, %v2006
        %v2008 = vpop.f32.mrb[0].mxu0
        %2009 = vmatprep.mubr.bf16.mxu0 0
        %2010 = vmatmul.mubr.bf16.gmra.mrb[0].mxu0 %v1900
        %v2011 = vpop.f32.mrb[0].mxu0
        %v2012 = vadd.f32 0.0, %v2011
        %v2013 = vpop.f32.mrb[0].mxu0
        %v2014 = vpop.f32.mrb[0].mxu0
        %v2015 = vadd.f32 0.0, %v2014
        %v2016 = vpop.f32.mrb[0].mxu0
        %2017 = vmatprep.mubr.bf16.mxu0 0
        %2018 = vmatmul.mubr.bf16.gmra.mrb[0].mxu0 %v1903
        %v2019 = vpop.f32.mrb[0].mxu0
        %v2020 = vadd.f32 0.0, %v2019
        %v2021 = vpop.f32.mrb[0].mxu0
        %v2022 = vpop.f32.mrb[0].mxu0
        %v2023 = vadd.f32 0.0, %v2022
        %v2024 = vpop.f32.mrb[0].mxu0
        %2025 = vmatprep.mubr.bf16.mxu0 0
        %2026 = vmatmul.mubr.bf16.gmra.mrb[0].mxu0 %v1906
        %v2027 = vpop.f32.mrb[0].mxu0
        %v2028 = vadd.f32 0.0, %v2027
        %v2029 = vpop.f32.mrb[0].mxu0
        %v2030 = vpop.f32.mrb[0].mxu0
        %v2031 = vadd.f32 0.0, %v2030
        %v2032 = vpop.f32.mrb[0].mxu0
        %2033 = vmatprep.mubr.bf16.mxu0 0
        %2034 = vmatmul.mubr.bf16.gmra.mrb[0].mxu0 %v1909
        %v2035 = vpop.f32.mrb[0].mxu0
        %v2036 = vadd.f32 0.0, %v2035
        %v2037 = vpop.f32.mrb[0].mxu0
        %v2038 = vpop.f32.mrb[0].mxu0
        %v2039 = vadd.f32 0.0, %v2038
        %v2040 = vpop.f32.mrb[0].mxu0
        %2041 = vmatprep.mubr.bf16.mxu0 0
        %2042 = vmatmul.mubr.bf16.gmra.mrb[0].mxu0 %v1912
        %v2043 = vpop.f32.mrb[0].mxu0
        %v2044 = vadd.f32 0.0, %v2043
        %v2045 = vpop.f32.mrb[0].mxu0
        %v2046 = vpop.f32.mrb[0].mxu0
        %v2047 = vadd.f32 0.0, %v2046
        %v2048 = vpop.f32.mrb[0].mxu0
        %2049 = vmatprep.mubr.bf16.mxu0 0
        %2050 = vmatmul.mubr.bf16.gmra.mrb[0].mxu0 %v1915
        %v2051 = vpop.f32.mrb[0].mxu0
        %v2052 = vadd.f32 0.0, %v2051
        %v2053 = vpop.f32.mrb[0].mxu0
        %v2054 = vpop.f32.mrb[0].mxu0
        %v2055 = vadd.f32 0.0, %v2054
        %v2056 = vpop.f32.mrb[0].mxu0
        %2057 = vmatprep.mubr.bf16.mxu0 0
        %2058 = vmatmul.mubr.bf16.gmra.mrb[0].mxu0 %v1918
        %v2059 = vpop.f32.mrb[0].mxu0
        %v2060 = vadd.f32 0.0, %v2059
        %v2061 = vpop.f32.mrb[0].mxu0
        %v2062 = vpop.f32.mrb[0].mxu0
        %v2063 = vadd.f32 0.0, %v2062
        %v2064 = vpop.f32.mrb[0].mxu0
        %2065 = vmatprep.mubr.bf16.mxu0 0
        %2066 = vmatmul.mubr.bf16.gmra.mrb[0].mxu0 %v1921
        %v2067 = vpop.f32.mrb[0].mxu0
        %v2068 = vadd.f32 0.0, %v2067
        %v2069 = vpop.f32.mrb[0].mxu0
        %v2070 = vpop.f32.mrb[0].mxu0
        %v2071 = vadd.f32 0.0, %v2070
        %v2072 = vpop.f32.mrb[0].mxu0
        %2073 = vmatprep.mubr.bf16.mxu0 0
        %2074 = vmatmul.mubr.bf16.gmra.mrb[0].mxu0 %v1924
        %v2075 = vpop.f32.mrb[0].mxu0
        %v2076 = vadd.f32 0.0, %v2075
        %v2077 = vpop.f32.mrb[0].mxu0
        %v2078 = vpop.f32.mrb[0].mxu0
        %v2079 = vadd.f32 0.0, %v2078
        %v2080 = vpop.f32.mrb[0].mxu0
        %2081 = vmatprep.mubr.bf16.mxu0 0
        %2082 = vmatmul.mubr.bf16.gmra.mrb[0].mxu0 %v1927
        %v2083 = vpop.f32.mrb[0].mxu0
        %v2084 = vadd.f32 0.0, %v2083
        %v2085 = vpop.f32.mrb[0].mxu0
        %v2086 = vpop.f32.mrb[0].mxu0
        %v2087 = vadd.f32 0.0, %v2086
        %v2088 = vpop.f32.mrb[0].mxu0
        %2089 = vdwg.mxu0
        %v2090 = vmax.f32 %v1769, %v1964
        %v2091 = vmax.f32 %v1770, %v1967
        %v2092 = vmax.f32 %v1771, %v1972
        %v2093 = vmax.f32 %v1772, %v1975
        %v2094 = vmax.f32 %v1773, %v1980
        %v2095 = vmax.f32 %v1774, %v1983
        %v2096 = vmax.f32 %v1775, %v1988
        %v2097 = vmax.f32 %v1776, %v1991
        %v2098 = vmax.f32 %v1777, %v1996
        %v2099 = vmax.f32 %v1778, %v1999
        %v2100 = vmax.f32 %v1779, %v2004
        %v2101 = vmax.f32 %v1780, %v2007
        %v2102 = vmax.f32 %v1781, %v2012
        %v2103 = vmax.f32 %v1782, %v2015
        %v2104 = vmax.f32 %v1783, %v2020
        %v2105 = vmax.f32 %v1784, %v2023
        %v2106 = vmax.f32 %v1785, %v2028
        %v2107 = vmax.f32 %v1786, %v2031
        %v2108 = vmax.f32 %v1787, %v2036
        %v2109 = vmax.f32 %v1788, %v2039
        %v2110 = vmax.f32 %v1789, %v2044
        %v2111 = vmax.f32 %v1790, %v2047
        %v2112 = vmax.f32 %v1791, %v2052
        %v2113 = vmax.f32 %v1792, %v2055
        %v2114 = vmax.f32 %v1793, %v2060
        %v2115 = vmax.f32 %v1794, %v2063
        %v2116 = vmax.f32 %v1795, %v2068
        %v2117 = vmax.f32 %v1796, %v2071
        %v2118 = vmax.f32 %v1797, %v2076
        %v2119 = vmax.f32 %v1798, %v2079
        %v2120 = vmax.f32 %v1799, %v2084
        %v2121 = vmax.f32 %v1800, %v2087
        %v2122 = vld [vmem:[%s2] sm:$0x1]
        %v2124 = vlaneseq
        %v2125 = vshrl.u32 %v2124, 7
        %v2126 = vsub.s32 0, %v2125
        %v2127 = vrot.slane %v2122, %v2126
        %v2129 = vadd.f32 %v2090, %v2127
        %v2130 = vadd.f32 %v2091, %v2127
        %v2131 = vadd.f32 %v2092, %v2127
        %v2132 = vadd.f32 %v2093, %v2127
        %v2133 = vadd.f32 %v2094, %v2127
        %v2134 = vadd.f32 %v2095, %v2127
        %v2135 = vadd.f32 %v2096, %v2127
        %v2136 = vadd.f32 %v2097, %v2127
        %v2137 = vadd.f32 %v2098, %v2127
        %v2138 = vadd.f32 %v2099, %v2127
        %v2139 = vadd.f32 %v2100, %v2127
        %v2140 = vadd.f32 %v2101, %v2127
        %v2141 = vadd.f32 %v2102, %v2127
        %v2142 = vadd.f32 %v2103, %v2127
        %v2143 = vadd.f32 %v2104, %v2127
        %v2144 = vadd.f32 %v2105, %v2127
        %v2145 = vadd.f32 %v2106, %v2127
        %v2146 = vadd.f32 %v2107, %v2127
        %v2147 = vadd.f32 %v2108, %v2127
        %v2148 = vadd.f32 %v2109, %v2127
        %v2149 = vadd.f32 %v2110, %v2127
        %v2150 = vadd.f32 %v2111, %v2127
        %v2151 = vadd.f32 %v2112, %v2127
        %v2152 = vadd.f32 %v2113, %v2127
        %v2153 = vadd.f32 %v2114, %v2127
        %v2154 = vadd.f32 %v2115, %v2127
        %v2155 = vadd.f32 %v2116, %v2127
        %v2156 = vadd.f32 %v2117, %v2127
        %v2157 = vadd.f32 %v2118, %v2127
        %v2158 = vadd.f32 %v2119, %v2127
        %v2159 = vadd.f32 %v2120, %v2127
        %v2160 = vadd.f32 %v2121, %v2127
        %v2161 = vmax.f32 %v2129, 0.0
        %v2162 = vmax.f32 %v2130, 0.0
        %v2163 = vmax.f32 %v2131, 0.0
        %v2164 = vmax.f32 %v2132, 0.0
        %v2165 = vmax.f32 %v2133, 0.0
        %v2166 = vmax.f32 %v2134, 0.0
        %v2167 = vmax.f32 %v2135, 0.0
        %v2168 = vmax.f32 %v2136, 0.0
        %v2169 = vmax.f32 %v2137, 0.0
        %v2170 = vmax.f32 %v2138, 0.0
        %v2171 = vmax.f32 %v2139, 0.0
        %v2172 = vmax.f32 %v2140, 0.0
        %v2173 = vmax.f32 %v2141, 0.0
        %v2174 = vmax.f32 %v2142, 0.0
        %v2175 = vmax.f32 %v2143, 0.0
        %v2176 = vmax.f32 %v2144, 0.0
        %v2177 = vmax.f32 %v2145, 0.0
        %v2178 = vmax.f32 %v2146, 0.0
        %v2179 = vmax.f32 %v2147, 0.0
        %v2180 = vmax.f32 %v2148, 0.0
        %v2181 = vmax.f32 %v2149, 0.0
        %v2182 = vmax.f32 %v2150, 0.0
        %v2183 = vmax.f32 %v2151, 0.0
        %v2184 = vmax.f32 %v2152, 0.0
        %v2185 = vmax.f32 %v2153, 0.0
        %v2186 = vmax.f32 %v2154, 0.0
        %v2187 = vmax.f32 %v2155, 0.0
        %v2188 = vmax.f32 %v2156, 0.0
        %v2189 = vmax.f32 %v2157, 0.0
        %v2190 = vmax.f32 %v2158, 0.0
        %v2191 = vmax.f32 %v2159, 0.0
        %v2192 = vmax.f32 %v2160, 0.0
        %v2193 = vpack.c.bf16 %v2162, %v2161
        %v2194 = vpack.c.bf16 %v2164, %v2163
        %v2195 = vpack.c.bf16 %v2166, %v2165
        %v2196 = vpack.c.bf16 %v2168, %v2167
        %v2197 = vpack.c.bf16 %v2170, %v2169
        %v2198 = vpack.c.bf16 %v2172, %v2171
        %v2199 = vpack.c.bf16 %v2174, %v2173
        %v2200 = vpack.c.bf16 %v2176, %v2175
        %v2201 = vpack.c.bf16 %v2178, %v2177
        %v2202 = vpack.c.bf16 %v2180, %v2179
        %v2203 = vpack.c.bf16 %v2182, %v2181
        %v2204 = vpack.c.bf16 %v2184, %v2183
        %v2205 = vpack.c.bf16 %v2186, %v2185
        %v2206 = vpack.c.bf16 %v2188, %v2187
        %v2207 = vpack.c.bf16 %v2190, %v2189
        %v2208 = vpack.c.bf16 %v2192, %v2191
        %v2225 = vunpack.c.l.b16 %v2193
        %v2226 = vunpack.c.h.b16 %v2193
        %v2227 = vunpack.c.l.b16 %v2194
        %v2228 = vunpack.c.h.b16 %v2194
        %v2229 = vunpack.c.l.b16 %v2195
        %v2230 = vunpack.c.h.b16 %v2195
        %v2231 = vunpack.c.l.b16 %v2196
        %v2232 = vunpack.c.h.b16 %v2196
        %v2233 = vunpack.c.l.b16 %v2197
        %v2234 = vunpack.c.h.b16 %v2197
        %v2235 = vunpack.c.l.b16 %v2198
        %v2236 = vunpack.c.h.b16 %v2198
        %v2237 = vunpack.c.l.b16 %v2199
        %v2238 = vunpack.c.h.b16 %v2199
        %v2239 = vunpack.c.l.b16 %v2200
        %v2240 = vunpack.c.h.b16 %v2200
        %v2241 = vunpack.c.l.b16 %v2201
        %v2242 = vunpack.c.h.b16 %v2201
        %v2243 = vunpack.c.l.b16 %v2202
        %v2244 = vunpack.c.h.b16 %v2202
        %v2245 = vunpack.c.l.b16 %v2203
        %v2246 = vunpack.c.h.b16 %v2203
        %v2247 = vunpack.c.l.b16 %v2204
        %v2248 = vunpack.c.h.b16 %v2204
        %v2249 = vunpack.c.l.b16 %v2205
        %v2250 = vunpack.c.h.b16 %v2205
        %v2251 = vunpack.c.l.b16 %v2206
        %v2252 = vunpack.c.h.b16 %v2206
        %v2253 = vunpack.c.l.b16 %v2207
        %v2254 = vunpack.c.h.b16 %v2207
        %v2255 = vunpack.c.l.b16 %v2208
        %v2256 = vunpack.c.h.b16 %v2208
        %v2257 = vpack.c.b16 %v2225, %v2225
        %v2258 = vpack.c.b16 %v2226, %v2226
        %v2259 = vpack.c.b16 %v2227, %v2227
        %v2260 = vpack.c.b16 %v2228, %v2228
        %v2261 = vpack.c.b16 %v2229, %v2229
        %v2262 = vpack.c.b16 %v2230, %v2230
        %v2263 = vpack.c.b16 %v2231, %v2231
        %v2264 = vpack.c.b16 %v2232, %v2232
        %v2265 = vpack.c.b16 %v2233, %v2233
        %v2266 = vpack.c.b16 %v2234, %v2234
        %v2267 = vpack.c.b16 %v2235, %v2235
        %v2268 = vpack.c.b16 %v2236, %v2236
        %v2269 = vpack.c.b16 %v2237, %v2237
        %v2270 = vpack.c.b16 %v2238, %v2238
        %v2271 = vpack.c.b16 %v2239, %v2239
        %v2272 = vpack.c.b16 %v2240, %v2240
        %v2273 = vpack.c.b16 %v2241, %v2241
        %v2274 = vpack.c.b16 %v2242, %v2242
        %v2275 = vpack.c.b16 %v2243, %v2243
        %v2276 = vpack.c.b16 %v2244, %v2244
        %v2277 = vpack.c.b16 %v2245, %v2245
        %v2278 = vpack.c.b16 %v2246, %v2246
        %v2279 = vpack.c.b16 %v2247, %v2247
        %v2280 = vpack.c.b16 %v2248, %v2248
        %v2281 = vpack.c.b16 %v2249, %v2249
        %v2282 = vpack.c.b16 %v2250, %v2250
        %v2283 = vpack.c.b16 %v2251, %v2251
        %v2284 = vpack.c.b16 %v2252, %v2252
        %v2285 = vpack.c.b16 %v2253, %v2253
        %v2286 = vpack.c.b16 %v2254, %v2254
        %v2287 = vpack.c.b16 %v2255, %v2255
        %v2288 = vpack.c.b16 %v2256, %v2256
        %vm2321 = vcmask 257024
        %2322 = vst.msk [vmem:[%s721] sm:$0xf] %vm2321, %v2257
        %2323 = vst.msk [vmem:[%s721 + $0x4] sm:$0xf] %vm2321, %v2258
        %2324 = vst.msk [vmem:[%s721 + $0x8] sm:$0xf] %vm2321, %v2259
        %2325 = vst.msk [vmem:[%s721 + $0xc] sm:$0xf] %vm2321, %v2260
        %2326 = vst.msk [vmem:[%s721 + $0x10] sm:$0xf] %vm2321, %v2261
        %2327 = vst.msk [vmem:[%s721 + $0x14] sm:$0xf] %vm2321, %v2262
        %2328 = vst.msk [vmem:[%s721 + $0x18] sm:$0xf] %vm2321, %v2263
        %2329 = vst.msk [vmem:[%s721 + $0x1c] sm:$0xf] %vm2321, %v2264
        %2330 = vst.msk [vmem:[%s721 + $0x20] sm:$0xf] %vm2321, %v2265
        %2331 = vst.msk [vmem:[%s721 + $0x24] sm:$0xf] %vm2321, %v2266
        %2332 = vst.msk [vmem:[%s721 + $0x28] sm:$0xf] %vm2321, %v2267
        %2333 = vst.msk [vmem:[%s721 + $0x2c] sm:$0xf] %vm2321, %v2268
        %2334 = vst.msk [vmem:[%s721 + $0x30] sm:$0xf] %vm2321, %v2269
        %2335 = vst.msk [vmem:[%s721 + $0x34] sm:$0xf] %vm2321, %v2270
        %2336 = vst.msk [vmem:[%s721 + $0x38] sm:$0xf] %vm2321, %v2271
        %2337 = vst.msk [vmem:[%s721 + $0x3c] sm:$0xf] %vm2321, %v2272
        %2338 = vst.msk [vmem:[%s721 + $0x40] sm:$0xf] %vm2321, %v2273
        %2339 = vst.msk [vmem:[%s721 + $0x44] sm:$0xf] %vm2321, %v2274
        %2340 = vst.msk [vmem:[%s721 + $0x48] sm:$0xf] %vm2321, %v2275
        %2341 = vst.msk [vmem:[%s721 + $0x4c] sm:$0xf] %vm2321, %v2276
        %2342 = vst.msk [vmem:[%s721 + $0x50] sm:$0xf] %vm2321, %v2277
        %2343 = vst.msk [vmem:[%s721 + $0x54] sm:$0xf] %vm2321, %v2278
        %2344 = vst.msk [vmem:[%s721 + $0x58] sm:$0xf] %vm2321, %v2279
        %2345 = vst.msk [vmem:[%s721 + $0x5c] sm:$0xf] %vm2321, %v2280
        %2346 = vst.msk [vmem:[%s721 + $0x60] sm:$0xf] %vm2321, %v2281
        %2347 = vst.msk [vmem:[%s721 + $0x64] sm:$0xf] %vm2321, %v2282
        %2348 = vst.msk [vmem:[%s721 + $0x68] sm:$0xf] %vm2321, %v2283
        %2349 = vst.msk [vmem:[%s721 + $0x6c] sm:$0xf] %vm2321, %v2284
        %2350 = vst.msk [vmem:[%s721 + $0x70] sm:$0xf] %vm2321, %v2285
        %2351 = vst.msk [vmem:[%s721 + $0x74] sm:$0xf] %vm2321, %v2286
        %2352 = vst.msk [vmem:[%s721 + $0x78] sm:$0xf] %vm2321, %v2287
        %2353 = vst.msk [vmem:[%s721 + $0x7c] sm:$0xf] %vm2321, %v2288
        %s2354 = smul.u32 32, %s14
        %p2355 = scmp.lt.s32.totalorder %s2354, 63
        %s2356 = scalar_select %p2355, %s2354, 63
        %s2357 = smul.addr %s2356, 4
        %s2358 = scalar_lea.vmem %s3, %s2357
        // Predicated region
        $region74: #{cnn_forward.3} parent=68 // pred_check
          %p2359 = pneg %p100
        $region75: #{cnn_forward.3} parent=68 // pred_check_branch
          %2361 = sbr.rel (%p2359) target = $region77
        $region76: #{cnn_forward.3} parent=68 // pred_region
          %s2362 = smul.u32 32, %s14
        $region77: #{cnn_forward.3} parent=68 // pred_fallthru
          _
      $region69: #{cnn_forward.3} parent=5 // pred_fallthru
        _
      %p2363 = scmp.le.s32.totalorder 2, %s9
      // Predicated region
      $region78: #{cnn_forward.3} parent=5 // pred_check
        %p2364 = pneg %p2363
      $region79: #{cnn_forward.3} parent=5 // pred_check_branch
        %2366 = sbr.rel (%p2364) target = $region81
      $region80: #{cnn_forward.3} parent=5 // pred_region
        %s2367 = ssub.s32 %s9, 2
        // Predicated region
        $region82: #{cnn_forward.3} parent=80 // pred_check
          %p2368 = pneg %p106
        $region83: #{cnn_forward.3} parent=80 // pred_check_branch
          %2370 = sbr.rel (%p2368) target = $region85
        $region84: #{cnn_forward.3} parent=80 // pred_region
          %s2371 = smul.u32 32, %s15
          %p2372 = scmp.lt.s32.totalorder %s2371, 63
          %s2373 = scalar_select %p2372, %s2371, 63
          %s2374 = smul.addr %s2373, 4
          %s2375 = scalar_lea.vmem %s3, %s2374
        $region85: #{cnn_forward.3} parent=80 // pred_fallthru
          _
      $region81: #{cnn_forward.3} parent=5 // pred_fallthru
        _
    $region6: #{cnn_forward.3} parent=1 // loop_footer
      %s13 = sadd.s32 1, %s9
    $region7: #{cnn_forward.3} parent=1 // loop_footer_branch
      %8 = sbr.rel target = $region3
    $region8: #{cnn_forward.3} parent=1 // loop_exit
      _

// kernel: cnn_forward.5
$region0: #{cnn_forward.5}
  #allocation0 [shape = 'u32[]', space=smem, size = 0x4, offset = 0x4, fixed_abs, tag = 'smem constant byte address 0x4 - core index']
  #allocation1 [shape = 'u32[144,128]{1,0:T(1,128)}', space=vmem, size = 0x12000, scoped, tag = 'internal scratch']
  %s0 = inlined_call_operand.vmem [shape: bf16[8,3136], index: 0, kind: input, shape index: {}]
  %s1 = inlined_call_operand.vmem [shape: bf16[3136,128], index: 1, kind: input, shape index: {}]
  %s2 = inlined_call_operand.vmem [shape: f32[1,128], index: 2, kind: input, shape index: {}]
  %s3 = inlined_call_operand.vmem [shape: bf16[128,128], index: 3, kind: input, shape index: {}]
  %s4 = inlined_call_operand.vmem [shape: f32[1,128], index: 4, kind: input, shape index: {}]
  %s5 = inlined_call_operand.vmem [shape: f32[8,128], index: 5, kind: output, shape index: {}]
  %s6 = sld [smem:[#allocation0]]
  $region30: #{cnn_forward.5} parent=0
    _
  %s8 = ssub.s32 1, %s6
  %s9 = scalar_select 0, %s8, %s6
  // Predicated region
  $region2: #{cnn_forward.5} parent=0 // pred_check
    _
  $region3: #{cnn_forward.5} parent=0 // pred_check_branch
    %11 = sbr.rel (0) target = $region5
  $region4: #{cnn_forward.5} parent=0 // pred_region
    _
  $region5: #{cnn_forward.5} parent=0 // pred_fallthru
    _
  // Predicated region
  $region6: #{cnn_forward.5} parent=0 // pred_check
    _
  $region7: #{cnn_forward.5} parent=0 // pred_check_branch
    %13 = sbr.rel (0) target = $region9
  $region8: #{cnn_forward.5} parent=0 // pred_region
    _
  $region9: #{cnn_forward.5} parent=0 // pred_fallthru
    _
  // Predicated region
  $region10: #{cnn_forward.5} parent=0 // pred_check
    _
  $region11: #{cnn_forward.5} parent=0 // pred_check_branch
    %15 = sbr.rel (0) target = $region13
  $region12: #{cnn_forward.5} parent=0 // pred_region
    _
  $region13: #{cnn_forward.5} parent=0 // pred_fallthru
    _
  // Predicated region
  $region14: #{cnn_forward.5} parent=0 // pred_check
    _
  $region15: #{cnn_forward.5} parent=0 // pred_check_branch
    %17 = sbr.rel (0) target = $region17
  $region16: #{cnn_forward.5} parent=0 // pred_region
    _
  $region17: #{cnn_forward.5} parent=0 // pred_fallthru
    _
  // Predicated region
  $region18: #{cnn_forward.5} parent=0 // pred_check
    _
  $region19: #{cnn_forward.5} parent=0 // pred_check_branch
    %19 = sbr.rel (0) target = $region21
  $region20: #{cnn_forward.5} parent=0 // pred_region
    _
  $region21: #{cnn_forward.5} parent=0 // pred_fallthru
    _
  %v21 = vld [vmem:[%s0] sm:$0xff]
  %v22 = vld [vmem:[%s0 + $0x8] sm:$0xff]
  %v23 = vld [vmem:[%s0 + $0x10] sm:$0xff]
  %v24 = vld [vmem:[%s0 + $0x18] sm:$0xff]
  %v25 = vld [vmem:[%s0 + $0x20] sm:$0xff]
  %v26 = vld [vmem:[%s0 + $0x28] sm:$0xff]
  %v27 = vld [vmem:[%s0 + $0x30] sm:$0xff]
  %v28 = vld [vmem:[%s0 + $0x38] sm:$0xff]
  %v29 = vld [vmem:[%s0 + $0x40] sm:$0xff]
  %v30 = vld [vmem:[%s0 + $0x48] sm:$0xff]
  %v31 = vld [vmem:[%s0 + $0x50] sm:$0xff]
  %v32 = vld [vmem:[%s0 + $0x58] sm:$0xff]
  %v33 = vld [vmem:[%s0 + $0x60] sm:$0xf]
  %v34 = vld [vmem:[%s1] sm:$0xf]
  %v35 = vld [vmem:[%s1 + $0x4] sm:$0xf]
  %v36 = vld [vmem:[%s1 + $0x8] sm:$0xf]
  %v37 = vld [vmem:[%s1 + $0xc] sm:$0xf]
  %v38 = vld [vmem:[%s1 + $0x10] sm:$0xf]
  %v39 = vld [vmem:[%s1 + $0x14] sm:$0xf]
  %v40 = vld [vmem:[%s1 + $0x18] sm:$0xf]
  %v41 = vld [vmem:[%s1 + $0x1c] sm:$0xf]
  %v42 = vld [vmem:[%s1 + $0x20] sm:$0xf]
  %v43 = vld [vmem:[%s1 + $0x24] sm:$0xf]
  %v44 = vld [vmem:[%s1 + $0x28] sm:$0xf]
  %v45 = vld [vmem:[%s1 + $0x2c] sm:$0xf]
  %v46 = vld [vmem:[%s1 + $0x30] sm:$0xf]
  %v47 = vld [vmem:[%s1 + $0x34] sm:$0xf]
  %v48 = vld [vmem:[%s1 + $0x38] sm:$0xf]
  %v49 = vld [vmem:[%s1 + $0x3c] sm:$0xf]
  %v50 = vld [vmem:[%s1 + $0x40] sm:$0xf]
  %v51 = vld [vmem:[%s1 + $0x44] sm:$0xf]
  %v52 = vld [vmem:[%s1 + $0x48] sm:$0xf]
  %v53 = vld [vmem:[%s1 + $0x4c] sm:$0xf]
  %v54 = vld [vmem:[%s1 + $0x50] sm:$0xf]
  %v55 = vld [vmem:[%s1 + $0x54] sm:$0xf]
  %v56 = vld [vmem:[%s1 + $0x58] sm:$0xf]
  %v57 = vld [vmem:[%s1 + $0x5c] sm:$0xf]
  %v58 = vld [vmem:[%s1 + $0x60] sm:$0xf]
  %v59 = vld [vmem:[%s1 + $0x64] sm:$0xf]
  %v60 = vld [vmem:[%s1 + $0x68] sm:$0xf]
  %v61 = vld [vmem:[%s1 + $0x6c] sm:$0xf]
  %v62 = vld [vmem:[%s1 + $0x70] sm:$0xf]
  %v63 = vld [vmem:[%s1 + $0x74] sm:$0xf]
  %v64 = vld [vmem:[%s1 + $0x78] sm:$0xf]
  %v65 = vld [vmem:[%s1 + $0x7c] sm:$0xf]
  %v66 = vld [vmem:[%s1 + $0x80] sm:$0xf]
  %v67 = vld [vmem:[%s1 + $0x84] sm:$0xf]
  %v68 = vld [vmem:[%s1 + $0x88] sm:$0xf]
  %v69 = vld [vmem:[%s1 + $0x8c] sm:$0xf]
  %v70 = vld [vmem:[%s1 + $0x90] sm:$0xf]
  %v71 = vld [vmem:[%s1 + $0x94] sm:$0xf]
  %v72 = vld [vmem:[%s1 + $0x98] sm:$0xf]
  %v73 = vld [vmem:[%s1 + $0x9c] sm:$0xf]
  %v74 = vld [vmem:[%s1 + $0xa0] sm:$0xf]
  %v75 = vld [vmem:[%s1 + $0xa4] sm:$0xf]
  %v76 = vld [vmem:[%s1 + $0xa8] sm:$0xf]
  %v77 = vld [vmem:[%s1 + $0xac] sm:$0xf]
  %v78 = vld [vmem:[%s1 + $0xb0] sm:$0xf]
  %v79 = vld [vmem:[%s1 + $0xb4] sm:$0xf]
  %v80 = vld [vmem:[%s1 + $0xb8] sm:$0xf]
  %v81 = vld [vmem:[%s1 + $0xbc] sm:$0xf]
  %v82 = vld [vmem:[%s1 + $0xc0] sm:$0xf]
  %v83 = vld [vmem:[%s1 + $0xc4] sm:$0xf]
  %v84 = vld [vmem:[%s1 + $0xc8] sm:$0xf]
  %v85 = vld [vmem:[%s1 + $0xcc] sm:$0xf]
  %v86 = vld [vmem:[%s1 + $0xd0] sm:$0xf]
  %v87 = vld [vmem:[%s1 + $0xd4] sm:$0xf]
  %v88 = vld [vmem:[%s1 + $0xd8] sm:$0xf]
  %v89 = vld [vmem:[%s1 + $0xdc] sm:$0xf]
  %v90 = vld [vmem:[%s1 + $0xe0] sm:$0xf]
  %v91 = vld [vmem:[%s1 + $0xe4] sm:$0xf]
  %v92 = vld [vmem:[%s1 + $0xe8] sm:$0xf]
  %v93 = vld [vmem:[%s1 + $0xec] sm:$0xf]
  %v94 = vld [vmem:[%s1 + $0xf0] sm:$0xf]
  %v95 = vld [vmem:[%s1 + $0xf4] sm:$0xf]
  %v96 = vld [vmem:[%s1 + $0xf8] sm:$0xf]
  %v97 = vld [vmem:[%s1 + $0xfc] sm:$0xf]
  %v98 = vld [vmem:[%s1 + $0x100] sm:$0xf]
  %v99 = vld [vmem:[%s1 + $0x104] sm:$0xf]
  %v100 = vld [vmem:[%s1 + $0x108] sm:$0xf]
  %v101 = vld [vmem:[%s1 + $0x10c] sm:$0xf]
  %v102 = vld [vmem:[%s1 + $0x110] sm:$0xf]
  %v103 = vld [vmem:[%s1 + $0x114] sm:$0xf]
  %v104 = vld [vmem:[%s1 + $0x118] sm:$0xf]
  %v105 = vld [vmem:[%s1 + $0x11c] sm:$0xf]
  %v106 = vld [vmem:[%s1 + $0x120] sm:$0xf]
  %v107 = vld [vmem:[%s1 + $0x124] sm:$0xf]
  %v108 = vld [vmem:[%s1 + $0x128] sm:$0xf]
  %v109 = vld [vmem:[%s1 + $0x12c] sm:$0xf]
  %v110 = vld [vmem:[%s1 + $0x130] sm:$0xf]
  %v111 = vld [vmem:[%s1 + $0x134] sm:$0xf]
  %v112 = vld [vmem:[%s1 + $0x138] sm:$0xf]
  %v113 = vld [vmem:[%s1 + $0x13c] sm:$0xf]
  %v114 = vld [vmem:[%s1 + $0x140] sm:$0xf]
  %v115 = vld [vmem:[%s1 + $0x144] sm:$0xf]
  %v116 = vld [vmem:[%s1 + $0x148] sm:$0xf]
  %v117 = vld [vmem:[%s1 + $0x14c] sm:$0xf]
  %v118 = vld [vmem:[%s1 + $0x150] sm:$0xf]
  %v119 = vld [vmem:[%s1 + $0x154] sm:$0xf]
  %v120 = vld [vmem:[%s1 + $0x158] sm:$0xf]
  %v121 = vld [vmem:[%s1 + $0x15c] sm:$0xf]
  %v122 = vld [vmem:[%s1 + $0x160] sm:$0xf]
  %v123 = vld [vmem:[%s1 + $0x164] sm:$0xf]
  %v124 = vld [vmem:[%s1 + $0x168] sm:$0xf]
  %v125 = vld [vmem:[%s1 + $0x16c] sm:$0xf]
  %v126 = vld [vmem:[%s1 + $0x170] sm:$0xf]
  %v127 = vld [vmem:[%s1 + $0x174] sm:$0xf]
  %v128 = vld [vmem:[%s1 + $0x178] sm:$0xf]
  %v129 = vld [vmem:[%s1 + $0x17c] sm:$0xf]
  %v130 = vld [vmem:[%s1 + $0x180] sm:$0xf]
  %v131 = vld [vmem:[%s1 + $0x184] sm:$0xf]
  %v132 = vld [vmem:[%s1 + $0x188] sm:$0xf]
  %v133 = vld [vmem:[%s1 + $0x18c] sm:$0xf]
  %v134 = vld [vmem:[%s1 + $0x190] sm:$0xf]
  %v135 = vld [vmem:[%s1 + $0x194] sm:$0xf]
  %v136 = vld [vmem:[%s1 + $0x198] sm:$0xf]
  %v137 = vld [vmem:[%s1 + $0x19c] sm:$0xf]
  %v138 = vld [vmem:[%s1 + $0x1a0] sm:$0xf]
  %v139 = vld [vmem:[%s1 + $0x1a4] sm:$0xf]
  %v140 = vld [vmem:[%s1 + $0x1a8] sm:$0xf]
  %v141 = vld [vmem:[%s1 + $0x1ac] sm:$0xf]
  %v142 = vld [vmem:[%s1 + $0x1b0] sm:$0xf]
  %v143 = vld [vmem:[%s1 + $0x1b4] sm:$0xf]
  %v144 = vld [vmem:[%s1 + $0x1b8] sm:$0xf]
  %v145 = vld [vmem:[%s1 + $0x1bc] sm:$0xf]
  %v146 = vld [vmem:[%s1 + $0x1c0] sm:$0xf]
  %v147 = vld [vmem:[%s1 + $0x1c4] sm:$0xf]
  %v148 = vld [vmem:[%s1 + $0x1c8] sm:$0xf]
  %v149 = vld [vmem:[%s1 + $0x1cc] sm:$0xf]
  %v150 = vld [vmem:[%s1 + $0x1d0] sm:$0xf]
  %v151 = vld [vmem:[%s1 + $0x1d4] sm:$0xf]
  %v152 = vld [vmem:[%s1 + $0x1d8] sm:$0xf]
  %v153 = vld [vmem:[%s1 + $0x1dc] sm:$0xf]
  %v154 = vld [vmem:[%s1 + $0x1e0] sm:$0xf]
  %v155 = vld [vmem:[%s1 + $0x1e4] sm:$0xf]
  %v156 = vld [vmem:[%s1 + $0x1e8] sm:$0xf]
  %v157 = vld [vmem:[%s1 + $0x1ec] sm:$0xf]
  %v158 = vld [vmem:[%s1 + $0x1f0] sm:$0xf]
  %v159 = vld [vmem:[%s1 + $0x1f4] sm:$0xf]
  %v160 = vld [vmem:[%s1 + $0x1f8] sm:$0xf]
  %v161 = vld [vmem:[%s1 + $0x1fc] sm:$0xf]
  %v162 = vld [vmem:[%s1 + $0x200] sm:$0xf]
  %v163 = vld [vmem:[%s1 + $0x204] sm:$0xf]
  %v164 = vld [vmem:[%s1 + $0x208] sm:$0xf]
  %v165 = vld [vmem:[%s1 + $0x20c] sm:$0xf]
  %v166 = vld [vmem:[%s1 + $0x210] sm:$0xf]
  %v167 = vld [vmem:[%s1 + $0x214] sm:$0xf]
  %v168 = vld [vmem:[%s1 + $0x218] sm:$0xf]
  %v169 = vld [vmem:[%s1 + $0x21c] sm:$0xf]
  %v170 = vld [vmem:[%s1 + $0x220] sm:$0xf]
  %v171 = vld [vmem:[%s1 + $0x224] sm:$0xf]
  %v172 = vld [vmem:[%s1 + $0x228] sm:$0xf]
  %v173 = vld [vmem:[%s1 + $0x22c] sm:$0xf]
  %v174 = vld [vmem:[%s1 + $0x230] sm:$0xf]
  %v175 = vld [vmem:[%s1 + $0x234] sm:$0xf]
  %v176 = vld [vmem:[%s1 + $0x238] sm:$0xf]
  %v177 = vld [vmem:[%s1 + $0x23c] sm:$0xf]
  %v178 = vld [vmem:[%s1 + $0x240] sm:$0xf]
  %v179 = vld [vmem:[%s1 + $0x244] sm:$0xf]
  %v180 = vld [vmem:[%s1 + $0x248] sm:$0xf]
  %v181 = vld [vmem:[%s1 + $0x24c] sm:$0xf]
  %v182 = vld [vmem:[%s1 + $0x250] sm:$0xf]
  %v183 = vld [vmem:[%s1 + $0x254] sm:$0xf]
  %v184 = vld [vmem:[%s1 + $0x258] sm:$0xf]
  %v185 = vld [vmem:[%s1 + $0x25c] sm:$0xf]
  %v186 = vld [vmem:[%s1 + $0x260] sm:$0xf]
  %v187 = vld [vmem:[%s1 + $0x264] sm:$0xf]
  %v188 = vld [vmem:[%s1 + $0x268] sm:$0xf]
  %v189 = vld [vmem:[%s1 + $0x26c] sm:$0xf]
  %v190 = vld [vmem:[%s1 + $0x270] sm:$0xf]
  %v191 = vld [vmem:[%s1 + $0x274] sm:$0xf]
  %v192 = vld [vmem:[%s1 + $0x278] sm:$0xf]
  %v193 = vld [vmem:[%s1 + $0x27c] sm:$0xf]
  %v194 = vld [vmem:[%s1 + $0x280] sm:$0xf]
  %v195 = vld [vmem:[%s1 + $0x284] sm:$0xf]
  %v196 = vld [vmem:[%s1 + $0x288] sm:$0xf]
  %v197 = vld [vmem:[%s1 + $0x28c] sm:$0xf]
  %v198 = vld [vmem:[%s1 + $0x290] sm:$0xf]
  %v199 = vld [vmem:[%s1 + $0x294] sm:$0xf]
  %v200 = vld [vmem:[%s1 + $0x298] sm:$0xf]
  %v201 = vld [vmem:[%s1 + $0x29c] sm:$0xf]
  %v202 = vld [vmem:[%s1 + $0x2a0] sm:$0xf]
  %v203 = vld [vmem:[%s1 + $0x2a4] sm:$0xf]
  %v204 = vld [vmem:[%s1 + $0x2a8] sm:$0xf]
  %v205 = vld [vmem:[%s1 + $0x2ac] sm:$0xf]
  %v206 = vld [vmem:[%s1 + $0x2b0] sm:$0xf]
  %v207 = vld [vmem:[%s1 + $0x2b4] sm:$0xf]
  %v208 = vld [vmem:[%s1 + $0x2b8] sm:$0xf]
  %v209 = vld [vmem:[%s1 + $0x2bc] sm:$0xf]
  %v210 = vld [vmem:[%s1 + $0x2c0] sm:$0xf]
  %v211 = vld [vmem:[%s1 + $0x2c4] sm:$0xf]
  %v212 = vld [vmem:[%s1 + $0x2c8] sm:$0xf]
  %v213 = vld [vmem:[%s1 + $0x2cc] sm:$0xf]
  %v214 = vld [vmem:[%s1 + $0x2d0] sm:$0xf]
  %v215 = vld [vmem:[%s1 + $0x2d4] sm:$0xf]
  %v216 = vld [vmem:[%s1 + $0x2d8] sm:$0xf]
  %v217 = vld [vmem:[%s1 + $0x2dc] sm:$0xf]
  %v218 = vld [vmem:[%s1 + $0x2e0] sm:$0xf]
  %v219 = vld [vmem:[%s1 + $0x2e4] sm:$0xf]
  %v220 = vld [vmem:[%s1 + $0x2e8] sm:$0xf]
  %v221 = vld [vmem:[%s1 + $0x2ec] sm:$0xf]
  %v222 = vld [vmem:[%s1 + $0x2f0] sm:$0xf]
  %v223 = vld [vmem:[%s1 + $0x2f4] sm:$0xf]
  %v224 = vld [vmem:[%s1 + $0x2f8] sm:$0xf]
  %v225 = vld [vmem:[%s1 + $0x2fc] sm:$0xf]
  %v226 = vld [vmem:[%s1 + $0x300] sm:$0xf]
  %v227 = vld [vmem:[%s1 + $0x304] sm:$0xf]
  %v228 = vld [vmem:[%s1 + $0x308] sm:$0xf]
  %v229 = vld [vmem:[%s1 + $0x30c] sm:$0xf]
  %v230 = vld [vmem:[%s1 + $0x310] sm:$0xf]
  %v231 = vld [vmem:[%s1 + $0x314] sm:$0xf]
  %v232 = vld [vmem:[%s1 + $0x318] sm:$0xf]
  %v233 = vld [vmem:[%s1 + $0x31c] sm:$0xf]
  %v234 = vld [vmem:[%s1 + $0x320] sm:$0xf]
  %v235 = vld [vmem:[%s1 + $0x324] sm:$0xf]
  %v236 = vld [vmem:[%s1 + $0x328] sm:$0xf]
  %v237 = vld [vmem:[%s1 + $0x32c] sm:$0xf]
  %v238 = vld [vmem:[%s1 + $0x330] sm:$0xf]
  %v239 = vld [vmem:[%s1 + $0x334] sm:$0xf]
  %v240 = vld [vmem:[%s1 + $0x338] sm:$0xf]
  %v241 = vld [vmem:[%s1 + $0x33c] sm:$0xf]
  %v242 = vld [vmem:[%s1 + $0x340] sm:$0xf]
  %v243 = vld [vmem:[%s1 + $0x344] sm:$0xf]
  %v244 = vld [vmem:[%s1 + $0x348] sm:$0xf]
  %v245 = vld [vmem:[%s1 + $0x34c] sm:$0xf]
  %v246 = vld [vmem:[%s1 + $0x350] sm:$0xf]
  %v247 = vld [vmem:[%s1 + $0x354] sm:$0xf]
  %v248 = vld [vmem:[%s1 + $0x358] sm:$0xf]
  %v249 = vld [vmem:[%s1 + $0x35c] sm:$0xf]
  %v250 = vld [vmem:[%s1 + $0x360] sm:$0xf]
  %v251 = vld [vmem:[%s1 + $0x364] sm:$0xf]
  %v252 = vld [vmem:[%s1 + $0x368] sm:$0xf]
  %v253 = vld [vmem:[%s1 + $0x36c] sm:$0xf]
  %v254 = vld [vmem:[%s1 + $0x370] sm:$0xf]
  %v255 = vld [vmem:[%s1 + $0x374] sm:$0xf]
  %v256 = vld [vmem:[%s1 + $0x378] sm:$0xf]
  %v257 = vld [vmem:[%s1 + $0x37c] sm:$0xf]
  %v258 = vld [vmem:[%s1 + $0x380] sm:$0xf]
  %v259 = vld [vmem:[%s1 + $0x384] sm:$0xf]
  %v260 = vld [vmem:[%s1 + $0x388] sm:$0xf]
  %v261 = vld [vmem:[%s1 + $0x38c] sm:$0xf]
  %v262 = vld [vmem:[%s1 + $0x390] sm:$0xf]
  %v263 = vld [vmem:[%s1 + $0x394] sm:$0xf]
  %v264 = vld [vmem:[%s1 + $0x398] sm:$0xf]
  %v265 = vld [vmem:[%s1 + $0x39c] sm:$0xf]
  %v266 = vld [vmem:[%s1 + $0x3a0] sm:$0xf]
  %v267 = vld [vmem:[%s1 + $0x3a4] sm:$0xf]
  %v268 = vld [vmem:[%s1 + $0x3a8] sm:$0xf]
  %v269 = vld [vmem:[%s1 + $0x3ac] sm:$0xf]
  %v270 = vld [vmem:[%s1 + $0x3b0] sm:$0xf]
  %v271 = vld [vmem:[%s1 + $0x3b4] sm:$0xf]
  %v272 = vld [vmem:[%s1 + $0x3b8] sm:$0xf]
  %v273 = vld [vmem:[%s1 + $0x3bc] sm:$0xf]
  %v274 = vld [vmem:[%s1 + $0x3c0] sm:$0xf]
  %v275 = vld [vmem:[%s1 + $0x3c4] sm:$0xf]
  %v276 = vld [vmem:[%s1 + $0x3c8] sm:$0xf]
  %v277 = vld [vmem:[%s1 + $0x3cc] sm:$0xf]
  %v278 = vld [vmem:[%s1 + $0x3d0] sm:$0xf]
  %v279 = vld [vmem:[%s1 + $0x3d4] sm:$0xf]
  %v280 = vld [vmem:[%s1 + $0x3d8] sm:$0xf]
  %v281 = vld [vmem:[%s1 + $0x3dc] sm:$0xf]
  %v282 = vld [vmem:[%s1 + $0x3e0] sm:$0xf]
  %v283 = vld [vmem:[%s1 + $0x3e4] sm:$0xf]
  %v284 = vld [vmem:[%s1 + $0x3e8] sm:$0xf]
  %v285 = vld [vmem:[%s1 + $0x3ec] sm:$0xf]
  %v286 = vld [vmem:[%s1 + $0x3f0] sm:$0xf]
  %v287 = vld [vmem:[%s1 + $0x3f4] sm:$0xf]
  %v288 = vld [vmem:[%s1 + $0x3f8] sm:$0xf]
  %v289 = vld [vmem:[%s1 + $0x3fc] sm:$0xf]
  %v290 = vld [vmem:[%s1 + $0x400] sm:$0xf]
  %v291 = vld [vmem:[%s1 + $0x404] sm:$0xf]
  %v292 = vld [vmem:[%s1 + $0x408] sm:$0xf]
  %v293 = vld [vmem:[%s1 + $0x40c] sm:$0xf]
  %v294 = vld [vmem:[%s1 + $0x410] sm:$0xf]
  %v295 = vld [vmem:[%s1 + $0x414] sm:$0xf]
  %v296 = vld [vmem:[%s1 + $0x418] sm:$0xf]
  %v297 = vld [vmem:[%s1 + $0x41c] sm:$0xf]
  %v298 = vld [vmem:[%s1 + $0x420] sm:$0xf]
  %v299 = vld [vmem:[%s1 + $0x424] sm:$0xf]
  %v300 = vld [vmem:[%s1 + $0x428] sm:$0xf]
  %v301 = vld [vmem:[%s1 + $0x42c] sm:$0xf]
  %v302 = vld [vmem:[%s1 + $0x430] sm:$0xf]
  %v303 = vld [vmem:[%s1 + $0x434] sm:$0xf]
  %v304 = vld [vmem:[%s1 + $0x438] sm:$0xf]
  %v305 = vld [vmem:[%s1 + $0x43c] sm:$0xf]
  %v306 = vld [vmem:[%s1 + $0x440] sm:$0xf]
  %v307 = vld [vmem:[%s1 + $0x444] sm:$0xf]
  %v308 = vld [vmem:[%s1 + $0x448] sm:$0xf]
  %v309 = vld [vmem:[%s1 + $0x44c] sm:$0xf]
  %v310 = vld [vmem:[%s1 + $0x450] sm:$0xf]
  %v311 = vld [vmem:[%s1 + $0x454] sm:$0xf]
  %v312 = vld [vmem:[%s1 + $0x458] sm:$0xf]
  %v313 = vld [vmem:[%s1 + $0x45c] sm:$0xf]
  %v314 = vld [vmem:[%s1 + $0x460] sm:$0xf]
  %v315 = vld [vmem:[%s1 + $0x464] sm:$0xf]
  %v316 = vld [vmem:[%s1 + $0x468] sm:$0xf]
  %v317 = vld [vmem:[%s1 + $0x46c] sm:$0xf]
  %v318 = vld [vmem:[%s1 + $0x470] sm:$0xf]
  %v319 = vld [vmem:[%s1 + $0x474] sm:$0xf]
  %v320 = vld [vmem:[%s1 + $0x478] sm:$0xf]
  %v321 = vld [vmem:[%s1 + $0x47c] sm:$0xf]
  %v322 = vld [vmem:[%s1 + $0x480] sm:$0xf]
  %v323 = vld [vmem:[%s1 + $0x484] sm:$0xf]
  %v324 = vld [vmem:[%s1 + $0x488] sm:$0xf]
  %v325 = vld [vmem:[%s1 + $0x48c] sm:$0xf]
  %v326 = vld [vmem:[%s1 + $0x490] sm:$0xf]
  %v327 = vld [vmem:[%s1 + $0x494] sm:$0xf]
  %v328 = vld [vmem:[%s1 + $0x498] sm:$0xf]
  %v329 = vld [vmem:[%s1 + $0x49c] sm:$0xf]
  %v330 = vld [vmem:[%s1 + $0x4a0] sm:$0xf]
  %v331 = vld [vmem:[%s1 + $0x4a4] sm:$0xf]
  %v332 = vld [vmem:[%s1 + $0x4a8] sm:$0xf]
  %v333 = vld [vmem:[%s1 + $0x4ac] sm:$0xf]
  %v334 = vld [vmem:[%s1 + $0x4b0] sm:$0xf]
  %v335 = vld [vmem:[%s1 + $0x4b4] sm:$0xf]
  %v336 = vld [vmem:[%s1 + $0x4b8] sm:$0xf]
  %v337 = vld [vmem:[%s1 + $0x4bc] sm:$0xf]
  %v338 = vld [vmem:[%s1 + $0x4c0] sm:$0xf]
  %v339 = vld [vmem:[%s1 + $0x4c4] sm:$0xf]
  %v340 = vld [vmem:[%s1 + $0x4c8] sm:$0xf]
  %v341 = vld [vmem:[%s1 + $0x4cc] sm:$0xf]
  %v342 = vld [vmem:[%s1 + $0x4d0] sm:$0xf]
  %v343 = vld [vmem:[%s1 + $0x4d4] sm:$0xf]
  %v344 = vld [vmem:[%s1 + $0x4d8] sm:$0xf]
  %v345 = vld [vmem:[%s1 + $0x4dc] sm:$0xf]
  %v346 = vld [vmem:[%s1 + $0x4e0] sm:$0xf]
  %v347 = vld [vmem:[%s1 + $0x4e4] sm:$0xf]
  %v348 = vld [vmem:[%s1 + $0x4e8] sm:$0xf]
  %v349 = vld [vmem:[%s1 + $0x4ec] sm:$0xf]
  %v350 = vld [vmem:[%s1 + $0x4f0] sm:$0xf]
  %v351 = vld [vmem:[%s1 + $0x4f4] sm:$0xf]
  %v352 = vld [vmem:[%s1 + $0x4f8] sm:$0xf]
  %v353 = vld [vmem:[%s1 + $0x4fc] sm:$0xf]
  %v354 = vld [vmem:[%s1 + $0x500] sm:$0xf]
  %v355 = vld [vmem:[%s1 + $0x504] sm:$0xf]
  %v356 = vld [vmem:[%s1 + $0x508] sm:$0xf]
  %v357 = vld [vmem:[%s1 + $0x50c] sm:$0xf]
  %v358 = vld [vmem:[%s1 + $0x510] sm:$0xf]
  %v359 = vld [vmem:[%s1 + $0x514] sm:$0xf]
  %v360 = vld [vmem:[%s1 + $0x518] sm:$0xf]
  %v361 = vld [vmem:[%s1 + $0x51c] sm:$0xf]
  %v362 = vld [vmem:[%s1 + $0x520] sm:$0xf]
  %v363 = vld [vmem:[%s1 + $0x524] sm:$0xf]
  %v364 = vld [vmem:[%s1 + $0x528] sm:$0xf]
  %v365 = vld [vmem:[%s1 + $0x52c] sm:$0xf]
  %v366 = vld [vmem:[%s1 + $0x530] sm:$0xf]
  %v367 = vld [vmem:[%s1 + $0x534] sm:$0xf]
  %v368 = vld [vmem:[%s1 + $0x538] sm:$0xf]
  %v369 = vld [vmem:[%s1 + $0x53c] sm:$0xf]
  %v370 = vld [vmem:[%s1 + $0x540] sm:$0xf]
  %v371 = vld [vmem:[%s1 + $0x544] sm:$0xf]
  %v372 = vld [vmem:[%s1 + $0x548] sm:$0xf]
  %v373 = vld [vmem:[%s1 + $0x54c] sm:$0xf]
  %v374 = vld [vmem:[%s1 + $0x550] sm:$0xf]
  %v375 = vld [vmem:[%s1 + $0x554] sm:$0xf]
  %v376 = vld [vmem:[%s1 + $0x558] sm:$0xf]
  %v377 = vld [vmem:[%s1 + $0x55c] sm:$0xf]
  %v378 = vld [vmem:[%s1 + $0x560] sm:$0xf]
  %v379 = vld [vmem:[%s1 + $0x564] sm:$0xf]
  %v380 = vld [vmem:[%s1 + $0x568] sm:$0xf]
  %v381 = vld [vmem:[%s1 + $0x56c] sm:$0xf]
  %v382 = vld [vmem:[%s1 + $0x570] sm:$0xf]
  %v383 = vld [vmem:[%s1 + $0x574] sm:$0xf]
  %v384 = vld [vmem:[%s1 + $0x578] sm:$0xf]
  %v385 = vld [vmem:[%s1 + $0x57c] sm:$0xf]
  %v386 = vld [vmem:[%s1 + $0x580] sm:$0xf]
  %v387 = vld [vmem:[%s1 + $0x584] sm:$0xf]
  %v388 = vld [vmem:[%s1 + $0x588] sm:$0xf]
  %v389 = vld [vmem:[%s1 + $0x58c] sm:$0xf]
  %v390 = vld [vmem:[%s1 + $0x590] sm:$0xf]
  %v391 = vld [vmem:[%s1 + $0x594] sm:$0xf]
  %v392 = vld [vmem:[%s1 + $0x598] sm:$0xf]
  %v393 = vld [vmem:[%s1 + $0x59c] sm:$0xf]
  %v394 = vld [vmem:[%s1 + $0x5a0] sm:$0xf]
  %v395 = vld [vmem:[%s1 + $0x5a4] sm:$0xf]
  %v396 = vld [vmem:[%s1 + $0x5a8] sm:$0xf]
  %v397 = vld [vmem:[%s1 + $0x5ac] sm:$0xf]
  %v398 = vld [vmem:[%s1 + $0x5b0] sm:$0xf]
  %v399 = vld [vmem:[%s1 + $0x5b4] sm:$0xf]
  %v400 = vld [vmem:[%s1 + $0x5b8] sm:$0xf]
  %v401 = vld [vmem:[%s1 + $0x5bc] sm:$0xf]
  %v402 = vld [vmem:[%s1 + $0x5c0] sm:$0xf]
  %v403 = vld [vmem:[%s1 + $0x5c4] sm:$0xf]
  %v404 = vld [vmem:[%s1 + $0x5c8] sm:$0xf]
  %v405 = vld [vmem:[%s1 + $0x5cc] sm:$0xf]
  %v406 = vld [vmem:[%s1 + $0x5d0] sm:$0xf]
  %v407 = vld [vmem:[%s1 + $0x5d4] sm:$0xf]
  %v408 = vld [vmem:[%s1 + $0x5d8] sm:$0xf]
  %v409 = vld [vmem:[%s1 + $0x5dc] sm:$0xf]
  %v410 = vld [vmem:[%s1 + $0x5e0] sm:$0xf]
  %v411 = vld [vmem:[%s1 + $0x5e4] sm:$0xf]
  %v412 = vld [vmem:[%s1 + $0x5e8] sm:$0xf]
  %v413 = vld [vmem:[%s1 + $0x5ec] sm:$0xf]
  %v414 = vld [vmem:[%s1 + $0x5f0] sm:$0xf]
  %v415 = vld [vmem:[%s1 + $0x5f4] sm:$0xf]
  %v416 = vld [vmem:[%s1 + $0x5f8] sm:$0xf]
  %v417 = vld [vmem:[%s1 + $0x5fc] sm:$0xf]
  %v418 = vld [vmem:[%s1 + $0x600] sm:$0xf]
  %v419 = vld [vmem:[%s1 + $0x604] sm:$0xf]
  %v420 = vld [vmem:[%s1 + $0x608] sm:$0xf]
  %v421 = vld [vmem:[%s1 + $0x60c] sm:$0xf]
  %v422 = vld [vmem:[%s1 + $0x610] sm:$0xf]
  %v423 = vld [vmem:[%s1 + $0x614] sm:$0xf]
  %v424 = vld [vmem:[%s1 + $0x618] sm:$0xf]
  %v425 = vld [vmem:[%s1 + $0x61c] sm:$0xf]
  %v426 = vld [vmem:[%s2] sm:$0x1]
  %v428 = vlaneseq
  %v429 = vshrl.u32 %v428, 7
  %v430 = vsub.s32 0, %v429
  %v431 = vrot.slane %v426, %v430
  %v446 = vunpack.c.l.b16 %v21
  %v447 = vunpack.c.h.b16 %v21
  %v448 = vunpack.c.l.b16 %v22
  %v449 = vunpack.c.h.b16 %v22
  %v450 = vunpack.c.l.b16 %v23
  %v451 = vunpack.c.h.b16 %v23
  %v452 = vunpack.c.l.b16 %v24
  %v453 = vunpack.c.h.b16 %v24
  %v454 = vunpack.c.l.b16 %v25
  %v455 = vunpack.c.h.b16 %v25
  %v456 = vunpack.c.l.b16 %v26
  %v457 = vunpack.c.h.b16 %v26
  %v458 = vunpack.c.l.b16 %v27
  %v459 = vunpack.c.h.b16 %v27
  %v460 = vunpack.c.l.b16 %v28
  %v461 = vunpack.c.h.b16 %v28
  %v462 = vunpack.c.l.b16 %v29
  %v463 = vunpack.c.h.b16 %v29
  %v464 = vunpack.c.l.b16 %v30
  %v465 = vunpack.c.h.b16 %v30
  %v466 = vunpack.c.l.b16 %v31
  %v467 = vunpack.c.h.b16 %v31
  %v468 = vunpack.c.l.b16 %v32
  %v469 = vunpack.c.h.b16 %v32
  %v470 = vunpack.c.l.b16 %v33
  %v471 = vpack.c.b16 %v446, %v446
  %v472 = vpack.c.b16 %v447, %v447
  %v473 = vpack.c.b16 %v448, %v448
  %v474 = vpack.c.b16 %v449, %v449
  %v475 = vpack.c.b16 %v450, %v450
  %v476 = vpack.c.b16 %v451, %v451
  %v477 = vpack.c.b16 %v452, %v452
  %v478 = vpack.c.b16 %v453, %v453
  %v479 = vpack.c.b16 %v454, %v454
  %v480 = vpack.c.b16 %v455, %v455
  %v481 = vpack.c.b16 %v456, %v456
  %v482 = vpack.c.b16 %v457, %v457
  %v483 = vpack.c.b16 %v458, %v458
  %v484 = vpack.c.b16 %v459, %v459
  %v485 = vpack.c.b16 %v460, %v460
  %v486 = vpack.c.b16 %v461, %v461
  %v487 = vpack.c.b16 %v462, %v462
  %v488 = vpack.c.b16 %v463, %v463
  %v489 = vpack.c.b16 %v464, %v464
  %v490 = vpack.c.b16 %v465, %v465
  %v491 = vpack.c.b16 %v466, %v466
  %v492 = vpack.c.b16 %v467, %v467
  %v493 = vpack.c.b16 %v468, %v468
  %v494 = vpack.c.b16 %v469, %v469
  %v495 = vpack.c.b16 %v470, %v470
  %v912 = vunpack.c.l.b16 %v34
  %v913 = vunpack.c.l.b16 %v35
  %v914 = vunpack.c.l.b16 %v36
  %v915 = vunpack.c.l.b16 %v37
  %v916 = vunpack.c.l.b16 %v38
  %v917 = vunpack.c.l.b16 %v39
  %v918 = vunpack.c.l.b16 %v40
  %v919 = vunpack.c.l.b16 %v41
  %v920 = vunpack.c.l.b16 %v42
  %v921 = vunpack.c.l.b16 %v43
  %v922 = vunpack.c.l.b16 %v44
  %v923 = vunpack.c.l.b16 %v45
  %v924 = vunpack.c.l.b16 %v46
  %v925 = vunpack.c.l.b16 %v47
  %v926 = vunpack.c.l.b16 %v48
  %v927 = vunpack.c.l.b16 %v49
  %v928 = vunpack.c.l.b16 %v50
  %v929 = vunpack.c.l.b16 %v51
  %v930 = vunpack.c.l.b16 %v52
  %v931 = vunpack.c.l.b16 %v53
  %v932 = vunpack.c.l.b16 %v54
  %v933 = vunpack.c.l.b16 %v55
  %v934 = vunpack.c.l.b16 %v56
  %v935 = vunpack.c.l.b16 %v57
  %v936 = vunpack.c.l.b16 %v58
  %v937 = vunpack.c.l.b16 %v59
  %v938 = vunpack.c.l.b16 %v60
  %v939 = vunpack.c.l.b16 %v61
  %v940 = vunpack.c.l.b16 %v62
  %v941 = vunpack.c.l.b16 %v63
  %v942 = vunpack.c.l.b16 %v64
  %v943 = vunpack.c.l.b16 %v65
  %v944 = vunpack.c.l.b16 %v66
  %v945 = vunpack.c.l.b16 %v67
  %v946 = vunpack.c.l.b16 %v68
  %v947 = vunpack.c.l.b16 %v69
  %v948 = vunpack.c.l.b16 %v70
  %v949 = vunpack.c.l.b16 %v71
  %v950 = vunpack.c.l.b16 %v72
  %v951 = vunpack.c.l.b16 %v73
  %v952 = vunpack.c.l.b16 %v74
  %v953 = vunpack.c.l.b16 %v75
  %v954 = vunpack.c.l.b16 %v76
  %v955 = vunpack.c.l.b16 %v77
  %v956 = vunpack.c.l.b16 %v78
  %v957 = vunpack.c.l.b16 %v79
  %v958 = vunpack.c.l.b16 %v80
  %v959 = vunpack.c.l.b16 %v81
  %v960 = vunpack.c.l.b16 %v82
  %v961 = vunpack.c.l.b16 %v83
  %v962 = vunpack.c.l.b16 %v84
  %v963 = vunpack.c.l.b16 %v85
  %v964 = vunpack.c.l.b16 %v86
  %v965 = vunpack.c.l.b16 %v87
  %v966 = vunpack.c.l.b16 %v88
  %v967 = vunpack.c.l.b16 %v89
  %v968 = vunpack.c.l.b16 %v90
  %v969 = vunpack.c.l.b16 %v91
  %v970 = vunpack.c.l.b16 %v92
  %v971 = vunpack.c.l.b16 %v93
  %v972 = vunpack.c.l.b16 %v94
  %v973 = vunpack.c.l.b16 %v95
  %v974 = vunpack.c.l.b16 %v96
  %v975 = vunpack.c.l.b16 %v97
  %v976 = vunpack.c.l.b16 %v98
  %v977 = vunpack.c.l.b16 %v99
  %v978 = vunpack.c.l.b16 %v100
  %v979 = vunpack.c.l.b16 %v101
  %v980 = vunpack.c.l.b16 %v102
  %v981 = vunpack.c.l.b16 %v103
  %v982 = vunpack.c.l.b16 %v104
  %v983 = vunpack.c.l.b16 %v105
  %v984 = vunpack.c.l.b16 %v106
  %v985 = vunpack.c.l.b16 %v107
  %v986 = vunpack.c.l.b16 %v108
  %v987 = vunpack.c.l.b16 %v109
  %v988 = vunpack.c.l.b16 %v110
  %v989 = vunpack.c.l.b16 %v111
  %v990 = vunpack.c.l.b16 %v112
  %v991 = vunpack.c.l.b16 %v113
  %v992 = vunpack.c.l.b16 %v114
  %v993 = vunpack.c.l.b16 %v115
  %v994 = vunpack.c.l.b16 %v116
  %v995 = vunpack.c.l.b16 %v117
  %v996 = vunpack.c.l.b16 %v118
  %v997 = vunpack.c.l.b16 %v119
  %v998 = vunpack.c.l.b16 %v120
  %v999 = vunpack.c.l.b16 %v121
  %v1000 = vunpack.c.l.b16 %v122
  %v1001 = vunpack.c.l.b16 %v123
  %v1002 = vunpack.c.l.b16 %v124
  %v1003 = vunpack.c.l.b16 %v125
  %v1004 = vunpack.c.l.b16 %v126
  %v1005 = vunpack.c.l.b16 %v127
  %v1006 = vunpack.c.l.b16 %v128
  %v1007 = vunpack.c.l.b16 %v129
  %v1008 = vunpack.c.l.b16 %v130
  %v1009 = vunpack.c.l.b16 %v131
  %v1010 = vunpack.c.l.b16 %v132
  %v1011 = vunpack.c.l.b16 %v133
  %v1012 = vunpack.c.l.b16 %v134
  %v1013 = vunpack.c.l.b16 %v135
  %v1014 = vunpack.c.l.b16 %v136
  %v1015 = vunpack.c.l.b16 %v137
  %v1016 = vunpack.c.l.b16 %v138
  %v1017 = vunpack.c.l.b16 %v139
  %v1018 = vunpack.c.l.b16 %v140
  %v1019 = vunpack.c.l.b16 %v141
  %v1020 = vunpack.c.l.b16 %v142
  %v1021 = vunpack.c.l.b16 %v143
  %v1022 = vunpack.c.l.b16 %v144
  %v1023 = vunpack.c.l.b16 %v145
  %v1024 = vunpack.c.l.b16 %v146
  %v1025 = vunpack.c.l.b16 %v147
  %v1026 = vunpack.c.l.b16 %v148
  %v1027 = vunpack.c.l.b16 %v149
  %v1028 = vunpack.c.l.b16 %v150
  %v1029 = vunpack.c.l.b16 %v151
  %v1030 = vunpack.c.l.b16 %v152
  %v1031 = vunpack.c.l.b16 %v153
  %v1032 = vunpack.c.l.b16 %v154
  %v1033 = vunpack.c.l.b16 %v155
  %v1034 = vunpack.c.l.b16 %v156
  %v1035 = vunpack.c.l.b16 %v157
  %v1036 = vunpack.c.l.b16 %v158
  %v1037 = vunpack.c.l.b16 %v159
  %v1038 = vunpack.c.l.b16 %v160
  %v1039 = vunpack.c.l.b16 %v161
  %v1040 = vunpack.c.l.b16 %v162
  %v1041 = vunpack.c.l.b16 %v163
  %v1042 = vunpack.c.l.b16 %v164
  %v1043 = vunpack.c.l.b16 %v165
  %v1044 = vunpack.c.l.b16 %v166
  %v1045 = vunpack.c.l.b16 %v167
  %v1046 = vunpack.c.l.b16 %v168
  %v1047 = vunpack.c.l.b16 %v169
  %v1048 = vunpack.c.l.b16 %v170
  %v1049 = vunpack.c.l.b16 %v171
  %v1050 = vunpack.c.l.b16 %v172
  %v1051 = vunpack.c.l.b16 %v173
  %v1052 = vunpack.c.l.b16 %v174
  %v1053 = vunpack.c.l.b16 %v175
  %v1054 = vunpack.c.l.b16 %v176
  %v1055 = vunpack.c.l.b16 %v177
  %v1056 = vunpack.c.l.b16 %v178
  %v1057 = vunpack.c.l.b16 %v179
  %v1058 = vunpack.c.l.b16 %v180
  %v1059 = vunpack.c.l.b16 %v181
  %v1060 = vunpack.c.l.b16 %v182
  %v1061 = vunpack.c.l.b16 %v183
  %v1062 = vunpack.c.l.b16 %v184
  %v1063 = vunpack.c.l.b16 %v185
  %v1064 = vunpack.c.l.b16 %v186
  %v1065 = vunpack.c.l.b16 %v187
  %v1066 = vunpack.c.l.b16 %v188
  %v1067 = vunpack.c.l.b16 %v189
  %v1068 = vunpack.c.l.b16 %v190
  %v1069 = vunpack.c.l.b16 %v191
  %v1070 = vunpack.c.l.b16 %v192
  %v1071 = vunpack.c.l.b16 %v193
  %v1072 = vunpack.c.l.b16 %v194
  %v1073 = vunpack.c.l.b16 %v195
  %v1074 = vunpack.c.l.b16 %v196
  %v1075 = vunpack.c.l.b16 %v197
  %v1076 = vunpack.c.l.b16 %v198
  %v1077 = vunpack.c.l.b16 %v199
  %v1078 = vunpack.c.l.b16 %v200
  %v1079 = vunpack.c.l.b16 %v201
  %v1080 = vunpack.c.l.b16 %v202
  %v1081 = vunpack.c.l.b16 %v203
  %v1082 = vunpack.c.l.b16 %v204
  %v1083 = vunpack.c.l.b16 %v205
  %v1084 = vunpack.c.l.b16 %v206
  %v1085 = vunpack.c.l.b16 %v207
  %v1086 = vunpack.c.l.b16 %v208
  %v1087 = vunpack.c.l.b16 %v209
  %v1088 = vunpack.c.l.b16 %v210
  %v1089 = vunpack.c.l.b16 %v211
  %v1090 = vunpack.c.l.b16 %v212
  %v1091 = vunpack.c.l.b16 %v213
  %v1092 = vunpack.c.l.b16 %v214
  %v1093 = vunpack.c.l.b16 %v215
  %v1094 = vunpack.c.l.b16 %v216
  %v1095 = vunpack.c.l.b16 %v217
  %v1096 = vunpack.c.l.b16 %v218
  %v1097 = vunpack.c.l.b16 %v219
  %v1098 = vunpack.c.l.b16 %v220
  %v1099 = vunpack.c.l.b16 %v221
  %v1100 = vunpack.c.l.b16 %v222
  %v1101 = vunpack.c.l.b16 %v223
  %v1102 = vunpack.c.l.b16 %v224
  %v1103 = vunpack.c.l.b16 %v225
  %v1104 = vunpack.c.l.b16 %v226
  %v1105 = vunpack.c.l.b16 %v227
  %v1106 = vunpack.c.l.b16 %v228
  %v1107 = vunpack.c.l.b16 %v229
  %v1108 = vunpack.c.l.b16 %v230
  %v1109 = vunpack.c.l.b16 %v231
  %v1110 = vunpack.c.l.b16 %v232
  %v1111 = vunpack.c.l.b16 %v233
  %v1112 = vunpack.c.l.b16 %v234
  %v1113 = vunpack.c.l.b16 %v235
  %v1114 = vunpack.c.l.b16 %v236
  %v1115 = vunpack.c.l.b16 %v237
  %v1116 = vunpack.c.l.b16 %v238
  %v1117 = vunpack.c.l.b16 %v239
  %v1118 = vunpack.c.l.b16 %v240
  %v1119 = vunpack.c.l.b16 %v241
  %v1120 = vunpack.c.l.b16 %v242
  %v1121 = vunpack.c.l.b16 %v243
  %v1122 = vunpack.c.l.b16 %v244
  %v1123 = vunpack.c.l.b16 %v245
  %v1124 = vunpack.c.l.b16 %v246
  %v1125 = vunpack.c.l.b16 %v247
  %v1126 = vunpack.c.l.b16 %v248
  %v1127 = vunpack.c.l.b16 %v249
  %v1128 = vunpack.c.l.b16 %v250
  %v1129 = vunpack.c.l.b16 %v251
  %v1130 = vunpack.c.l.b16 %v252
  %v1131 = vunpack.c.l.b16 %v253
  %v1132 = vunpack.c.l.b16 %v254
  %v1133 = vunpack.c.l.b16 %v255
  %v1134 = vunpack.c.l.b16 %v256
  %v1135 = vunpack.c.l.b16 %v257
  %v1136 = vunpack.c.l.b16 %v258
  %v1137 = vunpack.c.l.b16 %v259
  %v1138 = vunpack.c.l.b16 %v260
  %v1139 = vunpack.c.l.b16 %v261
  %v1140 = vunpack.c.l.b16 %v262
  %v1141 = vunpack.c.l.b16 %v263
  %v1142 = vunpack.c.l.b16 %v264
  %v1143 = vunpack.c.l.b16 %v265
  %v1144 = vunpack.c.l.b16 %v266
  %v1145 = vunpack.c.l.b16 %v267
  %v1146 = vunpack.c.l.b16 %v268
  %v1147 = vunpack.c.l.b16 %v269
  %v1148 = vunpack.c.l.b16 %v270
  %v1149 = vunpack.c.l.b16 %v271
  %v1150 = vunpack.c.l.b16 %v272
  %v1151 = vunpack.c.l.b16 %v273
  %v1152 = vunpack.c.l.b16 %v274
  %v1153 = vunpack.c.l.b16 %v275
  %v1154 = vunpack.c.l.b16 %v276
  %v1155 = vunpack.c.l.b16 %v277
  %v1156 = vunpack.c.l.b16 %v278
  %v1157 = vunpack.c.l.b16 %v279
  %v1158 = vunpack.c.l.b16 %v280
  %v1159 = vunpack.c.l.b16 %v281
  %v1160 = vunpack.c.l.b16 %v282
  %v1161 = vunpack.c.l.b16 %v283
  %v1162 = vunpack.c.l.b16 %v284
  %v1163 = vunpack.c.l.b16 %v285
  %v1164 = vunpack.c.l.b16 %v286
  %v1165 = vunpack.c.l.b16 %v287
  %v1166 = vunpack.c.l.b16 %v288
  %v1167 = vunpack.c.l.b16 %v289
  %v1168 = vunpack.c.l.b16 %v290
  %v1169 = vunpack.c.l.b16 %v291
  %v1170 = vunpack.c.l.b16 %v292
  %v1171 = vunpack.c.l.b16 %v293
  %v1172 = vunpack.c.l.b16 %v294
  %v1173 = vunpack.c.l.b16 %v295
  %v1174 = vunpack.c.l.b16 %v296
  %v1175 = vunpack.c.l.b16 %v297
  %v1176 = vunpack.c.l.b16 %v298
  %v1177 = vunpack.c.l.b16 %v299
  %v1178 = vunpack.c.l.b16 %v300
  %v1179 = vunpack.c.l.b16 %v301
  %v1180 = vunpack.c.l.b16 %v302
  %v1181 = vunpack.c.l.b16 %v303
  %v1182 = vunpack.c.l.b16 %v304
  %v1183 = vunpack.c.l.b16 %v305
  %v1184 = vunpack.c.l.b16 %v306
  %v1185 = vunpack.c.l.b16 %v307
  %v1186 = vunpack.c.l.b16 %v308
  %v1187 = vunpack.c.l.b16 %v309
  %v1188 = vunpack.c.l.b16 %v310
  %v1189 = vunpack.c.l.b16 %v311
  %v1190 = vunpack.c.l.b16 %v312
  %v1191 = vunpack.c.l.b16 %v313
  %v1192 = vunpack.c.l.b16 %v314
  %v1193 = vunpack.c.l.b16 %v315
  %v1194 = vunpack.c.l.b16 %v316
  %v1195 = vunpack.c.l.b16 %v317
  %v1196 = vunpack.c.l.b16 %v318
  %v1197 = vunpack.c.l.b16 %v319
  %v1198 = vunpack.c.l.b16 %v320
  %v1199 = vunpack.c.l.b16 %v321
  %v1200 = vunpack.c.l.b16 %v322
  %v1201 = vunpack.c.l.b16 %v323
  %v1202 = vunpack.c.l.b16 %v324
  %v1203 = vunpack.c.l.b16 %v325
  %v1204 = vunpack.c.l.b16 %v326
  %v1205 = vunpack.c.l.b16 %v327
  %v1206 = vunpack.c.l.b16 %v328
  %v1207 = vunpack.c.l.b16 %v329
  %v1208 = vunpack.c.l.b16 %v330
  %v1209 = vunpack.c.l.b16 %v331
  %v1210 = vunpack.c.l.b16 %v332
  %v1211 = vunpack.c.l.b16 %v333
  %v1212 = vunpack.c.l.b16 %v334
  %v1213 = vunpack.c.l.b16 %v335
  %v1214 = vunpack.c.l.b16 %v336
  %v1215 = vunpack.c.l.b16 %v337
  %v1216 = vunpack.c.l.b16 %v338
  %v1217 = vunpack.c.l.b16 %v339
  %v1218 = vunpack.c.l.b16 %v340
  %v1219 = vunpack.c.l.b16 %v341
  %v1220 = vunpack.c.l.b16 %v342
  %v1221 = vunpack.c.l.b16 %v343
  %v1222 = vunpack.c.l.b16 %v344
  %v1223 = vunpack.c.l.b16 %v345
  %v1224 = vunpack.c.l.b16 %v346
  %v1225 = vunpack.c.l.b16 %v347
  %v1226 = vunpack.c.l.b16 %v348
  %v1227 = vunpack.c.l.b16 %v349
  %v1228 = vunpack.c.l.b16 %v350
  %v1229 = vunpack.c.l.b16 %v351
  %v1230 = vunpack.c.l.b16 %v352
  %v1231 = vunpack.c.l.b16 %v353
  %v1232 = vunpack.c.l.b16 %v354
  %v1233 = vunpack.c.l.b16 %v355
  %v1234 = vunpack.c.l.b16 %v356
  %v1235 = vunpack.c.l.b16 %v357
  %v1236 = vunpack.c.l.b16 %v358
  %v1237 = vunpack.c.l.b16 %v359
  %v1238 = vunpack.c.l.b16 %v360
  %v1239 = vunpack.c.l.b16 %v361
  %v1240 = vunpack.c.l.b16 %v362
  %v1241 = vunpack.c.l.b16 %v363
  %v1242 = vunpack.c.l.b16 %v364
  %v1243 = vunpack.c.l.b16 %v365
  %v1244 = vunpack.c.l.b16 %v366
  %v1245 = vunpack.c.l.b16 %v367
  %v1246 = vunpack.c.l.b16 %v368
  %v1247 = vunpack.c.l.b16 %v369
  %v1248 = vunpack.c.l.b16 %v370
  %v1249 = vunpack.c.l.b16 %v371
  %v1250 = vunpack.c.l.b16 %v372
  %v1251 = vunpack.c.l.b16 %v373
  %v1252 = vunpack.c.l.b16 %v374
  %v1253 = vunpack.c.l.b16 %v375
  %v1254 = vunpack.c.l.b16 %v376
  %v1255 = vunpack.c.l.b16 %v377
  %v1256 = vunpack.c.l.b16 %v378
  %v1257 = vunpack.c.l.b16 %v379
  %v1258 = vunpack.c.l.b16 %v380
  %v1259 = vunpack.c.l.b16 %v381
  %v1260 = vunpack.c.l.b16 %v382
  %v1261 = vunpack.c.l.b16 %v383
  %v1262 = vunpack.c.l.b16 %v384
  %v1263 = vunpack.c.l.b16 %v385
  %v1264 = vunpack.c.l.b16 %v386
  %v1265 = vunpack.c.l.b16 %v387
  %v1266 = vunpack.c.l.b16 %v388
  %v1267 = vunpack.c.l.b16 %v389
  %v1268 = vunpack.c.l.b16 %v390
  %v1269 = vunpack.c.l.b16 %v391
  %v1270 = vunpack.c.l.b16 %v392
  %v1271 = vunpack.c.l.b16 %v393
  %v1272 = vunpack.c.l.b16 %v394
  %v1273 = vunpack.c.l.b16 %v395
  %v1274 = vunpack.c.l.b16 %v396
  %v1275 = vunpack.c.l.b16 %v397
  %v1276 = vunpack.c.l.b16 %v398
  %v1277 = vunpack.c.l.b16 %v399
  %v1278 = vunpack.c.l.b16 %v400
  %v1279 = vunpack.c.l.b16 %v401
  %v1280 = vunpack.c.l.b16 %v402
  %v1281 = vunpack.c.l.b16 %v403
  %v1282 = vunpack.c.l.b16 %v404
  %v1283 = vunpack.c.l.b16 %v405
  %v1284 = vunpack.c.l.b16 %v406
  %v1285 = vunpack.c.l.b16 %v407
  %v1286 = vunpack.c.l.b16 %v408
  %v1287 = vunpack.c.l.b16 %v409
  %v1288 = vunpack.c.l.b16 %v410
  %v1289 = vunpack.c.l.b16 %v411
  %v1290 = vunpack.c.l.b16 %v412
  %v1291 = vunpack.c.l.b16 %v413
  %v1292 = vunpack.c.l.b16 %v414
  %v1293 = vunpack.c.l.b16 %v415
  %v1294 = vunpack.c.l.b16 %v416
  %v1295 = vunpack.c.l.b16 %v417
  %v1296 = vunpack.c.l.b16 %v418
  %v1297 = vunpack.c.l.b16 %v419
  %v1298 = vunpack.c.l.b16 %v420
  %v1299 = vunpack.c.l.b16 %v421
  %v1300 = vunpack.c.l.b16 %v422
  %v1301 = vunpack.c.l.b16 %v423
  %v1302 = vunpack.c.l.b16 %v424
  %v1303 = vunpack.c.l.b16 %v425
  %v1304 = vpack.c.b16 %v913, %v912
  %v1305 = vpack.c.b16 %v915, %v914
  %v1306 = vpack.c.b16 %v917, %v916
  %v1307 = vpack.c.b16 %v919, %v918
  %v1308 = vpack.c.b16 %v921, %v920
  %v1309 = vpack.c.b16 %v923, %v922
  %v1310 = vpack.c.b16 %v925, %v924
  %v1311 = vpack.c.b16 %v927, %v926
  %v1312 = vpack.c.b16 %v929, %v928
  %v1313 = vpack.c.b16 %v931, %v930
  %v1314 = vpack.c.b16 %v933, %v932
  %v1315 = vpack.c.b16 %v935, %v934
  %v1316 = vpack.c.b16 %v937, %v936
  %v1317 = vpack.c.b16 %v939, %v938
  %v1318 = vpack.c.b16 %v941, %v940
  %v1319 = vpack.c.b16 %v943, %v942
  %v1320 = vpack.c.b16 %v945, %v944
  %v1321 = vpack.c.b16 %v947, %v946
  %v1322 = vpack.c.b16 %v949, %v948
  %v1323 = vpack.c.b16 %v951, %v950
  %v1324 = vpack.c.b16 %v953, %v952
  %v1325 = vpack.c.b16 %v955, %v954
  %v1326 = vpack.c.b16 %v957, %v956
  %v1327 = vpack.c.b16 %v959, %v958
  %v1328 = vpack.c.b16 %v961, %v960
  %v1329 = vpack.c.b16 %v963, %v962
  %v1330 = vpack.c.b16 %v965, %v964
  %v1331 = vpack.c.b16 %v967, %v966
  %v1332 = vpack.c.b16 %v969, %v968
  %v1333 = vpack.c.b16 %v971, %v970
  %v1334 = vpack.c.b16 %v973, %v972
  %v1335 = vpack.c.b16 %v975, %v974
  %v1336 = vpack.c.b16 %v977, %v976
  %v1337 = vpack.c.b16 %v979, %v978
  %v1338 = vpack.c.b16 %v981, %v980
  %v1339 = vpack.c.b16 %v983, %v982
  %v1340 = vpack.c.b16 %v985, %v984
  %v1341 = vpack.c.b16 %v987, %v986
  %v1342 = vpack.c.b16 %v989, %v988
  %v1343 = vpack.c.b16 %v991, %v990
  %v1344 = vpack.c.b16 %v993, %v992
  %v1345 = vpack.c.b16 %v995, %v994
  %v1346 = vpack.c.b16 %v997, %v996
  %v1347 = vpack.c.b16 %v999, %v998
  %v1348 = vpack.c.b16 %v1001, %v1000
  %v1349 = vpack.c.b16 %v1003, %v1002
  %v1350 = vpack.c.b16 %v1005, %v1004
  %v1351 = vpack.c.b16 %v1007, %v1006
  %v1352 = vpack.c.b16 %v1009, %v1008
  %v1353 = vpack.c.b16 %v1011, %v1010
  %v1354 = vpack.c.b16 %v1013, %v1012
  %v1355 = vpack.c.b16 %v1015, %v1014
  %v1356 = vpack.c.b16 %v1017, %v1016
  %v1357 = vpack.c.b16 %v1019, %v1018
  %v1358 = vpack.c.b16 %v1021, %v1020
  %v1359 = vpack.c.b16 %v1023, %v1022
  %v1360 = vpack.c.b16 %v1025, %v1024
  %v1361 = vpack.c.b16 %v1027, %v1026
  %v1362 = vpack.c.b16 %v1029, %v1028
  %v1363 = vpack.c.b16 %v1031, %v1030
  %v1364 = vpack.c.b16 %v1033, %v1032
  %v1365 = vpack.c.b16 %v1035, %v1034
  %v1366 = vpack.c.b16 %v1037, %v1036
  %v1367 = vpack.c.b16 %v1039, %v1038
  %v1368 = vpack.c.b16 %v1041, %v1040
  %v1369 = vpack.c.b16 %v1043, %v1042
  %v1370 = vpack.c.b16 %v1045, %v1044
  %v1371 = vpack.c.b16 %v1047, %v1046
  %v1372 = vpack.c.b16 %v1049, %v1048
  %v1373 = vpack.c.b16 %v1051, %v1050
  %v1374 = vpack.c.b16 %v1053, %v1052
  %v1375 = vpack.c.b16 %v1055, %v1054
  %v1376 = vpack.c.b16 %v1057, %v1056
  %v1377 = vpack.c.b16 %v1059, %v1058
  %v1378 = vpack.c.b16 %v1061, %v1060
  %v1379 = vpack.c.b16 %v1063, %v1062
  %v1380 = vpack.c.b16 %v1065, %v1064
  %v1381 = vpack.c.b16 %v1067, %v1066
  %v1382 = vpack.c.b16 %v1069, %v1068
  %v1383 = vpack.c.b16 %v1071, %v1070
  %v1384 = vpack.c.b16 %v1073, %v1072
  %v1385 = vpack.c.b16 %v1075, %v1074
  %v1386 = vpack.c.b16 %v1077, %v1076
  %v1387 = vpack.c.b16 %v1079, %v1078
  %v1388 = vpack.c.b16 %v1081, %v1080
  %v1389 = vpack.c.b16 %v1083, %v1082
  %v1390 = vpack.c.b16 %v1085, %v1084
  %v1391 = vpack.c.b16 %v1087, %v1086
  %v1392 = vpack.c.b16 %v1089, %v1088
  %v1393 = vpack.c.b16 %v1091, %v1090
  %v1394 = vpack.c.b16 %v1093, %v1092
  %v1395 = vpack.c.b16 %v1095, %v1094
  %v1396 = vpack.c.b16 %v1097, %v1096
  %v1397 = vpack.c.b16 %v1099, %v1098
  %v1398 = vpack.c.b16 %v1101, %v1100
  %v1399 = vpack.c.b16 %v1103, %v1102
  %v1400 = vpack.c.b16 %v1105, %v1104
  %v1401 = vpack.c.b16 %v1107, %v1106
  %v1402 = vpack.c.b16 %v1109, %v1108
  %v1403 = vpack.c.b16 %v1111, %v1110
  %v1404 = vpack.c.b16 %v1113, %v1112
  %v1405 = vpack.c.b16 %v1115, %v1114
  %v1406 = vpack.c.b16 %v1117, %v1116
  %v1407 = vpack.c.b16 %v1119, %v1118
  %v1408 = vpack.c.b16 %v1121, %v1120
  %v1409 = vpack.c.b16 %v1123, %v1122
  %v1410 = vpack.c.b16 %v1125, %v1124
  %v1411 = vpack.c.b16 %v1127, %v1126
  %v1412 = vpack.c.b16 %v1129, %v1128
  %v1413 = vpack.c.b16 %v1131, %v1130
  %v1414 = vpack.c.b16 %v1133, %v1132
  %v1415 = vpack.c.b16 %v1135, %v1134
  %v1416 = vpack.c.b16 %v1137, %v1136
  %v1417 = vpack.c.b16 %v1139, %v1138
  %v1418 = vpack.c.b16 %v1141, %v1140
  %v1419 = vpack.c.b16 %v1143, %v1142
  %v1420 = vpack.c.b16 %v1145, %v1144
  %v1421 = vpack.c.b16 %v1147, %v1146
  %v1422 = vpack.c.b16 %v1149, %v1148
  %v1423 = vpack.c.b16 %v1151, %v1150
  %v1424 = vpack.c.b16 %v1153, %v1152
  %v1425 = vpack.c.b16 %v1155, %v1154
  %v1426 = vpack.c.b16 %v1157, %v1156
  %v1427 = vpack.c.b16 %v1159, %v1158
  %v1428 = vpack.c.b16 %v1161, %v1160
  %v1429 = vpack.c.b16 %v1163, %v1162
  %v1430 = vpack.c.b16 %v1165, %v1164
  %v1431 = vpack.c.b16 %v1167, %v1166
  %v1432 = vpack.c.b16 %v1169, %v1168
  %v1433 = vpack.c.b16 %v1171, %v1170
  %v1434 = vpack.c.b16 %v1173, %v1172
  %v1435 = vpack.c.b16 %v1175, %v1174
  %v1436 = vpack.c.b16 %v1177, %v1176
  %v1437 = vpack.c.b16 %v1179, %v1178
  %v1438 = vpack.c.b16 %v1181, %v1180
  %v1439 = vpack.c.b16 %v1183, %v1182
  %v1440 = vpack.c.b16 %v1185, %v1184
  %v1441 = vpack.c.b16 %v1187, %v1186
  %v1442 = vpack.c.b16 %v1189, %v1188
  %v1443 = vpack.c.b16 %v1191, %v1190
  %v1444 = vpack.c.b16 %v1193, %v1192
  %v1445 = vpack.c.b16 %v1195, %v1194
  %v1446 = vpack.c.b16 %v1197, %v1196
  %v1447 = vpack.c.b16 %v1199, %v1198
  %v1448 = vpack.c.b16 %v1201, %v1200
  %v1449 = vpack.c.b16 %v1203, %v1202
  %v1450 = vpack.c.b16 %v1205, %v1204
  %v1451 = vpack.c.b16 %v1207, %v1206
  %v1452 = vpack.c.b16 %v1209, %v1208
  %v1453 = vpack.c.b16 %v1211, %v1210
  %v1454 = vpack.c.b16 %v1213, %v1212
  %v1455 = vpack.c.b16 %v1215, %v1214
  %v1456 = vpack.c.b16 %v1217, %v1216
  %v1457 = vpack.c.b16 %v1219, %v1218
  %v1458 = vpack.c.b16 %v1221, %v1220
  %v1459 = vpack.c.b16 %v1223, %v1222
  %v1460 = vpack.c.b16 %v1225, %v1224
  %v1461 = vpack.c.b16 %v1227, %v1226
  %v1462 = vpack.c.b16 %v1229, %v1228
  %v1463 = vpack.c.b16 %v1231, %v1230
  %v1464 = vpack.c.b16 %v1233, %v1232
  %v1465 = vpack.c.b16 %v1235, %v1234
  %v1466 = vpack.c.b16 %v1237, %v1236
  %v1467 = vpack.c.b16 %v1239, %v1238
  %v1468 = vpack.c.b16 %v1241, %v1240
  %v1469 = vpack.c.b16 %v1243, %v1242
  %v1470 = vpack.c.b16 %v1245, %v1244
  %v1471 = vpack.c.b16 %v1247, %v1246
  %v1472 = vpack.c.b16 %v1249, %v1248
  %v1473 = vpack.c.b16 %v1251, %v1250
  %v1474 = vpack.c.b16 %v1253, %v1252
  %v1475 = vpack.c.b16 %v1255, %v1254
  %v1476 = vpack.c.b16 %v1257, %v1256
  %v1477 = vpack.c.b16 %v1259, %v1258
  %v1478 = vpack.c.b16 %v1261, %v1260
  %v1479 = vpack.c.b16 %v1263, %v1262
  %v1480 = vpack.c.b16 %v1265, %v1264
  %v1481 = vpack.c.b16 %v1267, %v1266
  %v1482 = vpack.c.b16 %v1269, %v1268
  %v1483 = vpack.c.b16 %v1271, %v1270
  %v1484 = vpack.c.b16 %v1273, %v1272
  %v1485 = vpack.c.b16 %v1275, %v1274
  %v1486 = vpack.c.b16 %v1277, %v1276
  %v1487 = vpack.c.b16 %v1279, %v1278
  %v1488 = vpack.c.b16 %v1281, %v1280
  %v1489 = vpack.c.b16 %v1283, %v1282
  %v1490 = vpack.c.b16 %v1285, %v1284
  %v1491 = vpack.c.b16 %v1287, %v1286
  %v1492 = vpack.c.b16 %v1289, %v1288
  %v1493 = vpack.c.b16 %v1291, %v1290
  %v1494 = vpack.c.b16 %v1293, %v1292
  %v1495 = vpack.c.b16 %v1295, %v1294
  %v1496 = vpack.c.b16 %v1297, %v1296
  %v1497 = vpack.c.b16 %v1299, %v1298
  %v1498 = vpack.c.b16 %v1301, %v1300
  %v1499 = vpack.c.b16 %v1303, %v1302
  %vm1696 = vcmask 523264
  %v1698 = vsel %vm1696, %v495, 0
  %1700 = vmatprep.subr.bf16.mxu0 0
  %1701 = vmatpush1.bf16.msra.mxu0 %v1304
  %1702 = vmatprep.subr.bf16.mxu0 0
  %1703 = vmatpush1.bf16.msra.mxu0 %v1305
  %1704 = vmatprep.subr.bf16.mxu0 0
  %1705 = vmatpush1.bf16.msra.mxu0 %v1306
  %1706 = vmatprep.subr.bf16.mxu0 0
  %1707 = vmatpush1.bf16.msra.mxu0 %v1307
  %1708 = vmatprep.subr.bf16.mxu0 0
  %1709 = vmatpush1.bf16.msra.mxu0 %v1308
  %1710 = vmatprep.subr.bf16.mxu0 0
  %1711 = vmatpush1.bf16.msra.mxu0 %v1309
  %1712 = vmatprep.subr.bf16.mxu0 0
  %1713 = vmatpush1.bf16.msra.mxu0 %v1310
  %1714 = vmatprep.subr.bf16.mxu0 0
  %1715 = vmatpush1.bf16.msra.mxu0 %v1311
  %1716 = vmatprep.subr.bf16.mxu0 0
  %1717 = vmatpush1.bf16.msra.mxu0 %v1312
  %1718 = vmatprep.subr.bf16.mxu0 0
  %1719 = vmatpush1.bf16.msra.mxu0 %v1313
  %1720 = vmatprep.subr.bf16.mxu0 0
  %1721 = vmatpush1.bf16.msra.mxu0 %v1314
  %1722 = vmatprep.subr.bf16.mxu0 0
  %1723 = vmatpush1.bf16.msra.mxu0 %v1315
  %1724 = vmatprep.subr.bf16.mxu0 0
  %1725 = vmatpush1.bf16.msra.mxu0 %v1316
  %1726 = vmatprep.subr.bf16.mxu0 0
  %1727 = vmatpush1.bf16.msra.mxu0 %v1317
  %1728 = vmatprep.subr.bf16.mxu0 0
  %1729 = vmatpush1.bf16.msra.mxu0 %v1318
  %1730 = vmatprep.subr.bf16.mxu0 0
  %1731 = vmatpush1.bf16.msra.mxu0 %v1319
  %1732 = vmatprep.mubr.bf16.mxu0 %v472
  %1733 = vmatmul.mubr.bf16.gmra.mrb[0].mxu0 %v471
  %v1734 = vpop.f32.mrb[0].mxu0
  %v1735 = vadd.f32 %v431, %v1734
  %v1736 = vpop.f32.mrb[0].mxu0
  %v1737 = vpop.f32.mrb[0].mxu0
  %v1738 = vpop.f32.mrb[0].mxu0
  %1739 = vdwg.mxu0
  %1740 = vmatprep.subr.bf16.mxu0 0
  %1741 = vmatpush1.bf16.msra.mxu0 %v1320
  %1742 = vmatprep.subr.bf16.mxu0 0
  %1743 = vmatpush1.bf16.msra.mxu0 %v1321
  %1744 = vmatprep.subr.bf16.mxu0 0
  %1745 = vmatpush1.bf16.msra.mxu0 %v1322
  %1746 = vmatprep.subr.bf16.mxu0 0
  %1747 = vmatpush1.bf16.msra.mxu0 %v1323
  %1748 = vmatprep.subr.bf16.mxu0 0
  %1749 = vmatpush1.bf16.msra.mxu0 %v1324
  %1750 = vmatprep.subr.bf16.mxu0 0
  %1751 = vmatpush1.bf16.msra.mxu0 %v1325
  %1752 = vmatprep.subr.bf16.mxu0 0
  %1753 = vmatpush1.bf16.msra.mxu0 %v1326
  %1754 = vmatprep.subr.bf16.mxu0 0
  %1755 = vmatpush1.bf16.msra.mxu0 %v1327
  %1756 = vmatprep.subr.bf16.mxu0 0
  %1757 = vmatpush1.bf16.msra.mxu0 %v1328
  %1758 = vmatprep.subr.bf16.mxu0 0
  %1759 = vmatpush1.bf16.msra.mxu0 %v1329
  %1760 = vmatprep.subr.bf16.mxu0 0
  %1761 = vmatpush1.bf16.msra.mxu0 %v1330
  %1762 = vmatprep.subr.bf16.mxu0 0
  %1763 = vmatpush1.bf16.msra.mxu0 %v1331
  %1764 = vmatprep.subr.bf16.mxu0 0
  %1765 = vmatpush1.bf16.msra.mxu0 %v1332
  %1766 = vmatprep.subr.bf16.mxu0 0
  %1767 = vmatpush1.bf16.msra.mxu0 %v1333
  %1768 = vmatprep.subr.bf16.mxu0 0
  %1769 = vmatpush1.bf16.msra.mxu0 %v1334
  %1770 = vmatprep.subr.bf16.mxu0 0
  %1771 = vmatpush1.bf16.msra.mxu0 %v1335
  %1772 = vmatprep.mubr.bf16.mxu0 %v474
  %1773 = vmatmul.mubr.bf16.gmra.mrb[0].mxu0 %v473
  %v1774 = vpop.f32.mrb[0].mxu0
  %v1775 = vadd.f32 %v1735, %v1774
  %v1776 = vpop.f32.mrb[0].mxu0
  %v1777 = vpop.f32.mrb[0].mxu0
  %v1778 = vpop.f32.mrb[0].mxu0
  %1779 = vdwg.mxu0
  %1780 = vmatprep.subr.bf16.mxu0 0
  %1781 = vmatpush1.bf16.msra.mxu0 %v1336
  %1782 = vmatprep.subr.bf16.mxu0 0
  %1783 = vmatpush1.bf16.msra.mxu0 %v1337
  %1784 = vmatprep.subr.bf16.mxu0 0
  %1785 = vmatpush1.bf16.msra.mxu0 %v1338
  %1786 = vmatprep.subr.bf16.mxu0 0
  %1787 = vmatpush1.bf16.msra.mxu0 %v1339
  %1788 = vmatprep.subr.bf16.mxu0 0
  %1789 = vmatpush1.bf16.msra.mxu0 %v1340
  %1790 = vmatprep.subr.bf16.mxu0 0
  %1791 = vmatpush1.bf16.msra.mxu0 %v1341
  %1792 = vmatprep.subr.bf16.mxu0 0
  %1793 = vmatpush1.bf16.msra.mxu0 %v1342
  %1794 = vmatprep.subr.bf16.mxu0 0
  %1795 = vmatpush1.bf16.msra.mxu0 %v1343
  %1796 = vmatprep.subr.bf16.mxu0 0
  %1797 = vmatpush1.bf16.msra.mxu0 %v1344
  %1798 = vmatprep.subr.bf16.mxu0 0
  %1799 = vmatpush1.bf16.msra.mxu0 %v1345
  %1800 = vmatprep.subr.bf16.mxu0 0
  %1801 = vmatpush1.bf16.msra.mxu0 %v1346
  %1802 = vmatprep.subr.bf16.mxu0 0
  %1803 = vmatpush1.bf16.msra.mxu0 %v1347
  %1804 = vmatprep.subr.bf16.mxu0 0
  %1805 = vmatpush1.bf16.msra.mxu0 %v1348
  %1806 = vmatprep.subr.bf16.mxu0 0
  %1807 = vmatpush1.bf16.msra.mxu0 %v1349
  %1808 = vmatprep.subr.bf16.mxu0 0
  %1809 = vmatpush1.bf16.msra.mxu0 %v1350
  %1810 = vmatprep.subr.bf16.mxu0 0
  %1811 = vmatpush1.bf16.msra.mxu0 %v1351
  %1812 = vmatprep.mubr.bf16.mxu0 %v476
  %1813 = vmatmul.mubr.bf16.gmra.mrb[0].mxu0 %v475
  %v1814 = vpop.f32.mrb[0].mxu0
  %v1815 = vadd.f32 %v1775, %v1814
  %v1816 = vpop.f32.mrb[0].mxu0
  %v1817 = vpop.f32.mrb[0].mxu0
  %v1818 = vpop.f32.mrb[0].mxu0
  %1819 = vdwg.mxu0
  %1820 = vmatprep.subr.bf16.mxu0 0
  %1821 = vmatpush1.bf16.msra.mxu0 %v1352
  %1822 = vmatprep.subr.bf16.mxu0 0
  %1823 = vmatpush1.bf16.msra.mxu0 %v1353
  %1824 = vmatprep.subr.bf16.mxu0 0
  %1825 = vmatpush1.bf16.msra.mxu0 %v1354
  %1826 = vmatprep.subr.bf16.mxu0 0
  %1827 = vmatpush1.bf16.msra.mxu0 %v1355
  %1828 = vmatprep.subr.bf16.mxu0 0
  %1829 = vmatpush1.bf16.msra.mxu0 %v1356
  %1830 = vmatprep.subr.bf16.mxu0 0
  %1831 = vmatpush1.bf16.msra.mxu0 %v1357
  %1832 = vmatprep.subr.bf16.mxu0 0
  %1833 = vmatpush1.bf16.msra.mxu0 %v1358
  %1834 = vmatprep.subr.bf16.mxu0 0
  %1835 = vmatpush1.bf16.msra.mxu0 %v1359
  %1836 = vmatprep.subr.bf16.mxu0 0
  %1837 = vmatpush1.bf16.msra.mxu0 %v1360
  %1838 = vmatprep.subr.bf16.mxu0 0
  %1839 = vmatpush1.bf16.msra.mxu0 %v1361
  %1840 = vmatprep.subr.bf16.mxu0 0
  %1841 = vmatpush1.bf16.msra.mxu0 %v1362
  %1842 = vmatprep.subr.bf16.mxu0 0
  %1843 = vmatpush1.bf16.msra.mxu0 %v1363
  %1844 = vmatprep.subr.bf16.mxu0 0
  %1845 = vmatpush1.bf16.msra.mxu0 %v1364
  %1846 = vmatprep.subr.bf16.mxu0 0
  %1847 = vmatpush1.bf16.msra.mxu0 %v1365
  %1848 = vmatprep.subr.bf16.mxu0 0
  %1849 = vmatpush1.bf16.msra.mxu0 %v1366
  %1850 = vmatprep.subr.bf16.mxu0 0
  %1851 = vmatpush1.bf16.msra.mxu0 %v1367
  %1852 = vmatprep.mubr.bf16.mxu0 %v478
  %1853 = vmatmul.mubr.bf16.gmra.mrb[0].mxu0 %v477
  %v1854 = vpop.f32.mrb[0].mxu0
  %v1855 = vadd.f32 %v1815, %v1854
  %v1856 = vpop.f32.mrb[0].mxu0
  %v1857 = vpop.f32.mrb[0].mxu0
  %v1858 = vpop.f32.mrb[0].mxu0
  %1859 = vdwg.mxu0
  %1860 = vmatprep.subr.bf16.mxu0 0
  %1861 = vmatpush1.bf16.msra.mxu0 %v1368
  %1862 = vmatprep.subr.bf16.mxu0 0
  %1863 = vmatpush1.bf16.msra.mxu0 %v1369
  %1864 = vmatprep.subr.bf16.mxu0 0
  %1865 = vmatpush1.bf16.msra.mxu0 %v1370
  %1866 = vmatprep.subr.bf16.mxu0 0
  %1867 = vmatpush1.bf16.msra.mxu0 %v1371
  %1868 = vmatprep.subr.bf16.mxu0 0
  %1869 = vmatpush1.bf16.msra.mxu0 %v1372
  %1870 = vmatprep.subr.bf16.mxu0 0
  %1871 = vmatpush1.bf16.msra.mxu0 %v1373
  %1872 = vmatprep.subr.bf16.mxu0 0
  %1873 = vmatpush1.bf16.msra.mxu0 %v1374
  %1874 = vmatprep.subr.bf16.mxu0 0
  %1875 = vmatpush1.bf16.msra.mxu0 %v1375
  %1876 = vmatprep.subr.bf16.mxu0 0
  %1877 = vmatpush1.bf16.msra.mxu0 %v1376
  %1878 = vmatprep.subr.bf16.mxu0 0
  %1879 = vmatpush1.bf16.msra.mxu0 %v1377
  %1880 = vmatprep.subr.bf16.mxu0 0
  %1881 = vmatpush1.bf16.msra.mxu0 %v1378
  %1882 = vmatprep.subr.bf16.mxu0 0
  %1883 = vmatpush1.bf16.msra.mxu0 %v1379
  %1884 = vmatprep.subr.bf16.mxu0 0
  %1885 = vmatpush1.bf16.msra.mxu0 %v1380
  %1886 = vmatprep.subr.bf16.mxu0 0
  %1887 = vmatpush1.bf16.msra.mxu0 %v1381
  %1888 = vmatprep.subr.bf16.mxu0 0
  %1889 = vmatpush1.bf16.msra.mxu0 %v1382
  %1890 = vmatprep.subr.bf16.mxu0 0
  %1891 = vmatpush1.bf16.msra.mxu0 %v1383
  %1892 = vmatprep.mubr.bf16.mxu0 %v480
  %1893 = vmatmul.mubr.bf16.gmra.mrb[0].mxu0 %v479
  %v1894 = vpop.f32.mrb[0].mxu0
  %v1895 = vadd.f32 %v1855, %v1894
  %v1896 = vpop.f32.mrb[0].mxu0
  %v1897 = vpop.f32.mrb[0].mxu0
  %v1898 = vpop.f32.mrb[0].mxu0
  %1899 = vdwg.mxu0
  %1900 = vmatprep.subr.bf16.mxu0 0
  %1901 = vmatpush1.bf16.msra.mxu0 %v1384
  %1902 = vmatprep.subr.bf16.mxu0 0
  %1903 = vmatpush1.bf16.msra.mxu0 %v1385
  %1904 = vmatprep.subr.bf16.mxu0 0
  %1905 = vmatpush1.bf16.msra.mxu0 %v1386
  %1906 = vmatprep.subr.bf16.mxu0 0
  %1907 = vmatpush1.bf16.msra.mxu0 %v1387
  %1908 = vmatprep.subr.bf16.mxu0 0
  %1909 = vmatpush1.bf16.msra.mxu0 %v1388
  %1910 = vmatprep.subr.bf16.mxu0 0
  %1911 = vmatpush1.bf16.msra.mxu0 %v1389
  %1912 = vmatprep.subr.bf16.mxu0 0
  %1913 = vmatpush1.bf16.msra.mxu0 %v1390
  %1914 = vmatprep.subr.bf16.mxu0 0
  %1915 = vmatpush1.bf16.msra.mxu0 %v1391
  %1916 = vmatprep.subr.bf16.mxu0 0
  %1917 = vmatpush1.bf16.msra.mxu0 %v1392
  %1918 = vmatprep.subr.bf16.mxu0 0
  %1919 = vmatpush1.bf16.msra.mxu0 %v1393
  %1920 = vmatprep.subr.bf16.mxu0 0
  %1921 = vmatpush1.bf16.msra.mxu0 %v1394
  %1922 = vmatprep.subr.bf16.mxu0 0
  %1923 = vmatpush1.bf16.msra.mxu0 %v1395
  %1924 = vmatprep.subr.bf16.mxu0 0
  %1925 = vmatpush1.bf16.msra.mxu0 %v1396
  %1926 = vmatprep.subr.bf16.mxu0 0
  %1927 = vmatpush1.bf16.msra.mxu0 %v1397
  %1928 = vmatprep.subr.bf16.mxu0 0
  %1929 = vmatpush1.bf16.msra.mxu0 %v1398
  %1930 = vmatprep.subr.bf16.mxu0 0
  %1931 = vmatpush1.bf16.msra.mxu0 %v1399
  %1932 = vmatprep.mubr.bf16.mxu0 %v482
  %1933 = vmatmul.mubr.bf16.gmra.mrb[0].mxu0 %v481
  %v1934 = vpop.f32.mrb[0].mxu0
  %v1935 = vadd.f32 %v1895, %v1934
  %v1936 = vpop.f32.mrb[0].mxu0
  %v1937 = vpop.f32.mrb[0].mxu0
  %v1938 = vpop.f32.mrb[0].mxu0
  %1939 = vdwg.mxu0
  %1940 = vmatprep.subr.bf16.mxu0 0
  %1941 = vmatpush1.bf16.msra.mxu0 %v1400
  %1942 = vmatprep.subr.bf16.mxu0 0
  %1943 = vmatpush1.bf16.msra.mxu0 %v1401
  %1944 = vmatprep.subr.bf16.mxu0 0
  %1945 = vmatpush1.bf16.msra.mxu0 %v1402
  %1946 = vmatprep.subr.bf16.mxu0 0
  %1947 = vmatpush1.bf16.msra.mxu0 %v1403
  %1948 = vmatprep.subr.bf16.mxu0 0
  %1949 = vmatpush1.bf16.msra.mxu0 %v1404
  %1950 = vmatprep.subr.bf16.mxu0 0
  %1951 = vmatpush1.bf16.msra.mxu0 %v1405
  %1952 = vmatprep.subr.bf16.mxu0 0
  %1953 = vmatpush1.bf16.msra.mxu0 %v1406
  %1954 = vmatprep.subr.bf16.mxu0 0
  %1955 = vmatpush1.bf16.msra.mxu0 %v1407
  %1956 = vmatprep.subr.bf16.mxu0 0
  %1957 = vmatpush1.bf16.msra.mxu0 %v1408
  %1958 = vmatprep.subr.bf16.mxu0 0
  %1959 = vmatpush1.bf16.msra.mxu0 %v1409
  %1960 = vmatprep.subr.bf16.mxu0 0
  %1961 = vmatpush1.bf16.msra.mxu0 %v1410
  %1962 = vmatprep.subr.bf16.mxu0 0
  %1963 = vmatpush1.bf16.msra.mxu0 %v1411
  %1964 = vmatprep.subr.bf16.mxu0 0
  %1965 = vmatpush1.bf16.msra.mxu0 %v1412
  %1966 = vmatprep.subr.bf16.mxu0 0
  %1967 = vmatpush1.bf16.msra.mxu0 %v1413
  %1968 = vmatprep.subr.bf16.mxu0 0
  %1969 = vmatpush1.bf16.msra.mxu0 %v1414
  %1970 = vmatprep.subr.bf16.mxu0 0
  %1971 = vmatpush1.bf16.msra.mxu0 %v1415
  %1972 = vmatprep.mubr.bf16.mxu0 %v484
  %1973 = vmatmul.mubr.bf16.gmra.mrb[0].mxu0 %v483
  %v1974 = vpop.f32.mrb[0].mxu0
  %v1975 = vadd.f32 %v1935, %v1974
  %v1976 = vpop.f32.mrb[0].mxu0
  %v1977 = vpop.f32.mrb[0].mxu0
  %v1978 = vpop.f32.mrb[0].mxu0
  %1979 = vdwg.mxu0
  %1980 = vmatprep.subr.bf16.mxu0 0
  %1981 = vmatpush1.bf16.msra.mxu0 %v1416
  %1982 = vmatprep.subr.bf16.mxu0 0
  %1983 = vmatpush1.bf16.msra.mxu0 %v1417
  %1984 = vmatprep.subr.bf16.mxu0 0
  %1985 = vmatpush1.bf16.msra.mxu0 %v1418
  %1986 = vmatprep.subr.bf16.mxu0 0
  %1987 = vmatpush1.bf16.msra.mxu0 %v1419
  %1988 = vmatprep.subr.bf16.mxu0 0
  %1989 = vmatpush1.bf16.msra.mxu0 %v1420
  %1990 = vmatprep.subr.bf16.mxu0 0
  %1991 = vmatpush1.bf16.msra.mxu0 %v1421
  %1992 = vmatprep.subr.bf16.mxu0 0
  %1993 = vmatpush1.bf16.msra.mxu0 %v1422
  %1994 = vmatprep.subr.bf16.mxu0 0
  %1995 = vmatpush1.bf16.msra.mxu0 %v1423
  %1996 = vmatprep.subr.bf16.mxu0 0
  %1997 = vmatpush1.bf16.msra.mxu0 %v1424
  %1998 = vmatprep.subr.bf16.mxu0 0
  %1999 = vmatpush1.bf16.msra.mxu0 %v1425
  %2000 = vmatprep.subr.bf16.mxu0 0
  %2001 = vmatpush1.bf16.msra.mxu0 %v1426
  %2002 = vmatprep.subr.bf16.mxu0 0
  %2003 = vmatpush1.bf16.msra.mxu0 %v1427
  %2004 = vmatprep.subr.bf16.mxu0 0
  %2005 = vmatpush1.bf16.msra.mxu0 %v1428
  %2006 = vmatprep.subr.bf16.mxu0 0
  %2007 = vmatpush1.bf16.msra.mxu0 %v1429
  %2008 = vmatprep.subr.bf16.mxu0 0
  %2009 = vmatpush1.bf16.msra.mxu0 %v1430
  %2010 = vmatprep.subr.bf16.mxu0 0
  %2011 = vmatpush1.bf16.msra.mxu0 %v1431
  %2012 = vmatprep.mubr.bf16.mxu0 %v486
  %2013 = vmatmul.mubr.bf16.gmra.mrb[0].mxu0 %v485
  %v2014 = vpop.f32.mrb[0].mxu0
  %v2015 = vadd.f32 %v1975, %v2014
  %v2016 = vpop.f32.mrb[0].mxu0
  %v2017 = vpop.f32.mrb[0].mxu0
  %v2018 = vpop.f32.mrb[0].mxu0
  %2019 = vdwg.mxu0
  %2020 = vmatprep.subr.bf16.mxu0 0
  %2021 = vmatpush1.bf16.msra.mxu0 %v1432
  %2022 = vmatprep.subr.bf16.mxu0 0
  %2023 = vmatpush1.bf16.msra.mxu0 %v1433
  %2024 = vmatprep.subr.bf16.mxu0 0
  %2025 = vmatpush1.bf16.msra.mxu0 %v1434
  %2026 = vmatprep.subr.bf16.mxu0 0
  %2027 = vmatpush1.bf16.msra.mxu0 %v1435
  %2028 = vmatprep.subr.bf16.mxu0 0
  %2029 = vmatpush1.bf16.msra.mxu0 %v1436
  %2030 = vmatprep.subr.bf16.mxu0 0
  %2031 = vmatpush1.bf16.msra.mxu0 %v1437
  %2032 = vmatprep.subr.bf16.mxu0 0
  %2033 = vmatpush1.bf16.msra.mxu0 %v1438
  %2034 = vmatprep.subr.bf16.mxu0 0
  %2035 = vmatpush1.bf16.msra.mxu0 %v1439
  %2036 = vmatprep.subr.bf16.mxu0 0
  %2037 = vmatpush1.bf16.msra.mxu0 %v1440
  %2038 = vmatprep.subr.bf16.mxu0 0
  %2039 = vmatpush1.bf16.msra.mxu0 %v1441
  %2040 = vmatprep.subr.bf16.mxu0 0
  %2041 = vmatpush1.bf16.msra.mxu0 %v1442
  %2042 = vmatprep.subr.bf16.mxu0 0
  %2043 = vmatpush1.bf16.msra.mxu0 %v1443
  %2044 = vmatprep.subr.bf16.mxu0 0
  %2045 = vmatpush1.bf16.msra.mxu0 %v1444
  %2046 = vmatprep.subr.bf16.mxu0 0
  %2047 = vmatpush1.bf16.msra.mxu0 %v1445
  %2048 = vmatprep.subr.bf16.mxu0 0
  %2049 = vmatpush1.bf16.msra.mxu0 %v1446
  %2050 = vmatprep.subr.bf16.mxu0 0
  %2051 = vmatpush1.bf16.msra.mxu0 %v1447
  %2052 = vmatprep.mubr.bf16.mxu0 %v488
  %2053 = vmatmul.mubr.bf16.gmra.mrb[0].mxu0 %v487
  %v2054 = vpop.f32.mrb[0].mxu0
  %v2055 = vadd.f32 %v2015, %v2054
  %v2056 = vpop.f32.mrb[0].mxu0
  %v2057 = vpop.f32.mrb[0].mxu0
  %v2058 = vpop.f32.mrb[0].mxu0
  %2059 = vdwg.mxu0
  %2060 = vmatprep.subr.bf16.mxu0 0
  %2061 = vmatpush1.bf16.msra.mxu0 %v1448
  %2062 = vmatprep.subr.bf16.mxu0 0
  %2063 = vmatpush1.bf16.msra.mxu0 %v1449
  %2064 = vmatprep.subr.bf16.mxu0 0
  %2065 = vmatpush1.bf16.msra.mxu0 %v1450
  %2066 = vmatprep.subr.bf16.mxu0 0
  %2067 = vmatpush1.bf16.msra.mxu0 %v1451
  %2068 = vmatprep.subr.bf16.mxu0 0
  %2069 = vmatpush1.bf16.msra.mxu0 %v1452
  %2070 = vmatprep.subr.bf16.mxu0 0
  %2071 = vmatpush1.bf16.msra.mxu0 %v1453
  %2072 = vmatprep.subr.bf16.mxu0 0
  %2073 = vmatpush1.bf16.msra.mxu0 %v1454
  %2074 = vmatprep.subr.bf16.mxu0 0
  %2075 = vmatpush1.bf16.msra.mxu0 %v1455
  %2076 = vmatprep.subr.bf16.mxu0 0
  %2077 = vmatpush1.bf16.msra.mxu0 %v1456
  %2078 = vmatprep.subr.bf16.mxu0 0
  %2079 = vmatpush1.bf16.msra.mxu0 %v1457
  %2080 = vmatprep.subr.bf16.mxu0 0
  %2081 = vmatpush1.bf16.msra.mxu0 %v1458
  %2082 = vmatprep.subr.bf16.mxu0 0
  %2083 = vmatpush1.bf16.msra.mxu0 %v1459
  %2084 = vmatprep.subr.bf16.mxu0 0
  %2085 = vmatpush1.bf16.msra.mxu0 %v1460
  %2086 = vmatprep.subr.bf16.mxu0 0
  %2087 = vmatpush1.bf16.msra.mxu0 %v1461
  %2088 = vmatprep.subr.bf16.mxu0 0
  %2089 = vmatpush1.bf16.msra.mxu0 %v1462
  %2090 = vmatprep.subr.bf16.mxu0 0
  %2091 = vmatpush1.bf16.msra.mxu0 %v1463
  %2092 = vmatprep.mubr.bf16.mxu0 %v490
  %2093 = vmatmul.mubr.bf16.gmra.mrb[0].mxu0 %v489
  %v2094 = vpop.f32.mrb[0].mxu0
  %v2095 = vadd.f32 %v2055, %v2094
  %v2096 = vpop.f32.mrb[0].mxu0
  %v2097 = vpop.f32.mrb[0].mxu0
  %v2098 = vpop.f32.mrb[0].mxu0
  %2099 = vdwg.mxu0
  %2100 = vmatprep.subr.bf16.mxu0 0
  %2101 = vmatpush1.bf16.msra.mxu0 %v1464
  %2102 = vmatprep.subr.bf16.mxu0 0
  %2103 = vmatpush1.bf16.msra.mxu0 %v1465
  %2104 = vmatprep.subr.bf16.mxu0 0
  %2105 = vmatpush1.bf16.msra.mxu0 %v1466
  %2106 = vmatprep.subr.bf16.mxu0 0
  %2107 = vmatpush1.bf16.msra.mxu0 %v1467
  %2108 = vmatprep.subr.bf16.mxu0 0
  %2109 = vmatpush1.bf16.msra.mxu0 %v1468
  %2110 = vmatprep.subr.bf16.mxu0 0
  %2111 = vmatpush1.bf16.msra.mxu0 %v1469
  %2112 = vmatprep.subr.bf16.mxu0 0
  %2113 = vmatpush1.bf16.msra.mxu0 %v1470
  %2114 = vmatprep.subr.bf16.mxu0 0
  %2115 = vmatpush1.bf16.msra.mxu0 %v1471
  %2116 = vmatprep.subr.bf16.mxu0 0
  %2117 = vmatpush1.bf16.msra.mxu0 %v1472
  %2118 = vmatprep.subr.bf16.mxu0 0
  %2119 = vmatpush1.bf16.msra.mxu0 %v1473
  %2120 = vmatprep.subr.bf16.mxu0 0
  %2121 = vmatpush1.bf16.msra.mxu0 %v1474
  %2122 = vmatprep.subr.bf16.mxu0 0
  %2123 = vmatpush1.bf16.msra.mxu0 %v1475
  %2124 = vmatprep.subr.bf16.mxu0 0
  %2125 = vmatpush1.bf16.msra.mxu0 %v1476
  %2126 = vmatprep.subr.bf16.mxu0 0
  %2127 = vmatpush1.bf16.msra.mxu0 %v1477
  %2128 = vmatprep.subr.bf16.mxu0 0
  %2129 = vmatpush1.bf16.msra.mxu0 %v1478
  %2130 = vmatprep.subr.bf16.mxu0 0
  %2131 = vmatpush1.bf16.msra.mxu0 %v1479
  %2132 = vmatprep.mubr.bf16.mxu0 %v492
  %2133 = vmatmul.mubr.bf16.gmra.mrb[0].mxu0 %v491
  %v2134 = vpop.f32.mrb[0].mxu0
  %v2135 = vadd.f32 %v2095, %v2134
  %v2136 = vpop.f32.mrb[0].mxu0
  %v2137 = vpop.f32.mrb[0].mxu0
  %v2138 = vpop.f32.mrb[0].mxu0
  %2139 = vdwg.mxu0
  %2140 = vmatprep.subr.bf16.mxu0 0
  %2141 = vmatpush1.bf16.msra.mxu0 %v1480
  %2142 = vmatprep.subr.bf16.mxu0 0
  %2143 = vmatpush1.bf16.msra.mxu0 %v1481
  %2144 = vmatprep.subr.bf16.mxu0 0
  %2145 = vmatpush1.bf16.msra.mxu0 %v1482
  %2146 = vmatprep.subr.bf16.mxu0 0
  %2147 = vmatpush1.bf16.msra.mxu0 %v1483
  %2148 = vmatprep.subr.bf16.mxu0 0
  %2149 = vmatpush1.bf16.msra.mxu0 %v1484
  %2150 = vmatprep.subr.bf16.mxu0 0
  %2151 = vmatpush1.bf16.msra.mxu0 %v1485
  %2152 = vmatprep.subr.bf16.mxu0 0
  %2153 = vmatpush1.bf16.msra.mxu0 %v1486
  %2154 = vmatprep.subr.bf16.mxu0 0
  %2155 = vmatpush1.bf16.msra.mxu0 %v1487
  %2156 = vmatprep.subr.bf16.mxu0 0
  %2157 = vmatpush1.bf16.msra.mxu0 %v1488
  %2158 = vmatprep.subr.bf16.mxu0 0
  %2159 = vmatpush1.bf16.msra.mxu0 %v1489
  %2160 = vmatprep.subr.bf16.mxu0 0
  %2161 = vmatpush1.bf16.msra.mxu0 %v1490
  %2162 = vmatprep.subr.bf16.mxu0 0
  %2163 = vmatpush1.bf16.msra.mxu0 %v1491
  %2164 = vmatprep.subr.bf16.mxu0 0
  %2165 = vmatpush1.bf16.msra.mxu0 %v1492
  %2166 = vmatprep.subr.bf16.mxu0 0
  %2167 = vmatpush1.bf16.msra.mxu0 %v1493
  %2168 = vmatprep.subr.bf16.mxu0 0
  %2169 = vmatpush1.bf16.msra.mxu0 %v1494
  %2170 = vmatprep.subr.bf16.mxu0 0
  %2171 = vmatpush1.bf16.msra.mxu0 %v1495
  %2172 = vmatprep.mubr.bf16.mxu0 %v494
  %2173 = vmatmul.mubr.bf16.gmra.mrb[0].mxu0 %v493
  %v2174 = vpop.f32.mrb[0].mxu0
  %v2175 = vadd.f32 %v2135, %v2174
  %v2176 = vpop.f32.mrb[0].mxu0
  %v2177 = vpop.f32.mrb[0].mxu0
  %v2178 = vpop.f32.mrb[0].mxu0
  %2179 = vdwg.mxu0
  %2180 = vmatprep.subr.bf16.mxu0 0
  %2181 = vmatpush1.bf16.msra.mxu0 %v1496
  %2182 = vmatprep.subr.bf16.mxu0 0
  %2183 = vmatpush1.bf16.msra.mxu0 %v1497
  %2184 = vmatprep.subr.bf16.mxu0 0
  %2185 = vmatpush1.bf16.msra.mxu0 %v1498
  %2186 = vmatprep.subr.bf16.mxu0 0
  %2187 = vmatpush1.bf16.msra.mxu0 %v1499
  %2188 = vmatprep.subr.bf16.mxu0 0
  %2189 = vmatpush1.bf16.msra.mxu0 0
  %2190 = vmatprep.subr.bf16.mxu0 0
  %2191 = vmatpush1.bf16.msra.mxu0 0
  %2192 = vmatprep.subr.bf16.mxu0 0
  %2193 = vmatpush1.bf16.msra.mxu0 0
  %2194 = vmatprep.subr.bf16.mxu0 0
  %2195 = vmatpush1.bf16.msra.mxu0 0
  %2196 = vmatprep.subr.bf16.mxu0 0
  %2197 = vmatpush1.bf16.msra.mxu0 0
  %2198 = vmatprep.subr.bf16.mxu0 0
  %2199 = vmatpush1.bf16.msra.mxu0 0
  %2200 = vmatprep.subr.bf16.mxu0 0
  %2201 = vmatpush1.bf16.msra.mxu0 0
  %2202 = vmatprep.subr.bf16.mxu0 0
  %2203 = vmatpush1.bf16.msra.mxu0 0
  %2204 = vmatprep.subr.bf16.mxu0 0
  %2205 = vmatpush1.bf16.msra.mxu0 0
  %2206 = vmatprep.subr.bf16.mxu0 0
  %2207 = vmatpush1.bf16.msra.mxu0 0
  %2208 = vmatprep.subr.bf16.mxu0 0
  %2209 = vmatpush1.bf16.msra.mxu0 0
  %2210 = vmatprep.subr.bf16.mxu0 0
  %2211 = vmatpush1.bf16.msra.mxu0 0
  %2212 = vmatprep.mubr.bf16.mxu0 0
  %2213 = vmatmul.mubr.bf16.gmra.mrb[0].mxu0 %v1698
  %v2214 = vpop.f32.mrb[0].mxu0
  %v2215 = vadd.f32 %v2175, %v2214
  %v2216 = vpop.f32.mrb[0].mxu0
  %v2217 = vpop.f32.mrb[0].mxu0
  %v2218 = vpop.f32.mrb[0].mxu0
  %2219 = vdwg.mxu0
  %v2220 = vmax.f32 %v2215, 0.0
  %v2221 = vpack.c.bf16 %v2220, %v2220
  %v2222 = vld [vmem:[%s3] sm:$0xf]
  %v2223 = vld [vmem:[%s3 + $0x4] sm:$0xf]
  %v2224 = vld [vmem:[%s3 + $0x8] sm:$0xf]
  %v2225 = vld [vmem:[%s3 + $0xc] sm:$0xf]
  %v2226 = vld [vmem:[%s3 + $0x10] sm:$0xf]
  %v2227 = vld [vmem:[%s3 + $0x14] sm:$0xf]
  %v2228 = vld [vmem:[%s3 + $0x18] sm:$0xf]
  %v2229 = vld [vmem:[%s3 + $0x1c] sm:$0xf]
  %v2230 = vld [vmem:[%s3 + $0x20] sm:$0xf]
  %v2231 = vld [vmem:[%s3 + $0x24] sm:$0xf]
  %v2232 = vld [vmem:[%s3 + $0x28] sm:$0xf]
  %v2233 = vld [vmem:[%s3 + $0x2c] sm:$0xf]
  %v2234 = vld [vmem:[%s3 + $0x30] sm:$0xf]
  %v2235 = vld [vmem:[%s3 + $0x34] sm:$0xf]
  %v2236 = vld [vmem:[%s3 + $0x38] sm:$0xf]
  %v2237 = vld [vmem:[%s3 + $0x3c] sm:$0xf]
  %v2238 = vld [vmem:[%s4] sm:$0x1]
  %v2240 = vlaneseq
  %v2241 = vshrl.u32 %v2240, 7
  %v2242 = vsub.s32 0, %v2241
  %v2243 = vrot.slane %v2238, %v2242
  %v2261 = vunpack.c.l.b16 %v2222
  %v2262 = vunpack.c.l.b16 %v2223
  %v2263 = vunpack.c.l.b16 %v2224
  %v2264 = vunpack.c.l.b16 %v2225
  %v2265 = vunpack.c.l.b16 %v2226
  %v2266 = vunpack.c.l.b16 %v2227
  %v2267 = vunpack.c.l.b16 %v2228
  %v2268 = vunpack.c.l.b16 %v2229
  %v2269 = vunpack.c.l.b16 %v2230
  %v2270 = vunpack.c.l.b16 %v2231
  %v2271 = vunpack.c.l.b16 %v2232
  %v2272 = vunpack.c.l.b16 %v2233
  %v2273 = vunpack.c.l.b16 %v2234
  %v2274 = vunpack.c.l.b16 %v2235
  %v2275 = vunpack.c.l.b16 %v2236
  %v2276 = vunpack.c.l.b16 %v2237
  %v2277 = vpack.c.b16 %v2262, %v2261
  %v2278 = vpack.c.b16 %v2264, %v2263
  %v2279 = vpack.c.b16 %v2266, %v2265
  %v2280 = vpack.c.b16 %v2268, %v2267
  %v2281 = vpack.c.b16 %v2270, %v2269
  %v2282 = vpack.c.b16 %v2272, %v2271
  %v2283 = vpack.c.b16 %v2274, %v2273
  %v2284 = vpack.c.b16 %v2276, %v2275
  %2293 = vmatprep.subr.bf16.mxu0 0
  %2294 = vmatpush1.bf16.msra.mxu0 %v2277
  %2295 = vmatprep.subr.bf16.mxu0 0
  %2296 = vmatpush1.bf16.msra.mxu0 %v2278
  %2297 = vmatprep.subr.bf16.mxu0 0
  %2298 = vmatpush1.bf16.msra.mxu0 %v2279
  %2299 = vmatprep.subr.bf16.mxu0 0
  %2300 = vmatpush1.bf16.msra.mxu0 %v2280
  %2301 = vmatprep.subr.bf16.mxu0 0
  %2302 = vmatpush1.bf16.msra.mxu0 %v2281
  %2303 = vmatprep.subr.bf16.mxu0 0
  %2304 = vmatpush1.bf16.msra.mxu0 %v2282
  %2305 = vmatprep.subr.bf16.mxu0 0
  %2306 = vmatpush1.bf16.msra.mxu0 %v2283
  %2307 = vmatprep.subr.bf16.mxu0 0
  %2308 = vmatpush1.bf16.msra.mxu0 %v2284
  %2309 = vmatprep.subr.bf16.mxu0 0
  %2310 = vmatpush1.bf16.msra.mxu0 0
  %2311 = vmatprep.subr.bf16.mxu0 0
  %2312 = vmatpush1.bf16.msra.mxu0 0
  %2313 = vmatprep.subr.bf16.mxu0 0
  %2314 = vmatpush1.bf16.msra.mxu0 0
  %2315 = vmatprep.subr.bf16.mxu0 0
  %2316 = vmatpush1.bf16.msra.mxu0 0
  %2317 = vmatprep.subr.bf16.mxu0 0
  %2318 = vmatpush1.bf16.msra.mxu0 0
  %2319 = vmatprep.subr.bf16.mxu0 0
  %2320 = vmatpush1.bf16.msra.mxu0 0
  %2321 = vmatprep.subr.bf16.mxu0 0
  %2322 = vmatpush1.bf16.msra.mxu0 0
  %2323 = vmatprep.subr.bf16.mxu0 0
  %2324 = vmatpush1.bf16.msra.mxu0 0
  %2325 = vmatprep.mubr.bf16.mxu0 0
  %2326 = vmatmul.mubr.bf16.gmra.mrb[0].mxu0 %v2221
  %v2327 = vpop.f32.mrb[0].mxu0
  %v2328 = vadd.f32 %v2243, %v2327
  %v2329 = vpop.f32.mrb[0].mxu0
  %v2330 = vpop.f32.mrb[0].mxu0
  %v2331 = vpop.f32.mrb[0].mxu0
  %2332 = vdwg.mxu0
  %2333 = vst [vmem:[%s5] sm:$0xff] %v2328
  // Predicated region
  $region22: #{cnn_forward.5} parent=0 // pred_check
    _
  $region23: #{cnn_forward.5} parent=0 // pred_check_branch
    %2335 = sbr.rel (0) target = $region25
  $region24: #{cnn_forward.5} parent=0 // pred_region
    _
  $region25: #{cnn_forward.5} parent=0 // pred_fallthru
    _
  // Predicated region
  $region26: #{cnn_forward.5} parent=0 // pred_check
    _
  $region27: #{cnn_forward.5} parent=0 // pred_check_branch
    %2337 = sbr.rel (0) target = $region29
  $region28: #{cnn_forward.5} parent=0 // pred_region
    _
  $region29: #{cnn_forward.5} parent=0 // pred_fallthru
    _

// kernel: cnn_forward.4
$region0: #{cnn_forward.4}
  #allocation0 [shape = 'u32[]', space=smem, size = 0x4, offset = 0x4, fixed_abs, tag = 'smem constant byte address 0x4 - core index']
  #allocation1 [shape = 'u32[144,128]{1,0:T(1,128)}', space=vmem, size = 0x12000, scoped, tag = 'internal scratch']
  %s0 = inlined_call_operand.vmem [shape: bf16[16,104,32], index: 0, kind: input, shape index: {}]
  %s1 = inlined_call_operand.vmem [shape: bf16[9,32,64], index: 1, kind: input, shape index: {}]
  %s2 = inlined_call_operand.vmem [shape: f32[1,64], index: 2, kind: input, shape index: {}]
  %s3 = inlined_call_operand.vmem [shape: bf16[104,64], index: 3, kind: output, shape index: {}]
  %s4 = sld [smem:[#allocation0]]
  $region22: #{cnn_forward.4} parent=0
    _
  %s6 = ssub.s32 1, %s4
  %s7 = scalar_select 0, %s6, %s4
  // Predicated region
  $region2: #{cnn_forward.4} parent=0 // pred_check
    _
  $region3: #{cnn_forward.4} parent=0 // pred_check_branch
    %9 = sbr.rel (0) target = $region5
  $region4: #{cnn_forward.4} parent=0 // pred_region
    _
  $region5: #{cnn_forward.4} parent=0 // pred_fallthru
    _
  // Predicated region
  $region6: #{cnn_forward.4} parent=0 // pred_check
    _
  $region7: #{cnn_forward.4} parent=0 // pred_check_branch
    %11 = sbr.rel (0) target = $region9
  $region8: #{cnn_forward.4} parent=0 // pred_region
    _
  $region9: #{cnn_forward.4} parent=0 // pred_fallthru
    _
  // Predicated region
  $region10: #{cnn_forward.4} parent=0 // pred_check
    _
  $region11: #{cnn_forward.4} parent=0 // pred_check_branch
    %13 = sbr.rel (0) target = $region13
  $region12: #{cnn_forward.4} parent=0 // pred_region
    _
  $region13: #{cnn_forward.4} parent=0 // pred_fallthru
    _
  %v15 = vld [vmem:[%s0] sm:$0xf]
  %v16 = vld [vmem:[%s0 + $0x4] sm:$0xf]
  %v17 = vld [vmem:[%s0 + $0x8] sm:$0xf]
  %v18 = vld [vmem:[%s0 + $0xc] sm:$0xf]
  %v19 = vld [vmem:[%s0 + $0x10] sm:$0xf]
  %v20 = vld [vmem:[%s0 + $0x14] sm:$0xf]
  %v21 = vld [vmem:[%s0 + $0x18] sm:$0xf]
  %v22 = vld [vmem:[%s0 + $0x1c] sm:$0xf]
  %v23 = vld [vmem:[%s0 + $0x20] sm:$0xf]
  %v24 = vld [vmem:[%s0 + $0x24] sm:$0xf]
  %v25 = vld [vmem:[%s0 + $0x28] sm:$0xf]
  %v26 = vld [vmem:[%s0 + $0x2c] sm:$0xf]
  %v27 = vld [vmem:[%s0 + $0x30] sm:$0xf]
  %s28 = scalar_lea.vmem %s0, 52
  %v29 = vld [vmem:[%s28] sm:$0xf]
  %v30 = vld [vmem:[%s28 + $0x4] sm:$0xf]
  %v31 = vld [vmem:[%s28 + $0x8] sm:$0xf]
  %v32 = vld [vmem:[%s28 + $0xc] sm:$0xf]
  %v33 = vld [vmem:[%s28 + $0x10] sm:$0xf]
  %v34 = vld [vmem:[%s28 + $0x14] sm:$0xf]
  %v35 = vld [vmem:[%s28 + $0x18] sm:$0xf]
  %v36 = vld [vmem:[%s28 + $0x1c] sm:$0xf]
  %v37 = vld [vmem:[%s28 + $0x20] sm:$0xf]
  %v38 = vld [vmem:[%s28 + $0x24] sm:$0xf]
  %v39 = vld [vmem:[%s28 + $0x28] sm:$0xf]
  %v40 = vld [vmem:[%s28 + $0x2c] sm:$0xf]
  %v41 = vld [vmem:[%s28 + $0x30] sm:$0xf]
  %s42 = scalar_lea.vmem %s0, 104
  %v43 = vld [vmem:[%s42] sm:$0xf]
  %v44 = vld [vmem:[%s42 + $0x4] sm:$0xf]
  %v45 = vld [vmem:[%s42 + $0x8] sm:$0xf]
  %v46 = vld [vmem:[%s42 + $0xc] sm:$0xf]
  %v47 = vld [vmem:[%s42 + $0x10] sm:$0xf]
  %v48 = vld [vmem:[%s42 + $0x14] sm:$0xf]
  %v49 = vld [vmem:[%s42 + $0x18] sm:$0xf]
  %v50 = vld [vmem:[%s42 + $0x1c] sm:$0xf]
  %v51 = vld [vmem:[%s42 + $0x20] sm:$0xf]
  %v52 = vld [vmem:[%s42 + $0x24] sm:$0xf]
  %v53 = vld [vmem:[%s42 + $0x28] sm:$0xf]
  %v54 = vld [vmem:[%s42 + $0x2c] sm:$0xf]
  %v55 = vld [vmem:[%s42 + $0x30] sm:$0xf]
  %s56 = scalar_lea.vmem %s0, 156
  %v57 = vld [vmem:[%s56] sm:$0xf]
  %v58 = vld [vmem:[%s56 + $0x4] sm:$0xf]
  %v59 = vld [vmem:[%s56 + $0x8] sm:$0xf]
  %v60 = vld [vmem:[%s56 + $0xc] sm:$0xf]
  %v61 = vld [vmem:[%s56 + $0x10] sm:$0xf]
  %v62 = vld [vmem:[%s56 + $0x14] sm:$0xf]
  %v63 = vld [vmem:[%s56 + $0x18] sm:$0xf]
  %v64 = vld [vmem:[%s56 + $0x1c] sm:$0xf]
  %v65 = vld [vmem:[%s56 + $0x20] sm:$0xf]
  %v66 = vld [vmem:[%s56 + $0x24] sm:$0xf]
  %v67 = vld [vmem:[%s56 + $0x28] sm:$0xf]
  %v68 = vld [vmem:[%s56 + $0x2c] sm:$0xf]
  %v69 = vld [vmem:[%s56 + $0x30] sm:$0xf]
  %s70 = scalar_lea.vmem %s0, 208
  %v71 = vld [vmem:[%s70] sm:$0xf]
  %v72 = vld [vmem:[%s70 + $0x4] sm:$0xf]
  %v73 = vld [vmem:[%s70 + $0x8] sm:$0xf]
  %v74 = vld [vmem:[%s70 + $0xc] sm:$0xf]
  %v75 = vld [vmem:[%s70 + $0x10] sm:$0xf]
  %v76 = vld [vmem:[%s70 + $0x14] sm:$0xf]
  %v77 = vld [vmem:[%s70 + $0x18] sm:$0xf]
  %v78 = vld [vmem:[%s70 + $0x1c] sm:$0xf]
  %v79 = vld [vmem:[%s70 + $0x20] sm:$0xf]
  %v80 = vld [vmem:[%s70 + $0x24] sm:$0xf]
  %v81 = vld [vmem:[%s70 + $0x28] sm:$0xf]
  %v82 = vld [vmem:[%s70 + $0x2c] sm:$0xf]
  %v83 = vld [vmem:[%s70 + $0x30] sm:$0xf]
  %s84 = scalar_lea.vmem %s0, 260
  %v85 = vld [vmem:[%s84] sm:$0xf]
  %v86 = vld [vmem:[%s84 + $0x4] sm:$0xf]
  %v87 = vld [vmem:[%s84 + $0x8] sm:$0xf]
  %v88 = vld [vmem:[%s84 + $0xc] sm:$0xf]
  %v89 = vld [vmem:[%s84 + $0x10] sm:$0xf]
  %v90 = vld [vmem:[%s84 + $0x14] sm:$0xf]
  %v91 = vld [vmem:[%s84 + $0x18] sm:$0xf]
  %v92 = vld [vmem:[%s84 + $0x1c] sm:$0xf]
  %v93 = vld [vmem:[%s84 + $0x20] sm:$0xf]
  %v94 = vld [vmem:[%s84 + $0x24] sm:$0xf]
  %v95 = vld [vmem:[%s84 + $0x28] sm:$0xf]
  %v96 = vld [vmem:[%s84 + $0x2c] sm:$0xf]
  %v97 = vld [vmem:[%s84 + $0x30] sm:$0xf]
  %s98 = scalar_lea.vmem %s0, 312
  %v99 = vld [vmem:[%s98] sm:$0xf]
  %v100 = vld [vmem:[%s98 + $0x4] sm:$0xf]
  %v101 = vld [vmem:[%s98 + $0x8] sm:$0xf]
  %v102 = vld [vmem:[%s98 + $0xc] sm:$0xf]
  %v103 = vld [vmem:[%s98 + $0x10] sm:$0xf]
  %v104 = vld [vmem:[%s98 + $0x14] sm:$0xf]
  %v105 = vld [vmem:[%s98 + $0x18] sm:$0xf]
  %v106 = vld [vmem:[%s98 + $0x1c] sm:$0xf]
  %v107 = vld [vmem:[%s98 + $0x20] sm:$0xf]
  %v108 = vld [vmem:[%s98 + $0x24] sm:$0xf]
  %v109 = vld [vmem:[%s98 + $0x28] sm:$0xf]
  %v110 = vld [vmem:[%s98 + $0x2c] sm:$0xf]
  %v111 = vld [vmem:[%s98 + $0x30] sm:$0xf]
  %s112 = scalar_lea.vmem %s0, 364
  %v113 = vld [vmem:[%s112] sm:$0xf]
  %v114 = vld [vmem:[%s112 + $0x4] sm:$0xf]
  %v115 = vld [vmem:[%s112 + $0x8] sm:$0xf]
  %v116 = vld [vmem:[%s112 + $0xc] sm:$0xf]
  %v117 = vld [vmem:[%s112 + $0x10] sm:$0xf]
  %v118 = vld [vmem:[%s112 + $0x14] sm:$0xf]
  %v119 = vld [vmem:[%s112 + $0x18] sm:$0xf]
  %v120 = vld [vmem:[%s112 + $0x1c] sm:$0xf]
  %v121 = vld [vmem:[%s112 + $0x20] sm:$0xf]
  %v122 = vld [vmem:[%s112 + $0x24] sm:$0xf]
  %v123 = vld [vmem:[%s112 + $0x28] sm:$0xf]
  %v124 = vld [vmem:[%s112 + $0x2c] sm:$0xf]
  %v125 = vld [vmem:[%s112 + $0x30] sm:$0xf]
  %s126 = scalar_lea.vmem %s0, 416
  %v127 = vld [vmem:[%s126] sm:$0xf]
  %v128 = vld [vmem:[%s126 + $0x4] sm:$0xf]
  %v129 = vld [vmem:[%s126 + $0x8] sm:$0xf]
  %v130 = vld [vmem:[%s126 + $0xc] sm:$0xf]
  %v131 = vld [vmem:[%s126 + $0x10] sm:$0xf]
  %v132 = vld [vmem:[%s126 + $0x14] sm:$0xf]
  %v133 = vld [vmem:[%s126 + $0x18] sm:$0xf]
  %v134 = vld [vmem:[%s126 + $0x1c] sm:$0xf]
  %v135 = vld [vmem:[%s126 + $0x20] sm:$0xf]
  %v136 = vld [vmem:[%s126 + $0x24] sm:$0xf]
  %v137 = vld [vmem:[%s126 + $0x28] sm:$0xf]
  %v138 = vld [vmem:[%s126 + $0x2c] sm:$0xf]
  %v139 = vld [vmem:[%s126 + $0x30] sm:$0xf]
  %s140 = scalar_lea.vmem %s0, 468
  %v141 = vld [vmem:[%s140] sm:$0xf]
  %v142 = vld [vmem:[%s140 + $0x4] sm:$0xf]
  %v143 = vld [vmem:[%s140 + $0x8] sm:$0xf]
  %v144 = vld [vmem:[%s140 + $0xc] sm:$0xf]
  %v145 = vld [vmem:[%s140 + $0x10] sm:$0xf]
  %v146 = vld [vmem:[%s140 + $0x14] sm:$0xf]
  %v147 = vld [vmem:[%s140 + $0x18] sm:$0xf]
  %v148 = vld [vmem:[%s140 + $0x1c] sm:$0xf]
  %v149 = vld [vmem:[%s140 + $0x20] sm:$0xf]
  %v150 = vld [vmem:[%s140 + $0x24] sm:$0xf]
  %v151 = vld [vmem:[%s140 + $0x28] sm:$0xf]
  %v152 = vld [vmem:[%s140 + $0x2c] sm:$0xf]
  %v153 = vld [vmem:[%s140 + $0x30] sm:$0xf]
  %s154 = scalar_lea.vmem %s0, 520
  %v155 = vld [vmem:[%s154] sm:$0xf]
  %v156 = vld [vmem:[%s154 + $0x4] sm:$0xf]
  %v157 = vld [vmem:[%s154 + $0x8] sm:$0xf]
  %v158 = vld [vmem:[%s154 + $0xc] sm:$0xf]
  %v159 = vld [vmem:[%s154 + $0x10] sm:$0xf]
  %v160 = vld [vmem:[%s154 + $0x14] sm:$0xf]
  %v161 = vld [vmem:[%s154 + $0x18] sm:$0xf]
  %v162 = vld [vmem:[%s154 + $0x1c] sm:$0xf]
  %v163 = vld [vmem:[%s154 + $0x20] sm:$0xf]
  %v164 = vld [vmem:[%s154 + $0x24] sm:$0xf]
  %v165 = vld [vmem:[%s154 + $0x28] sm:$0xf]
  %v166 = vld [vmem:[%s154 + $0x2c] sm:$0xf]
  %v167 = vld [vmem:[%s154 + $0x30] sm:$0xf]
  %s168 = scalar_lea.vmem %s0, 572
  %v169 = vld [vmem:[%s168] sm:$0xf]
  %v170 = vld [vmem:[%s168 + $0x4] sm:$0xf]
  %v171 = vld [vmem:[%s168 + $0x8] sm:$0xf]
  %v172 = vld [vmem:[%s168 + $0xc] sm:$0xf]
  %v173 = vld [vmem:[%s168 + $0x10] sm:$0xf]
  %v174 = vld [vmem:[%s168 + $0x14] sm:$0xf]
  %v175 = vld [vmem:[%s168 + $0x18] sm:$0xf]
  %v176 = vld [vmem:[%s168 + $0x1c] sm:$0xf]
  %v177 = vld [vmem:[%s168 + $0x20] sm:$0xf]
  %v178 = vld [vmem:[%s168 + $0x24] sm:$0xf]
  %v179 = vld [vmem:[%s168 + $0x28] sm:$0xf]
  %v180 = vld [vmem:[%s168 + $0x2c] sm:$0xf]
  %v181 = vld [vmem:[%s168 + $0x30] sm:$0xf]
  %s182 = scalar_lea.vmem %s0, 624
  %v183 = vld [vmem:[%s182] sm:$0xf]
  %v184 = vld [vmem:[%s182 + $0x4] sm:$0xf]
  %v185 = vld [vmem:[%s182 + $0x8] sm:$0xf]
  %v186 = vld [vmem:[%s182 + $0xc] sm:$0xf]
  %v187 = vld [vmem:[%s182 + $0x10] sm:$0xf]
  %v188 = vld [vmem:[%s182 + $0x14] sm:$0xf]
  %v189 = vld [vmem:[%s182 + $0x18] sm:$0xf]
  %v190 = vld [vmem:[%s182 + $0x1c] sm:$0xf]
  %v191 = vld [vmem:[%s182 + $0x20] sm:$0xf]
  %v192 = vld [vmem:[%s182 + $0x24] sm:$0xf]
  %v193 = vld [vmem:[%s182 + $0x28] sm:$0xf]
  %v194 = vld [vmem:[%s182 + $0x2c] sm:$0xf]
  %v195 = vld [vmem:[%s182 + $0x30] sm:$0xf]
  %s196 = scalar_lea.vmem %s0, 676
  %v197 = vld [vmem:[%s196] sm:$0xf]
  %v198 = vld [vmem:[%s196 + $0x4] sm:$0xf]
  %v199 = vld [vmem:[%s196 + $0x8] sm:$0xf]
  %v200 = vld [vmem:[%s196 + $0xc] sm:$0xf]
  %v201 = vld [vmem:[%s196 + $0x10] sm:$0xf]
  %v202 = vld [vmem:[%s196 + $0x14] sm:$0xf]
  %v203 = vld [vmem:[%s196 + $0x18] sm:$0xf]
  %v204 = vld [vmem:[%s196 + $0x1c] sm:$0xf]
  %v205 = vld [vmem:[%s196 + $0x20] sm:$0xf]
  %v206 = vld [vmem:[%s196 + $0x24] sm:$0xf]
  %v207 = vld [vmem:[%s196 + $0x28] sm:$0xf]
  %v208 = vld [vmem:[%s196 + $0x2c] sm:$0xf]
  %v209 = vld [vmem:[%s196 + $0x30] sm:$0xf]
  %s210 = scalar_lea.vmem %s0, 728
  %v211 = vld [vmem:[%s210] sm:$0xf]
  %v212 = vld [vmem:[%s210 + $0x4] sm:$0xf]
  %v213 = vld [vmem:[%s210 + $0x8] sm:$0xf]
  %v214 = vld [vmem:[%s210 + $0xc] sm:$0xf]
  %v215 = vld [vmem:[%s210 + $0x10] sm:$0xf]
  %v216 = vld [vmem:[%s210 + $0x14] sm:$0xf]
  %v217 = vld [vmem:[%s210 + $0x18] sm:$0xf]
  %v218 = vld [vmem:[%s210 + $0x1c] sm:$0xf]
  %v219 = vld [vmem:[%s210 + $0x20] sm:$0xf]
  %v220 = vld [vmem:[%s210 + $0x24] sm:$0xf]
  %v221 = vld [vmem:[%s210 + $0x28] sm:$0xf]
  %v222 = vld [vmem:[%s210 + $0x2c] sm:$0xf]
  %v223 = vld [vmem:[%s210 + $0x30] sm:$0xf]
  %s224 = scalar_lea.vmem %s0, 780
  %v225 = vld [vmem:[%s224] sm:$0xf]
  %v226 = vld [vmem:[%s224 + $0x4] sm:$0xf]
  %v227 = vld [vmem:[%s224 + $0x8] sm:$0xf]
  %v228 = vld [vmem:[%s224 + $0xc] sm:$0xf]
  %v229 = vld [vmem:[%s224 + $0x10] sm:$0xf]
  %v230 = vld [vmem:[%s224 + $0x14] sm:$0xf]
  %v231 = vld [vmem:[%s224 + $0x18] sm:$0xf]
  %v232 = vld [vmem:[%s224 + $0x1c] sm:$0xf]
  %v233 = vld [vmem:[%s224 + $0x20] sm:$0xf]
  %v234 = vld [vmem:[%s224 + $0x24] sm:$0xf]
  %v235 = vld [vmem:[%s224 + $0x28] sm:$0xf]
  %v236 = vld [vmem:[%s224 + $0x2c] sm:$0xf]
  %v237 = vld [vmem:[%s224 + $0x30] sm:$0xf]
  %v238 = vld [vmem:[%s1] sm:$0xf]
  %v239 = vld [vmem:[%s1 + $0x4] sm:$0xf]
  %v240 = vld [vmem:[%s1 + $0x8] sm:$0xf]
  %v241 = vld [vmem:[%s1 + $0xc] sm:$0xf]
  %s242 = scalar_lea.vmem %s1, 16
  %v243 = vld [vmem:[%s242] sm:$0xf]
  %v244 = vld [vmem:[%s242 + $0x4] sm:$0xf]
  %v245 = vld [vmem:[%s242 + $0x8] sm:$0xf]
  %v246 = vld [vmem:[%s242 + $0xc] sm:$0xf]
  %s247 = scalar_lea.vmem %s1, 32
  %v248 = vld [vmem:[%s247] sm:$0xf]
  %v249 = vld [vmem:[%s247 + $0x4] sm:$0xf]
  %v250 = vld [vmem:[%s247 + $0x8] sm:$0xf]
  %v251 = vld [vmem:[%s247 + $0xc] sm:$0xf]
  %s252 = scalar_lea.vmem %s1, 48
  %v253 = vld [vmem:[%s252] sm:$0xf]
  %v254 = vld [vmem:[%s252 + $0x4] sm:$0xf]
  %v255 = vld [vmem:[%s252 + $0x8] sm:$0xf]
  %v256 = vld [vmem:[%s252 + $0xc] sm:$0xf]
  %s257 = scalar_lea.vmem %s1, 64
  %v258 = vld [vmem:[%s257] sm:$0xf]
  %v259 = vld [vmem:[%s257 + $0x4] sm:$0xf]
  %v260 = vld [vmem:[%s257 + $0x8] sm:$0xf]
  %v261 = vld [vmem:[%s257 + $0xc] sm:$0xf]
  %s262 = scalar_lea.vmem %s1, 80
  %v263 = vld [vmem:[%s262] sm:$0xf]
  %v264 = vld [vmem:[%s262 + $0x4] sm:$0xf]
  %v265 = vld [vmem:[%s262 + $0x8] sm:$0xf]
  %v266 = vld [vmem:[%s262 + $0xc] sm:$0xf]
  %s267 = scalar_lea.vmem %s1, 96
  %v268 = vld [vmem:[%s267] sm:$0xf]
  %v269 = vld [vmem:[%s267 + $0x4] sm:$0xf]
  %v270 = vld [vmem:[%s267 + $0x8] sm:$0xf]
  %v271 = vld [vmem:[%s267 + $0xc] sm:$0xf]
  %s272 = scalar_lea.vmem %s1, 112
  %v273 = vld [vmem:[%s272] sm:$0xf]
  %v274 = vld [vmem:[%s272 + $0x4] sm:$0xf]
  %v275 = vld [vmem:[%s272 + $0x8] sm:$0xf]
  %v276 = vld [vmem:[%s272 + $0xc] sm:$0xf]
  %s277 = scalar_lea.vmem %s1, 128
  %v278 = vld [vmem:[%s277] sm:$0xf]
  %v279 = vld [vmem:[%s277 + $0x4] sm:$0xf]
  %v280 = vld [vmem:[%s277 + $0x8] sm:$0xf]
  %v281 = vld [vmem:[%s277 + $0xc] sm:$0xf]
  %v295 = vunpack.c.l.b16 %v29
  %v296 = vunpack.c.l.b16 %v30
  %v297 = vunpack.c.l.b16 %v31
  %v298 = vunpack.c.l.b16 %v32
  %v299 = vunpack.c.l.b16 %v33
  %v300 = vunpack.c.l.b16 %v34
  %v301 = vunpack.c.l.b16 %v35
  %v302 = vunpack.c.l.b16 %v36
  %v303 = vunpack.c.l.b16 %v37
  %v304 = vunpack.c.l.b16 %v38
  %v305 = vunpack.c.l.b16 %v39
  %v306 = vunpack.c.l.b16 %v40
  %v307 = vunpack.c.l.b16 %v41
  %v308 = vpack.c.b16 %v296, %v295
  %v309 = vpack.c.b16 %v298, %v297
  %v310 = vpack.c.b16 %v300, %v299
  %v311 = vpack.c.b16 %v302, %v301
  %v312 = vpack.c.b16 %v304, %v303
  %v313 = vpack.c.b16 %v306, %v305
  %v314 = vpack.c.b16 %v307, %v307
  %v319 = vunpack.c.l.b16 %v243
  %v320 = vunpack.c.l.b16 %v244
  %v321 = vunpack.c.l.b16 %v245
  %v322 = vunpack.c.l.b16 %v246
  %v323 = vpack.c.b16 %v320, %v319
  %v324 = vpack.c.b16 %v322, %v321
  %vm327 = vcmask 261120
  %v329 = vsel %vm327, %v308, 0
  %v332 = vsel %vm327, %v309, 0
  %v335 = vsel %vm327, %v310, 0
  %v338 = vsel %vm327, %v311, 0
  %v341 = vsel %vm327, %v312, 0
  %v344 = vsel %vm327, %v313, 0
  %v347 = vsel %vm327, %v314, 0
  %349 = vmatprep.subr.bf16.mxu0 0
  %350 = vmatpush1.bf16.msra.mxu0 %v323
  %351 = vmatprep.subr.bf16.mxu0 0
  %352 = vmatpush1.bf16.msra.mxu0 %v324
  %353 = vmatprep.subr.bf16.mxu0 0
  %354 = vmatpush1.bf16.msra.mxu0 0
  %355 = vmatprep.subr.bf16.mxu0 0
  %356 = vmatpush1.bf16.msra.mxu0 0
  %357 = vmatprep.subr.bf16.mxu0 0
  %358 = vmatpush1.bf16.msra.mxu0 0
  %359 = vmatprep.subr.bf16.mxu0 0
  %360 = vmatpush1.bf16.msra.mxu0 0
  %361 = vmatprep.subr.bf16.mxu0 0
  %362 = vmatpush1.bf16.msra.mxu0 0
  %363 = vmatprep.subr.bf16.mxu0 0
  %364 = vmatpush1.bf16.msra.mxu0 0
  %365 = vmatprep.subr.bf16.mxu0 0
  %366 = vmatpush1.bf16.msra.mxu0 0
  %367 = vmatprep.subr.bf16.mxu0 0
  %368 = vmatpush1.bf16.msra.mxu0 0
  %369 = vmatprep.subr.bf16.mxu0 0
  %370 = vmatpush1.bf16.msra.mxu0 0
  %371 = vmatprep.subr.bf16.mxu0 0
  %372 = vmatpush1.bf16.msra.mxu0 0
  %373 = vmatprep.subr.bf16.mxu0 0
  %374 = vmatpush1.bf16.msra.mxu0 0
  %375 = vmatprep.subr.bf16.mxu0 0
  %376 = vmatpush1.bf16.msra.mxu0 0
  %377 = vmatprep.subr.bf16.mxu0 0
  %378 = vmatpush1.bf16.msra.mxu0 0
  %379 = vmatprep.subr.bf16.mxu0 0
  %380 = vmatpush1.bf16.msra.mxu0 0
  %381 = vmatprep.mubr.bf16.mxu0 0
  %382 = vmatmul.mubr.bf16.gmra.mrb[0].mxu0 %v329
  %v383 = vpop.f32.mrb[0].mxu0
  %v384 = vadd.f32 0.0, %v383
  %v385 = vpop.f32.mrb[0].mxu0
  %v386 = vpop.f32.mrb[0].mxu0
  %v387 = vadd.f32 0.0, %v386
  %v388 = vpop.f32.mrb[0].mxu0
  %389 = vmatprep.mubr.bf16.mxu0 0
  %390 = vmatmul.mubr.bf16.gmra.mrb[0].mxu0 %v332
  %v391 = vpop.f32.mrb[0].mxu0
  %v392 = vadd.f32 0.0, %v391
  %v393 = vpop.f32.mrb[0].mxu0
  %v394 = vpop.f32.mrb[0].mxu0
  %v395 = vadd.f32 0.0, %v394
  %v396 = vpop.f32.mrb[0].mxu0
  %397 = vmatprep.mubr.bf16.mxu0 0
  %398 = vmatmul.mubr.bf16.gmra.mrb[0].mxu0 %v335
  %v399 = vpop.f32.mrb[0].mxu0
  %v400 = vadd.f32 0.0, %v399
  %v401 = vpop.f32.mrb[0].mxu0
  %v402 = vpop.f32.mrb[0].mxu0
  %v403 = vadd.f32 0.0, %v402
  %v404 = vpop.f32.mrb[0].mxu0
  %405 = vmatprep.mubr.bf16.mxu0 0
  %406 = vmatmul.mubr.bf16.gmra.mrb[0].mxu0 %v338
  %v407 = vpop.f32.mrb[0].mxu0
  %v408 = vadd.f32 0.0, %v407
  %v409 = vpop.f32.mrb[0].mxu0
  %v410 = vpop.f32.mrb[0].mxu0
  %v411 = vadd.f32 0.0, %v410
  %v412 = vpop.f32.mrb[0].mxu0
  %413 = vmatprep.mubr.bf16.mxu0 0
  %414 = vmatmul.mubr.bf16.gmra.mrb[0].mxu0 %v341
  %v415 = vpop.f32.mrb[0].mxu0
  %v416 = vadd.f32 0.0, %v415
  %v417 = vpop.f32.mrb[0].mxu0
  %v418 = vpop.f32.mrb[0].mxu0
  %v419 = vadd.f32 0.0, %v418
  %v420 = vpop.f32.mrb[0].mxu0
  %421 = vmatprep.mubr.bf16.mxu0 0
  %422 = vmatmul.mubr.bf16.gmra.mrb[0].mxu0 %v344
  %v423 = vpop.f32.mrb[0].mxu0
  %v424 = vadd.f32 0.0, %v423
  %v425 = vpop.f32.mrb[0].mxu0
  %v426 = vpop.f32.mrb[0].mxu0
  %v427 = vadd.f32 0.0, %v426
  %v428 = vpop.f32.mrb[0].mxu0
  %429 = vmatprep.mubr.bf16.mxu0 0
  %430 = vmatmul.mubr.bf16.gmra.mrb[0].mxu0 %v347
  %v431 = vpop.f32.mrb[0].mxu0
  %v432 = vadd.f32 0.0, %v431
  %v433 = vpop.f32.mrb[0].mxu0
  %v434 = vpop.f32.mrb[0].mxu0
  %v435 = vpop.f32.mrb[0].mxu0
  %436 = vdwg.mxu0
  %v450 = vunpack.c.l.b16 %v15
  %v451 = vunpack.c.l.b16 %v16
  %v452 = vunpack.c.l.b16 %v17
  %v453 = vunpack.c.l.b16 %v18
  %v454 = vunpack.c.l.b16 %v19
  %v455 = vunpack.c.l.b16 %v20
  %v456 = vunpack.c.l.b16 %v21
  %v457 = vunpack.c.l.b16 %v22
  %v458 = vunpack.c.l.b16 %v23
  %v459 = vunpack.c.l.b16 %v24
  %v460 = vunpack.c.l.b16 %v25
  %v461 = vunpack.c.l.b16 %v26
  %v462 = vunpack.c.l.b16 %v27
  %v463 = vpack.c.b16 %v451, %v450
  %v464 = vpack.c.b16 %v453, %v452
  %v465 = vpack.c.b16 %v455, %v454
  %v466 = vpack.c.b16 %v457, %v456
  %v467 = vpack.c.b16 %v459, %v458
  %v468 = vpack.c.b16 %v461, %v460
  %v469 = vpack.c.b16 %v462, %v462
  %v474 = vunpack.c.l.b16 %v238
  %v475 = vunpack.c.l.b16 %v239
  %v476 = vunpack.c.l.b16 %v240
  %v477 = vunpack.c.l.b16 %v241
  %v478 = vpack.c.b16 %v475, %v474
  %v479 = vpack.c.b16 %v477, %v476
  %v483 = vsel %vm327, %v463, 0
  %v486 = vsel %vm327, %v464, 0
  %v489 = vsel %vm327, %v465, 0
  %v492 = vsel %vm327, %v466, 0
  %v495 = vsel %vm327, %v467, 0
  %v498 = vsel %vm327, %v468, 0
  %v501 = vsel %vm327, %v469, 0
  %503 = vmatprep.subr.bf16.mxu0 0
  %504 = vmatpush1.bf16.msra.mxu0 %v478
  %505 = vmatprep.subr.bf16.mxu0 0
  %506 = vmatpush1.bf16.msra.mxu0 %v479
  %507 = vmatprep.subr.bf16.mxu0 0
  %508 = vmatpush1.bf16.msra.mxu0 0
  %509 = vmatprep.subr.bf16.mxu0 0
  %510 = vmatpush1.bf16.msra.mxu0 0
  %511 = vmatprep.subr.bf16.mxu0 0
  %512 = vmatpush1.bf16.msra.mxu0 0
  %513 = vmatprep.subr.bf16.mxu0 0
  %514 = vmatpush1.bf16.msra.mxu0 0
  %515 = vmatprep.subr.bf16.mxu0 0
  %516 = vmatpush1.bf16.msra.mxu0 0
  %517 = vmatprep.subr.bf16.mxu0 0
  %518 = vmatpush1.bf16.msra.mxu0 0
  %519 = vmatprep.subr.bf16.mxu0 0
  %520 = vmatpush1.bf16.msra.mxu0 0
  %521 = vmatprep.subr.bf16.mxu0 0
  %522 = vmatpush1.bf16.msra.mxu0 0
  %523 = vmatprep.subr.bf16.mxu0 0
  %524 = vmatpush1.bf16.msra.mxu0 0
  %525 = vmatprep.subr.bf16.mxu0 0
  %526 = vmatpush1.bf16.msra.mxu0 0
  %527 = vmatprep.subr.bf16.mxu0 0
  %528 = vmatpush1.bf16.msra.mxu0 0
  %529 = vmatprep.subr.bf16.mxu0 0
  %530 = vmatpush1.bf16.msra.mxu0 0
  %531 = vmatprep.subr.bf16.mxu0 0
  %532 = vmatpush1.bf16.msra.mxu0 0
  %533 = vmatprep.subr.bf16.mxu0 0
  %534 = vmatpush1.bf16.msra.mxu0 0
  %535 = vmatprep.mubr.bf16.mxu0 0
  %536 = vmatmul.mubr.bf16.gmra.mrb[0].mxu0 %v483
  %v537 = vpop.f32.mrb[0].mxu0
  %v538 = vadd.f32 %v384, %v537
  %v539 = vpop.f32.mrb[0].mxu0
  %v540 = vpop.f32.mrb[0].mxu0
  %v541 = vadd.f32 %v387, %v540
  %v542 = vpop.f32.mrb[0].mxu0
  %543 = vmatprep.mubr.bf16.mxu0 0
  %544 = vmatmul.mubr.bf16.gmra.mrb[0].mxu0 %v486
  %v545 = vpop.f32.mrb[0].mxu0
  %v546 = vadd.f32 %v392, %v545
  %v547 = vpop.f32.mrb[0].mxu0
  %v548 = vpop.f32.mrb[0].mxu0
  %v549 = vadd.f32 %v395, %v548
  %v550 = vpop.f32.mrb[0].mxu0
  %551 = vmatprep.mubr.bf16.mxu0 0
  %552 = vmatmul.mubr.bf16.gmra.mrb[0].mxu0 %v489
  %v553 = vpop.f32.mrb[0].mxu0
  %v554 = vadd.f32 %v400, %v553
  %v555 = vpop.f32.mrb[0].mxu0
  %v556 = vpop.f32.mrb[0].mxu0
  %v557 = vadd.f32 %v403, %v556
  %v558 = vpop.f32.mrb[0].mxu0
  %559 = vmatprep.mubr.bf16.mxu0 0
  %560 = vmatmul.mubr.bf16.gmra.mrb[0].mxu0 %v492
  %v561 = vpop.f32.mrb[0].mxu0
  %v562 = vadd.f32 %v408, %v561
  %v563 = vpop.f32.mrb[0].mxu0
  %v564 = vpop.f32.mrb[0].mxu0
  %v565 = vadd.f32 %v411, %v564
  %v566 = vpop.f32.mrb[0].mxu0
  %567 = vmatprep.mubr.bf16.mxu0 0
  %568 = vmatmul.mubr.bf16.gmra.mrb[0].mxu0 %v495
  %v569 = vpop.f32.mrb[0].mxu0
  %v570 = vadd.f32 %v416, %v569
  %v571 = vpop.f32.mrb[0].mxu0
  %v572 = vpop.f32.mrb[0].mxu0
  %v573 = vadd.f32 %v419, %v572
  %v574 = vpop.f32.mrb[0].mxu0
  %575 = vmatprep.mubr.bf16.mxu0 0
  %576 = vmatmul.mubr.bf16.gmra.mrb[0].mxu0 %v498
  %v577 = vpop.f32.mrb[0].mxu0
  %v578 = vadd.f32 %v424, %v577
  %v579 = vpop.f32.mrb[0].mxu0
  %v580 = vpop.f32.mrb[0].mxu0
  %v581 = vadd.f32 %v427, %v580
  %v582 = vpop.f32.mrb[0].mxu0
  %583 = vmatprep.mubr.bf16.mxu0 0
  %584 = vmatmul.mubr.bf16.gmra.mrb[0].mxu0 %v501
  %v585 = vpop.f32.mrb[0].mxu0
  %v586 = vadd.f32 %v432, %v585
  %v587 = vpop.f32.mrb[0].mxu0
  %v588 = vpop.f32.mrb[0].mxu0
  %v589 = vpop.f32.mrb[0].mxu0
  %590 = vdwg.mxu0
  %v604 = vunpack.c.l.b16 %v43
  %v605 = vunpack.c.l.b16 %v44
  %v606 = vunpack.c.l.b16 %v45
  %v607 = vunpack.c.l.b16 %v46
  %v608 = vunpack.c.l.b16 %v47
  %v609 = vunpack.c.l.b16 %v48
  %v610 = vunpack.c.l.b16 %v49
  %v611 = vunpack.c.l.b16 %v50
  %v612 = vunpack.c.l.b16 %v51
  %v613 = vunpack.c.l.b16 %v52
  %v614 = vunpack.c.l.b16 %v53
  %v615 = vunpack.c.l.b16 %v54
  %v616 = vunpack.c.l.b16 %v55
  %v617 = vpack.c.b16 %v605, %v604
  %v618 = vpack.c.b16 %v607, %v606
  %v619 = vpack.c.b16 %v609, %v608
  %v620 = vpack.c.b16 %v611, %v610
  %v621 = vpack.c.b16 %v613, %v612
  %v622 = vpack.c.b16 %v615, %v614
  %v623 = vpack.c.b16 %v616, %v616
  %v628 = vunpack.c.l.b16 %v248
  %v629 = vunpack.c.l.b16 %v249
  %v630 = vunpack.c.l.b16 %v250
  %v631 = vunpack.c.l.b16 %v251
  %v632 = vpack.c.b16 %v629, %v628
  %v633 = vpack.c.b16 %v631, %v630
  %v637 = vsel %vm327, %v617, 0
  %v640 = vsel %vm327, %v618, 0
  %v643 = vsel %vm327, %v619, 0
  %v646 = vsel %vm327, %v620, 0
  %v649 = vsel %vm327, %v621, 0
  %v652 = vsel %vm327, %v622, 0
  %v655 = vsel %vm327, %v623, 0
  %657 = vmatprep.subr.bf16.mxu0 0
  %658 = vmatpush1.bf16.msra.mxu0 %v632
  %659 = vmatprep.subr.bf16.mxu0 0
  %660 = vmatpush1.bf16.msra.mxu0 %v633
  %661 = vmatprep.subr.bf16.mxu0 0
  %662 = vmatpush1.bf16.msra.mxu0 0
  %663 = vmatprep.subr.bf16.mxu0 0
  %664 = vmatpush1.bf16.msra.mxu0 0
  %665 = vmatprep.subr.bf16.mxu0 0
  %666 = vmatpush1.bf16.msra.mxu0 0
  %667 = vmatprep.subr.bf16.mxu0 0
  %668 = vmatpush1.bf16.msra.mxu0 0
  %669 = vmatprep.subr.bf16.mxu0 0
  %670 = vmatpush1.bf16.msra.mxu0 0
  %671 = vmatprep.subr.bf16.mxu0 0
  %672 = vmatpush1.bf16.msra.mxu0 0
  %673 = vmatprep.subr.bf16.mxu0 0
  %674 = vmatpush1.bf16.msra.mxu0 0
  %675 = vmatprep.subr.bf16.mxu0 0
  %676 = vmatpush1.bf16.msra.mxu0 0
  %677 = vmatprep.subr.bf16.mxu0 0
  %678 = vmatpush1.bf16.msra.mxu0 0
  %679 = vmatprep.subr.bf16.mxu0 0
  %680 = vmatpush1.bf16.msra.mxu0 0
  %681 = vmatprep.subr.bf16.mxu0 0
  %682 = vmatpush1.bf16.msra.mxu0 0
  %683 = vmatprep.subr.bf16.mxu0 0
  %684 = vmatpush1.bf16.msra.mxu0 0
  %685 = vmatprep.subr.bf16.mxu0 0
  %686 = vmatpush1.bf16.msra.mxu0 0
  %687 = vmatprep.subr.bf16.mxu0 0
  %688 = vmatpush1.bf16.msra.mxu0 0
  %689 = vmatprep.mubr.bf16.mxu0 0
  %690 = vmatmul.mubr.bf16.gmra.mrb[0].mxu0 %v637
  %v691 = vpop.f32.mrb[0].mxu0
  %v692 = vadd.f32 0.0, %v691
  %v693 = vpop.f32.mrb[0].mxu0
  %v694 = vpop.f32.mrb[0].mxu0
  %v695 = vadd.f32 0.0, %v694
  %v696 = vpop.f32.mrb[0].mxu0
  %697 = vmatprep.mubr.bf16.mxu0 0
  %698 = vmatmul.mubr.bf16.gmra.mrb[0].mxu0 %v640
  %v699 = vpop.f32.mrb[0].mxu0
  %v700 = vadd.f32 0.0, %v699
  %v701 = vpop.f32.mrb[0].mxu0
  %v702 = vpop.f32.mrb[0].mxu0
  %v703 = vadd.f32 0.0, %v702
  %v704 = vpop.f32.mrb[0].mxu0
  %705 = vmatprep.mubr.bf16.mxu0 0
  %706 = vmatmul.mubr.bf16.gmra.mrb[0].mxu0 %v643
  %v707 = vpop.f32.mrb[0].mxu0
  %v708 = vadd.f32 0.0, %v707
  %v709 = vpop.f32.mrb[0].mxu0
  %v710 = vpop.f32.mrb[0].mxu0
  %v711 = vadd.f32 0.0, %v710
  %v712 = vpop.f32.mrb[0].mxu0
  %713 = vmatprep.mubr.bf16.mxu0 0
  %714 = vmatmul.mubr.bf16.gmra.mrb[0].mxu0 %v646
  %v715 = vpop.f32.mrb[0].mxu0
  %v716 = vadd.f32 0.0, %v715
  %v717 = vpop.f32.mrb[0].mxu0
  %v718 = vpop.f32.mrb[0].mxu0
  %v719 = vadd.f32 0.0, %v718
  %v720 = vpop.f32.mrb[0].mxu0
  %721 = vmatprep.mubr.bf16.mxu0 0
  %722 = vmatmul.mubr.bf16.gmra.mrb[0].mxu0 %v649
  %v723 = vpop.f32.mrb[0].mxu0
  %v724 = vadd.f32 0.0, %v723
  %v725 = vpop.f32.mrb[0].mxu0
  %v726 = vpop.f32.mrb[0].mxu0
  %v727 = vadd.f32 0.0, %v726
  %v728 = vpop.f32.mrb[0].mxu0
  %729 = vmatprep.mubr.bf16.mxu0 0
  %730 = vmatmul.mubr.bf16.gmra.mrb[0].mxu0 %v652
  %v731 = vpop.f32.mrb[0].mxu0
  %v732 = vadd.f32 0.0, %v731
  %v733 = vpop.f32.mrb[0].mxu0
  %v734 = vpop.f32.mrb[0].mxu0
  %v735 = vadd.f32 0.0, %v734
  %v736 = vpop.f32.mrb[0].mxu0
  %737 = vmatprep.mubr.bf16.mxu0 0
  %738 = vmatmul.mubr.bf16.gmra.mrb[0].mxu0 %v655
  %v739 = vpop.f32.mrb[0].mxu0
  %v740 = vadd.f32 0.0, %v739
  %v741 = vpop.f32.mrb[0].mxu0
  %v742 = vpop.f32.mrb[0].mxu0
  %v743 = vpop.f32.mrb[0].mxu0
  %744 = vdwg.mxu0
  %v745 = vadd.f32 %v538, %v692
  %v746 = vadd.f32 %v541, %v695
  %v747 = vadd.f32 %v546, %v700
  %v748 = vadd.f32 %v549, %v703
  %v749 = vadd.f32 %v554, %v708
  %v750 = vadd.f32 %v557, %v711
  %v751 = vadd.f32 %v562, %v716
  %v752 = vadd.f32 %v565, %v719
  %v753 = vadd.f32 %v570, %v724
  %v754 = vadd.f32 %v573, %v727
  %v755 = vadd.f32 %v578, %v732
  %v756 = vadd.f32 %v581, %v735
  %v757 = vadd.f32 %v586, %v740
  %v771 = vunpack.c.l.b16 %v71
  %v772 = vunpack.c.l.b16 %v72
  %v773 = vunpack.c.l.b16 %v73
  %v774 = vunpack.c.l.b16 %v74
  %v775 = vunpack.c.l.b16 %v75
  %v776 = vunpack.c.l.b16 %v76
  %v777 = vunpack.c.l.b16 %v77
  %v778 = vunpack.c.l.b16 %v78
  %v779 = vunpack.c.l.b16 %v79
  %v780 = vunpack.c.l.b16 %v80
  %v781 = vunpack.c.l.b16 %v81
  %v782 = vunpack.c.l.b16 %v82
  %v783 = vunpack.c.l.b16 %v83
  %v784 = vpack.c.b16 %v772, %v771
  %v785 = vpack.c.b16 %v774, %v773
  %v786 = vpack.c.b16 %v776, %v775
  %v787 = vpack.c.b16 %v778, %v777
  %v788 = vpack.c.b16 %v780, %v779
  %v789 = vpack.c.b16 %v782, %v781
  %v790 = vpack.c.b16 %v783, %v783
  %v795 = vunpack.c.l.b16 %v253
  %v796 = vunpack.c.l.b16 %v254
  %v797 = vunpack.c.l.b16 %v255
  %v798 = vunpack.c.l.b16 %v256
  %v799 = vpack.c.b16 %v796, %v795
  %v800 = vpack.c.b16 %v798, %v797
  %v804 = vsel %vm327, %v784, 0
  %v807 = vsel %vm327, %v785, 0
  %v810 = vsel %vm327, %v786, 0
  %v813 = vsel %vm327, %v787, 0
  %v816 = vsel %vm327, %v788, 0
  %v819 = vsel %vm327, %v789, 0
  %v822 = vsel %vm327, %v790, 0
  %824 = vmatprep.subr.bf16.mxu0 0
  %825 = vmatpush1.bf16.msra.mxu0 %v799
  %826 = vmatprep.subr.bf16.mxu0 0
  %827 = vmatpush1.bf16.msra.mxu0 %v800
  %828 = vmatprep.subr.bf16.mxu0 0
  %829 = vmatpush1.bf16.msra.mxu0 0
  %830 = vmatprep.subr.bf16.mxu0 0
  %831 = vmatpush1.bf16.msra.mxu0 0
  %832 = vmatprep.subr.bf16.mxu0 0
  %833 = vmatpush1.bf16.msra.mxu0 0
  %834 = vmatprep.subr.bf16.mxu0 0
  %835 = vmatpush1.bf16.msra.mxu0 0
  %836 = vmatprep.subr.bf16.mxu0 0
  %837 = vmatpush1.bf16.msra.mxu0 0
  %838 = vmatprep.subr.bf16.mxu0 0
  %839 = vmatpush1.bf16.msra.mxu0 0
  %840 = vmatprep.subr.bf16.mxu0 0
  %841 = vmatpush1.bf16.msra.mxu0 0
  %842 = vmatprep.subr.bf16.mxu0 0
  %843 = vmatpush1.bf16.msra.mxu0 0
  %844 = vmatprep.subr.bf16.mxu0 0
  %845 = vmatpush1.bf16.msra.mxu0 0
  %846 = vmatprep.subr.bf16.mxu0 0
  %847 = vmatpush1.bf16.msra.mxu0 0
  %848 = vmatprep.subr.bf16.mxu0 0
  %849 = vmatpush1.bf16.msra.mxu0 0
  %850 = vmatprep.subr.bf16.mxu0 0
  %851 = vmatpush1.bf16.msra.mxu0 0
  %852 = vmatprep.subr.bf16.mxu0 0
  %853 = vmatpush1.bf16.msra.mxu0 0
  %854 = vmatprep.subr.bf16.mxu0 0
  %855 = vmatpush1.bf16.msra.mxu0 0
  %856 = vmatprep.mubr.bf16.mxu0 0
  %857 = vmatmul.mubr.bf16.gmra.mrb[0].mxu0 %v804
  %v858 = vpop.f32.mrb[0].mxu0
  %v859 = vadd.f32 0.0, %v858
  %v860 = vpop.f32.mrb[0].mxu0
  %v861 = vpop.f32.mrb[0].mxu0
  %v862 = vadd.f32 0.0, %v861
  %v863 = vpop.f32.mrb[0].mxu0
  %864 = vmatprep.mubr.bf16.mxu0 0
  %865 = vmatmul.mubr.bf16.gmra.mrb[0].mxu0 %v807
  %v866 = vpop.f32.mrb[0].mxu0
  %v867 = vadd.f32 0.0, %v866
  %v868 = vpop.f32.mrb[0].mxu0
  %v869 = vpop.f32.mrb[0].mxu0
  %v870 = vadd.f32 0.0, %v869
  %v871 = vpop.f32.mrb[0].mxu0
  %872 = vmatprep.mubr.bf16.mxu0 0
  %873 = vmatmul.mubr.bf16.gmra.mrb[0].mxu0 %v810
  %v874 = vpop.f32.mrb[0].mxu0
  %v875 = vadd.f32 0.0, %v874
  %v876 = vpop.f32.mrb[0].mxu0
  %v877 = vpop.f32.mrb[0].mxu0
  %v878 = vadd.f32 0.0, %v877
  %v879 = vpop.f32.mrb[0].mxu0
  %880 = vmatprep.mubr.bf16.mxu0 0
  %881 = vmatmul.mubr.bf16.gmra.mrb[0].mxu0 %v813
  %v882 = vpop.f32.mrb[0].mxu0
  %v883 = vadd.f32 0.0, %v882
  %v884 = vpop.f32.mrb[0].mxu0
  %v885 = vpop.f32.mrb[0].mxu0
  %v886 = vadd.f32 0.0, %v885
  %v887 = vpop.f32.mrb[0].mxu0
  %888 = vmatprep.mubr.bf16.mxu0 0
  %889 = vmatmul.mubr.bf16.gmra.mrb[0].mxu0 %v816
  %v890 = vpop.f32.mrb[0].mxu0
  %v891 = vadd.f32 0.0, %v890
  %v892 = vpop.f32.mrb[0].mxu0
  %v893 = vpop.f32.mrb[0].mxu0
  %v894 = vadd.f32 0.0, %v893
  %v895 = vpop.f32.mrb[0].mxu0
  %896 = vmatprep.mubr.bf16.mxu0 0
  %897 = vmatmul.mubr.bf16.gmra.mrb[0].mxu0 %v819
  %v898 = vpop.f32.mrb[0].mxu0
  %v899 = vadd.f32 0.0, %v898
  %v900 = vpop.f32.mrb[0].mxu0
  %v901 = vpop.f32.mrb[0].mxu0
  %v902 = vadd.f32 0.0, %v901
  %v903 = vpop.f32.mrb[0].mxu0
  %904 = vmatprep.mubr.bf16.mxu0 0
  %905 = vmatmul.mubr.bf16.gmra.mrb[0].mxu0 %v822
  %v906 = vpop.f32.mrb[0].mxu0
  %v907 = vadd.f32 0.0, %v906
  %v908 = vpop.f32.mrb[0].mxu0
  %v909 = vpop.f32.mrb[0].mxu0
  %v910 = vpop.f32.mrb[0].mxu0
  %911 = vdwg.mxu0
  %v912 = vadd.f32 %v745, %v859
  %v913 = vadd.f32 %v746, %v862
  %v914 = vadd.f32 %v747, %v867
  %v915 = vadd.f32 %v748, %v870
  %v916 = vadd.f32 %v749, %v875
  %v917 = vadd.f32 %v750, %v878
  %v918 = vadd.f32 %v751, %v883
  %v919 = vadd.f32 %v752, %v886
  %v920 = vadd.f32 %v753, %v891
  %v921 = vadd.f32 %v754, %v894
  %v922 = vadd.f32 %v755, %v899
  %v923 = vadd.f32 %v756, %v902
  %v924 = vadd.f32 %v757, %v907
  %v938 = vunpack.c.l.b16 %v85
  %v939 = vunpack.c.l.b16 %v86
  %v940 = vunpack.c.l.b16 %v87
  %v941 = vunpack.c.l.b16 %v88
  %v942 = vunpack.c.l.b16 %v89
  %v943 = vunpack.c.l.b16 %v90
  %v944 = vunpack.c.l.b16 %v91
  %v945 = vunpack.c.l.b16 %v92
  %v946 = vunpack.c.l.b16 %v93
  %v947 = vunpack.c.l.b16 %v94
  %v948 = vunpack.c.l.b16 %v95
  %v949 = vunpack.c.l.b16 %v96
  %v950 = vunpack.c.l.b16 %v97
  %v951 = vpack.c.b16 %v939, %v938
  %v952 = vpack.c.b16 %v941, %v940
  %v953 = vpack.c.b16 %v943, %v942
  %v954 = vpack.c.b16 %v945, %v944
  %v955 = vpack.c.b16 %v947, %v946
  %v956 = vpack.c.b16 %v949, %v948
  %v957 = vpack.c.b16 %v950, %v950
  %v962 = vunpack.c.l.b16 %v258
  %v963 = vunpack.c.l.b16 %v259
  %v964 = vunpack.c.l.b16 %v260
  %v965 = vunpack.c.l.b16 %v261
  %v966 = vpack.c.b16 %v963, %v962
  %v967 = vpack.c.b16 %v965, %v964
  %v971 = vsel %vm327, %v951, 0
  %v974 = vsel %vm327, %v952, 0
  %v977 = vsel %vm327, %v953, 0
  %v980 = vsel %vm327, %v954, 0
  %v983 = vsel %vm327, %v955, 0
  %v986 = vsel %vm327, %v956, 0
  %v989 = vsel %vm327, %v957, 0
  %991 = vmatprep.subr.bf16.mxu0 0
  %992 = vmatpush1.bf16.msra.mxu0 %v966
  %993 = vmatprep.subr.bf16.mxu0 0
  %994 = vmatpush1.bf16.msra.mxu0 %v967
  %995 = vmatprep.subr.bf16.mxu0 0
  %996 = vmatpush1.bf16.msra.mxu0 0
  %997 = vmatprep.subr.bf16.mxu0 0
  %998 = vmatpush1.bf16.msra.mxu0 0
  %999 = vmatprep.subr.bf16.mxu0 0
  %1000 = vmatpush1.bf16.msra.mxu0 0
  %1001 = vmatprep.subr.bf16.mxu0 0
  %1002 = vmatpush1.bf16.msra.mxu0 0
  %1003 = vmatprep.subr.bf16.mxu0 0
  %1004 = vmatpush1.bf16.msra.mxu0 0
  %1005 = vmatprep.subr.bf16.mxu0 0
  %1006 = vmatpush1.bf16.msra.mxu0 0
  %1007 = vmatprep.subr.bf16.mxu0 0
  %1008 = vmatpush1.bf16.msra.mxu0 0
  %1009 = vmatprep.subr.bf16.mxu0 0
  %1010 = vmatpush1.bf16.msra.mxu0 0
  %1011 = vmatprep.subr.bf16.mxu0 0
  %1012 = vmatpush1.bf16.msra.mxu0 0
  %1013 = vmatprep.subr.bf16.mxu0 0
  %1014 = vmatpush1.bf16.msra.mxu0 0
  %1015 = vmatprep.subr.bf16.mxu0 0
  %1016 = vmatpush1.bf16.msra.mxu0 0
  %1017 = vmatprep.subr.bf16.mxu0 0
  %1018 = vmatpush1.bf16.msra.mxu0 0
  %1019 = vmatprep.subr.bf16.mxu0 0
  %1020 = vmatpush1.bf16.msra.mxu0 0
  %1021 = vmatprep.subr.bf16.mxu0 0
  %1022 = vmatpush1.bf16.msra.mxu0 0
  %1023 = vmatprep.mubr.bf16.mxu0 0
  %1024 = vmatmul.mubr.bf16.gmra.mrb[0].mxu0 %v971
  %v1025 = vpop.f32.mrb[0].mxu0
  %v1026 = vadd.f32 0.0, %v1025
  %v1027 = vpop.f32.mrb[0].mxu0
  %v1028 = vpop.f32.mrb[0].mxu0
  %v1029 = vadd.f32 0.0, %v1028
  %v1030 = vpop.f32.mrb[0].mxu0
  %1031 = vmatprep.mubr.bf16.mxu0 0
  %1032 = vmatmul.mubr.bf16.gmra.mrb[0].mxu0 %v974
  %v1033 = vpop.f32.mrb[0].mxu0
  %v1034 = vadd.f32 0.0, %v1033
  %v1035 = vpop.f32.mrb[0].mxu0
  %v1036 = vpop.f32.mrb[0].mxu0
  %v1037 = vadd.f32 0.0, %v1036
  %v1038 = vpop.f32.mrb[0].mxu0
  %1039 = vmatprep.mubr.bf16.mxu0 0
  %1040 = vmatmul.mubr.bf16.gmra.mrb[0].mxu0 %v977
  %v1041 = vpop.f32.mrb[0].mxu0
  %v1042 = vadd.f32 0.0, %v1041
  %v1043 = vpop.f32.mrb[0].mxu0
  %v1044 = vpop.f32.mrb[0].mxu0
  %v1045 = vadd.f32 0.0, %v1044
  %v1046 = vpop.f32.mrb[0].mxu0
  %1047 = vmatprep.mubr.bf16.mxu0 0
  %1048 = vmatmul.mubr.bf16.gmra.mrb[0].mxu0 %v980
  %v1049 = vpop.f32.mrb[0].mxu0
  %v1050 = vadd.f32 0.0, %v1049
  %v1051 = vpop.f32.mrb[0].mxu0
  %v1052 = vpop.f32.mrb[0].mxu0
  %v1053 = vadd.f32 0.0, %v1052
  %v1054 = vpop.f32.mrb[0].mxu0
  %1055 = vmatprep.mubr.bf16.mxu0 0
  %1056 = vmatmul.mubr.bf16.gmra.mrb[0].mxu0 %v983
  %v1057 = vpop.f32.mrb[0].mxu0
  %v1058 = vadd.f32 0.0, %v1057
  %v1059 = vpop.f32.mrb[0].mxu0
  %v1060 = vpop.f32.mrb[0].mxu0
  %v1061 = vadd.f32 0.0, %v1060
  %v1062 = vpop.f32.mrb[0].mxu0
  %1063 = vmatprep.mubr.bf16.mxu0 0
  %1064 = vmatmul.mubr.bf16.gmra.mrb[0].mxu0 %v986
  %v1065 = vpop.f32.mrb[0].mxu0
  %v1066 = vadd.f32 0.0, %v1065
  %v1067 = vpop.f32.mrb[0].mxu0
  %v1068 = vpop.f32.mrb[0].mxu0
  %v1069 = vadd.f32 0.0, %v1068
  %v1070 = vpop.f32.mrb[0].mxu0
  %1071 = vmatprep.mubr.bf16.mxu0 0
  %1072 = vmatmul.mubr.bf16.gmra.mrb[0].mxu0 %v989
  %v1073 = vpop.f32.mrb[0].mxu0
  %v1074 = vadd.f32 0.0, %v1073
  %v1075 = vpop.f32.mrb[0].mxu0
  %v1076 = vpop.f32.mrb[0].mxu0
  %v1077 = vpop.f32.mrb[0].mxu0
  %1078 = vdwg.mxu0
  %v1079 = vadd.f32 %v912, %v1026
  %v1080 = vadd.f32 %v913, %v1029
  %v1081 = vadd.f32 %v914, %v1034
  %v1082 = vadd.f32 %v915, %v1037
  %v1083 = vadd.f32 %v916, %v1042
  %v1084 = vadd.f32 %v917, %v1045
  %v1085 = vadd.f32 %v918, %v1050
  %v1086 = vadd.f32 %v919, %v1053
  %v1087 = vadd.f32 %v920, %v1058
  %v1088 = vadd.f32 %v921, %v1061
  %v1089 = vadd.f32 %v922, %v1066
  %v1090 = vadd.f32 %v923, %v1069
  %v1091 = vadd.f32 %v924, %v1074
  %v1105 = vunpack.c.l.b16 %v99
  %v1106 = vunpack.c.l.b16 %v100
  %v1107 = vunpack.c.l.b16 %v101
  %v1108 = vunpack.c.l.b16 %v102
  %v1109 = vunpack.c.l.b16 %v103
  %v1110 = vunpack.c.l.b16 %v104
  %v1111 = vunpack.c.l.b16 %v105
  %v1112 = vunpack.c.l.b16 %v106
  %v1113 = vunpack.c.l.b16 %v107
  %v1114 = vunpack.c.l.b16 %v108
  %v1115 = vunpack.c.l.b16 %v109
  %v1116 = vunpack.c.l.b16 %v110
  %v1117 = vunpack.c.l.b16 %v111
  %v1118 = vpack.c.b16 %v1106, %v1105
  %v1119 = vpack.c.b16 %v1108, %v1107
  %v1120 = vpack.c.b16 %v1110, %v1109
  %v1121 = vpack.c.b16 %v1112, %v1111
  %v1122 = vpack.c.b16 %v1114, %v1113
  %v1123 = vpack.c.b16 %v1116, %v1115
  %v1124 = vpack.c.b16 %v1117, %v1117
  %v1129 = vunpack.c.l.b16 %v263
  %v1130 = vunpack.c.l.b16 %v264
  %v1131 = vunpack.c.l.b16 %v265
  %v1132 = vunpack.c.l.b16 %v266
  %v1133 = vpack.c.b16 %v1130, %v1129
  %v1134 = vpack.c.b16 %v1132, %v1131
  %v1138 = vsel %vm327, %v1118, 0
  %v1141 = vsel %vm327, %v1119, 0
  %v1144 = vsel %vm327, %v1120, 0
  %v1147 = vsel %vm327, %v1121, 0
  %v1150 = vsel %vm327, %v1122, 0
  %v1153 = vsel %vm327, %v1123, 0
  %v1156 = vsel %vm327, %v1124, 0
  %1158 = vmatprep.subr.bf16.mxu0 0
  %1159 = vmatpush1.bf16.msra.mxu0 %v1133
  %1160 = vmatprep.subr.bf16.mxu0 0
  %1161 = vmatpush1.bf16.msra.mxu0 %v1134
  %1162 = vmatprep.subr.bf16.mxu0 0
  %1163 = vmatpush1.bf16.msra.mxu0 0
  %1164 = vmatprep.subr.bf16.mxu0 0
  %1165 = vmatpush1.bf16.msra.mxu0 0
  %1166 = vmatprep.subr.bf16.mxu0 0
  %1167 = vmatpush1.bf16.msra.mxu0 0
  %1168 = vmatprep.subr.bf16.mxu0 0
  %1169 = vmatpush1.bf16.msra.mxu0 0
  %1170 = vmatprep.subr.bf16.mxu0 0
  %1171 = vmatpush1.bf16.msra.mxu0 0
  %1172 = vmatprep.subr.bf16.mxu0 0
  %1173 = vmatpush1.bf16.msra.mxu0 0
  %1174 = vmatprep.subr.bf16.mxu0 0
  %1175 = vmatpush1.bf16.msra.mxu0 0
  %1176 = vmatprep.subr.bf16.mxu0 0
  %1177 = vmatpush1.bf16.msra.mxu0 0
  %1178 = vmatprep.subr.bf16.mxu0 0
  %1179 = vmatpush1.bf16.msra.mxu0 0
  %1180 = vmatprep.subr.bf16.mxu0 0
  %1181 = vmatpush1.bf16.msra.mxu0 0
  %1182 = vmatprep.subr.bf16.mxu0 0
  %1183 = vmatpush1.bf16.msra.mxu0 0
  %1184 = vmatprep.subr.bf16.mxu0 0
  %1185 = vmatpush1.bf16.msra.mxu0 0
  %1186 = vmatprep.subr.bf16.mxu0 0
  %1187 = vmatpush1.bf16.msra.mxu0 0
  %1188 = vmatprep.subr.bf16.mxu0 0
  %1189 = vmatpush1.bf16.msra.mxu0 0
  %1190 = vmatprep.mubr.bf16.mxu0 0
  %1191 = vmatmul.mubr.bf16.gmra.mrb[0].mxu0 %v1138
  %v1192 = vpop.f32.mrb[0].mxu0
  %v1193 = vadd.f32 0.0, %v1192
  %v1194 = vpop.f32.mrb[0].mxu0
  %v1195 = vpop.f32.mrb[0].mxu0
  %v1196 = vadd.f32 0.0, %v1195
  %v1197 = vpop.f32.mrb[0].mxu0
  %1198 = vmatprep.mubr.bf16.mxu0 0
  %1199 = vmatmul.mubr.bf16.gmra.mrb[0].mxu0 %v1141
  %v1200 = vpop.f32.mrb[0].mxu0
  %v1201 = vadd.f32 0.0, %v1200
  %v1202 = vpop.f32.mrb[0].mxu0
  %v1203 = vpop.f32.mrb[0].mxu0
  %v1204 = vadd.f32 0.0, %v1203
  %v1205 = vpop.f32.mrb[0].mxu0
  %1206 = vmatprep.mubr.bf16.mxu0 0
  %1207 = vmatmul.mubr.bf16.gmra.mrb[0].mxu0 %v1144
  %v1208 = vpop.f32.mrb[0].mxu0
  %v1209 = vadd.f32 0.0, %v1208
  %v1210 = vpop.f32.mrb[0].mxu0
  %v1211 = vpop.f32.mrb[0].mxu0
  %v1212 = vadd.f32 0.0, %v1211
  %v1213 = vpop.f32.mrb[0].mxu0
  %1214 = vmatprep.mubr.bf16.mxu0 0
  %1215 = vmatmul.mubr.bf16.gmra.mrb[0].mxu0 %v1147
  %v1216 = vpop.f32.mrb[0].mxu0
  %v1217 = vadd.f32 0.0, %v1216
  %v1218 = vpop.f32.mrb[0].mxu0
  %v1219 = vpop.f32.mrb[0].mxu0
  %v1220 = vadd.f32 0.0, %v1219
  %v1221 = vpop.f32.mrb[0].mxu0
  %1222 = vmatprep.mubr.bf16.mxu0 0
  %1223 = vmatmul.mubr.bf16.gmra.mrb[0].mxu0 %v1150
  %v1224 = vpop.f32.mrb[0].mxu0
  %v1225 = vadd.f32 0.0, %v1224
  %v1226 = vpop.f32.mrb[0].mxu0
  %v1227 = vpop.f32.mrb[0].mxu0
  %v1228 = vadd.f32 0.0, %v1227
  %v1229 = vpop.f32.mrb[0].mxu0
  %1230 = vmatprep.mubr.bf16.mxu0 0
  %1231 = vmatmul.mubr.bf16.gmra.mrb[0].mxu0 %v1153
  %v1232 = vpop.f32.mrb[0].mxu0
  %v1233 = vadd.f32 0.0, %v1232
  %v1234 = vpop.f32.mrb[0].mxu0
  %v1235 = vpop.f32.mrb[0].mxu0
  %v1236 = vadd.f32 0.0, %v1235
  %v1237 = vpop.f32.mrb[0].mxu0
  %1238 = vmatprep.mubr.bf16.mxu0 0
  %1239 = vmatmul.mubr.bf16.gmra.mrb[0].mxu0 %v1156
  %v1240 = vpop.f32.mrb[0].mxu0
  %v1241 = vadd.f32 0.0, %v1240
  %v1242 = vpop.f32.mrb[0].mxu0
  %v1243 = vpop.f32.mrb[0].mxu0
  %v1244 = vpop.f32.mrb[0].mxu0
  %1245 = vdwg.mxu0
  %v1246 = vadd.f32 %v1079, %v1193
  %v1247 = vadd.f32 %v1080, %v1196
  %v1248 = vadd.f32 %v1081, %v1201
  %v1249 = vadd.f32 %v1082, %v1204
  %v1250 = vadd.f32 %v1083, %v1209
  %v1251 = vadd.f32 %v1084, %v1212
  %v1252 = vadd.f32 %v1085, %v1217
  %v1253 = vadd.f32 %v1086, %v1220
  %v1254 = vadd.f32 %v1087, %v1225
  %v1255 = vadd.f32 %v1088, %v1228
  %v1256 = vadd.f32 %v1089, %v1233
  %v1257 = vadd.f32 %v1090, %v1236
  %v1258 = vadd.f32 %v1091, %v1241
  %v1272 = vunpack.c.l.b16 %v127
  %v1273 = vunpack.c.l.b16 %v128
  %v1274 = vunpack.c.l.b16 %v129
  %v1275 = vunpack.c.l.b16 %v130
  %v1276 = vunpack.c.l.b16 %v131
  %v1277 = vunpack.c.l.b16 %v132
  %v1278 = vunpack.c.l.b16 %v133
  %v1279 = vunpack.c.l.b16 %v134
  %v1280 = vunpack.c.l.b16 %v135
  %v1281 = vunpack.c.l.b16 %v136
  %v1282 = vunpack.c.l.b16 %v137
  %v1283 = vunpack.c.l.b16 %v138
  %v1284 = vunpack.c.l.b16 %v139
  %v1285 = vpack.c.b16 %v1273, %v1272
  %v1286 = vpack.c.b16 %v1275, %v1274
  %v1287 = vpack.c.b16 %v1277, %v1276
  %v1288 = vpack.c.b16 %v1279, %v1278
  %v1289 = vpack.c.b16 %v1281, %v1280
  %v1290 = vpack.c.b16 %v1283, %v1282
  %v1291 = vpack.c.b16 %v1284, %v1284
  %v1296 = vunpack.c.l.b16 %v268
  %v1297 = vunpack.c.l.b16 %v269
  %v1298 = vunpack.c.l.b16 %v270
  %v1299 = vunpack.c.l.b16 %v271
  %v1300 = vpack.c.b16 %v1297, %v1296
  %v1301 = vpack.c.b16 %v1299, %v1298
  %v1305 = vsel %vm327, %v1285, 0
  %v1308 = vsel %vm327, %v1286, 0
  %v1311 = vsel %vm327, %v1287, 0
  %v1314 = vsel %vm327, %v1288, 0
  %v1317 = vsel %vm327, %v1289, 0
  %v1320 = vsel %vm327, %v1290, 0
  %v1323 = vsel %vm327, %v1291, 0
  %1325 = vmatprep.subr.bf16.mxu0 0
  %1326 = vmatpush1.bf16.msra.mxu0 %v1300
  %1327 = vmatprep.subr.bf16.mxu0 0
  %1328 = vmatpush1.bf16.msra.mxu0 %v1301
  %1329 = vmatprep.subr.bf16.mxu0 0
  %1330 = vmatpush1.bf16.msra.mxu0 0
  %1331 = vmatprep.subr.bf16.mxu0 0
  %1332 = vmatpush1.bf16.msra.mxu0 0
  %1333 = vmatprep.subr.bf16.mxu0 0
  %1334 = vmatpush1.bf16.msra.mxu0 0
  %1335 = vmatprep.subr.bf16.mxu0 0
  %1336 = vmatpush1.bf16.msra.mxu0 0
  %1337 = vmatprep.subr.bf16.mxu0 0
  %1338 = vmatpush1.bf16.msra.mxu0 0
  %1339 = vmatprep.subr.bf16.mxu0 0
  %1340 = vmatpush1.bf16.msra.mxu0 0
  %1341 = vmatprep.subr.bf16.mxu0 0
  %1342 = vmatpush1.bf16.msra.mxu0 0
  %1343 = vmatprep.subr.bf16.mxu0 0
  %1344 = vmatpush1.bf16.msra.mxu0 0
  %1345 = vmatprep.subr.bf16.mxu0 0
  %1346 = vmatpush1.bf16.msra.mxu0 0
  %1347 = vmatprep.subr.bf16.mxu0 0
  %1348 = vmatpush1.bf16.msra.mxu0 0
  %1349 = vmatprep.subr.bf16.mxu0 0
  %1350 = vmatpush1.bf16.msra.mxu0 0
  %1351 = vmatprep.subr.bf16.mxu0 0
  %1352 = vmatpush1.bf16.msra.mxu0 0
  %1353 = vmatprep.subr.bf16.mxu0 0
  %1354 = vmatpush1.bf16.msra.mxu0 0
  %1355 = vmatprep.subr.bf16.mxu0 0
  %1356 = vmatpush1.bf16.msra.mxu0 0
  %1357 = vmatprep.mubr.bf16.mxu0 0
  %1358 = vmatmul.mubr.bf16.gmra.mrb[0].mxu0 %v1305
  %v1359 = vpop.f32.mrb[0].mxu0
  %v1360 = vadd.f32 0.0, %v1359
  %v1361 = vpop.f32.mrb[0].mxu0
  %v1362 = vpop.f32.mrb[0].mxu0
  %v1363 = vadd.f32 0.0, %v1362
  %v1364 = vpop.f32.mrb[0].mxu0
  %1365 = vmatprep.mubr.bf16.mxu0 0
  %1366 = vmatmul.mubr.bf16.gmra.mrb[0].mxu0 %v1308
  %v1367 = vpop.f32.mrb[0].mxu0
  %v1368 = vadd.f32 0.0, %v1367
  %v1369 = vpop.f32.mrb[0].mxu0
  %v1370 = vpop.f32.mrb[0].mxu0
  %v1371 = vadd.f32 0.0, %v1370
  %v1372 = vpop.f32.mrb[0].mxu0
  %1373 = vmatprep.mubr.bf16.mxu0 0
  %1374 = vmatmul.mubr.bf16.gmra.mrb[0].mxu0 %v1311
  %v1375 = vpop.f32.mrb[0].mxu0
  %v1376 = vadd.f32 0.0, %v1375
  %v1377 = vpop.f32.mrb[0].mxu0
  %v1378 = vpop.f32.mrb[0].mxu0
  %v1379 = vadd.f32 0.0, %v1378
  %v1380 = vpop.f32.mrb[0].mxu0
  %1381 = vmatprep.mubr.bf16.mxu0 0
  %1382 = vmatmul.mubr.bf16.gmra.mrb[0].mxu0 %v1314
  %v1383 = vpop.f32.mrb[0].mxu0
  %v1384 = vadd.f32 0.0, %v1383
  %v1385 = vpop.f32.mrb[0].mxu0
  %v1386 = vpop.f32.mrb[0].mxu0
  %v1387 = vadd.f32 0.0, %v1386
  %v1388 = vpop.f32.mrb[0].mxu0
  %1389 = vmatprep.mubr.bf16.mxu0 0
  %1390 = vmatmul.mubr.bf16.gmra.mrb[0].mxu0 %v1317
  %v1391 = vpop.f32.mrb[0].mxu0
  %v1392 = vadd.f32 0.0, %v1391
  %v1393 = vpop.f32.mrb[0].mxu0
  %v1394 = vpop.f32.mrb[0].mxu0
  %v1395 = vadd.f32 0.0, %v1394
  %v1396 = vpop.f32.mrb[0].mxu0
  %1397 = vmatprep.mubr.bf16.mxu0 0
  %1398 = vmatmul.mubr.bf16.gmra.mrb[0].mxu0 %v1320
  %v1399 = vpop.f32.mrb[0].mxu0
  %v1400 = vadd.f32 0.0, %v1399
  %v1401 = vpop.f32.mrb[0].mxu0
  %v1402 = vpop.f32.mrb[0].mxu0
  %v1403 = vadd.f32 0.0, %v1402
  %v1404 = vpop.f32.mrb[0].mxu0
  %1405 = vmatprep.mubr.bf16.mxu0 0
  %1406 = vmatmul.mubr.bf16.gmra.mrb[0].mxu0 %v1323
  %v1407 = vpop.f32.mrb[0].mxu0
  %v1408 = vadd.f32 0.0, %v1407
  %v1409 = vpop.f32.mrb[0].mxu0
  %v1410 = vpop.f32.mrb[0].mxu0
  %v1411 = vpop.f32.mrb[0].mxu0
  %1412 = vdwg.mxu0
  %v1413 = vadd.f32 %v1246, %v1360
  %v1414 = vadd.f32 %v1247, %v1363
  %v1415 = vadd.f32 %v1248, %v1368
  %v1416 = vadd.f32 %v1249, %v1371
  %v1417 = vadd.f32 %v1250, %v1376
  %v1418 = vadd.f32 %v1251, %v1379
  %v1419 = vadd.f32 %v1252, %v1384
  %v1420 = vadd.f32 %v1253, %v1387
  %v1421 = vadd.f32 %v1254, %v1392
  %v1422 = vadd.f32 %v1255, %v1395
  %v1423 = vadd.f32 %v1256, %v1400
  %v1424 = vadd.f32 %v1257, %v1403
  %v1425 = vadd.f32 %v1258, %v1408
  %v1439 = vunpack.c.l.b16 %v141
  %v1440 = vunpack.c.l.b16 %v142
  %v1441 = vunpack.c.l.b16 %v143
  %v1442 = vunpack.c.l.b16 %v144
  %v1443 = vunpack.c.l.b16 %v145
  %v1444 = vunpack.c.l.b16 %v146
  %v1445 = vunpack.c.l.b16 %v147
  %v1446 = vunpack.c.l.b16 %v148
  %v1447 = vunpack.c.l.b16 %v149
  %v1448 = vunpack.c.l.b16 %v150
  %v1449 = vunpack.c.l.b16 %v151
  %v1450 = vunpack.c.l.b16 %v152
  %v1451 = vunpack.c.l.b16 %v153
  %v1452 = vpack.c.b16 %v1440, %v1439
  %v1453 = vpack.c.b16 %v1442, %v1441
  %v1454 = vpack.c.b16 %v1444, %v1443
  %v1455 = vpack.c.b16 %v1446, %v1445
  %v1456 = vpack.c.b16 %v1448, %v1447
  %v1457 = vpack.c.b16 %v1450, %v1449
  %v1458 = vpack.c.b16 %v1451, %v1451
  %v1463 = vunpack.c.l.b16 %v273
  %v1464 = vunpack.c.l.b16 %v274
  %v1465 = vunpack.c.l.b16 %v275
  %v1466 = vunpack.c.l.b16 %v276
  %v1467 = vpack.c.b16 %v1464, %v1463
  %v1468 = vpack.c.b16 %v1466, %v1465
  %v1472 = vsel %vm327, %v1452, 0
  %v1475 = vsel %vm327, %v1453, 0
  %v1478 = vsel %vm327, %v1454, 0
  %v1481 = vsel %vm327, %v1455, 0
  %v1484 = vsel %vm327, %v1456, 0
  %v1487 = vsel %vm327, %v1457, 0
  %v1490 = vsel %vm327, %v1458, 0
  %1492 = vmatprep.subr.bf16.mxu0 0
  %1493 = vmatpush1.bf16.msra.mxu0 %v1467
  %1494 = vmatprep.subr.bf16.mxu0 0
  %1495 = vmatpush1.bf16.msra.mxu0 %v1468
  %1496 = vmatprep.subr.bf16.mxu0 0
  %1497 = vmatpush1.bf16.msra.mxu0 0
  %1498 = vmatprep.subr.bf16.mxu0 0
  %1499 = vmatpush1.bf16.msra.mxu0 0
  %1500 = vmatprep.subr.bf16.mxu0 0
  %1501 = vmatpush1.bf16.msra.mxu0 0
  %1502 = vmatprep.subr.bf16.mxu0 0
  %1503 = vmatpush1.bf16.msra.mxu0 0
  %1504 = vmatprep.subr.bf16.mxu0 0
  %1505 = vmatpush1.bf16.msra.mxu0 0
  %1506 = vmatprep.subr.bf16.mxu0 0
  %1507 = vmatpush1.bf16.msra.mxu0 0
  %1508 = vmatprep.subr.bf16.mxu0 0
  %1509 = vmatpush1.bf16.msra.mxu0 0
  %1510 = vmatprep.subr.bf16.mxu0 0
  %1511 = vmatpush1.bf16.msra.mxu0 0
  %1512 = vmatprep.subr.bf16.mxu0 0
  %1513 = vmatpush1.bf16.msra.mxu0 0
  %1514 = vmatprep.subr.bf16.mxu0 0
  %1515 = vmatpush1.bf16.msra.mxu0 0
  %1516 = vmatprep.subr.bf16.mxu0 0
  %1517 = vmatpush1.bf16.msra.mxu0 0
  %1518 = vmatprep.subr.bf16.mxu0 0
  %1519 = vmatpush1.bf16.msra.mxu0 0
  %1520 = vmatprep.subr.bf16.mxu0 0
  %1521 = vmatpush1.bf16.msra.mxu0 0
  %1522 = vmatprep.subr.bf16.mxu0 0
  %1523 = vmatpush1.bf16.msra.mxu0 0
  %1524 = vmatprep.mubr.bf16.mxu0 0
  %1525 = vmatmul.mubr.bf16.gmra.mrb[0].mxu0 %v1472
  %v1526 = vpop.f32.mrb[0].mxu0
  %v1527 = vadd.f32 0.0, %v1526
  %v1528 = vpop.f32.mrb[0].mxu0
  %v1529 = vpop.f32.mrb[0].mxu0
  %v1530 = vadd.f32 0.0, %v1529
  %v1531 = vpop.f32.mrb[0].mxu0
  %1532 = vmatprep.mubr.bf16.mxu0 0
  %1533 = vmatmul.mubr.bf16.gmra.mrb[0].mxu0 %v1475
  %v1534 = vpop.f32.mrb[0].mxu0
  %v1535 = vadd.f32 0.0, %v1534
  %v1536 = vpop.f32.mrb[0].mxu0
  %v1537 = vpop.f32.mrb[0].mxu0
  %v1538 = vadd.f32 0.0, %v1537
  %v1539 = vpop.f32.mrb[0].mxu0
  %1540 = vmatprep.mubr.bf16.mxu0 0
  %1541 = vmatmul.mubr.bf16.gmra.mrb[0].mxu0 %v1478
  %v1542 = vpop.f32.mrb[0].mxu0
  %v1543 = vadd.f32 0.0, %v1542
  %v1544 = vpop.f32.mrb[0].mxu0
  %v1545 = vpop.f32.mrb[0].mxu0
  %v1546 = vadd.f32 0.0, %v1545
  %v1547 = vpop.f32.mrb[0].mxu0
  %1548 = vmatprep.mubr.bf16.mxu0 0
  %1549 = vmatmul.mubr.bf16.gmra.mrb[0].mxu0 %v1481
  %v1550 = vpop.f32.mrb[0].mxu0
  %v1551 = vadd.f32 0.0, %v1550
  %v1552 = vpop.f32.mrb[0].mxu0
  %v1553 = vpop.f32.mrb[0].mxu0
  %v1554 = vadd.f32 0.0, %v1553
  %v1555 = vpop.f32.mrb[0].mxu0
  %1556 = vmatprep.mubr.bf16.mxu0 0
  %1557 = vmatmul.mubr.bf16.gmra.mrb[0].mxu0 %v1484
  %v1558 = vpop.f32.mrb[0].mxu0
  %v1559 = vadd.f32 0.0, %v1558
  %v1560 = vpop.f32.mrb[0].mxu0
  %v1561 = vpop.f32.mrb[0].mxu0
  %v1562 = vadd.f32 0.0, %v1561
  %v1563 = vpop.f32.mrb[0].mxu0
  %1564 = vmatprep.mubr.bf16.mxu0 0
  %1565 = vmatmul.mubr.bf16.gmra.mrb[0].mxu0 %v1487
  %v1566 = vpop.f32.mrb[0].mxu0
  %v1567 = vadd.f32 0.0, %v1566
  %v1568 = vpop.f32.mrb[0].mxu0
  %v1569 = vpop.f32.mrb[0].mxu0
  %v1570 = vadd.f32 0.0, %v1569
  %v1571 = vpop.f32.mrb[0].mxu0
  %1572 = vmatprep.mubr.bf16.mxu0 0
  %1573 = vmatmul.mubr.bf16.gmra.mrb[0].mxu0 %v1490
  %v1574 = vpop.f32.mrb[0].mxu0
  %v1575 = vadd.f32 0.0, %v1574
  %v1576 = vpop.f32.mrb[0].mxu0
  %v1577 = vpop.f32.mrb[0].mxu0
  %v1578 = vpop.f32.mrb[0].mxu0
  %1579 = vdwg.mxu0
  %v1580 = vadd.f32 %v1413, %v1527
  %v1581 = vadd.f32 %v1414, %v1530
  %v1582 = vadd.f32 %v1415, %v1535
  %v1583 = vadd.f32 %v1416, %v1538
  %v1584 = vadd.f32 %v1417, %v1543
  %v1585 = vadd.f32 %v1418, %v1546
  %v1586 = vadd.f32 %v1419, %v1551
  %v1587 = vadd.f32 %v1420, %v1554
  %v1588 = vadd.f32 %v1421, %v1559
  %v1589 = vadd.f32 %v1422, %v1562
  %v1590 = vadd.f32 %v1423, %v1567
  %v1591 = vadd.f32 %v1424, %v1570
  %v1592 = vadd.f32 %v1425, %v1575
  %v1606 = vunpack.c.l.b16 %v155
  %v1607 = vunpack.c.l.b16 %v156
  %v1608 = vunpack.c.l.b16 %v157
  %v1609 = vunpack.c.l.b16 %v158
  %v1610 = vunpack.c.l.b16 %v159
  %v1611 = vunpack.c.l.b16 %v160
  %v1612 = vunpack.c.l.b16 %v161
  %v1613 = vunpack.c.l.b16 %v162
  %v1614 = vunpack.c.l.b16 %v163
  %v1615 = vunpack.c.l.b16 %v164
  %v1616 = vunpack.c.l.b16 %v165
  %v1617 = vunpack.c.l.b16 %v166
  %v1618 = vunpack.c.l.b16 %v167
  %v1619 = vpack.c.b16 %v1607, %v1606
  %v1620 = vpack.c.b16 %v1609, %v1608
  %v1621 = vpack.c.b16 %v1611, %v1610
  %v1622 = vpack.c.b16 %v1613, %v1612
  %v1623 = vpack.c.b16 %v1615, %v1614
  %v1624 = vpack.c.b16 %v1617, %v1616
  %v1625 = vpack.c.b16 %v1618, %v1618
  %v1630 = vunpack.c.l.b16 %v278
  %v1631 = vunpack.c.l.b16 %v279
  %v1632 = vunpack.c.l.b16 %v280
  %v1633 = vunpack.c.l.b16 %v281
  %v1634 = vpack.c.b16 %v1631, %v1630
  %v1635 = vpack.c.b16 %v1633, %v1632
  %v1639 = vsel %vm327, %v1619, 0
  %v1642 = vsel %vm327, %v1620, 0
  %v1645 = vsel %vm327, %v1621, 0
  %v1648 = vsel %vm327, %v1622, 0
  %v1651 = vsel %vm327, %v1623, 0
  %v1654 = vsel %vm327, %v1624, 0
  %v1657 = vsel %vm327, %v1625, 0
  %1659 = vmatprep.subr.bf16.mxu0 0
  %1660 = vmatpush1.bf16.msra.mxu0 %v1634
  %1661 = vmatprep.subr.bf16.mxu0 0
  %1662 = vmatpush1.bf16.msra.mxu0 %v1635
  %1663 = vmatprep.subr.bf16.mxu0 0
  %1664 = vmatpush1.bf16.msra.mxu0 0
  %1665 = vmatprep.subr.bf16.mxu0 0
  %1666 = vmatpush1.bf16.msra.mxu0 0
  %1667 = vmatprep.subr.bf16.mxu0 0
  %1668 = vmatpush1.bf16.msra.mxu0 0
  %1669 = vmatprep.subr.bf16.mxu0 0
  %1670 = vmatpush1.bf16.msra.mxu0 0
  %1671 = vmatprep.subr.bf16.mxu0 0
  %1672 = vmatpush1.bf16.msra.mxu0 0
  %1673 = vmatprep.subr.bf16.mxu0 0
  %1674 = vmatpush1.bf16.msra.mxu0 0
  %1675 = vmatprep.subr.bf16.mxu0 0
  %1676 = vmatpush1.bf16.msra.mxu0 0
  %1677 = vmatprep.subr.bf16.mxu0 0
  %1678 = vmatpush1.bf16.msra.mxu0 0
  %1679 = vmatprep.subr.bf16.mxu0 0
  %1680 = vmatpush1.bf16.msra.mxu0 0
  %1681 = vmatprep.subr.bf16.mxu0 0
  %1682 = vmatpush1.bf16.msra.mxu0 0
  %1683 = vmatprep.subr.bf16.mxu0 0
  %1684 = vmatpush1.bf16.msra.mxu0 0
  %1685 = vmatprep.subr.bf16.mxu0 0
  %1686 = vmatpush1.bf16.msra.mxu0 0
  %1687 = vmatprep.subr.bf16.mxu0 0
  %1688 = vmatpush1.bf16.msra.mxu0 0
  %1689 = vmatprep.subr.bf16.mxu0 0
  %1690 = vmatpush1.bf16.msra.mxu0 0
  %1691 = vmatprep.mubr.bf16.mxu0 0
  %1692 = vmatmul.mubr.bf16.gmra.mrb[0].mxu0 %v1639
  %v1693 = vpop.f32.mrb[0].mxu0
  %v1694 = vadd.f32 0.0, %v1693
  %v1695 = vpop.f32.mrb[0].mxu0
  %v1696 = vpop.f32.mrb[0].mxu0
  %v1697 = vadd.f32 0.0, %v1696
  %v1698 = vpop.f32.mrb[0].mxu0
  %1699 = vmatprep.mubr.bf16.mxu0 0
  %1700 = vmatmul.mubr.bf16.gmra.mrb[0].mxu0 %v1642
  %v1701 = vpop.f32.mrb[0].mxu0
  %v1702 = vadd.f32 0.0, %v1701
  %v1703 = vpop.f32.mrb[0].mxu0
  %v1704 = vpop.f32.mrb[0].mxu0
  %v1705 = vadd.f32 0.0, %v1704
  %v1706 = vpop.f32.mrb[0].mxu0
  %1707 = vmatprep.mubr.bf16.mxu0 0
  %1708 = vmatmul.mubr.bf16.gmra.mrb[0].mxu0 %v1645
  %v1709 = vpop.f32.mrb[0].mxu0
  %v1710 = vadd.f32 0.0, %v1709
  %v1711 = vpop.f32.mrb[0].mxu0
  %v1712 = vpop.f32.mrb[0].mxu0
  %v1713 = vadd.f32 0.0, %v1712
  %v1714 = vpop.f32.mrb[0].mxu0
  %1715 = vmatprep.mubr.bf16.mxu0 0
  %1716 = vmatmul.mubr.bf16.gmra.mrb[0].mxu0 %v1648
  %v1717 = vpop.f32.mrb[0].mxu0
  %v1718 = vadd.f32 0.0, %v1717
  %v1719 = vpop.f32.mrb[0].mxu0
  %v1720 = vpop.f32.mrb[0].mxu0
  %v1721 = vadd.f32 0.0, %v1720
  %v1722 = vpop.f32.mrb[0].mxu0
  %1723 = vmatprep.mubr.bf16.mxu0 0
  %1724 = vmatmul.mubr.bf16.gmra.mrb[0].mxu0 %v1651
  %v1725 = vpop.f32.mrb[0].mxu0
  %v1726 = vadd.f32 0.0, %v1725
  %v1727 = vpop.f32.mrb[0].mxu0
  %v1728 = vpop.f32.mrb[0].mxu0
  %v1729 = vadd.f32 0.0, %v1728
  %v1730 = vpop.f32.mrb[0].mxu0
  %1731 = vmatprep.mubr.bf16.mxu0 0
  %1732 = vmatmul.mubr.bf16.gmra.mrb[0].mxu0 %v1654
  %v1733 = vpop.f32.mrb[0].mxu0
  %v1734 = vadd.f32 0.0, %v1733
  %v1735 = vpop.f32.mrb[0].mxu0
  %v1736 = vpop.f32.mrb[0].mxu0
  %v1737 = vadd.f32 0.0, %v1736
  %v1738 = vpop.f32.mrb[0].mxu0
  %1739 = vmatprep.mubr.bf16.mxu0 0
  %1740 = vmatmul.mubr.bf16.gmra.mrb[0].mxu0 %v1657
  %v1741 = vpop.f32.mrb[0].mxu0
  %v1742 = vadd.f32 0.0, %v1741
  %v1743 = vpop.f32.mrb[0].mxu0
  %v1744 = vpop.f32.mrb[0].mxu0
  %v1745 = vpop.f32.mrb[0].mxu0
  %1746 = vdwg.mxu0
  %v1747 = vadd.f32 %v1580, %v1694
  %v1748 = vadd.f32 %v1581, %v1697
  %v1749 = vadd.f32 %v1582, %v1702
  %v1750 = vadd.f32 %v1583, %v1705
  %v1751 = vadd.f32 %v1584, %v1710
  %v1752 = vadd.f32 %v1585, %v1713
  %v1753 = vadd.f32 %v1586, %v1718
  %v1754 = vadd.f32 %v1587, %v1721
  %v1755 = vadd.f32 %v1588, %v1726
  %v1756 = vadd.f32 %v1589, %v1729
  %v1757 = vadd.f32 %v1590, %v1734
  %v1758 = vadd.f32 %v1591, %v1737
  %v1759 = vadd.f32 %v1592, %v1742
  %1760 = vmatprep.subr.bf16.mxu0 0
  %1761 = vmatpush1.bf16.msra.mxu0 %v323
  %1762 = vmatprep.subr.bf16.mxu0 0
  %1763 = vmatpush1.bf16.msra.mxu0 %v324
  %1764 = vmatprep.subr.bf16.mxu0 0
  %1765 = vmatpush1.bf16.msra.mxu0 0
  %1766 = vmatprep.subr.bf16.mxu0 0
  %1767 = vmatpush1.bf16.msra.mxu0 0
  %1768 = vmatprep.subr.bf16.mxu0 0
  %1769 = vmatpush1.bf16.msra.mxu0 0
  %1770 = vmatprep.subr.bf16.mxu0 0
  %1771 = vmatpush1.bf16.msra.mxu0 0
  %1772 = vmatprep.subr.bf16.mxu0 0
  %1773 = vmatpush1.bf16.msra.mxu0 0
  %1774 = vmatprep.subr.bf16.mxu0 0
  %1775 = vmatpush1.bf16.msra.mxu0 0
  %1776 = vmatprep.subr.bf16.mxu0 0
  %1777 = vmatpush1.bf16.msra.mxu0 0
  %1778 = vmatprep.subr.bf16.mxu0 0
  %1779 = vmatpush1.bf16.msra.mxu0 0
  %1780 = vmatprep.subr.bf16.mxu0 0
  %1781 = vmatpush1.bf16.msra.mxu0 0
  %1782 = vmatprep.subr.bf16.mxu0 0
  %1783 = vmatpush1.bf16.msra.mxu0 0
  %1784 = vmatprep.subr.bf16.mxu0 0
  %1785 = vmatpush1.bf16.msra.mxu0 0
  %1786 = vmatprep.subr.bf16.mxu0 0
  %1787 = vmatpush1.bf16.msra.mxu0 0
  %1788 = vmatprep.subr.bf16.mxu0 0
  %1789 = vmatpush1.bf16.msra.mxu0 0
  %1790 = vmatprep.subr.bf16.mxu0 0
  %1791 = vmatpush1.bf16.msra.mxu0 0
  %1792 = vmatprep.mubr.bf16.mxu0 0
  %1793 = vmatmul.mubr.bf16.gmra.mrb[0].mxu0 %v637
  %v1794 = vpop.f32.mrb[0].mxu0
  %v1795 = vadd.f32 0.0, %v1794
  %v1796 = vpop.f32.mrb[0].mxu0
  %v1797 = vpop.f32.mrb[0].mxu0
  %v1798 = vadd.f32 0.0, %v1797
  %v1799 = vpop.f32.mrb[0].mxu0
  %1800 = vmatprep.mubr.bf16.mxu0 0
  %1801 = vmatmul.mubr.bf16.gmra.mrb[0].mxu0 %v640
  %v1802 = vpop.f32.mrb[0].mxu0
  %v1803 = vadd.f32 0.0, %v1802
  %v1804 = vpop.f32.mrb[0].mxu0
  %v1805 = vpop.f32.mrb[0].mxu0
  %v1806 = vadd.f32 0.0, %v1805
  %v1807 = vpop.f32.mrb[0].mxu0
  %1808 = vmatprep.mubr.bf16.mxu0 0
  %1809 = vmatmul.mubr.bf16.gmra.mrb[0].mxu0 %v643
  %v1810 = vpop.f32.mrb[0].mxu0
  %v1811 = vadd.f32 0.0, %v1810
  %v1812 = vpop.f32.mrb[0].mxu0
  %v1813 = vpop.f32.mrb[0].mxu0
  %v1814 = vadd.f32 0.0, %v1813
  %v1815 = vpop.f32.mrb[0].mxu0
  %1816 = vmatprep.mubr.bf16.mxu0 0
  %1817 = vmatmul.mubr.bf16.gmra.mrb[0].mxu0 %v646
  %v1818 = vpop.f32.mrb[0].mxu0
  %v1819 = vadd.f32 0.0, %v1818
  %v1820 = vpop.f32.mrb[0].mxu0
  %v1821 = vpop.f32.mrb[0].mxu0
  %v1822 = vadd.f32 0.0, %v1821
  %v1823 = vpop.f32.mrb[0].mxu0
  %1824 = vmatprep.mubr.bf16.mxu0 0
  %1825 = vmatmul.mubr.bf16.gmra.mrb[0].mxu0 %v649
  %v1826 = vpop.f32.mrb[0].mxu0
  %v1827 = vadd.f32 0.0, %v1826
  %v1828 = vpop.f32.mrb[0].mxu0
  %v1829 = vpop.f32.mrb[0].mxu0
  %v1830 = vadd.f32 0.0, %v1829
  %v1831 = vpop.f32.mrb[0].mxu0
  %1832 = vmatprep.mubr.bf16.mxu0 0
  %1833 = vmatmul.mubr.bf16.gmra.mrb[0].mxu0 %v652
  %v1834 = vpop.f32.mrb[0].mxu0
  %v1835 = vadd.f32 0.0, %v1834
  %v1836 = vpop.f32.mrb[0].mxu0
  %v1837 = vpop.f32.mrb[0].mxu0
  %v1838 = vadd.f32 0.0, %v1837
  %v1839 = vpop.f32.mrb[0].mxu0
  %1840 = vmatprep.mubr.bf16.mxu0 0
  %1841 = vmatmul.mubr.bf16.gmra.mrb[0].mxu0 %v655
  %v1842 = vpop.f32.mrb[0].mxu0
  %v1843 = vadd.f32 0.0, %v1842
  %v1844 = vpop.f32.mrb[0].mxu0
  %v1845 = vpop.f32.mrb[0].mxu0
  %v1846 = vpop.f32.mrb[0].mxu0
  %1847 = vdwg.mxu0
  %1848 = vmatprep.subr.bf16.mxu0 0
  %1849 = vmatpush1.bf16.msra.mxu0 %v478
  %1850 = vmatprep.subr.bf16.mxu0 0
  %1851 = vmatpush1.bf16.msra.mxu0 %v479
  %1852 = vmatprep.subr.bf16.mxu0 0
  %1853 = vmatpush1.bf16.msra.mxu0 0
  %1854 = vmatprep.subr.bf16.mxu0 0
  %1855 = vmatpush1.bf16.msra.mxu0 0
  %1856 = vmatprep.subr.bf16.mxu0 0
  %1857 = vmatpush1.bf16.msra.mxu0 0
  %1858 = vmatprep.subr.bf16.mxu0 0
  %1859 = vmatpush1.bf16.msra.mxu0 0
  %1860 = vmatprep.subr.bf16.mxu0 0
  %1861 = vmatpush1.bf16.msra.mxu0 0
  %1862 = vmatprep.subr.bf16.mxu0 0
  %1863 = vmatpush1.bf16.msra.mxu0 0
  %1864 = vmatprep.subr.bf16.mxu0 0
  %1865 = vmatpush1.bf16.msra.mxu0 0
  %1866 = vmatprep.subr.bf16.mxu0 0
  %1867 = vmatpush1.bf16.msra.mxu0 0
  %1868 = vmatprep.subr.bf16.mxu0 0
  %1869 = vmatpush1.bf16.msra.mxu0 0
  %1870 = vmatprep.subr.bf16.mxu0 0
  %1871 = vmatpush1.bf16.msra.mxu0 0
  %1872 = vmatprep.subr.bf16.mxu0 0
  %1873 = vmatpush1.bf16.msra.mxu0 0
  %1874 = vmatprep.subr.bf16.mxu0 0
  %1875 = vmatpush1.bf16.msra.mxu0 0
  %1876 = vmatprep.subr.bf16.mxu0 0
  %1877 = vmatpush1.bf16.msra.mxu0 0
  %1878 = vmatprep.subr.bf16.mxu0 0
  %1879 = vmatpush1.bf16.msra.mxu0 0
  %1880 = vmatprep.mubr.bf16.mxu0 0
  %1881 = vmatmul.mubr.bf16.gmra.mrb[0].mxu0 %v329
  %v1882 = vpop.f32.mrb[0].mxu0
  %v1883 = vadd.f32 %v1795, %v1882
  %v1884 = vpop.f32.mrb[0].mxu0
  %v1885 = vpop.f32.mrb[0].mxu0
  %v1886 = vadd.f32 %v1798, %v1885
  %v1887 = vpop.f32.mrb[0].mxu0
  %1888 = vmatprep.mubr.bf16.mxu0 0
  %1889 = vmatmul.mubr.bf16.gmra.mrb[0].mxu0 %v332
  %v1890 = vpop.f32.mrb[0].mxu0
  %v1891 = vadd.f32 %v1803, %v1890
  %v1892 = vpop.f32.mrb[0].mxu0
  %v1893 = vpop.f32.mrb[0].mxu0
  %v1894 = vadd.f32 %v1806, %v1893
  %v1895 = vpop.f32.mrb[0].mxu0
  %1896 = vmatprep.mubr.bf16.mxu0 0
  %1897 = vmatmul.mubr.bf16.gmra.mrb[0].mxu0 %v335
  %v1898 = vpop.f32.mrb[0].mxu0
  %v1899 = vadd.f32 %v1811, %v1898
  %v1900 = vpop.f32.mrb[0].mxu0
  %v1901 = vpop.f32.mrb[0].mxu0
  %v1902 = vadd.f32 %v1814, %v1901
  %v1903 = vpop.f32.mrb[0].mxu0
  %1904 = vmatprep.mubr.bf16.mxu0 0
  %1905 = vmatmul.mubr.bf16.gmra.mrb[0].mxu0 %v338
  %v1906 = vpop.f32.mrb[0].mxu0
  %v1907 = vadd.f32 %v1819, %v1906
  %v1908 = vpop.f32.mrb[0].mxu0
  %v1909 = vpop.f32.mrb[0].mxu0
  %v1910 = vadd.f32 %v1822, %v1909
  %v1911 = vpop.f32.mrb[0].mxu0
  %1912 = vmatprep.mubr.bf16.mxu0 0
  %1913 = vmatmul.mubr.bf16.gmra.mrb[0].mxu0 %v341
  %v1914 = vpop.f32.mrb[0].mxu0
  %v1915 = vadd.f32 %v1827, %v1914
  %v1916 = vpop.f32.mrb[0].mxu0
  %v1917 = vpop.f32.mrb[0].mxu0
  %v1918 = vadd.f32 %v1830, %v1917
  %v1919 = vpop.f32.mrb[0].mxu0
  %1920 = vmatprep.mubr.bf16.mxu0 0
  %1921 = vmatmul.mubr.bf16.gmra.mrb[0].mxu0 %v344
  %v1922 = vpop.f32.mrb[0].mxu0
  %v1923 = vadd.f32 %v1835, %v1922
  %v1924 = vpop.f32.mrb[0].mxu0
  %v1925 = vpop.f32.mrb[0].mxu0
  %v1926 = vadd.f32 %v1838, %v1925
  %v1927 = vpop.f32.mrb[0].mxu0
  %1928 = vmatprep.mubr.bf16.mxu0 0
  %1929 = vmatmul.mubr.bf16.gmra.mrb[0].mxu0 %v347
  %v1930 = vpop.f32.mrb[0].mxu0
  %v1931 = vadd.f32 %v1843, %v1930
  %v1932 = vpop.f32.mrb[0].mxu0
  %v1933 = vpop.f32.mrb[0].mxu0
  %v1934 = vpop.f32.mrb[0].mxu0
  %1935 = vdwg.mxu0
  %v1949 = vunpack.c.l.b16 %v57
  %v1950 = vunpack.c.l.b16 %v58
  %v1951 = vunpack.c.l.b16 %v59
  %v1952 = vunpack.c.l.b16 %v60
  %v1953 = vunpack.c.l.b16 %v61
  %v1954 = vunpack.c.l.b16 %v62
  %v1955 = vunpack.c.l.b16 %v63
  %v1956 = vunpack.c.l.b16 %v64
  %v1957 = vunpack.c.l.b16 %v65
  %v1958 = vunpack.c.l.b16 %v66
  %v1959 = vunpack.c.l.b16 %v67
  %v1960 = vunpack.c.l.b16 %v68
  %v1961 = vunpack.c.l.b16 %v69
  %v1962 = vpack.c.b16 %v1950, %v1949
  %v1963 = vpack.c.b16 %v1952, %v1951
  %v1964 = vpack.c.b16 %v1954, %v1953
  %v1965 = vpack.c.b16 %v1956, %v1955
  %v1966 = vpack.c.b16 %v1958, %v1957
  %v1967 = vpack.c.b16 %v1960, %v1959
  %v1968 = vpack.c.b16 %v1961, %v1961
  %v1970 = vsel %vm327, %v1962, 0
  %v1973 = vsel %vm327, %v1963, 0
  %v1976 = vsel %vm327, %v1964, 0
  %v1979 = vsel %vm327, %v1965, 0
  %v1982 = vsel %vm327, %v1966, 0
  %v1985 = vsel %vm327, %v1967, 0
  %v1988 = vsel %vm327, %v1968, 0
  %1990 = vmatprep.subr.bf16.mxu0 0
  %1991 = vmatpush1.bf16.msra.mxu0 %v632
  %1992 = vmatprep.subr.bf16.mxu0 0
  %1993 = vmatpush1.bf16.msra.mxu0 %v633
  %1994 = vmatprep.subr.bf16.mxu0 0
  %1995 = vmatpush1.bf16.msra.mxu0 0
  %1996 = vmatprep.subr.bf16.mxu0 0
  %1997 = vmatpush1.bf16.msra.mxu0 0
  %1998 = vmatprep.subr.bf16.mxu0 0
  %1999 = vmatpush1.bf16.msra.mxu0 0
  %2000 = vmatprep.subr.bf16.mxu0 0
  %2001 = vmatpush1.bf16.msra.mxu0 0
  %2002 = vmatprep.subr.bf16.mxu0 0
  %2003 = vmatpush1.bf16.msra.mxu0 0
  %2004 = vmatprep.subr.bf16.mxu0 0
  %2005 = vmatpush1.bf16.msra.mxu0 0
  %2006 = vmatprep.subr.bf16.mxu0 0
  %2007 = vmatpush1.bf16.msra.mxu0 0
  %2008 = vmatprep.subr.bf16.mxu0 0
  %2009 = vmatpush1.bf16.msra.mxu0 0
  %2010 = vmatprep.subr.bf16.mxu0 0
  %2011 = vmatpush1.bf16.msra.mxu0 0
  %2012 = vmatprep.subr.bf16.mxu0 0
  %2013 = vmatpush1.bf16.msra.mxu0 0
  %2014 = vmatprep.subr.bf16.mxu0 0
  %2015 = vmatpush1.bf16.msra.mxu0 0
  %2016 = vmatprep.subr.bf16.mxu0 0
  %2017 = vmatpush1.bf16.msra.mxu0 0
  %2018 = vmatprep.subr.bf16.mxu0 0
  %2019 = vmatpush1.bf16.msra.mxu0 0
  %2020 = vmatprep.subr.bf16.mxu0 0
  %2021 = vmatpush1.bf16.msra.mxu0 0
  %2022 = vmatprep.mubr.bf16.mxu0 0
  %2023 = vmatmul.mubr.bf16.gmra.mrb[0].mxu0 %v1970
  %v2024 = vpop.f32.mrb[0].mxu0
  %v2025 = vadd.f32 0.0, %v2024
  %v2026 = vpop.f32.mrb[0].mxu0
  %v2027 = vpop.f32.mrb[0].mxu0
  %v2028 = vadd.f32 0.0, %v2027
  %v2029 = vpop.f32.mrb[0].mxu0
  %2030 = vmatprep.mubr.bf16.mxu0 0
  %2031 = vmatmul.mubr.bf16.gmra.mrb[0].mxu0 %v1973
  %v2032 = vpop.f32.mrb[0].mxu0
  %v2033 = vadd.f32 0.0, %v2032
  %v2034 = vpop.f32.mrb[0].mxu0
  %v2035 = vpop.f32.mrb[0].mxu0
  %v2036 = vadd.f32 0.0, %v2035
  %v2037 = vpop.f32.mrb[0].mxu0
  %2038 = vmatprep.mubr.bf16.mxu0 0
  %2039 = vmatmul.mubr.bf16.gmra.mrb[0].mxu0 %v1976
  %v2040 = vpop.f32.mrb[0].mxu0
  %v2041 = vadd.f32 0.0, %v2040
  %v2042 = vpop.f32.mrb[0].mxu0
  %v2043 = vpop.f32.mrb[0].mxu0
  %v2044 = vadd.f32 0.0, %v2043
  %v2045 = vpop.f32.mrb[0].mxu0
  %2046 = vmatprep.mubr.bf16.mxu0 0
  %2047 = vmatmul.mubr.bf16.gmra.mrb[0].mxu0 %v1979
  %v2048 = vpop.f32.mrb[0].mxu0
  %v2049 = vadd.f32 0.0, %v2048
  %v2050 = vpop.f32.mrb[0].mxu0
  %v2051 = vpop.f32.mrb[0].mxu0
  %v2052 = vadd.f32 0.0, %v2051
  %v2053 = vpop.f32.mrb[0].mxu0
  %2054 = vmatprep.mubr.bf16.mxu0 0
  %2055 = vmatmul.mubr.bf16.gmra.mrb[0].mxu0 %v1982
  %v2056 = vpop.f32.mrb[0].mxu0
  %v2057 = vadd.f32 0.0, %v2056
  %v2058 = vpop.f32.mrb[0].mxu0
  %v2059 = vpop.f32.mrb[0].mxu0
  %v2060 = vadd.f32 0.0, %v2059
  %v2061 = vpop.f32.mrb[0].mxu0
  %2062 = vmatprep.mubr.bf16.mxu0 0
  %2063 = vmatmul.mubr.bf16.gmra.mrb[0].mxu0 %v1985
  %v2064 = vpop.f32.mrb[0].mxu0
  %v2065 = vadd.f32 0.0, %v2064
  %v2066 = vpop.f32.mrb[0].mxu0
  %v2067 = vpop.f32.mrb[0].mxu0
  %v2068 = vadd.f32 0.0, %v2067
  %v2069 = vpop.f32.mrb[0].mxu0
  %2070 = vmatprep.mubr.bf16.mxu0 0
  %2071 = vmatmul.mubr.bf16.gmra.mrb[0].mxu0 %v1988
  %v2072 = vpop.f32.mrb[0].mxu0
  %v2073 = vadd.f32 0.0, %v2072
  %v2074 = vpop.f32.mrb[0].mxu0
  %v2075 = vpop.f32.mrb[0].mxu0
  %v2076 = vpop.f32.mrb[0].mxu0
  %2077 = vdwg.mxu0
  %v2078 = vadd.f32 %v1883, %v2025
  %v2079 = vadd.f32 %v1886, %v2028
  %v2080 = vadd.f32 %v1891, %v2033
  %v2081 = vadd.f32 %v1894, %v2036
  %v2082 = vadd.f32 %v1899, %v2041
  %v2083 = vadd.f32 %v1902, %v2044
  %v2084 = vadd.f32 %v1907, %v2049
  %v2085 = vadd.f32 %v1910, %v2052
  %v2086 = vadd.f32 %v1915, %v2057
  %v2087 = vadd.f32 %v1918, %v2060
  %v2088 = vadd.f32 %v1923, %v2065
  %v2089 = vadd.f32 %v1926, %v2068
  %v2090 = vadd.f32 %v1931, %v2073
  %2091 = vmatprep.subr.bf16.mxu0 0
  %2092 = vmatpush1.bf16.msra.mxu0 %v799
  %2093 = vmatprep.subr.bf16.mxu0 0
  %2094 = vmatpush1.bf16.msra.mxu0 %v800
  %2095 = vmatprep.subr.bf16.mxu0 0
  %2096 = vmatpush1.bf16.msra.mxu0 0
  %2097 = vmatprep.subr.bf16.mxu0 0
  %2098 = vmatpush1.bf16.msra.mxu0 0
  %2099 = vmatprep.subr.bf16.mxu0 0
  %2100 = vmatpush1.bf16.msra.mxu0 0
  %2101 = vmatprep.subr.bf16.mxu0 0
  %2102 = vmatpush1.bf16.msra.mxu0 0
  %2103 = vmatprep.subr.bf16.mxu0 0
  %2104 = vmatpush1.bf16.msra.mxu0 0
  %2105 = vmatprep.subr.bf16.mxu0 0
  %2106 = vmatpush1.bf16.msra.mxu0 0
  %2107 = vmatprep.subr.bf16.mxu0 0
  %2108 = vmatpush1.bf16.msra.mxu0 0
  %2109 = vmatprep.subr.bf16.mxu0 0
  %2110 = vmatpush1.bf16.msra.mxu0 0
  %2111 = vmatprep.subr.bf16.mxu0 0
  %2112 = vmatpush1.bf16.msra.mxu0 0
  %2113 = vmatprep.subr.bf16.mxu0 0
  %2114 = vmatpush1.bf16.msra.mxu0 0
  %2115 = vmatprep.subr.bf16.mxu0 0
  %2116 = vmatpush1.bf16.msra.mxu0 0
  %2117 = vmatprep.subr.bf16.mxu0 0
  %2118 = vmatpush1.bf16.msra.mxu0 0
  %2119 = vmatprep.subr.bf16.mxu0 0
  %2120 = vmatpush1.bf16.msra.mxu0 0
  %2121 = vmatprep.subr.bf16.mxu0 0
  %2122 = vmatpush1.bf16.msra.mxu0 0
  %2123 = vmatprep.mubr.bf16.mxu0 0
  %2124 = vmatmul.mubr.bf16.gmra.mrb[0].mxu0 %v971
  %v2125 = vpop.f32.mrb[0].mxu0
  %v2126 = vadd.f32 0.0, %v2125
  %v2127 = vpop.f32.mrb[0].mxu0
  %v2128 = vpop.f32.mrb[0].mxu0
  %v2129 = vadd.f32 0.0, %v2128
  %v2130 = vpop.f32.mrb[0].mxu0
  %2131 = vmatprep.mubr.bf16.mxu0 0
  %2132 = vmatmul.mubr.bf16.gmra.mrb[0].mxu0 %v974
  %v2133 = vpop.f32.mrb[0].mxu0
  %v2134 = vadd.f32 0.0, %v2133
  %v2135 = vpop.f32.mrb[0].mxu0
  %v2136 = vpop.f32.mrb[0].mxu0
  %v2137 = vadd.f32 0.0, %v2136
  %v2138 = vpop.f32.mrb[0].mxu0
  %2139 = vmatprep.mubr.bf16.mxu0 0
  %2140 = vmatmul.mubr.bf16.gmra.mrb[0].mxu0 %v977
  %v2141 = vpop.f32.mrb[0].mxu0
  %v2142 = vadd.f32 0.0, %v2141
  %v2143 = vpop.f32.mrb[0].mxu0
  %v2144 = vpop.f32.mrb[0].mxu0
  %v2145 = vadd.f32 0.0, %v2144
  %v2146 = vpop.f32.mrb[0].mxu0
  %2147 = vmatprep.mubr.bf16.mxu0 0
  %2148 = vmatmul.mubr.bf16.gmra.mrb[0].mxu0 %v980
  %v2149 = vpop.f32.mrb[0].mxu0
  %v2150 = vadd.f32 0.0, %v2149
  %v2151 = vpop.f32.mrb[0].mxu0
  %v2152 = vpop.f32.mrb[0].mxu0
  %v2153 = vadd.f32 0.0, %v2152
  %v2154 = vpop.f32.mrb[0].mxu0
  %2155 = vmatprep.mubr.bf16.mxu0 0
  %2156 = vmatmul.mubr.bf16.gmra.mrb[0].mxu0 %v983
  %v2157 = vpop.f32.mrb[0].mxu0
  %v2158 = vadd.f32 0.0, %v2157
  %v2159 = vpop.f32.mrb[0].mxu0
  %v2160 = vpop.f32.mrb[0].mxu0
  %v2161 = vadd.f32 0.0, %v2160
  %v2162 = vpop.f32.mrb[0].mxu0
  %2163 = vmatprep.mubr.bf16.mxu0 0
  %2164 = vmatmul.mubr.bf16.gmra.mrb[0].mxu0 %v986
  %v2165 = vpop.f32.mrb[0].mxu0
  %v2166 = vadd.f32 0.0, %v2165
  %v2167 = vpop.f32.mrb[0].mxu0
  %v2168 = vpop.f32.mrb[0].mxu0
  %v2169 = vadd.f32 0.0, %v2168
  %v2170 = vpop.f32.mrb[0].mxu0
  %2171 = vmatprep.mubr.bf16.mxu0 0
  %2172 = vmatmul.mubr.bf16.gmra.mrb[0].mxu0 %v989
  %v2173 = vpop.f32.mrb[0].mxu0
  %v2174 = vadd.f32 0.0, %v2173
  %v2175 = vpop.f32.mrb[0].mxu0
  %v2176 = vpop.f32.mrb[0].mxu0
  %v2177 = vpop.f32.mrb[0].mxu0
  %2178 = vdwg.mxu0
  %v2179 = vadd.f32 %v2078, %v2126
  %v2180 = vadd.f32 %v2079, %v2129
  %v2181 = vadd.f32 %v2080, %v2134
  %v2182 = vadd.f32 %v2081, %v2137
  %v2183 = vadd.f32 %v2082, %v2142
  %v2184 = vadd.f32 %v2083, %v2145
  %v2185 = vadd.f32 %v2084, %v2150
  %v2186 = vadd.f32 %v2085, %v2153
  %v2187 = vadd.f32 %v2086, %v2158
  %v2188 = vadd.f32 %v2087, %v2161
  %v2189 = vadd.f32 %v2088, %v2166
  %v2190 = vadd.f32 %v2089, %v2169
  %v2191 = vadd.f32 %v2090, %v2174
  %2192 = vmatprep.subr.bf16.mxu0 0
  %2193 = vmatpush1.bf16.msra.mxu0 %v966
  %2194 = vmatprep.subr.bf16.mxu0 0
  %2195 = vmatpush1.bf16.msra.mxu0 %v967
  %2196 = vmatprep.subr.bf16.mxu0 0
  %2197 = vmatpush1.bf16.msra.mxu0 0
  %2198 = vmatprep.subr.bf16.mxu0 0
  %2199 = vmatpush1.bf16.msra.mxu0 0
  %2200 = vmatprep.subr.bf16.mxu0 0
  %2201 = vmatpush1.bf16.msra.mxu0 0
  %2202 = vmatprep.subr.bf16.mxu0 0
  %2203 = vmatpush1.bf16.msra.mxu0 0
  %2204 = vmatprep.subr.bf16.mxu0 0
  %2205 = vmatpush1.bf16.msra.mxu0 0
  %2206 = vmatprep.subr.bf16.mxu0 0
  %2207 = vmatpush1.bf16.msra.mxu0 0
  %2208 = vmatprep.subr.bf16.mxu0 0
  %2209 = vmatpush1.bf16.msra.mxu0 0
  %2210 = vmatprep.subr.bf16.mxu0 0
  %2211 = vmatpush1.bf16.msra.mxu0 0
  %2212 = vmatprep.subr.bf16.mxu0 0
  %2213 = vmatpush1.bf16.msra.mxu0 0
  %2214 = vmatprep.subr.bf16.mxu0 0
  %2215 = vmatpush1.bf16.msra.mxu0 0
  %2216 = vmatprep.subr.bf16.mxu0 0
  %2217 = vmatpush1.bf16.msra.mxu0 0
  %2218 = vmatprep.subr.bf16.mxu0 0
  %2219 = vmatpush1.bf16.msra.mxu0 0
  %2220 = vmatprep.subr.bf16.mxu0 0
  %2221 = vmatpush1.bf16.msra.mxu0 0
  %2222 = vmatprep.subr.bf16.mxu0 0
  %2223 = vmatpush1.bf16.msra.mxu0 0
  %2224 = vmatprep.mubr.bf16.mxu0 0
  %2225 = vmatmul.mubr.bf16.gmra.mrb[0].mxu0 %v1138
  %v2226 = vpop.f32.mrb[0].mxu0
  %v2227 = vadd.f32 0.0, %v2226
  %v2228 = vpop.f32.mrb[0].mxu0
  %v2229 = vpop.f32.mrb[0].mxu0
  %v2230 = vadd.f32 0.0, %v2229
  %v2231 = vpop.f32.mrb[0].mxu0
  %2232 = vmatprep.mubr.bf16.mxu0 0
  %2233 = vmatmul.mubr.bf16.gmra.mrb[0].mxu0 %v1141
  %v2234 = vpop.f32.mrb[0].mxu0
  %v2235 = vadd.f32 0.0, %v2234
  %v2236 = vpop.f32.mrb[0].mxu0
  %v2237 = vpop.f32.mrb[0].mxu0
  %v2238 = vadd.f32 0.0, %v2237
  %v2239 = vpop.f32.mrb[0].mxu0
  %2240 = vmatprep.mubr.bf16.mxu0 0
  %2241 = vmatmul.mubr.bf16.gmra.mrb[0].mxu0 %v1144
  %v2242 = vpop.f32.mrb[0].mxu0
  %v2243 = vadd.f32 0.0, %v2242
  %v2244 = vpop.f32.mrb[0].mxu0
  %v2245 = vpop.f32.mrb[0].mxu0
  %v2246 = vadd.f32 0.0, %v2245
  %v2247 = vpop.f32.mrb[0].mxu0
  %2248 = vmatprep.mubr.bf16.mxu0 0
  %2249 = vmatmul.mubr.bf16.gmra.mrb[0].mxu0 %v1147
  %v2250 = vpop.f32.mrb[0].mxu0
  %v2251 = vadd.f32 0.0, %v2250
  %v2252 = vpop.f32.mrb[0].mxu0
  %v2253 = vpop.f32.mrb[0].mxu0
  %v2254 = vadd.f32 0.0, %v2253
  %v2255 = vpop.f32.mrb[0].mxu0
  %2256 = vmatprep.mubr.bf16.mxu0 0
  %2257 = vmatmul.mubr.bf16.gmra.mrb[0].mxu0 %v1150
  %v2258 = vpop.f32.mrb[0].mxu0
  %v2259 = vadd.f32 0.0, %v2258
  %v2260 = vpop.f32.mrb[0].mxu0
  %v2261 = vpop.f32.mrb[0].mxu0
  %v2262 = vadd.f32 0.0, %v2261
  %v2263 = vpop.f32.mrb[0].mxu0
  %2264 = vmatprep.mubr.bf16.mxu0 0
  %2265 = vmatmul.mubr.bf16.gmra.mrb[0].mxu0 %v1153
  %v2266 = vpop.f32.mrb[0].mxu0
  %v2267 = vadd.f32 0.0, %v2266
  %v2268 = vpop.f32.mrb[0].mxu0
  %v2269 = vpop.f32.mrb[0].mxu0
  %v2270 = vadd.f32 0.0, %v2269
  %v2271 = vpop.f32.mrb[0].mxu0
  %2272 = vmatprep.mubr.bf16.mxu0 0
  %2273 = vmatmul.mubr.bf16.gmra.mrb[0].mxu0 %v1156
  %v2274 = vpop.f32.mrb[0].mxu0
  %v2275 = vadd.f32 0.0, %v2274
  %v2276 = vpop.f32.mrb[0].mxu0
  %v2277 = vpop.f32.mrb[0].mxu0
  %v2278 = vpop.f32.mrb[0].mxu0
  %2279 = vdwg.mxu0
  %v2280 = vadd.f32 %v2179, %v2227
  %v2281 = vadd.f32 %v2180, %v2230
  %v2282 = vadd.f32 %v2181, %v2235
  %v2283 = vadd.f32 %v2182, %v2238
  %v2284 = vadd.f32 %v2183, %v2243
  %v2285 = vadd.f32 %v2184, %v2246
  %v2286 = vadd.f32 %v2185, %v2251
  %v2287 = vadd.f32 %v2186, %v2254
  %v2288 = vadd.f32 %v2187, %v2259
  %v2289 = vadd.f32 %v2188, %v2262
  %v2290 = vadd.f32 %v2189, %v2267
  %v2291 = vadd.f32 %v2190, %v2270
  %v2292 = vadd.f32 %v2191, %v2275
  %v2306 = vunpack.c.l.b16 %v113
  %v2307 = vunpack.c.l.b16 %v114
  %v2308 = vunpack.c.l.b16 %v115
  %v2309 = vunpack.c.l.b16 %v116
  %v2310 = vunpack.c.l.b16 %v117
  %v2311 = vunpack.c.l.b16 %v118
  %v2312 = vunpack.c.l.b16 %v119
  %v2313 = vunpack.c.l.b16 %v120
  %v2314 = vunpack.c.l.b16 %v121
  %v2315 = vunpack.c.l.b16 %v122
  %v2316 = vunpack.c.l.b16 %v123
  %v2317 = vunpack.c.l.b16 %v124
  %v2318 = vunpack.c.l.b16 %v125
  %v2319 = vpack.c.b16 %v2307, %v2306
  %v2320 = vpack.c.b16 %v2309, %v2308
  %v2321 = vpack.c.b16 %v2311, %v2310
  %v2322 = vpack.c.b16 %v2313, %v2312
  %v2323 = vpack.c.b16 %v2315, %v2314
  %v2324 = vpack.c.b16 %v2317, %v2316
  %v2325 = vpack.c.b16 %v2318, %v2318
  %v2327 = vsel %vm327, %v2319, 0
  %v2330 = vsel %vm327, %v2320, 0
  %v2333 = vsel %vm327, %v2321, 0
  %v2336 = vsel %vm327, %v2322, 0
  %v2339 = vsel %vm327, %v2323, 0
  %v2342 = vsel %vm327, %v2324, 0
  %v2345 = vsel %vm327, %v2325, 0
  %2347 = vmatprep.subr.bf16.mxu0 0
  %2348 = vmatpush1.bf16.msra.mxu0 %v1133
  %2349 = vmatprep.subr.bf16.mxu0 0
  %2350 = vmatpush1.bf16.msra.mxu0 %v1134
  %2351 = vmatprep.subr.bf16.mxu0 0
  %2352 = vmatpush1.bf16.msra.mxu0 0
  %2353 = vmatprep.subr.bf16.mxu0 0
  %2354 = vmatpush1.bf16.msra.mxu0 0
  %2355 = vmatprep.subr.bf16.mxu0 0
  %2356 = vmatpush1.bf16.msra.mxu0 0
  %2357 = vmatprep.subr.bf16.mxu0 0
  %2358 = vmatpush1.bf16.msra.mxu0 0
  %2359 = vmatprep.subr.bf16.mxu0 0
  %2360 = vmatpush1.bf16.msra.mxu0 0
  %2361 = vmatprep.subr.bf16.mxu0 0
  %2362 = vmatpush1.bf16.msra.mxu0 0
  %2363 = vmatprep.subr.bf16.mxu0 0
  %2364 = vmatpush1.bf16.msra.mxu0 0
  %2365 = vmatprep.subr.bf16.mxu0 0
  %2366 = vmatpush1.bf16.msra.mxu0 0
  %2367 = vmatprep.subr.bf16.mxu0 0
  %2368 = vmatpush1.bf16.msra.mxu0 0
  %2369 = vmatprep.subr.bf16.mxu0 0
  %2370 = vmatpush1.bf16.msra.mxu0 0
  %2371 = vmatprep.subr.bf16.mxu0 0
  %2372 = vmatpush1.bf16.msra.mxu0 0
  %2373 = vmatprep.subr.bf16.mxu0 0
  %2374 = vmatpush1.bf16.msra.mxu0 0
  %2375 = vmatprep.subr.bf16.mxu0 0
  %2376 = vmatpush1.bf16.msra.mxu0 0
  %2377 = vmatprep.subr.bf16.mxu0 0
  %2378 = vmatpush1.bf16.msra.mxu0 0
  %2379 = vmatprep.mubr.bf16.mxu0 0
  %2380 = vmatmul.mubr.bf16.gmra.mrb[0].mxu0 %v2327
  %v2381 = vpop.f32.mrb[0].mxu0
  %v2382 = vadd.f32 0.0, %v2381
  %v2383 = vpop.f32.mrb[0].mxu0
  %v2384 = vpop.f32.mrb[0].mxu0
  %v2385 = vadd.f32 0.0, %v2384
  %v2386 = vpop.f32.mrb[0].mxu0
  %2387 = vmatprep.mubr.bf16.mxu0 0
  %2388 = vmatmul.mubr.bf16.gmra.mrb[0].mxu0 %v2330
  %v2389 = vpop.f32.mrb[0].mxu0
  %v2390 = vadd.f32 0.0, %v2389
  %v2391 = vpop.f32.mrb[0].mxu0
  %v2392 = vpop.f32.mrb[0].mxu0
  %v2393 = vadd.f32 0.0, %v2392
  %v2394 = vpop.f32.mrb[0].mxu0
  %2395 = vmatprep.mubr.bf16.mxu0 0
  %2396 = vmatmul.mubr.bf16.gmra.mrb[0].mxu0 %v2333
  %v2397 = vpop.f32.mrb[0].mxu0
  %v2398 = vadd.f32 0.0, %v2397
  %v2399 = vpop.f32.mrb[0].mxu0
  %v2400 = vpop.f32.mrb[0].mxu0
  %v2401 = vadd.f32 0.0, %v2400
  %v2402 = vpop.f32.mrb[0].mxu0
  %2403 = vmatprep.mubr.bf16.mxu0 0
  %2404 = vmatmul.mubr.bf16.gmra.mrb[0].mxu0 %v2336
  %v2405 = vpop.f32.mrb[0].mxu0
  %v2406 = vadd.f32 0.0, %v2405
  %v2407 = vpop.f32.mrb[0].mxu0
  %v2408 = vpop.f32.mrb[0].mxu0
  %v2409 = vadd.f32 0.0, %v2408
  %v2410 = vpop.f32.mrb[0].mxu0
  %2411 = vmatprep.mubr.bf16.mxu0 0
  %2412 = vmatmul.mubr.bf16.gmra.mrb[0].mxu0 %v2339
  %v2413 = vpop.f32.mrb[0].mxu0
  %v2414 = vadd.f32 0.0, %v2413
  %v2415 = vpop.f32.mrb[0].mxu0
  %v2416 = vpop.f32.mrb[0].mxu0
  %v2417 = vadd.f32 0.0, %v2416
  %v2418 = vpop.f32.mrb[0].mxu0
  %2419 = vmatprep.mubr.bf16.mxu0 0
  %2420 = vmatmul.mubr.bf16.gmra.mrb[0].mxu0 %v2342
  %v2421 = vpop.f32.mrb[0].mxu0
  %v2422 = vadd.f32 0.0, %v2421
  %v2423 = vpop.f32.mrb[0].mxu0
  %v2424 = vpop.f32.mrb[0].mxu0
  %v2425 = vadd.f32 0.0, %v2424
  %v2426 = vpop.f32.mrb[0].mxu0
  %2427 = vmatprep.mubr.bf16.mxu0 0
  %2428 = vmatmul.mubr.bf16.gmra.mrb[0].mxu0 %v2345
  %v2429 = vpop.f32.mrb[0].mxu0
  %v2430 = vadd.f32 0.0, %v2429
  %v2431 = vpop.f32.mrb[0].mxu0
  %v2432 = vpop.f32.mrb[0].mxu0
  %v2433 = vpop.f32.mrb[0].mxu0
  %2434 = vdwg.mxu0
  %v2435 = vadd.f32 %v2280, %v2382
  %v2436 = vadd.f32 %v2281, %v2385
  %v2437 = vadd.f32 %v2282, %v2390
  %v2438 = vadd.f32 %v2283, %v2393
  %v2439 = vadd.f32 %v2284, %v2398
  %v2440 = vadd.f32 %v2285, %v2401
  %v2441 = vadd.f32 %v2286, %v2406
  %v2442 = vadd.f32 %v2287, %v2409
  %v2443 = vadd.f32 %v2288, %v2414
  %v2444 = vadd.f32 %v2289, %v2417
  %v2445 = vadd.f32 %v2290, %v2422
  %v2446 = vadd.f32 %v2291, %v2425
  %v2447 = vadd.f32 %v2292, %v2430
  %2448 = vmatprep.subr.bf16.mxu0 0
  %2449 = vmatpush1.bf16.msra.mxu0 %v1300
  %2450 = vmatprep.subr.bf16.mxu0 0
  %2451 = vmatpush1.bf16.msra.mxu0 %v1301
  %2452 = vmatprep.subr.bf16.mxu0 0
  %2453 = vmatpush1.bf16.msra.mxu0 0
  %2454 = vmatprep.subr.bf16.mxu0 0
  %2455 = vmatpush1.bf16.msra.mxu0 0
  %2456 = vmatprep.subr.bf16.mxu0 0
  %2457 = vmatpush1.bf16.msra.mxu0 0
  %2458 = vmatprep.subr.bf16.mxu0 0
  %2459 = vmatpush1.bf16.msra.mxu0 0
  %2460 = vmatprep.subr.bf16.mxu0 0
  %2461 = vmatpush1.bf16.msra.mxu0 0
  %2462 = vmatprep.subr.bf16.mxu0 0
  %2463 = vmatpush1.bf16.msra.mxu0 0
  %2464 = vmatprep.subr.bf16.mxu0 0
  %2465 = vmatpush1.bf16.msra.mxu0 0
  %2466 = vmatprep.subr.bf16.mxu0 0
  %2467 = vmatpush1.bf16.msra.mxu0 0
  %2468 = vmatprep.subr.bf16.mxu0 0
  %2469 = vmatpush1.bf16.msra.mxu0 0
  %2470 = vmatprep.subr.bf16.mxu0 0
  %2471 = vmatpush1.bf16.msra.mxu0 0
  %2472 = vmatprep.subr.bf16.mxu0 0
  %2473 = vmatpush1.bf16.msra.mxu0 0
  %2474 = vmatprep.subr.bf16.mxu0 0
  %2475 = vmatpush1.bf16.msra.mxu0 0
  %2476 = vmatprep.subr.bf16.mxu0 0
  %2477 = vmatpush1.bf16.msra.mxu0 0
  %2478 = vmatprep.subr.bf16.mxu0 0
  %2479 = vmatpush1.bf16.msra.mxu0 0
  %2480 = vmatprep.mubr.bf16.mxu0 0
  %2481 = vmatmul.mubr.bf16.gmra.mrb[0].mxu0 %v1472
  %v2482 = vpop.f32.mrb[0].mxu0
  %v2483 = vadd.f32 0.0, %v2482
  %v2484 = vpop.f32.mrb[0].mxu0
  %v2485 = vpop.f32.mrb[0].mxu0
  %v2486 = vadd.f32 0.0, %v2485
  %v2487 = vpop.f32.mrb[0].mxu0
  %2488 = vmatprep.mubr.bf16.mxu0 0
  %2489 = vmatmul.mubr.bf16.gmra.mrb[0].mxu0 %v1475
  %v2490 = vpop.f32.mrb[0].mxu0
  %v2491 = vadd.f32 0.0, %v2490
  %v2492 = vpop.f32.mrb[0].mxu0
  %v2493 = vpop.f32.mrb[0].mxu0
  %v2494 = vadd.f32 0.0, %v2493
  %v2495 = vpop.f32.mrb[0].mxu0
  %2496 = vmatprep.mubr.bf16.mxu0 0
  %2497 = vmatmul.mubr.bf16.gmra.mrb[0].mxu0 %v1478
  %v2498 = vpop.f32.mrb[0].mxu0
  %v2499 = vadd.f32 0.0, %v2498
  %v2500 = vpop.f32.mrb[0].mxu0
  %v2501 = vpop.f32.mrb[0].mxu0
  %v2502 = vadd.f32 0.0, %v2501
  %v2503 = vpop.f32.mrb[0].mxu0
  %2504 = vmatprep.mubr.bf16.mxu0 0
  %2505 = vmatmul.mubr.bf16.gmra.mrb[0].mxu0 %v1481
  %v2506 = vpop.f32.mrb[0].mxu0
  %v2507 = vadd.f32 0.0, %v2506
  %v2508 = vpop.f32.mrb[0].mxu0
  %v2509 = vpop.f32.mrb[0].mxu0
  %v2510 = vadd.f32 0.0, %v2509
  %v2511 = vpop.f32.mrb[0].mxu0
  %2512 = vmatprep.mubr.bf16.mxu0 0
  %2513 = vmatmul.mubr.bf16.gmra.mrb[0].mxu0 %v1484
  %v2514 = vpop.f32.mrb[0].mxu0
  %v2515 = vadd.f32 0.0, %v2514
  %v2516 = vpop.f32.mrb[0].mxu0
  %v2517 = vpop.f32.mrb[0].mxu0
  %v2518 = vadd.f32 0.0, %v2517
  %v2519 = vpop.f32.mrb[0].mxu0
  %2520 = vmatprep.mubr.bf16.mxu0 0
  %2521 = vmatmul.mubr.bf16.gmra.mrb[0].mxu0 %v1487
  %v2522 = vpop.f32.mrb[0].mxu0
  %v2523 = vadd.f32 0.0, %v2522
  %v2524 = vpop.f32.mrb[0].mxu0
  %v2525 = vpop.f32.mrb[0].mxu0
  %v2526 = vadd.f32 0.0, %v2525
  %v2527 = vpop.f32.mrb[0].mxu0
  %2528 = vmatprep.mubr.bf16.mxu0 0
  %2529 = vmatmul.mubr.bf16.gmra.mrb[0].mxu0 %v1490
  %v2530 = vpop.f32.mrb[0].mxu0
  %v2531 = vadd.f32 0.0, %v2530
  %v2532 = vpop.f32.mrb[0].mxu0
  %v2533 = vpop.f32.mrb[0].mxu0
  %v2534 = vpop.f32.mrb[0].mxu0
  %2535 = vdwg.mxu0
  %v2536 = vadd.f32 %v2435, %v2483
  %v2537 = vadd.f32 %v2436, %v2486
  %v2538 = vadd.f32 %v2437, %v2491
  %v2539 = vadd.f32 %v2438, %v2494
  %v2540 = vadd.f32 %v2439, %v2499
  %v2541 = vadd.f32 %v2440, %v2502
  %v2542 = vadd.f32 %v2441, %v2507
  %v2543 = vadd.f32 %v2442, %v2510
  %v2544 = vadd.f32 %v2443, %v2515
  %v2545 = vadd.f32 %v2444, %v2518
  %v2546 = vadd.f32 %v2445, %v2523
  %v2547 = vadd.f32 %v2446, %v2526
  %v2548 = vadd.f32 %v2447, %v2531
  %2549 = vmatprep.subr.bf16.mxu0 0
  %2550 = vmatpush1.bf16.msra.mxu0 %v1467
  %2551 = vmatprep.subr.bf16.mxu0 0
  %2552 = vmatpush1.bf16.msra.mxu0 %v1468
  %2553 = vmatprep.subr.bf16.mxu0 0
  %2554 = vmatpush1.bf16.msra.mxu0 0
  %2555 = vmatprep.subr.bf16.mxu0 0
  %2556 = vmatpush1.bf16.msra.mxu0 0
  %2557 = vmatprep.subr.bf16.mxu0 0
  %2558 = vmatpush1.bf16.msra.mxu0 0
  %2559 = vmatprep.subr.bf16.mxu0 0
  %2560 = vmatpush1.bf16.msra.mxu0 0
  %2561 = vmatprep.subr.bf16.mxu0 0
  %2562 = vmatpush1.bf16.msra.mxu0 0
  %2563 = vmatprep.subr.bf16.mxu0 0
  %2564 = vmatpush1.bf16.msra.mxu0 0
  %2565 = vmatprep.subr.bf16.mxu0 0
  %2566 = vmatpush1.bf16.msra.mxu0 0
  %2567 = vmatprep.subr.bf16.mxu0 0
  %2568 = vmatpush1.bf16.msra.mxu0 0
  %2569 = vmatprep.subr.bf16.mxu0 0
  %2570 = vmatpush1.bf16.msra.mxu0 0
  %2571 = vmatprep.subr.bf16.mxu0 0
  %2572 = vmatpush1.bf16.msra.mxu0 0
  %2573 = vmatprep.subr.bf16.mxu0 0
  %2574 = vmatpush1.bf16.msra.mxu0 0
  %2575 = vmatprep.subr.bf16.mxu0 0
  %2576 = vmatpush1.bf16.msra.mxu0 0
  %2577 = vmatprep.subr.bf16.mxu0 0
  %2578 = vmatpush1.bf16.msra.mxu0 0
  %2579 = vmatprep.subr.bf16.mxu0 0
  %2580 = vmatpush1.bf16.msra.mxu0 0
  %2581 = vmatprep.mubr.bf16.mxu0 0
  %2582 = vmatmul.mubr.bf16.gmra.mrb[0].mxu0 %v1639
  %v2583 = vpop.f32.mrb[0].mxu0
  %v2584 = vadd.f32 0.0, %v2583
  %v2585 = vpop.f32.mrb[0].mxu0
  %v2586 = vpop.f32.mrb[0].mxu0
  %v2587 = vadd.f32 0.0, %v2586
  %v2588 = vpop.f32.mrb[0].mxu0
  %2589 = vmatprep.mubr.bf16.mxu0 0
  %2590 = vmatmul.mubr.bf16.gmra.mrb[0].mxu0 %v1642
  %v2591 = vpop.f32.mrb[0].mxu0
  %v2592 = vadd.f32 0.0, %v2591
  %v2593 = vpop.f32.mrb[0].mxu0
  %v2594 = vpop.f32.mrb[0].mxu0
  %v2595 = vadd.f32 0.0, %v2594
  %v2596 = vpop.f32.mrb[0].mxu0
  %2597 = vmatprep.mubr.bf16.mxu0 0
  %2598 = vmatmul.mubr.bf16.gmra.mrb[0].mxu0 %v1645
  %v2599 = vpop.f32.mrb[0].mxu0
  %v2600 = vadd.f32 0.0, %v2599
  %v2601 = vpop.f32.mrb[0].mxu0
  %v2602 = vpop.f32.mrb[0].mxu0
  %v2603 = vadd.f32 0.0, %v2602
  %v2604 = vpop.f32.mrb[0].mxu0
  %2605 = vmatprep.mubr.bf16.mxu0 0
  %2606 = vmatmul.mubr.bf16.gmra.mrb[0].mxu0 %v1648
  %v2607 = vpop.f32.mrb[0].mxu0
  %v2608 = vadd.f32 0.0, %v2607
  %v2609 = vpop.f32.mrb[0].mxu0
  %v2610 = vpop.f32.mrb[0].mxu0
  %v2611 = vadd.f32 0.0, %v2610
  %v2612 = vpop.f32.mrb[0].mxu0
  %2613 = vmatprep.mubr.bf16.mxu0 0
  %2614 = vmatmul.mubr.bf16.gmra.mrb[0].mxu0 %v1651
  %v2615 = vpop.f32.mrb[0].mxu0
  %v2616 = vadd.f32 0.0, %v2615
  %v2617 = vpop.f32.mrb[0].mxu0
  %v2618 = vpop.f32.mrb[0].mxu0
  %v2619 = vadd.f32 0.0, %v2618
  %v2620 = vpop.f32.mrb[0].mxu0
  %2621 = vmatprep.mubr.bf16.mxu0 0
  %2622 = vmatmul.mubr.bf16.gmra.mrb[0].mxu0 %v1654
  %v2623 = vpop.f32.mrb[0].mxu0
  %v2624 = vadd.f32 0.0, %v2623
  %v2625 = vpop.f32.mrb[0].mxu0
  %v2626 = vpop.f32.mrb[0].mxu0
  %v2627 = vadd.f32 0.0, %v2626
  %v2628 = vpop.f32.mrb[0].mxu0
  %2629 = vmatprep.mubr.bf16.mxu0 0
  %2630 = vmatmul.mubr.bf16.gmra.mrb[0].mxu0 %v1657
  %v2631 = vpop.f32.mrb[0].mxu0
  %v2632 = vadd.f32 0.0, %v2631
  %v2633 = vpop.f32.mrb[0].mxu0
  %v2634 = vpop.f32.mrb[0].mxu0
  %v2635 = vpop.f32.mrb[0].mxu0
  %2636 = vdwg.mxu0
  %v2637 = vadd.f32 %v2536, %v2584
  %v2638 = vadd.f32 %v2537, %v2587
  %v2639 = vadd.f32 %v2538, %v2592
  %v2640 = vadd.f32 %v2539, %v2595
  %v2641 = vadd.f32 %v2540, %v2600
  %v2642 = vadd.f32 %v2541, %v2603
  %v2643 = vadd.f32 %v2542, %v2608
  %v2644 = vadd.f32 %v2543, %v2611
  %v2645 = vadd.f32 %v2544, %v2616
  %v2646 = vadd.f32 %v2545, %v2619
  %v2647 = vadd.f32 %v2546, %v2624
  %v2648 = vadd.f32 %v2547, %v2627
  %v2649 = vadd.f32 %v2548, %v2632
  %v2663 = vunpack.c.l.b16 %v169
  %v2664 = vunpack.c.l.b16 %v170
  %v2665 = vunpack.c.l.b16 %v171
  %v2666 = vunpack.c.l.b16 %v172
  %v2667 = vunpack.c.l.b16 %v173
  %v2668 = vunpack.c.l.b16 %v174
  %v2669 = vunpack.c.l.b16 %v175
  %v2670 = vunpack.c.l.b16 %v176
  %v2671 = vunpack.c.l.b16 %v177
  %v2672 = vunpack.c.l.b16 %v178
  %v2673 = vunpack.c.l.b16 %v179
  %v2674 = vunpack.c.l.b16 %v180
  %v2675 = vunpack.c.l.b16 %v181
  %v2676 = vpack.c.b16 %v2664, %v2663
  %v2677 = vpack.c.b16 %v2666, %v2665
  %v2678 = vpack.c.b16 %v2668, %v2667
  %v2679 = vpack.c.b16 %v2670, %v2669
  %v2680 = vpack.c.b16 %v2672, %v2671
  %v2681 = vpack.c.b16 %v2674, %v2673
  %v2682 = vpack.c.b16 %v2675, %v2675
  %v2684 = vsel %vm327, %v2676, 0
  %v2687 = vsel %vm327, %v2677, 0
  %v2690 = vsel %vm327, %v2678, 0
  %v2693 = vsel %vm327, %v2679, 0
  %v2696 = vsel %vm327, %v2680, 0
  %v2699 = vsel %vm327, %v2681, 0
  %v2702 = vsel %vm327, %v2682, 0
  %2704 = vmatprep.subr.bf16.mxu0 0
  %2705 = vmatpush1.bf16.msra.mxu0 %v1634
  %2706 = vmatprep.subr.bf16.mxu0 0
  %2707 = vmatpush1.bf16.msra.mxu0 %v1635
  %2708 = vmatprep.subr.bf16.mxu0 0
  %2709 = vmatpush1.bf16.msra.mxu0 0
  %2710 = vmatprep.subr.bf16.mxu0 0
  %2711 = vmatpush1.bf16.msra.mxu0 0
  %2712 = vmatprep.subr.bf16.mxu0 0
  %2713 = vmatpush1.bf16.msra.mxu0 0
  %2714 = vmatprep.subr.bf16.mxu0 0
  %2715 = vmatpush1.bf16.msra.mxu0 0
  %2716 = vmatprep.subr.bf16.mxu0 0
  %2717 = vmatpush1.bf16.msra.mxu0 0
  %2718 = vmatprep.subr.bf16.mxu0 0
  %2719 = vmatpush1.bf16.msra.mxu0 0
  %2720 = vmatprep.subr.bf16.mxu0 0
  %2721 = vmatpush1.bf16.msra.mxu0 0
  %2722 = vmatprep.subr.bf16.mxu0 0
  %2723 = vmatpush1.bf16.msra.mxu0 0
  %2724 = vmatprep.subr.bf16.mxu0 0
  %2725 = vmatpush1.bf16.msra.mxu0 0
  %2726 = vmatprep.subr.bf16.mxu0 0
  %2727 = vmatpush1.bf16.msra.mxu0 0
  %2728 = vmatprep.subr.bf16.mxu0 0
  %2729 = vmatpush1.bf16.msra.mxu0 0
  %2730 = vmatprep.subr.bf16.mxu0 0
  %2731 = vmatpush1.bf16.msra.mxu0 0
  %2732 = vmatprep.subr.bf16.mxu0 0
  %2733 = vmatpush1.bf16.msra.mxu0 0
  %2734 = vmatprep.subr.bf16.mxu0 0
  %2735 = vmatpush1.bf16.msra.mxu0 0
  %2736 = vmatprep.mubr.bf16.mxu0 0
  %2737 = vmatmul.mubr.bf16.gmra.mrb[0].mxu0 %v2684
  %v2738 = vpop.f32.mrb[0].mxu0
  %v2739 = vadd.f32 0.0, %v2738
  %v2740 = vpop.f32.mrb[0].mxu0
  %v2741 = vpop.f32.mrb[0].mxu0
  %v2742 = vadd.f32 0.0, %v2741
  %v2743 = vpop.f32.mrb[0].mxu0
  %2744 = vmatprep.mubr.bf16.mxu0 0
  %2745 = vmatmul.mubr.bf16.gmra.mrb[0].mxu0 %v2687
  %v2746 = vpop.f32.mrb[0].mxu0
  %v2747 = vadd.f32 0.0, %v2746
  %v2748 = vpop.f32.mrb[0].mxu0
  %v2749 = vpop.f32.mrb[0].mxu0
  %v2750 = vadd.f32 0.0, %v2749
  %v2751 = vpop.f32.mrb[0].mxu0
  %2752 = vmatprep.mubr.bf16.mxu0 0
  %2753 = vmatmul.mubr.bf16.gmra.mrb[0].mxu0 %v2690
  %v2754 = vpop.f32.mrb[0].mxu0
  %v2755 = vadd.f32 0.0, %v2754
  %v2756 = vpop.f32.mrb[0].mxu0
  %v2757 = vpop.f32.mrb[0].mxu0
  %v2758 = vadd.f32 0.0, %v2757
  %v2759 = vpop.f32.mrb[0].mxu0
  %2760 = vmatprep.mubr.bf16.mxu0 0
  %2761 = vmatmul.mubr.bf16.gmra.mrb[0].mxu0 %v2693
  %v2762 = vpop.f32.mrb[0].mxu0
  %v2763 = vadd.f32 0.0, %v2762
  %v2764 = vpop.f32.mrb[0].mxu0
  %v2765 = vpop.f32.mrb[0].mxu0
  %v2766 = vadd.f32 0.0, %v2765
  %v2767 = vpop.f32.mrb[0].mxu0
  %2768 = vmatprep.mubr.bf16.mxu0 0
  %2769 = vmatmul.mubr.bf16.gmra.mrb[0].mxu0 %v2696
  %v2770 = vpop.f32.mrb[0].mxu0
  %v2771 = vadd.f32 0.0, %v2770
  %v2772 = vpop.f32.mrb[0].mxu0
  %v2773 = vpop.f32.mrb[0].mxu0
  %v2774 = vadd.f32 0.0, %v2773
  %v2775 = vpop.f32.mrb[0].mxu0
  %2776 = vmatprep.mubr.bf16.mxu0 0
  %2777 = vmatmul.mubr.bf16.gmra.mrb[0].mxu0 %v2699
  %v2778 = vpop.f32.mrb[0].mxu0
  %v2779 = vadd.f32 0.0, %v2778
  %v2780 = vpop.f32.mrb[0].mxu0
  %v2781 = vpop.f32.mrb[0].mxu0
  %v2782 = vadd.f32 0.0, %v2781
  %v2783 = vpop.f32.mrb[0].mxu0
  %2784 = vmatprep.mubr.bf16.mxu0 0
  %2785 = vmatmul.mubr.bf16.gmra.mrb[0].mxu0 %v2702
  %v2786 = vpop.f32.mrb[0].mxu0
  %v2787 = vadd.f32 0.0, %v2786
  %v2788 = vpop.f32.mrb[0].mxu0
  %v2789 = vpop.f32.mrb[0].mxu0
  %v2790 = vpop.f32.mrb[0].mxu0
  %2791 = vdwg.mxu0
  %v2792 = vadd.f32 %v2637, %v2739
  %v2793 = vadd.f32 %v2638, %v2742
  %v2794 = vadd.f32 %v2639, %v2747
  %v2795 = vadd.f32 %v2640, %v2750
  %v2796 = vadd.f32 %v2641, %v2755
  %v2797 = vadd.f32 %v2642, %v2758
  %v2798 = vadd.f32 %v2643, %v2763
  %v2799 = vadd.f32 %v2644, %v2766
  %v2800 = vadd.f32 %v2645, %v2771
  %v2801 = vadd.f32 %v2646, %v2774
  %v2802 = vadd.f32 %v2647, %v2779
  %v2803 = vadd.f32 %v2648, %v2782
  %v2804 = vadd.f32 %v2649, %v2787
  %v2805 = vmax.f32 %v1747, %v2792
  %v2806 = vmax.f32 %v1748, %v2793
  %v2807 = vmax.f32 %v1749, %v2794
  %v2808 = vmax.f32 %v1750, %v2795
  %v2809 = vmax.f32 %v1751, %v2796
  %v2810 = vmax.f32 %v1752, %v2797
  %v2811 = vmax.f32 %v1753, %v2798
  %v2812 = vmax.f32 %v1754, %v2799
  %v2813 = vmax.f32 %v1755, %v2800
  %v2814 = vmax.f32 %v1756, %v2801
  %v2815 = vmax.f32 %v1757, %v2802
  %v2816 = vmax.f32 %v1758, %v2803
  %v2817 = vmax.f32 %v1759, %v2804
  %2818 = vmatprep.subr.bf16.mxu0 0
  %2819 = vmatpush1.bf16.msra.mxu0 %v323
  %2820 = vmatprep.subr.bf16.mxu0 0
  %2821 = vmatpush1.bf16.msra.mxu0 %v324
  %2822 = vmatprep.subr.bf16.mxu0 0
  %2823 = vmatpush1.bf16.msra.mxu0 0
  %2824 = vmatprep.subr.bf16.mxu0 0
  %2825 = vmatpush1.bf16.msra.mxu0 0
  %2826 = vmatprep.subr.bf16.mxu0 0
  %2827 = vmatpush1.bf16.msra.mxu0 0
  %2828 = vmatprep.subr.bf16.mxu0 0
  %2829 = vmatpush1.bf16.msra.mxu0 0
  %2830 = vmatprep.subr.bf16.mxu0 0
  %2831 = vmatpush1.bf16.msra.mxu0 0
  %2832 = vmatprep.subr.bf16.mxu0 0
  %2833 = vmatpush1.bf16.msra.mxu0 0
  %2834 = vmatprep.subr.bf16.mxu0 0
  %2835 = vmatpush1.bf16.msra.mxu0 0
  %2836 = vmatprep.subr.bf16.mxu0 0
  %2837 = vmatpush1.bf16.msra.mxu0 0
  %2838 = vmatprep.subr.bf16.mxu0 0
  %2839 = vmatpush1.bf16.msra.mxu0 0
  %2840 = vmatprep.subr.bf16.mxu0 0
  %2841 = vmatpush1.bf16.msra.mxu0 0
  %2842 = vmatprep.subr.bf16.mxu0 0
  %2843 = vmatpush1.bf16.msra.mxu0 0
  %2844 = vmatprep.subr.bf16.mxu0 0
  %2845 = vmatpush1.bf16.msra.mxu0 0
  %2846 = vmatprep.subr.bf16.mxu0 0
  %2847 = vmatpush1.bf16.msra.mxu0 0
  %2848 = vmatprep.subr.bf16.mxu0 0
  %2849 = vmatpush1.bf16.msra.mxu0 0
  %2850 = vmatprep.mubr.bf16.mxu0 0
  %2851 = vmatmul.mubr.bf16.gmra.mrb[0].mxu0 %v971
  %v2852 = vpop.f32.mrb[0].mxu0
  %v2853 = vadd.f32 0.0, %v2852
  %v2854 = vpop.f32.mrb[0].mxu0
  %v2855 = vpop.f32.mrb[0].mxu0
  %v2856 = vadd.f32 0.0, %v2855
  %v2857 = vpop.f32.mrb[0].mxu0
  %2858 = vmatprep.mubr.bf16.mxu0 0
  %2859 = vmatmul.mubr.bf16.gmra.mrb[0].mxu0 %v974
  %v2860 = vpop.f32.mrb[0].mxu0
  %v2861 = vadd.f32 0.0, %v2860
  %v2862 = vpop.f32.mrb[0].mxu0
  %v2863 = vpop.f32.mrb[0].mxu0
  %v2864 = vadd.f32 0.0, %v2863
  %v2865 = vpop.f32.mrb[0].mxu0
  %2866 = vmatprep.mubr.bf16.mxu0 0
  %2867 = vmatmul.mubr.bf16.gmra.mrb[0].mxu0 %v977
  %v2868 = vpop.f32.mrb[0].mxu0
  %v2869 = vadd.f32 0.0, %v2868
  %v2870 = vpop.f32.mrb[0].mxu0
  %v2871 = vpop.f32.mrb[0].mxu0
  %v2872 = vadd.f32 0.0, %v2871
  %v2873 = vpop.f32.mrb[0].mxu0
  %2874 = vmatprep.mubr.bf16.mxu0 0
  %2875 = vmatmul.mubr.bf16.gmra.mrb[0].mxu0 %v980
  %v2876 = vpop.f32.mrb[0].mxu0
  %v2877 = vadd.f32 0.0, %v2876
  %v2878 = vpop.f32.mrb[0].mxu0
  %v2879 = vpop.f32.mrb[0].mxu0
  %v2880 = vadd.f32 0.0, %v2879
  %v2881 = vpop.f32.mrb[0].mxu0
  %2882 = vmatprep.mubr.bf16.mxu0 0
  %2883 = vmatmul.mubr.bf16.gmra.mrb[0].mxu0 %v983
  %v2884 = vpop.f32.mrb[0].mxu0
  %v2885 = vadd.f32 0.0, %v2884
  %v2886 = vpop.f32.mrb[0].mxu0
  %v2887 = vpop.f32.mrb[0].mxu0
  %v2888 = vadd.f32 0.0, %v2887
  %v2889 = vpop.f32.mrb[0].mxu0
  %2890 = vmatprep.mubr.bf16.mxu0 0
  %2891 = vmatmul.mubr.bf16.gmra.mrb[0].mxu0 %v986
  %v2892 = vpop.f32.mrb[0].mxu0
  %v2893 = vadd.f32 0.0, %v2892
  %v2894 = vpop.f32.mrb[0].mxu0
  %v2895 = vpop.f32.mrb[0].mxu0
  %v2896 = vadd.f32 0.0, %v2895
  %v2897 = vpop.f32.mrb[0].mxu0
  %2898 = vmatprep.mubr.bf16.mxu0 0
  %2899 = vmatmul.mubr.bf16.gmra.mrb[0].mxu0 %v989
  %v2900 = vpop.f32.mrb[0].mxu0
  %v2901 = vadd.f32 0.0, %v2900
  %v2902 = vpop.f32.mrb[0].mxu0
  %v2903 = vpop.f32.mrb[0].mxu0
  %v2904 = vpop.f32.mrb[0].mxu0
  %2905 = vdwg.mxu0
  %2906 = vmatprep.subr.bf16.mxu0 0
  %2907 = vmatpush1.bf16.msra.mxu0 %v478
  %2908 = vmatprep.subr.bf16.mxu0 0
  %2909 = vmatpush1.bf16.msra.mxu0 %v479
  %2910 = vmatprep.subr.bf16.mxu0 0
  %2911 = vmatpush1.bf16.msra.mxu0 0
  %2912 = vmatprep.subr.bf16.mxu0 0
  %2913 = vmatpush1.bf16.msra.mxu0 0
  %2914 = vmatprep.subr.bf16.mxu0 0
  %2915 = vmatpush1.bf16.msra.mxu0 0
  %2916 = vmatprep.subr.bf16.mxu0 0
  %2917 = vmatpush1.bf16.msra.mxu0 0
  %2918 = vmatprep.subr.bf16.mxu0 0
  %2919 = vmatpush1.bf16.msra.mxu0 0
  %2920 = vmatprep.subr.bf16.mxu0 0
  %2921 = vmatpush1.bf16.msra.mxu0 0
  %2922 = vmatprep.subr.bf16.mxu0 0
  %2923 = vmatpush1.bf16.msra.mxu0 0
  %2924 = vmatprep.subr.bf16.mxu0 0
  %2925 = vmatpush1.bf16.msra.mxu0 0
  %2926 = vmatprep.subr.bf16.mxu0 0
  %2927 = vmatpush1.bf16.msra.mxu0 0
  %2928 = vmatprep.subr.bf16.mxu0 0
  %2929 = vmatpush1.bf16.msra.mxu0 0
  %2930 = vmatprep.subr.bf16.mxu0 0
  %2931 = vmatpush1.bf16.msra.mxu0 0
  %2932 = vmatprep.subr.bf16.mxu0 0
  %2933 = vmatpush1.bf16.msra.mxu0 0
  %2934 = vmatprep.subr.bf16.mxu0 0
  %2935 = vmatpush1.bf16.msra.mxu0 0
  %2936 = vmatprep.subr.bf16.mxu0 0
  %2937 = vmatpush1.bf16.msra.mxu0 0
  %2938 = vmatprep.mubr.bf16.mxu0 0
  %2939 = vmatmul.mubr.bf16.gmra.mrb[0].mxu0 %v804
  %v2940 = vpop.f32.mrb[0].mxu0
  %v2941 = vadd.f32 %v2853, %v2940
  %v2942 = vpop.f32.mrb[0].mxu0
  %v2943 = vpop.f32.mrb[0].mxu0
  %v2944 = vadd.f32 %v2856, %v2943
  %v2945 = vpop.f32.mrb[0].mxu0
  %2946 = vmatprep.mubr.bf16.mxu0 0
  %2947 = vmatmul.mubr.bf16.gmra.mrb[0].mxu0 %v807
  %v2948 = vpop.f32.mrb[0].mxu0
  %v2949 = vadd.f32 %v2861, %v2948
  %v2950 = vpop.f32.mrb[0].mxu0
  %v2951 = vpop.f32.mrb[0].mxu0
  %v2952 = vadd.f32 %v2864, %v2951
  %v2953 = vpop.f32.mrb[0].mxu0
  %2954 = vmatprep.mubr.bf16.mxu0 0
  %2955 = vmatmul.mubr.bf16.gmra.mrb[0].mxu0 %v810
  %v2956 = vpop.f32.mrb[0].mxu0
  %v2957 = vadd.f32 %v2869, %v2956
  %v2958 = vpop.f32.mrb[0].mxu0
  %v2959 = vpop.f32.mrb[0].mxu0
  %v2960 = vadd.f32 %v2872, %v2959
  %v2961 = vpop.f32.mrb[0].mxu0
  %2962 = vmatprep.mubr.bf16.mxu0 0
  %2963 = vmatmul.mubr.bf16.gmra.mrb[0].mxu0 %v813
  %v2964 = vpop.f32.mrb[0].mxu0
  %v2965 = vadd.f32 %v2877, %v2964
  %v2966 = vpop.f32.mrb[0].mxu0
  %v2967 = vpop.f32.mrb[0].mxu0
  %v2968 = vadd.f32 %v2880, %v2967
  %v2969 = vpop.f32.mrb[0].mxu0
  %2970 = vmatprep.mubr.bf16.mxu0 0
  %2971 = vmatmul.mubr.bf16.gmra.mrb[0].mxu0 %v816
  %v2972 = vpop.f32.mrb[0].mxu0
  %v2973 = vadd.f32 %v2885, %v2972
  %v2974 = vpop.f32.mrb[0].mxu0
  %v2975 = vpop.f32.mrb[0].mxu0
  %v2976 = vadd.f32 %v2888, %v2975
  %v2977 = vpop.f32.mrb[0].mxu0
  %2978 = vmatprep.mubr.bf16.mxu0 0
  %2979 = vmatmul.mubr.bf16.gmra.mrb[0].mxu0 %v819
  %v2980 = vpop.f32.mrb[0].mxu0
  %v2981 = vadd.f32 %v2893, %v2980
  %v2982 = vpop.f32.mrb[0].mxu0
  %v2983 = vpop.f32.mrb[0].mxu0
  %v2984 = vadd.f32 %v2896, %v2983
  %v2985 = vpop.f32.mrb[0].mxu0
  %2986 = vmatprep.mubr.bf16.mxu0 0
  %2987 = vmatmul.mubr.bf16.gmra.mrb[0].mxu0 %v822
  %v2988 = vpop.f32.mrb[0].mxu0
  %v2989 = vadd.f32 %v2901, %v2988
  %v2990 = vpop.f32.mrb[0].mxu0
  %v2991 = vpop.f32.mrb[0].mxu0
  %v2992 = vpop.f32.mrb[0].mxu0
  %2993 = vdwg.mxu0
  %2994 = vmatprep.subr.bf16.mxu0 0
  %2995 = vmatpush1.bf16.msra.mxu0 %v632
  %2996 = vmatprep.subr.bf16.mxu0 0
  %2997 = vmatpush1.bf16.msra.mxu0 %v633
  %2998 = vmatprep.subr.bf16.mxu0 0
  %2999 = vmatpush1.bf16.msra.mxu0 0
  %3000 = vmatprep.subr.bf16.mxu0 0
  %3001 = vmatpush1.bf16.msra.mxu0 0
  %3002 = vmatprep.subr.bf16.mxu0 0
  %3003 = vmatpush1.bf16.msra.mxu0 0
  %3004 = vmatprep.subr.bf16.mxu0 0
  %3005 = vmatpush1.bf16.msra.mxu0 0
  %3006 = vmatprep.subr.bf16.mxu0 0
  %3007 = vmatpush1.bf16.msra.mxu0 0
  %3008 = vmatprep.subr.bf16.mxu0 0
  %3009 = vmatpush1.bf16.msra.mxu0 0
  %3010 = vmatprep.subr.bf16.mxu0 0
  %3011 = vmatpush1.bf16.msra.mxu0 0
  %3012 = vmatprep.subr.bf16.mxu0 0
  %3013 = vmatpush1.bf16.msra.mxu0 0
  %3014 = vmatprep.subr.bf16.mxu0 0
  %3015 = vmatpush1.bf16.msra.mxu0 0
  %3016 = vmatprep.subr.bf16.mxu0 0
  %3017 = vmatpush1.bf16.msra.mxu0 0
  %3018 = vmatprep.subr.bf16.mxu0 0
  %3019 = vmatpush1.bf16.msra.mxu0 0
  %3020 = vmatprep.subr.bf16.mxu0 0
  %3021 = vmatpush1.bf16.msra.mxu0 0
  %3022 = vmatprep.subr.bf16.mxu0 0
  %3023 = vmatpush1.bf16.msra.mxu0 0
  %3024 = vmatprep.subr.bf16.mxu0 0
  %3025 = vmatpush1.bf16.msra.mxu0 0
  %3026 = vmatprep.mubr.bf16.mxu0 0
  %3027 = vmatmul.mubr.bf16.gmra.mrb[0].mxu0 %v1138
  %v3028 = vpop.f32.mrb[0].mxu0
  %v3029 = vadd.f32 0.0, %v3028
  %v3030 = vpop.f32.mrb[0].mxu0
  %v3031 = vpop.f32.mrb[0].mxu0
  %v3032 = vadd.f32 0.0, %v3031
  %v3033 = vpop.f32.mrb[0].mxu0
  %3034 = vmatprep.mubr.bf16.mxu0 0
  %3035 = vmatmul.mubr.bf16.gmra.mrb[0].mxu0 %v1141
  %v3036 = vpop.f32.mrb[0].mxu0
  %v3037 = vadd.f32 0.0, %v3036
  %v3038 = vpop.f32.mrb[0].mxu0
  %v3039 = vpop.f32.mrb[0].mxu0
  %v3040 = vadd.f32 0.0, %v3039
  %v3041 = vpop.f32.mrb[0].mxu0
  %3042 = vmatprep.mubr.bf16.mxu0 0
  %3043 = vmatmul.mubr.bf16.gmra.mrb[0].mxu0 %v1144
  %v3044 = vpop.f32.mrb[0].mxu0
  %v3045 = vadd.f32 0.0, %v3044
  %v3046 = vpop.f32.mrb[0].mxu0
  %v3047 = vpop.f32.mrb[0].mxu0
  %v3048 = vadd.f32 0.0, %v3047
  %v3049 = vpop.f32.mrb[0].mxu0
  %3050 = vmatprep.mubr.bf16.mxu0 0
  %3051 = vmatmul.mubr.bf16.gmra.mrb[0].mxu0 %v1147
  %v3052 = vpop.f32.mrb[0].mxu0
  %v3053 = vadd.f32 0.0, %v3052
  %v3054 = vpop.f32.mrb[0].mxu0
  %v3055 = vpop.f32.mrb[0].mxu0
  %v3056 = vadd.f32 0.0, %v3055
  %v3057 = vpop.f32.mrb[0].mxu0
  %3058 = vmatprep.mubr.bf16.mxu0 0
  %3059 = vmatmul.mubr.bf16.gmra.mrb[0].mxu0 %v1150
  %v3060 = vpop.f32.mrb[0].mxu0
  %v3061 = vadd.f32 0.0, %v3060
  %v3062 = vpop.f32.mrb[0].mxu0
  %v3063 = vpop.f32.mrb[0].mxu0
  %v3064 = vadd.f32 0.0, %v3063
  %v3065 = vpop.f32.mrb[0].mxu0
  %3066 = vmatprep.mubr.bf16.mxu0 0
  %3067 = vmatmul.mubr.bf16.gmra.mrb[0].mxu0 %v1153
  %v3068 = vpop.f32.mrb[0].mxu0
  %v3069 = vadd.f32 0.0, %v3068
  %v3070 = vpop.f32.mrb[0].mxu0
  %v3071 = vpop.f32.mrb[0].mxu0
  %v3072 = vadd.f32 0.0, %v3071
  %v3073 = vpop.f32.mrb[0].mxu0
  %3074 = vmatprep.mubr.bf16.mxu0 0
  %3075 = vmatmul.mubr.bf16.gmra.mrb[0].mxu0 %v1156
  %v3076 = vpop.f32.mrb[0].mxu0
  %v3077 = vadd.f32 0.0, %v3076
  %v3078 = vpop.f32.mrb[0].mxu0
  %v3079 = vpop.f32.mrb[0].mxu0
  %v3080 = vpop.f32.mrb[0].mxu0
  %3081 = vdwg.mxu0
  %v3082 = vadd.f32 %v2941, %v3029
  %v3083 = vadd.f32 %v2944, %v3032
  %v3084 = vadd.f32 %v2949, %v3037
  %v3085 = vadd.f32 %v2952, %v3040
  %v3086 = vadd.f32 %v2957, %v3045
  %v3087 = vadd.f32 %v2960, %v3048
  %v3088 = vadd.f32 %v2965, %v3053
  %v3089 = vadd.f32 %v2968, %v3056
  %v3090 = vadd.f32 %v2973, %v3061
  %v3091 = vadd.f32 %v2976, %v3064
  %v3092 = vadd.f32 %v2981, %v3069
  %v3093 = vadd.f32 %v2984, %v3072
  %v3094 = vadd.f32 %v2989, %v3077
  %3095 = vmatprep.subr.bf16.mxu0 0
  %3096 = vmatpush1.bf16.msra.mxu0 %v799
  %3097 = vmatprep.subr.bf16.mxu0 0
  %3098 = vmatpush1.bf16.msra.mxu0 %v800
  %3099 = vmatprep.subr.bf16.mxu0 0
  %3100 = vmatpush1.bf16.msra.mxu0 0
  %3101 = vmatprep.subr.bf16.mxu0 0
  %3102 = vmatpush1.bf16.msra.mxu0 0
  %3103 = vmatprep.subr.bf16.mxu0 0
  %3104 = vmatpush1.bf16.msra.mxu0 0
  %3105 = vmatprep.subr.bf16.mxu0 0
  %3106 = vmatpush1.bf16.msra.mxu0 0
  %3107 = vmatprep.subr.bf16.mxu0 0
  %3108 = vmatpush1.bf16.msra.mxu0 0
  %3109 = vmatprep.subr.bf16.mxu0 0
  %3110 = vmatpush1.bf16.msra.mxu0 0
  %3111 = vmatprep.subr.bf16.mxu0 0
  %3112 = vmatpush1.bf16.msra.mxu0 0
  %3113 = vmatprep.subr.bf16.mxu0 0
  %3114 = vmatpush1.bf16.msra.mxu0 0
  %3115 = vmatprep.subr.bf16.mxu0 0
  %3116 = vmatpush1.bf16.msra.mxu0 0
  %3117 = vmatprep.subr.bf16.mxu0 0
  %3118 = vmatpush1.bf16.msra.mxu0 0
  %3119 = vmatprep.subr.bf16.mxu0 0
  %3120 = vmatpush1.bf16.msra.mxu0 0
  %3121 = vmatprep.subr.bf16.mxu0 0
  %3122 = vmatpush1.bf16.msra.mxu0 0
  %3123 = vmatprep.subr.bf16.mxu0 0
  %3124 = vmatpush1.bf16.msra.mxu0 0
  %3125 = vmatprep.subr.bf16.mxu0 0
  %3126 = vmatpush1.bf16.msra.mxu0 0
  %3127 = vmatprep.mubr.bf16.mxu0 0
  %3128 = vmatmul.mubr.bf16.gmra.mrb[0].mxu0 %v1305
  %v3129 = vpop.f32.mrb[0].mxu0
  %v3130 = vadd.f32 0.0, %v3129
  %v3131 = vpop.f32.mrb[0].mxu0
  %v3132 = vpop.f32.mrb[0].mxu0
  %v3133 = vadd.f32 0.0, %v3132
  %v3134 = vpop.f32.mrb[0].mxu0
  %3135 = vmatprep.mubr.bf16.mxu0 0
  %3136 = vmatmul.mubr.bf16.gmra.mrb[0].mxu0 %v1308
  %v3137 = vpop.f32.mrb[0].mxu0
  %v3138 = vadd.f32 0.0, %v3137
  %v3139 = vpop.f32.mrb[0].mxu0
  %v3140 = vpop.f32.mrb[0].mxu0
  %v3141 = vadd.f32 0.0, %v3140
  %v3142 = vpop.f32.mrb[0].mxu0
  %3143 = vmatprep.mubr.bf16.mxu0 0
  %3144 = vmatmul.mubr.bf16.gmra.mrb[0].mxu0 %v1311
  %v3145 = vpop.f32.mrb[0].mxu0
  %v3146 = vadd.f32 0.0, %v3145
  %v3147 = vpop.f32.mrb[0].mxu0
  %v3148 = vpop.f32.mrb[0].mxu0
  %v3149 = vadd.f32 0.0, %v3148
  %v3150 = vpop.f32.mrb[0].mxu0
  %3151 = vmatprep.mubr.bf16.mxu0 0
  %3152 = vmatmul.mubr.bf16.gmra.mrb[0].mxu0 %v1314
  %v3153 = vpop.f32.mrb[0].mxu0
  %v3154 = vadd.f32 0.0, %v3153
  %v3155 = vpop.f32.mrb[0].mxu0
  %v3156 = vpop.f32.mrb[0].mxu0
  %v3157 = vadd.f32 0.0, %v3156
  %v3158 = vpop.f32.mrb[0].mxu0
  %3159 = vmatprep.mubr.bf16.mxu0 0
  %3160 = vmatmul.mubr.bf16.gmra.mrb[0].mxu0 %v1317
  %v3161 = vpop.f32.mrb[0].mxu0
  %v3162 = vadd.f32 0.0, %v3161
  %v3163 = vpop.f32.mrb[0].mxu0
  %v3164 = vpop.f32.mrb[0].mxu0
  %v3165 = vadd.f32 0.0, %v3164
  %v3166 = vpop.f32.mrb[0].mxu0
  %3167 = vmatprep.mubr.bf16.mxu0 0
  %3168 = vmatmul.mubr.bf16.gmra.mrb[0].mxu0 %v1320
  %v3169 = vpop.f32.mrb[0].mxu0
  %v3170 = vadd.f32 0.0, %v3169
  %v3171 = vpop.f32.mrb[0].mxu0
  %v3172 = vpop.f32.mrb[0].mxu0
  %v3173 = vadd.f32 0.0, %v3172
  %v3174 = vpop.f32.mrb[0].mxu0
  %3175 = vmatprep.mubr.bf16.mxu0 0
  %3176 = vmatmul.mubr.bf16.gmra.mrb[0].mxu0 %v1323
  %v3177 = vpop.f32.mrb[0].mxu0
  %v3178 = vadd.f32 0.0, %v3177
  %v3179 = vpop.f32.mrb[0].mxu0
  %v3180 = vpop.f32.mrb[0].mxu0
  %v3181 = vpop.f32.mrb[0].mxu0
  %3182 = vdwg.mxu0
  %v3183 = vadd.f32 %v3082, %v3130
  %v3184 = vadd.f32 %v3083, %v3133
  %v3185 = vadd.f32 %v3084, %v3138
  %v3186 = vadd.f32 %v3085, %v3141
  %v3187 = vadd.f32 %v3086, %v3146
  %v3188 = vadd.f32 %v3087, %v3149
  %v3189 = vadd.f32 %v3088, %v3154
  %v3190 = vadd.f32 %v3089, %v3157
  %v3191 = vadd.f32 %v3090, %v3162
  %v3192 = vadd.f32 %v3091, %v3165
  %v3193 = vadd.f32 %v3092, %v3170
  %v3194 = vadd.f32 %v3093, %v3173
  %v3195 = vadd.f32 %v3094, %v3178
  %3196 = vmatprep.subr.bf16.mxu0 0
  %3197 = vmatpush1.bf16.msra.mxu0 %v966
  %3198 = vmatprep.subr.bf16.mxu0 0
  %3199 = vmatpush1.bf16.msra.mxu0 %v967
  %3200 = vmatprep.subr.bf16.mxu0 0
  %3201 = vmatpush1.bf16.msra.mxu0 0
  %3202 = vmatprep.subr.bf16.mxu0 0
  %3203 = vmatpush1.bf16.msra.mxu0 0
  %3204 = vmatprep.subr.bf16.mxu0 0
  %3205 = vmatpush1.bf16.msra.mxu0 0
  %3206 = vmatprep.subr.bf16.mxu0 0
  %3207 = vmatpush1.bf16.msra.mxu0 0
  %3208 = vmatprep.subr.bf16.mxu0 0
  %3209 = vmatpush1.bf16.msra.mxu0 0
  %3210 = vmatprep.subr.bf16.mxu0 0
  %3211 = vmatpush1.bf16.msra.mxu0 0
  %3212 = vmatprep.subr.bf16.mxu0 0
  %3213 = vmatpush1.bf16.msra.mxu0 0
  %3214 = vmatprep.subr.bf16.mxu0 0
  %3215 = vmatpush1.bf16.msra.mxu0 0
  %3216 = vmatprep.subr.bf16.mxu0 0
  %3217 = vmatpush1.bf16.msra.mxu0 0
  %3218 = vmatprep.subr.bf16.mxu0 0
  %3219 = vmatpush1.bf16.msra.mxu0 0
  %3220 = vmatprep.subr.bf16.mxu0 0
  %3221 = vmatpush1.bf16.msra.mxu0 0
  %3222 = vmatprep.subr.bf16.mxu0 0
  %3223 = vmatpush1.bf16.msra.mxu0 0
  %3224 = vmatprep.subr.bf16.mxu0 0
  %3225 = vmatpush1.bf16.msra.mxu0 0
  %3226 = vmatprep.subr.bf16.mxu0 0
  %3227 = vmatpush1.bf16.msra.mxu0 0
  %3228 = vmatprep.mubr.bf16.mxu0 0
  %3229 = vmatmul.mubr.bf16.gmra.mrb[0].mxu0 %v1472
  %v3230 = vpop.f32.mrb[0].mxu0
  %v3231 = vadd.f32 0.0, %v3230
  %v3232 = vpop.f32.mrb[0].mxu0
  %v3233 = vpop.f32.mrb[0].mxu0
  %v3234 = vadd.f32 0.0, %v3233
  %v3235 = vpop.f32.mrb[0].mxu0
  %3236 = vmatprep.mubr.bf16.mxu0 0
  %3237 = vmatmul.mubr.bf16.gmra.mrb[0].mxu0 %v1475
  %v3238 = vpop.f32.mrb[0].mxu0
  %v3239 = vadd.f32 0.0, %v3238
  %v3240 = vpop.f32.mrb[0].mxu0
  %v3241 = vpop.f32.mrb[0].mxu0
  %v3242 = vadd.f32 0.0, %v3241
  %v3243 = vpop.f32.mrb[0].mxu0
  %3244 = vmatprep.mubr.bf16.mxu0 0
  %3245 = vmatmul.mubr.bf16.gmra.mrb[0].mxu0 %v1478
  %v3246 = vpop.f32.mrb[0].mxu0
  %v3247 = vadd.f32 0.0, %v3246
  %v3248 = vpop.f32.mrb[0].mxu0
  %v3249 = vpop.f32.mrb[0].mxu0
  %v3250 = vadd.f32 0.0, %v3249
  %v3251 = vpop.f32.mrb[0].mxu0
  %3252 = vmatprep.mubr.bf16.mxu0 0
  %3253 = vmatmul.mubr.bf16.gmra.mrb[0].mxu0 %v1481
  %v3254 = vpop.f32.mrb[0].mxu0
  %v3255 = vadd.f32 0.0, %v3254
  %v3256 = vpop.f32.mrb[0].mxu0
  %v3257 = vpop.f32.mrb[0].mxu0
  %v3258 = vadd.f32 0.0, %v3257
  %v3259 = vpop.f32.mrb[0].mxu0
  %3260 = vmatprep.mubr.bf16.mxu0 0
  %3261 = vmatmul.mubr.bf16.gmra.mrb[0].mxu0 %v1484
  %v3262 = vpop.f32.mrb[0].mxu0
  %v3263 = vadd.f32 0.0, %v3262
  %v3264 = vpop.f32.mrb[0].mxu0
  %v3265 = vpop.f32.mrb[0].mxu0
  %v3266 = vadd.f32 0.0, %v3265
  %v3267 = vpop.f32.mrb[0].mxu0
  %3268 = vmatprep.mubr.bf16.mxu0 0
  %3269 = vmatmul.mubr.bf16.gmra.mrb[0].mxu0 %v1487
  %v3270 = vpop.f32.mrb[0].mxu0
  %v3271 = vadd.f32 0.0, %v3270
  %v3272 = vpop.f32.mrb[0].mxu0
  %v3273 = vpop.f32.mrb[0].mxu0
  %v3274 = vadd.f32 0.0, %v3273
  %v3275 = vpop.f32.mrb[0].mxu0
  %3276 = vmatprep.mubr.bf16.mxu0 0
  %3277 = vmatmul.mubr.bf16.gmra.mrb[0].mxu0 %v1490
  %v3278 = vpop.f32.mrb[0].mxu0
  %v3279 = vadd.f32 0.0, %v3278
  %v3280 = vpop.f32.mrb[0].mxu0
  %v3281 = vpop.f32.mrb[0].mxu0
  %v3282 = vpop.f32.mrb[0].mxu0
  %3283 = vdwg.mxu0
  %v3284 = vadd.f32 %v3183, %v3231
  %v3285 = vadd.f32 %v3184, %v3234
  %v3286 = vadd.f32 %v3185, %v3239
  %v3287 = vadd.f32 %v3186, %v3242
  %v3288 = vadd.f32 %v3187, %v3247
  %v3289 = vadd.f32 %v3188, %v3250
  %v3290 = vadd.f32 %v3189, %v3255
  %v3291 = vadd.f32 %v3190, %v3258
  %v3292 = vadd.f32 %v3191, %v3263
  %v3293 = vadd.f32 %v3192, %v3266
  %v3294 = vadd.f32 %v3193, %v3271
  %v3295 = vadd.f32 %v3194, %v3274
  %v3296 = vadd.f32 %v3195, %v3279
  %3297 = vmatprep.subr.bf16.mxu0 0
  %3298 = vmatpush1.bf16.msra.mxu0 %v1133
  %3299 = vmatprep.subr.bf16.mxu0 0
  %3300 = vmatpush1.bf16.msra.mxu0 %v1134
  %3301 = vmatprep.subr.bf16.mxu0 0
  %3302 = vmatpush1.bf16.msra.mxu0 0
  %3303 = vmatprep.subr.bf16.mxu0 0
  %3304 = vmatpush1.bf16.msra.mxu0 0
  %3305 = vmatprep.subr.bf16.mxu0 0
  %3306 = vmatpush1.bf16.msra.mxu0 0
  %3307 = vmatprep.subr.bf16.mxu0 0
  %3308 = vmatpush1.bf16.msra.mxu0 0
  %3309 = vmatprep.subr.bf16.mxu0 0
  %3310 = vmatpush1.bf16.msra.mxu0 0
  %3311 = vmatprep.subr.bf16.mxu0 0
  %3312 = vmatpush1.bf16.msra.mxu0 0
  %3313 = vmatprep.subr.bf16.mxu0 0
  %3314 = vmatpush1.bf16.msra.mxu0 0
  %3315 = vmatprep.subr.bf16.mxu0 0
  %3316 = vmatpush1.bf16.msra.mxu0 0
  %3317 = vmatprep.subr.bf16.mxu0 0
  %3318 = vmatpush1.bf16.msra.mxu0 0
  %3319 = vmatprep.subr.bf16.mxu0 0
  %3320 = vmatpush1.bf16.msra.mxu0 0
  %3321 = vmatprep.subr.bf16.mxu0 0
  %3322 = vmatpush1.bf16.msra.mxu0 0
  %3323 = vmatprep.subr.bf16.mxu0 0
  %3324 = vmatpush1.bf16.msra.mxu0 0
  %3325 = vmatprep.subr.bf16.mxu0 0
  %3326 = vmatpush1.bf16.msra.mxu0 0
  %3327 = vmatprep.subr.bf16.mxu0 0
  %3328 = vmatpush1.bf16.msra.mxu0 0
  %3329 = vmatprep.mubr.bf16.mxu0 0
  %3330 = vmatmul.mubr.bf16.gmra.mrb[0].mxu0 %v1639
  %v3331 = vpop.f32.mrb[0].mxu0
  %v3332 = vadd.f32 0.0, %v3331
  %v3333 = vpop.f32.mrb[0].mxu0
  %v3334 = vpop.f32.mrb[0].mxu0
  %v3335 = vadd.f32 0.0, %v3334
  %v3336 = vpop.f32.mrb[0].mxu0
  %3337 = vmatprep.mubr.bf16.mxu0 0
  %3338 = vmatmul.mubr.bf16.gmra.mrb[0].mxu0 %v1642
  %v3339 = vpop.f32.mrb[0].mxu0
  %v3340 = vadd.f32 0.0, %v3339
  %v3341 = vpop.f32.mrb[0].mxu0
  %v3342 = vpop.f32.mrb[0].mxu0
  %v3343 = vadd.f32 0.0, %v3342
  %v3344 = vpop.f32.mrb[0].mxu0
  %3345 = vmatprep.mubr.bf16.mxu0 0
  %3346 = vmatmul.mubr.bf16.gmra.mrb[0].mxu0 %v1645
  %v3347 = vpop.f32.mrb[0].mxu0
  %v3348 = vadd.f32 0.0, %v3347
  %v3349 = vpop.f32.mrb[0].mxu0
  %v3350 = vpop.f32.mrb[0].mxu0
  %v3351 = vadd.f32 0.0, %v3350
  %v3352 = vpop.f32.mrb[0].mxu0
  %3353 = vmatprep.mubr.bf16.mxu0 0
  %3354 = vmatmul.mubr.bf16.gmra.mrb[0].mxu0 %v1648
  %v3355 = vpop.f32.mrb[0].mxu0
  %v3356 = vadd.f32 0.0, %v3355
  %v3357 = vpop.f32.mrb[0].mxu0
  %v3358 = vpop.f32.mrb[0].mxu0
  %v3359 = vadd.f32 0.0, %v3358
  %v3360 = vpop.f32.mrb[0].mxu0
  %3361 = vmatprep.mubr.bf16.mxu0 0
  %3362 = vmatmul.mubr.bf16.gmra.mrb[0].mxu0 %v1651
  %v3363 = vpop.f32.mrb[0].mxu0
  %v3364 = vadd.f32 0.0, %v3363
  %v3365 = vpop.f32.mrb[0].mxu0
  %v3366 = vpop.f32.mrb[0].mxu0
  %v3367 = vadd.f32 0.0, %v3366
  %v3368 = vpop.f32.mrb[0].mxu0
  %3369 = vmatprep.mubr.bf16.mxu0 0
  %3370 = vmatmul.mubr.bf16.gmra.mrb[0].mxu0 %v1654
  %v3371 = vpop.f32.mrb[0].mxu0
  %v3372 = vadd.f32 0.0, %v3371
  %v3373 = vpop.f32.mrb[0].mxu0
  %v3374 = vpop.f32.mrb[0].mxu0
  %v3375 = vadd.f32 0.0, %v3374
  %v3376 = vpop.f32.mrb[0].mxu0
  %3377 = vmatprep.mubr.bf16.mxu0 0
  %3378 = vmatmul.mubr.bf16.gmra.mrb[0].mxu0 %v1657
  %v3379 = vpop.f32.mrb[0].mxu0
  %v3380 = vadd.f32 0.0, %v3379
  %v3381 = vpop.f32.mrb[0].mxu0
  %v3382 = vpop.f32.mrb[0].mxu0
  %v3383 = vpop.f32.mrb[0].mxu0
  %3384 = vdwg.mxu0
  %v3385 = vadd.f32 %v3284, %v3332
  %v3386 = vadd.f32 %v3285, %v3335
  %v3387 = vadd.f32 %v3286, %v3340
  %v3388 = vadd.f32 %v3287, %v3343
  %v3389 = vadd.f32 %v3288, %v3348
  %v3390 = vadd.f32 %v3289, %v3351
  %v3391 = vadd.f32 %v3290, %v3356
  %v3392 = vadd.f32 %v3291, %v3359
  %v3393 = vadd.f32 %v3292, %v3364
  %v3394 = vadd.f32 %v3293, %v3367
  %v3395 = vadd.f32 %v3294, %v3372
  %v3396 = vadd.f32 %v3295, %v3375
  %v3397 = vadd.f32 %v3296, %v3380
  %v3411 = vunpack.c.l.b16 %v183
  %v3412 = vunpack.c.l.b16 %v184
  %v3413 = vunpack.c.l.b16 %v185
  %v3414 = vunpack.c.l.b16 %v186
  %v3415 = vunpack.c.l.b16 %v187
  %v3416 = vunpack.c.l.b16 %v188
  %v3417 = vunpack.c.l.b16 %v189
  %v3418 = vunpack.c.l.b16 %v190
  %v3419 = vunpack.c.l.b16 %v191
  %v3420 = vunpack.c.l.b16 %v192
  %v3421 = vunpack.c.l.b16 %v193
  %v3422 = vunpack.c.l.b16 %v194
  %v3423 = vunpack.c.l.b16 %v195
  %v3424 = vpack.c.b16 %v3412, %v3411
  %v3425 = vpack.c.b16 %v3414, %v3413
  %v3426 = vpack.c.b16 %v3416, %v3415
  %v3427 = vpack.c.b16 %v3418, %v3417
  %v3428 = vpack.c.b16 %v3420, %v3419
  %v3429 = vpack.c.b16 %v3422, %v3421
  %v3430 = vpack.c.b16 %v3423, %v3423
  %v3432 = vsel %vm327, %v3424, 0
  %v3435 = vsel %vm327, %v3425, 0
  %v3438 = vsel %vm327, %v3426, 0
  %v3441 = vsel %vm327, %v3427, 0
  %v3444 = vsel %vm327, %v3428, 0
  %v3447 = vsel %vm327, %v3429, 0
  %v3450 = vsel %vm327, %v3430, 0
  %3452 = vmatprep.subr.bf16.mxu0 0
  %3453 = vmatpush1.bf16.msra.mxu0 %v1300
  %3454 = vmatprep.subr.bf16.mxu0 0
  %3455 = vmatpush1.bf16.msra.mxu0 %v1301
  %3456 = vmatprep.subr.bf16.mxu0 0
  %3457 = vmatpush1.bf16.msra.mxu0 0
  %3458 = vmatprep.subr.bf16.mxu0 0
  %3459 = vmatpush1.bf16.msra.mxu0 0
  %3460 = vmatprep.subr.bf16.mxu0 0
  %3461 = vmatpush1.bf16.msra.mxu0 0
  %3462 = vmatprep.subr.bf16.mxu0 0
  %3463 = vmatpush1.bf16.msra.mxu0 0
  %3464 = vmatprep.subr.bf16.mxu0 0
  %3465 = vmatpush1.bf16.msra.mxu0 0
  %3466 = vmatprep.subr.bf16.mxu0 0
  %3467 = vmatpush1.bf16.msra.mxu0 0
  %3468 = vmatprep.subr.bf16.mxu0 0
  %3469 = vmatpush1.bf16.msra.mxu0 0
  %3470 = vmatprep.subr.bf16.mxu0 0
  %3471 = vmatpush1.bf16.msra.mxu0 0
  %3472 = vmatprep.subr.bf16.mxu0 0
  %3473 = vmatpush1.bf16.msra.mxu0 0
  %3474 = vmatprep.subr.bf16.mxu0 0
  %3475 = vmatpush1.bf16.msra.mxu0 0
  %3476 = vmatprep.subr.bf16.mxu0 0
  %3477 = vmatpush1.bf16.msra.mxu0 0
  %3478 = vmatprep.subr.bf16.mxu0 0
  %3479 = vmatpush1.bf16.msra.mxu0 0
  %3480 = vmatprep.subr.bf16.mxu0 0
  %3481 = vmatpush1.bf16.msra.mxu0 0
  %3482 = vmatprep.subr.bf16.mxu0 0
  %3483 = vmatpush1.bf16.msra.mxu0 0
  %3484 = vmatprep.mubr.bf16.mxu0 0
  %3485 = vmatmul.mubr.bf16.gmra.mrb[0].mxu0 %v3432
  %v3486 = vpop.f32.mrb[0].mxu0
  %v3487 = vadd.f32 0.0, %v3486
  %v3488 = vpop.f32.mrb[0].mxu0
  %v3489 = vpop.f32.mrb[0].mxu0
  %v3490 = vadd.f32 0.0, %v3489
  %v3491 = vpop.f32.mrb[0].mxu0
  %3492 = vmatprep.mubr.bf16.mxu0 0
  %3493 = vmatmul.mubr.bf16.gmra.mrb[0].mxu0 %v3435
  %v3494 = vpop.f32.mrb[0].mxu0
  %v3495 = vadd.f32 0.0, %v3494
  %v3496 = vpop.f32.mrb[0].mxu0
  %v3497 = vpop.f32.mrb[0].mxu0
  %v3498 = vadd.f32 0.0, %v3497
  %v3499 = vpop.f32.mrb[0].mxu0
  %3500 = vmatprep.mubr.bf16.mxu0 0
  %3501 = vmatmul.mubr.bf16.gmra.mrb[0].mxu0 %v3438
  %v3502 = vpop.f32.mrb[0].mxu0
  %v3503 = vadd.f32 0.0, %v3502
  %v3504 = vpop.f32.mrb[0].mxu0
  %v3505 = vpop.f32.mrb[0].mxu0
  %v3506 = vadd.f32 0.0, %v3505
  %v3507 = vpop.f32.mrb[0].mxu0
  %3508 = vmatprep.mubr.bf16.mxu0 0
  %3509 = vmatmul.mubr.bf16.gmra.mrb[0].mxu0 %v3441
  %v3510 = vpop.f32.mrb[0].mxu0
  %v3511 = vadd.f32 0.0, %v3510
  %v3512 = vpop.f32.mrb[0].mxu0
  %v3513 = vpop.f32.mrb[0].mxu0
  %v3514 = vadd.f32 0.0, %v3513
  %v3515 = vpop.f32.mrb[0].mxu0
  %3516 = vmatprep.mubr.bf16.mxu0 0
  %3517 = vmatmul.mubr.bf16.gmra.mrb[0].mxu0 %v3444
  %v3518 = vpop.f32.mrb[0].mxu0
  %v3519 = vadd.f32 0.0, %v3518
  %v3520 = vpop.f32.mrb[0].mxu0
  %v3521 = vpop.f32.mrb[0].mxu0
  %v3522 = vadd.f32 0.0, %v3521
  %v3523 = vpop.f32.mrb[0].mxu0
  %3524 = vmatprep.mubr.bf16.mxu0 0
  %3525 = vmatmul.mubr.bf16.gmra.mrb[0].mxu0 %v3447
  %v3526 = vpop.f32.mrb[0].mxu0
  %v3527 = vadd.f32 0.0, %v3526
  %v3528 = vpop.f32.mrb[0].mxu0
  %v3529 = vpop.f32.mrb[0].mxu0
  %v3530 = vadd.f32 0.0, %v3529
  %v3531 = vpop.f32.mrb[0].mxu0
  %3532 = vmatprep.mubr.bf16.mxu0 0
  %3533 = vmatmul.mubr.bf16.gmra.mrb[0].mxu0 %v3450
  %v3534 = vpop.f32.mrb[0].mxu0
  %v3535 = vadd.f32 0.0, %v3534
  %v3536 = vpop.f32.mrb[0].mxu0
  %v3537 = vpop.f32.mrb[0].mxu0
  %v3538 = vpop.f32.mrb[0].mxu0
  %3539 = vdwg.mxu0
  %v3540 = vadd.f32 %v3385, %v3487
  %v3541 = vadd.f32 %v3386, %v3490
  %v3542 = vadd.f32 %v3387, %v3495
  %v3543 = vadd.f32 %v3388, %v3498
  %v3544 = vadd.f32 %v3389, %v3503
  %v3545 = vadd.f32 %v3390, %v3506
  %v3546 = vadd.f32 %v3391, %v3511
  %v3547 = vadd.f32 %v3392, %v3514
  %v3548 = vadd.f32 %v3393, %v3519
  %v3549 = vadd.f32 %v3394, %v3522
  %v3550 = vadd.f32 %v3395, %v3527
  %v3551 = vadd.f32 %v3396, %v3530
  %v3552 = vadd.f32 %v3397, %v3535
  %v3566 = vunpack.c.l.b16 %v197
  %v3567 = vunpack.c.l.b16 %v198
  %v3568 = vunpack.c.l.b16 %v199
  %v3569 = vunpack.c.l.b16 %v200
  %v3570 = vunpack.c.l.b16 %v201
  %v3571 = vunpack.c.l.b16 %v202
  %v3572 = vunpack.c.l.b16 %v203
  %v3573 = vunpack.c.l.b16 %v204
  %v3574 = vunpack.c.l.b16 %v205
  %v3575 = vunpack.c.l.b16 %v206
  %v3576 = vunpack.c.l.b16 %v207
  %v3577 = vunpack.c.l.b16 %v208
  %v3578 = vunpack.c.l.b16 %v209
  %v3579 = vpack.c.b16 %v3567, %v3566
  %v3580 = vpack.c.b16 %v3569, %v3568
  %v3581 = vpack.c.b16 %v3571, %v3570
  %v3582 = vpack.c.b16 %v3573, %v3572
  %v3583 = vpack.c.b16 %v3575, %v3574
  %v3584 = vpack.c.b16 %v3577, %v3576
  %v3585 = vpack.c.b16 %v3578, %v3578
  %v3587 = vsel %vm327, %v3579, 0
  %v3590 = vsel %vm327, %v3580, 0
  %v3593 = vsel %vm327, %v3581, 0
  %v3596 = vsel %vm327, %v3582, 0
  %v3599 = vsel %vm327, %v3583, 0
  %v3602 = vsel %vm327, %v3584, 0
  %v3605 = vsel %vm327, %v3585, 0
  %3607 = vmatprep.subr.bf16.mxu0 0
  %3608 = vmatpush1.bf16.msra.mxu0 %v1467
  %3609 = vmatprep.subr.bf16.mxu0 0
  %3610 = vmatpush1.bf16.msra.mxu0 %v1468
  %3611 = vmatprep.subr.bf16.mxu0 0
  %3612 = vmatpush1.bf16.msra.mxu0 0
  %3613 = vmatprep.subr.bf16.mxu0 0
  %3614 = vmatpush1.bf16.msra.mxu0 0
  %3615 = vmatprep.subr.bf16.mxu0 0
  %3616 = vmatpush1.bf16.msra.mxu0 0
  %3617 = vmatprep.subr.bf16.mxu0 0
  %3618 = vmatpush1.bf16.msra.mxu0 0
  %3619 = vmatprep.subr.bf16.mxu0 0
  %3620 = vmatpush1.bf16.msra.mxu0 0
  %3621 = vmatprep.subr.bf16.mxu0 0
  %3622 = vmatpush1.bf16.msra.mxu0 0
  %3623 = vmatprep.subr.bf16.mxu0 0
  %3624 = vmatpush1.bf16.msra.mxu0 0
  %3625 = vmatprep.subr.bf16.mxu0 0
  %3626 = vmatpush1.bf16.msra.mxu0 0
  %3627 = vmatprep.subr.bf16.mxu0 0
  %3628 = vmatpush1.bf16.msra.mxu0 0
  %3629 = vmatprep.subr.bf16.mxu0 0
  %3630 = vmatpush1.bf16.msra.mxu0 0
  %3631 = vmatprep.subr.bf16.mxu0 0
  %3632 = vmatpush1.bf16.msra.mxu0 0
  %3633 = vmatprep.subr.bf16.mxu0 0
  %3634 = vmatpush1.bf16.msra.mxu0 0
  %3635 = vmatprep.subr.bf16.mxu0 0
  %3636 = vmatpush1.bf16.msra.mxu0 0
  %3637 = vmatprep.subr.bf16.mxu0 0
  %3638 = vmatpush1.bf16.msra.mxu0 0
  %3639 = vmatprep.mubr.bf16.mxu0 0
  %3640 = vmatmul.mubr.bf16.gmra.mrb[0].mxu0 %v3587
  %v3641 = vpop.f32.mrb[0].mxu0
  %v3642 = vadd.f32 0.0, %v3641
  %v3643 = vpop.f32.mrb[0].mxu0
  %v3644 = vpop.f32.mrb[0].mxu0
  %v3645 = vadd.f32 0.0, %v3644
  %v3646 = vpop.f32.mrb[0].mxu0
  %3647 = vmatprep.mubr.bf16.mxu0 0
  %3648 = vmatmul.mubr.bf16.gmra.mrb[0].mxu0 %v3590
  %v3649 = vpop.f32.mrb[0].mxu0
  %v3650 = vadd.f32 0.0, %v3649
  %v3651 = vpop.f32.mrb[0].mxu0
  %v3652 = vpop.f32.mrb[0].mxu0
  %v3653 = vadd.f32 0.0, %v3652
  %v3654 = vpop.f32.mrb[0].mxu0
  %3655 = vmatprep.mubr.bf16.mxu0 0
  %3656 = vmatmul.mubr.bf16.gmra.mrb[0].mxu0 %v3593
  %v3657 = vpop.f32.mrb[0].mxu0
  %v3658 = vadd.f32 0.0, %v3657
  %v3659 = vpop.f32.mrb[0].mxu0
  %v3660 = vpop.f32.mrb[0].mxu0
  %v3661 = vadd.f32 0.0, %v3660
  %v3662 = vpop.f32.mrb[0].mxu0
  %3663 = vmatprep.mubr.bf16.mxu0 0
  %3664 = vmatmul.mubr.bf16.gmra.mrb[0].mxu0 %v3596
  %v3665 = vpop.f32.mrb[0].mxu0
  %v3666 = vadd.f32 0.0, %v3665
  %v3667 = vpop.f32.mrb[0].mxu0
  %v3668 = vpop.f32.mrb[0].mxu0
  %v3669 = vadd.f32 0.0, %v3668
  %v3670 = vpop.f32.mrb[0].mxu0
  %3671 = vmatprep.mubr.bf16.mxu0 0
  %3672 = vmatmul.mubr.bf16.gmra.mrb[0].mxu0 %v3599
  %v3673 = vpop.f32.mrb[0].mxu0
  %v3674 = vadd.f32 0.0, %v3673
  %v3675 = vpop.f32.mrb[0].mxu0
  %v3676 = vpop.f32.mrb[0].mxu0
  %v3677 = vadd.f32 0.0, %v3676
  %v3678 = vpop.f32.mrb[0].mxu0
  %3679 = vmatprep.mubr.bf16.mxu0 0
  %3680 = vmatmul.mubr.bf16.gmra.mrb[0].mxu0 %v3602
  %v3681 = vpop.f32.mrb[0].mxu0
  %v3682 = vadd.f32 0.0, %v3681
  %v3683 = vpop.f32.mrb[0].mxu0
  %v3684 = vpop.f32.mrb[0].mxu0
  %v3685 = vadd.f32 0.0, %v3684
  %v3686 = vpop.f32.mrb[0].mxu0
  %3687 = vmatprep.mubr.bf16.mxu0 0
  %3688 = vmatmul.mubr.bf16.gmra.mrb[0].mxu0 %v3605
  %v3689 = vpop.f32.mrb[0].mxu0
  %v3690 = vadd.f32 0.0, %v3689
  %v3691 = vpop.f32.mrb[0].mxu0
  %v3692 = vpop.f32.mrb[0].mxu0
  %v3693 = vpop.f32.mrb[0].mxu0
  %3694 = vdwg.mxu0
  %v3695 = vadd.f32 %v3540, %v3642
  %v3696 = vadd.f32 %v3541, %v3645
  %v3697 = vadd.f32 %v3542, %v3650
  %v3698 = vadd.f32 %v3543, %v3653
  %v3699 = vadd.f32 %v3544, %v3658
  %v3700 = vadd.f32 %v3545, %v3661
  %v3701 = vadd.f32 %v3546, %v3666
  %v3702 = vadd.f32 %v3547, %v3669
  %v3703 = vadd.f32 %v3548, %v3674
  %v3704 = vadd.f32 %v3549, %v3677
  %v3705 = vadd.f32 %v3550, %v3682
  %v3706 = vadd.f32 %v3551, %v3685
  %v3707 = vadd.f32 %v3552, %v3690
  %v3721 = vunpack.c.l.b16 %v211
  %v3722 = vunpack.c.l.b16 %v212
  %v3723 = vunpack.c.l.b16 %v213
  %v3724 = vunpack.c.l.b16 %v214
  %v3725 = vunpack.c.l.b16 %v215
  %v3726 = vunpack.c.l.b16 %v216
  %v3727 = vunpack.c.l.b16 %v217
  %v3728 = vunpack.c.l.b16 %v218
  %v3729 = vunpack.c.l.b16 %v219
  %v3730 = vunpack.c.l.b16 %v220
  %v3731 = vunpack.c.l.b16 %v221
  %v3732 = vunpack.c.l.b16 %v222
  %v3733 = vunpack.c.l.b16 %v223
  %v3734 = vpack.c.b16 %v3722, %v3721
  %v3735 = vpack.c.b16 %v3724, %v3723
  %v3736 = vpack.c.b16 %v3726, %v3725
  %v3737 = vpack.c.b16 %v3728, %v3727
  %v3738 = vpack.c.b16 %v3730, %v3729
  %v3739 = vpack.c.b16 %v3732, %v3731
  %v3740 = vpack.c.b16 %v3733, %v3733
  %v3742 = vsel %vm327, %v3734, 0
  %v3745 = vsel %vm327, %v3735, 0
  %v3748 = vsel %vm327, %v3736, 0
  %v3751 = vsel %vm327, %v3737, 0
  %v3754 = vsel %vm327, %v3738, 0
  %v3757 = vsel %vm327, %v3739, 0
  %v3760 = vsel %vm327, %v3740, 0
  %3762 = vmatprep.subr.bf16.mxu0 0
  %3763 = vmatpush1.bf16.msra.mxu0 %v1634
  %3764 = vmatprep.subr.bf16.mxu0 0
  %3765 = vmatpush1.bf16.msra.mxu0 %v1635
  %3766 = vmatprep.subr.bf16.mxu0 0
  %3767 = vmatpush1.bf16.msra.mxu0 0
  %3768 = vmatprep.subr.bf16.mxu0 0
  %3769 = vmatpush1.bf16.msra.mxu0 0
  %3770 = vmatprep.subr.bf16.mxu0 0
  %3771 = vmatpush1.bf16.msra.mxu0 0
  %3772 = vmatprep.subr.bf16.mxu0 0
  %3773 = vmatpush1.bf16.msra.mxu0 0
  %3774 = vmatprep.subr.bf16.mxu0 0
  %3775 = vmatpush1.bf16.msra.mxu0 0
  %3776 = vmatprep.subr.bf16.mxu0 0
  %3777 = vmatpush1.bf16.msra.mxu0 0
  %3778 = vmatprep.subr.bf16.mxu0 0
  %3779 = vmatpush1.bf16.msra.mxu0 0
  %3780 = vmatprep.subr.bf16.mxu0 0
  %3781 = vmatpush1.bf16.msra.mxu0 0
  %3782 = vmatprep.subr.bf16.mxu0 0
  %3783 = vmatpush1.bf16.msra.mxu0 0
  %3784 = vmatprep.subr.bf16.mxu0 0
  %3785 = vmatpush1.bf16.msra.mxu0 0
  %3786 = vmatprep.subr.bf16.mxu0 0
  %3787 = vmatpush1.bf16.msra.mxu0 0
  %3788 = vmatprep.subr.bf16.mxu0 0
  %3789 = vmatpush1.bf16.msra.mxu0 0
  %3790 = vmatprep.subr.bf16.mxu0 0
  %3791 = vmatpush1.bf16.msra.mxu0 0
  %3792 = vmatprep.subr.bf16.mxu0 0
  %3793 = vmatpush1.bf16.msra.mxu0 0
  %3794 = vmatprep.mubr.bf16.mxu0 0
  %3795 = vmatmul.mubr.bf16.gmra.mrb[0].mxu0 %v3742
  %v3796 = vpop.f32.mrb[0].mxu0
  %v3797 = vadd.f32 0.0, %v3796
  %v3798 = vpop.f32.mrb[0].mxu0
  %v3799 = vpop.f32.mrb[0].mxu0
  %v3800 = vadd.f32 0.0, %v3799
  %v3801 = vpop.f32.mrb[0].mxu0
  %3802 = vmatprep.mubr.bf16.mxu0 0
  %3803 = vmatmul.mubr.bf16.gmra.mrb[0].mxu0 %v3745
  %v3804 = vpop.f32.mrb[0].mxu0
  %v3805 = vadd.f32 0.0, %v3804
  %v3806 = vpop.f32.mrb[0].mxu0
  %v3807 = vpop.f32.mrb[0].mxu0
  %v3808 = vadd.f32 0.0, %v3807
  %v3809 = vpop.f32.mrb[0].mxu0
  %3810 = vmatprep.mubr.bf16.mxu0 0
  %3811 = vmatmul.mubr.bf16.gmra.mrb[0].mxu0 %v3748
  %v3812 = vpop.f32.mrb[0].mxu0
  %v3813 = vadd.f32 0.0, %v3812
  %v3814 = vpop.f32.mrb[0].mxu0
  %v3815 = vpop.f32.mrb[0].mxu0
  %v3816 = vadd.f32 0.0, %v3815
  %v3817 = vpop.f32.mrb[0].mxu0
  %3818 = vmatprep.mubr.bf16.mxu0 0
  %3819 = vmatmul.mubr.bf16.gmra.mrb[0].mxu0 %v3751
  %v3820 = vpop.f32.mrb[0].mxu0
  %v3821 = vadd.f32 0.0, %v3820
  %v3822 = vpop.f32.mrb[0].mxu0
  %v3823 = vpop.f32.mrb[0].mxu0
  %v3824 = vadd.f32 0.0, %v3823
  %v3825 = vpop.f32.mrb[0].mxu0
  %3826 = vmatprep.mubr.bf16.mxu0 0
  %3827 = vmatmul.mubr.bf16.gmra.mrb[0].mxu0 %v3754
  %v3828 = vpop.f32.mrb[0].mxu0
  %v3829 = vadd.f32 0.0, %v3828
  %v3830 = vpop.f32.mrb[0].mxu0
  %v3831 = vpop.f32.mrb[0].mxu0
  %v3832 = vadd.f32 0.0, %v3831
  %v3833 = vpop.f32.mrb[0].mxu0
  %3834 = vmatprep.mubr.bf16.mxu0 0
  %3835 = vmatmul.mubr.bf16.gmra.mrb[0].mxu0 %v3757
  %v3836 = vpop.f32.mrb[0].mxu0
  %v3837 = vadd.f32 0.0, %v3836
  %v3838 = vpop.f32.mrb[0].mxu0
  %v3839 = vpop.f32.mrb[0].mxu0
  %v3840 = vadd.f32 0.0, %v3839
  %v3841 = vpop.f32.mrb[0].mxu0
  %3842 = vmatprep.mubr.bf16.mxu0 0
  %3843 = vmatmul.mubr.bf16.gmra.mrb[0].mxu0 %v3760
  %v3844 = vpop.f32.mrb[0].mxu0
  %v3845 = vadd.f32 0.0, %v3844
  %v3846 = vpop.f32.mrb[0].mxu0
  %v3847 = vpop.f32.mrb[0].mxu0
  %v3848 = vpop.f32.mrb[0].mxu0
  %3849 = vdwg.mxu0
  %v3850 = vadd.f32 %v3695, %v3797
  %v3851 = vadd.f32 %v3696, %v3800
  %v3852 = vadd.f32 %v3697, %v3805
  %v3853 = vadd.f32 %v3698, %v3808
  %v3854 = vadd.f32 %v3699, %v3813
  %v3855 = vadd.f32 %v3700, %v3816
  %v3856 = vadd.f32 %v3701, %v3821
  %v3857 = vadd.f32 %v3702, %v3824
  %v3858 = vadd.f32 %v3703, %v3829
  %v3859 = vadd.f32 %v3704, %v3832
  %v3860 = vadd.f32 %v3705, %v3837
  %v3861 = vadd.f32 %v3706, %v3840
  %v3862 = vadd.f32 %v3707, %v3845
  %v3863 = vmax.f32 %v2805, %v3850
  %v3864 = vmax.f32 %v2806, %v3851
  %v3865 = vmax.f32 %v2807, %v3852
  %v3866 = vmax.f32 %v2808, %v3853
  %v3867 = vmax.f32 %v2809, %v3854
  %v3868 = vmax.f32 %v2810, %v3855
  %v3869 = vmax.f32 %v2811, %v3856
  %v3870 = vmax.f32 %v2812, %v3857
  %v3871 = vmax.f32 %v2813, %v3858
  %v3872 = vmax.f32 %v2814, %v3859
  %v3873 = vmax.f32 %v2815, %v3860
  %v3874 = vmax.f32 %v2816, %v3861
  %v3875 = vmax.f32 %v2817, %v3862
  %3876 = vmatprep.subr.bf16.mxu0 0
  %3877 = vmatpush1.bf16.msra.mxu0 %v323
  %3878 = vmatprep.subr.bf16.mxu0 0
  %3879 = vmatpush1.bf16.msra.mxu0 %v324
  %3880 = vmatprep.subr.bf16.mxu0 0
  %3881 = vmatpush1.bf16.msra.mxu0 0
  %3882 = vmatprep.subr.bf16.mxu0 0
  %3883 = vmatpush1.bf16.msra.mxu0 0
  %3884 = vmatprep.subr.bf16.mxu0 0
  %3885 = vmatpush1.bf16.msra.mxu0 0
  %3886 = vmatprep.subr.bf16.mxu0 0
  %3887 = vmatpush1.bf16.msra.mxu0 0
  %3888 = vmatprep.subr.bf16.mxu0 0
  %3889 = vmatpush1.bf16.msra.mxu0 0
  %3890 = vmatprep.subr.bf16.mxu0 0
  %3891 = vmatpush1.bf16.msra.mxu0 0
  %3892 = vmatprep.subr.bf16.mxu0 0
  %3893 = vmatpush1.bf16.msra.mxu0 0
  %3894 = vmatprep.subr.bf16.mxu0 0
  %3895 = vmatpush1.bf16.msra.mxu0 0
  %3896 = vmatprep.subr.bf16.mxu0 0
  %3897 = vmatpush1.bf16.msra.mxu0 0
  %3898 = vmatprep.subr.bf16.mxu0 0
  %3899 = vmatpush1.bf16.msra.mxu0 0
  %3900 = vmatprep.subr.bf16.mxu0 0
  %3901 = vmatpush1.bf16.msra.mxu0 0
  %3902 = vmatprep.subr.bf16.mxu0 0
  %3903 = vmatpush1.bf16.msra.mxu0 0
  %3904 = vmatprep.subr.bf16.mxu0 0
  %3905 = vmatpush1.bf16.msra.mxu0 0
  %3906 = vmatprep.subr.bf16.mxu0 0
  %3907 = vmatpush1.bf16.msra.mxu0 0
  %3908 = vmatprep.mubr.bf16.mxu0 0
  %3909 = vmatmul.mubr.bf16.gmra.mrb[0].mxu0 %v1138
  %v3910 = vpop.f32.mrb[0].mxu0
  %v3911 = vadd.f32 0.0, %v3910
  %v3912 = vpop.f32.mrb[0].mxu0
  %v3913 = vpop.f32.mrb[0].mxu0
  %v3914 = vadd.f32 0.0, %v3913
  %v3915 = vpop.f32.mrb[0].mxu0
  %3916 = vmatprep.mubr.bf16.mxu0 0
  %3917 = vmatmul.mubr.bf16.gmra.mrb[0].mxu0 %v1141
  %v3918 = vpop.f32.mrb[0].mxu0
  %v3919 = vadd.f32 0.0, %v3918
  %v3920 = vpop.f32.mrb[0].mxu0
  %v3921 = vpop.f32.mrb[0].mxu0
  %v3922 = vadd.f32 0.0, %v3921
  %v3923 = vpop.f32.mrb[0].mxu0
  %3924 = vmatprep.mubr.bf16.mxu0 0
  %3925 = vmatmul.mubr.bf16.gmra.mrb[0].mxu0 %v1144
  %v3926 = vpop.f32.mrb[0].mxu0
  %v3927 = vadd.f32 0.0, %v3926
  %v3928 = vpop.f32.mrb[0].mxu0
  %v3929 = vpop.f32.mrb[0].mxu0
  %v3930 = vadd.f32 0.0, %v3929
  %v3931 = vpop.f32.mrb[0].mxu0
  %3932 = vmatprep.mubr.bf16.mxu0 0
  %3933 = vmatmul.mubr.bf16.gmra.mrb[0].mxu0 %v1147
  %v3934 = vpop.f32.mrb[0].mxu0
  %v3935 = vadd.f32 0.0, %v3934
  %v3936 = vpop.f32.mrb[0].mxu0
  %v3937 = vpop.f32.mrb[0].mxu0
  %v3938 = vadd.f32 0.0, %v3937
  %v3939 = vpop.f32.mrb[0].mxu0
  %3940 = vmatprep.mubr.bf16.mxu0 0
  %3941 = vmatmul.mubr.bf16.gmra.mrb[0].mxu0 %v1150
  %v3942 = vpop.f32.mrb[0].mxu0
  %v3943 = vadd.f32 0.0, %v3942
  %v3944 = vpop.f32.mrb[0].mxu0
  %v3945 = vpop.f32.mrb[0].mxu0
  %v3946 = vadd.f32 0.0, %v3945
  %v3947 = vpop.f32.mrb[0].mxu0
  %3948 = vmatprep.mubr.bf16.mxu0 0
  %3949 = vmatmul.mubr.bf16.gmra.mrb[0].mxu0 %v1153
  %v3950 = vpop.f32.mrb[0].mxu0
  %v3951 = vadd.f32 0.0, %v3950
  %v3952 = vpop.f32.mrb[0].mxu0
  %v3953 = vpop.f32.mrb[0].mxu0
  %v3954 = vadd.f32 0.0, %v3953
  %v3955 = vpop.f32.mrb[0].mxu0
  %3956 = vmatprep.mubr.bf16.mxu0 0
  %3957 = vmatmul.mubr.bf16.gmra.mrb[0].mxu0 %v1156
  %v3958 = vpop.f32.mrb[0].mxu0
  %v3959 = vadd.f32 0.0, %v3958
  %v3960 = vpop.f32.mrb[0].mxu0
  %v3961 = vpop.f32.mrb[0].mxu0
  %v3962 = vpop.f32.mrb[0].mxu0
  %3963 = vdwg.mxu0
  %3964 = vmatprep.subr.bf16.mxu0 0
  %3965 = vmatpush1.bf16.msra.mxu0 %v478
  %3966 = vmatprep.subr.bf16.mxu0 0
  %3967 = vmatpush1.bf16.msra.mxu0 %v479
  %3968 = vmatprep.subr.bf16.mxu0 0
  %3969 = vmatpush1.bf16.msra.mxu0 0
  %3970 = vmatprep.subr.bf16.mxu0 0
  %3971 = vmatpush1.bf16.msra.mxu0 0
  %3972 = vmatprep.subr.bf16.mxu0 0
  %3973 = vmatpush1.bf16.msra.mxu0 0
  %3974 = vmatprep.subr.bf16.mxu0 0
  %3975 = vmatpush1.bf16.msra.mxu0 0
  %3976 = vmatprep.subr.bf16.mxu0 0
  %3977 = vmatpush1.bf16.msra.mxu0 0
  %3978 = vmatprep.subr.bf16.mxu0 0
  %3979 = vmatpush1.bf16.msra.mxu0 0
  %3980 = vmatprep.subr.bf16.mxu0 0
  %3981 = vmatpush1.bf16.msra.mxu0 0
  %3982 = vmatprep.subr.bf16.mxu0 0
  %3983 = vmatpush1.bf16.msra.mxu0 0
  %3984 = vmatprep.subr.bf16.mxu0 0
  %3985 = vmatpush1.bf16.msra.mxu0 0
  %3986 = vmatprep.subr.bf16.mxu0 0
  %3987 = vmatpush1.bf16.msra.mxu0 0
  %3988 = vmatprep.subr.bf16.mxu0 0
  %3989 = vmatpush1.bf16.msra.mxu0 0
  %3990 = vmatprep.subr.bf16.mxu0 0
  %3991 = vmatpush1.bf16.msra.mxu0 0
  %3992 = vmatprep.subr.bf16.mxu0 0
  %3993 = vmatpush1.bf16.msra.mxu0 0
  %3994 = vmatprep.subr.bf16.mxu0 0
  %3995 = vmatpush1.bf16.msra.mxu0 0
  %3996 = vmatprep.mubr.bf16.mxu0 0
  %3997 = vmatmul.mubr.bf16.gmra.mrb[0].mxu0 %v971
  %v3998 = vpop.f32.mrb[0].mxu0
  %v3999 = vadd.f32 %v3911, %v3998
  %v4000 = vpop.f32.mrb[0].mxu0
  %v4001 = vpop.f32.mrb[0].mxu0
  %v4002 = vadd.f32 %v3914, %v4001
  %v4003 = vpop.f32.mrb[0].mxu0
  %4004 = vmatprep.mubr.bf16.mxu0 0
  %4005 = vmatmul.mubr.bf16.gmra.mrb[0].mxu0 %v974
  %v4006 = vpop.f32.mrb[0].mxu0
  %v4007 = vadd.f32 %v3919, %v4006
  %v4008 = vpop.f32.mrb[0].mxu0
  %v4009 = vpop.f32.mrb[0].mxu0
  %v4010 = vadd.f32 %v3922, %v4009
  %v4011 = vpop.f32.mrb[0].mxu0
  %4012 = vmatprep.mubr.bf16.mxu0 0
  %4013 = vmatmul.mubr.bf16.gmra.mrb[0].mxu0 %v977
  %v4014 = vpop.f32.mrb[0].mxu0
  %v4015 = vadd.f32 %v3927, %v4014
  %v4016 = vpop.f32.mrb[0].mxu0
  %v4017 = vpop.f32.mrb[0].mxu0
  %v4018 = vadd.f32 %v3930, %v4017
  %v4019 = vpop.f32.mrb[0].mxu0
  %4020 = vmatprep.mubr.bf16.mxu0 0
  %4021 = vmatmul.mubr.bf16.gmra.mrb[0].mxu0 %v980
  %v4022 = vpop.f32.mrb[0].mxu0
  %v4023 = vadd.f32 %v3935, %v4022
  %v4024 = vpop.f32.mrb[0].mxu0
  %v4025 = vpop.f32.mrb[0].mxu0
  %v4026 = vadd.f32 %v3938, %v4025
  %v4027 = vpop.f32.mrb[0].mxu0
  %4028 = vmatprep.mubr.bf16.mxu0 0
  %4029 = vmatmul.mubr.bf16.gmra.mrb[0].mxu0 %v983
  %v4030 = vpop.f32.mrb[0].mxu0
  %v4031 = vadd.f32 %v3943, %v4030
  %v4032 = vpop.f32.mrb[0].mxu0
  %v4033 = vpop.f32.mrb[0].mxu0
  %v4034 = vadd.f32 %v3946, %v4033
  %v4035 = vpop.f32.mrb[0].mxu0
  %4036 = vmatprep.mubr.bf16.mxu0 0
  %4037 = vmatmul.mubr.bf16.gmra.mrb[0].mxu0 %v986
  %v4038 = vpop.f32.mrb[0].mxu0
  %v4039 = vadd.f32 %v3951, %v4038
  %v4040 = vpop.f32.mrb[0].mxu0
  %v4041 = vpop.f32.mrb[0].mxu0
  %v4042 = vadd.f32 %v3954, %v4041
  %v4043 = vpop.f32.mrb[0].mxu0
  %4044 = vmatprep.mubr.bf16.mxu0 0
  %4045 = vmatmul.mubr.bf16.gmra.mrb[0].mxu0 %v989
  %v4046 = vpop.f32.mrb[0].mxu0
  %v4047 = vadd.f32 %v3959, %v4046
  %v4048 = vpop.f32.mrb[0].mxu0
  %v4049 = vpop.f32.mrb[0].mxu0
  %v4050 = vpop.f32.mrb[0].mxu0
  %4051 = vdwg.mxu0
  %4052 = vmatprep.subr.bf16.mxu0 0
  %4053 = vmatpush1.bf16.msra.mxu0 %v632
  %4054 = vmatprep.subr.bf16.mxu0 0
  %4055 = vmatpush1.bf16.msra.mxu0 %v633
  %4056 = vmatprep.subr.bf16.mxu0 0
  %4057 = vmatpush1.bf16.msra.mxu0 0
  %4058 = vmatprep.subr.bf16.mxu0 0
  %4059 = vmatpush1.bf16.msra.mxu0 0
  %4060 = vmatprep.subr.bf16.mxu0 0
  %4061 = vmatpush1.bf16.msra.mxu0 0
  %4062 = vmatprep.subr.bf16.mxu0 0
  %4063 = vmatpush1.bf16.msra.mxu0 0
  %4064 = vmatprep.subr.bf16.mxu0 0
  %4065 = vmatpush1.bf16.msra.mxu0 0
  %4066 = vmatprep.subr.bf16.mxu0 0
  %4067 = vmatpush1.bf16.msra.mxu0 0
  %4068 = vmatprep.subr.bf16.mxu0 0
  %4069 = vmatpush1.bf16.msra.mxu0 0
  %4070 = vmatprep.subr.bf16.mxu0 0
  %4071 = vmatpush1.bf16.msra.mxu0 0
  %4072 = vmatprep.subr.bf16.mxu0 0
  %4073 = vmatpush1.bf16.msra.mxu0 0
  %4074 = vmatprep.subr.bf16.mxu0 0
  %4075 = vmatpush1.bf16.msra.mxu0 0
  %4076 = vmatprep.subr.bf16.mxu0 0
  %4077 = vmatpush1.bf16.msra.mxu0 0
  %4078 = vmatprep.subr.bf16.mxu0 0
  %4079 = vmatpush1.bf16.msra.mxu0 0
  %4080 = vmatprep.subr.bf16.mxu0 0
  %4081 = vmatpush1.bf16.msra.mxu0 0
  %4082 = vmatprep.subr.bf16.mxu0 0
  %4083 = vmatpush1.bf16.msra.mxu0 0
  %4084 = vmatprep.mubr.bf16.mxu0 0
  %4085 = vmatmul.mubr.bf16.gmra.mrb[0].mxu0 %v2327
  %v4086 = vpop.f32.mrb[0].mxu0
  %v4087 = vadd.f32 0.0, %v4086
  %v4088 = vpop.f32.mrb[0].mxu0
  %v4089 = vpop.f32.mrb[0].mxu0
  %v4090 = vadd.f32 0.0, %v4089
  %v4091 = vpop.f32.mrb[0].mxu0
  %4092 = vmatprep.mubr.bf16.mxu0 0
  %4093 = vmatmul.mubr.bf16.gmra.mrb[0].mxu0 %v2330
  %v4094 = vpop.f32.mrb[0].mxu0
  %v4095 = vadd.f32 0.0, %v4094
  %v4096 = vpop.f32.mrb[0].mxu0
  %v4097 = vpop.f32.mrb[0].mxu0
  %v4098 = vadd.f32 0.0, %v4097
  %v4099 = vpop.f32.mrb[0].mxu0
  %4100 = vmatprep.mubr.bf16.mxu0 0
  %4101 = vmatmul.mubr.bf16.gmra.mrb[0].mxu0 %v2333
  %v4102 = vpop.f32.mrb[0].mxu0
  %v4103 = vadd.f32 0.0, %v4102
  %v4104 = vpop.f32.mrb[0].mxu0
  %v4105 = vpop.f32.mrb[0].mxu0
  %v4106 = vadd.f32 0.0, %v4105
  %v4107 = vpop.f32.mrb[0].mxu0
  %4108 = vmatprep.mubr.bf16.mxu0 0
  %4109 = vmatmul.mubr.bf16.gmra.mrb[0].mxu0 %v2336
  %v4110 = vpop.f32.mrb[0].mxu0
  %v4111 = vadd.f32 0.0, %v4110
  %v4112 = vpop.f32.mrb[0].mxu0
  %v4113 = vpop.f32.mrb[0].mxu0
  %v4114 = vadd.f32 0.0, %v4113
  %v4115 = vpop.f32.mrb[0].mxu0
  %4116 = vmatprep.mubr.bf16.mxu0 0
  %4117 = vmatmul.mubr.bf16.gmra.mrb[0].mxu0 %v2339
  %v4118 = vpop.f32.mrb[0].mxu0
  %v4119 = vadd.f32 0.0, %v4118
  %v4120 = vpop.f32.mrb[0].mxu0
  %v4121 = vpop.f32.mrb[0].mxu0
  %v4122 = vadd.f32 0.0, %v4121
  %v4123 = vpop.f32.mrb[0].mxu0
  %4124 = vmatprep.mubr.bf16.mxu0 0
  %4125 = vmatmul.mubr.bf16.gmra.mrb[0].mxu0 %v2342
  %v4126 = vpop.f32.mrb[0].mxu0
  %v4127 = vadd.f32 0.0, %v4126
  %v4128 = vpop.f32.mrb[0].mxu0
  %v4129 = vpop.f32.mrb[0].mxu0
  %v4130 = vadd.f32 0.0, %v4129
  %v4131 = vpop.f32.mrb[0].mxu0
  %4132 = vmatprep.mubr.bf16.mxu0 0
  %4133 = vmatmul.mubr.bf16.gmra.mrb[0].mxu0 %v2345
  %v4134 = vpop.f32.mrb[0].mxu0
  %v4135 = vadd.f32 0.0, %v4134
  %v4136 = vpop.f32.mrb[0].mxu0
  %v4137 = vpop.f32.mrb[0].mxu0
  %v4138 = vpop.f32.mrb[0].mxu0
  %4139 = vdwg.mxu0
  %v4140 = vadd.f32 %v3999, %v4087
  %v4141 = vadd.f32 %v4002, %v4090
  %v4142 = vadd.f32 %v4007, %v4095
  %v4143 = vadd.f32 %v4010, %v4098
  %v4144 = vadd.f32 %v4015, %v4103
  %v4145 = vadd.f32 %v4018, %v4106
  %v4146 = vadd.f32 %v4023, %v4111
  %v4147 = vadd.f32 %v4026, %v4114
  %v4148 = vadd.f32 %v4031, %v4119
  %v4149 = vadd.f32 %v4034, %v4122
  %v4150 = vadd.f32 %v4039, %v4127
  %v4151 = vadd.f32 %v4042, %v4130
  %v4152 = vadd.f32 %v4047, %v4135
  %4153 = vmatprep.subr.bf16.mxu0 0
  %4154 = vmatpush1.bf16.msra.mxu0 %v799
  %4155 = vmatprep.subr.bf16.mxu0 0
  %4156 = vmatpush1.bf16.msra.mxu0 %v800
  %4157 = vmatprep.subr.bf16.mxu0 0
  %4158 = vmatpush1.bf16.msra.mxu0 0
  %4159 = vmatprep.subr.bf16.mxu0 0
  %4160 = vmatpush1.bf16.msra.mxu0 0
  %4161 = vmatprep.subr.bf16.mxu0 0
  %4162 = vmatpush1.bf16.msra.mxu0 0
  %4163 = vmatprep.subr.bf16.mxu0 0
  %4164 = vmatpush1.bf16.msra.mxu0 0
  %4165 = vmatprep.subr.bf16.mxu0 0
  %4166 = vmatpush1.bf16.msra.mxu0 0
  %4167 = vmatprep.subr.bf16.mxu0 0
  %4168 = vmatpush1.bf16.msra.mxu0 0
  %4169 = vmatprep.subr.bf16.mxu0 0
  %4170 = vmatpush1.bf16.msra.mxu0 0
  %4171 = vmatprep.subr.bf16.mxu0 0
  %4172 = vmatpush1.bf16.msra.mxu0 0
  %4173 = vmatprep.subr.bf16.mxu0 0
  %4174 = vmatpush1.bf16.msra.mxu0 0
  %4175 = vmatprep.subr.bf16.mxu0 0
  %4176 = vmatpush1.bf16.msra.mxu0 0
  %4177 = vmatprep.subr.bf16.mxu0 0
  %4178 = vmatpush1.bf16.msra.mxu0 0
  %4179 = vmatprep.subr.bf16.mxu0 0
  %4180 = vmatpush1.bf16.msra.mxu0 0
  %4181 = vmatprep.subr.bf16.mxu0 0
  %4182 = vmatpush1.bf16.msra.mxu0 0
  %4183 = vmatprep.subr.bf16.mxu0 0
  %4184 = vmatpush1.bf16.msra.mxu0 0
  %4185 = vmatprep.mubr.bf16.mxu0 0
  %4186 = vmatmul.mubr.bf16.gmra.mrb[0].mxu0 %v1472
  %v4187 = vpop.f32.mrb[0].mxu0
  %v4188 = vadd.f32 0.0, %v4187
  %v4189 = vpop.f32.mrb[0].mxu0
  %v4190 = vpop.f32.mrb[0].mxu0
  %v4191 = vadd.f32 0.0, %v4190
  %v4192 = vpop.f32.mrb[0].mxu0
  %4193 = vmatprep.mubr.bf16.mxu0 0
  %4194 = vmatmul.mubr.bf16.gmra.mrb[0].mxu0 %v1475
  %v4195 = vpop.f32.mrb[0].mxu0
  %v4196 = vadd.f32 0.0, %v4195
  %v4197 = vpop.f32.mrb[0].mxu0
  %v4198 = vpop.f32.mrb[0].mxu0
  %v4199 = vadd.f32 0.0, %v4198
  %v4200 = vpop.f32.mrb[0].mxu0
  %4201 = vmatprep.mubr.bf16.mxu0 0
  %4202 = vmatmul.mubr.bf16.gmra.mrb[0].mxu0 %v1478
  %v4203 = vpop.f32.mrb[0].mxu0
  %v4204 = vadd.f32 0.0, %v4203
  %v4205 = vpop.f32.mrb[0].mxu0
  %v4206 = vpop.f32.mrb[0].mxu0
  %v4207 = vadd.f32 0.0, %v4206
  %v4208 = vpop.f32.mrb[0].mxu0
  %4209 = vmatprep.mubr.bf16.mxu0 0
  %4210 = vmatmul.mubr.bf16.gmra.mrb[0].mxu0 %v1481
  %v4211 = vpop.f32.mrb[0].mxu0
  %v4212 = vadd.f32 0.0, %v4211
  %v4213 = vpop.f32.mrb[0].mxu0
  %v4214 = vpop.f32.mrb[0].mxu0
  %v4215 = vadd.f32 0.0, %v4214
  %v4216 = vpop.f32.mrb[0].mxu0
  %4217 = vmatprep.mubr.bf16.mxu0 0
  %4218 = vmatmul.mubr.bf16.gmra.mrb[0].mxu0 %v1484
  %v4219 = vpop.f32.mrb[0].mxu0
  %v4220 = vadd.f32 0.0, %v4219
  %v4221 = vpop.f32.mrb[0].mxu0
  %v4222 = vpop.f32.mrb[0].mxu0
  %v4223 = vadd.f32 0.0, %v4222
  %v4224 = vpop.f32.mrb[0].mxu0
  %4225 = vmatprep.mubr.bf16.mxu0 0
  %4226 = vmatmul.mubr.bf16.gmra.mrb[0].mxu0 %v1487
  %v4227 = vpop.f32.mrb[0].mxu0
  %v4228 = vadd.f32 0.0, %v4227
  %v4229 = vpop.f32.mrb[0].mxu0
  %v4230 = vpop.f32.mrb[0].mxu0
  %v4231 = vadd.f32 0.0, %v4230
  %v4232 = vpop.f32.mrb[0].mxu0
  %4233 = vmatprep.mubr.bf16.mxu0 0
  %4234 = vmatmul.mubr.bf16.gmra.mrb[0].mxu0 %v1490
  %v4235 = vpop.f32.mrb[0].mxu0
  %v4236 = vadd.f32 0.0, %v4235
  %v4237 = vpop.f32.mrb[0].mxu0
  %v4238 = vpop.f32.mrb[0].mxu0
  %v4239 = vpop.f32.mrb[0].mxu0
  %4240 = vdwg.mxu0
  %v4241 = vadd.f32 %v4140, %v4188
  %v4242 = vadd.f32 %v4141, %v4191
  %v4243 = vadd.f32 %v4142, %v4196
  %v4244 = vadd.f32 %v4143, %v4199
  %v4245 = vadd.f32 %v4144, %v4204
  %v4246 = vadd.f32 %v4145, %v4207
  %v4247 = vadd.f32 %v4146, %v4212
  %v4248 = vadd.f32 %v4147, %v4215
  %v4249 = vadd.f32 %v4148, %v4220
  %v4250 = vadd.f32 %v4149, %v4223
  %v4251 = vadd.f32 %v4150, %v4228
  %v4252 = vadd.f32 %v4151, %v4231
  %v4253 = vadd.f32 %v4152, %v4236
  %4254 = vmatprep.subr.bf16.mxu0 0
  %4255 = vmatpush1.bf16.msra.mxu0 %v966
  %4256 = vmatprep.subr.bf16.mxu0 0
  %4257 = vmatpush1.bf16.msra.mxu0 %v967
  %4258 = vmatprep.subr.bf16.mxu0 0
  %4259 = vmatpush1.bf16.msra.mxu0 0
  %4260 = vmatprep.subr.bf16.mxu0 0
  %4261 = vmatpush1.bf16.msra.mxu0 0
  %4262 = vmatprep.subr.bf16.mxu0 0
  %4263 = vmatpush1.bf16.msra.mxu0 0
  %4264 = vmatprep.subr.bf16.mxu0 0
  %4265 = vmatpush1.bf16.msra.mxu0 0
  %4266 = vmatprep.subr.bf16.mxu0 0
  %4267 = vmatpush1.bf16.msra.mxu0 0
  %4268 = vmatprep.subr.bf16.mxu0 0
  %4269 = vmatpush1.bf16.msra.mxu0 0
  %4270 = vmatprep.subr.bf16.mxu0 0
  %4271 = vmatpush1.bf16.msra.mxu0 0
  %4272 = vmatprep.subr.bf16.mxu0 0
  %4273 = vmatpush1.bf16.msra.mxu0 0
  %4274 = vmatprep.subr.bf16.mxu0 0
  %4275 = vmatpush1.bf16.msra.mxu0 0
  %4276 = vmatprep.subr.bf16.mxu0 0
  %4277 = vmatpush1.bf16.msra.mxu0 0
  %4278 = vmatprep.subr.bf16.mxu0 0
  %4279 = vmatpush1.bf16.msra.mxu0 0
  %4280 = vmatprep.subr.bf16.mxu0 0
  %4281 = vmatpush1.bf16.msra.mxu0 0
  %4282 = vmatprep.subr.bf16.mxu0 0
  %4283 = vmatpush1.bf16.msra.mxu0 0
  %4284 = vmatprep.subr.bf16.mxu0 0
  %4285 = vmatpush1.bf16.msra.mxu0 0
  %4286 = vmatprep.mubr.bf16.mxu0 0
  %4287 = vmatmul.mubr.bf16.gmra.mrb[0].mxu0 %v1639
  %v4288 = vpop.f32.mrb[0].mxu0
  %v4289 = vadd.f32 0.0, %v4288
  %v4290 = vpop.f32.mrb[0].mxu0
  %v4291 = vpop.f32.mrb[0].mxu0
  %v4292 = vadd.f32 0.0, %v4291
  %v4293 = vpop.f32.mrb[0].mxu0
  %4294 = vmatprep.mubr.bf16.mxu0 0
  %4295 = vmatmul.mubr.bf16.gmra.mrb[0].mxu0 %v1642
  %v4296 = vpop.f32.mrb[0].mxu0
  %v4297 = vadd.f32 0.0, %v4296
  %v4298 = vpop.f32.mrb[0].mxu0
  %v4299 = vpop.f32.mrb[0].mxu0
  %v4300 = vadd.f32 0.0, %v4299
  %v4301 = vpop.f32.mrb[0].mxu0
  %4302 = vmatprep.mubr.bf16.mxu0 0
  %4303 = vmatmul.mubr.bf16.gmra.mrb[0].mxu0 %v1645
  %v4304 = vpop.f32.mrb[0].mxu0
  %v4305 = vadd.f32 0.0, %v4304
  %v4306 = vpop.f32.mrb[0].mxu0
  %v4307 = vpop.f32.mrb[0].mxu0
  %v4308 = vadd.f32 0.0, %v4307
  %v4309 = vpop.f32.mrb[0].mxu0
  %4310 = vmatprep.mubr.bf16.mxu0 0
  %4311 = vmatmul.mubr.bf16.gmra.mrb[0].mxu0 %v1648
  %v4312 = vpop.f32.mrb[0].mxu0
  %v4313 = vadd.f32 0.0, %v4312
  %v4314 = vpop.f32.mrb[0].mxu0
  %v4315 = vpop.f32.mrb[0].mxu0
  %v4316 = vadd.f32 0.0, %v4315
  %v4317 = vpop.f32.mrb[0].mxu0
  %4318 = vmatprep.mubr.bf16.mxu0 0
  %4319 = vmatmul.mubr.bf16.gmra.mrb[0].mxu0 %v1651
  %v4320 = vpop.f32.mrb[0].mxu0
  %v4321 = vadd.f32 0.0, %v4320
  %v4322 = vpop.f32.mrb[0].mxu0
  %v4323 = vpop.f32.mrb[0].mxu0
  %v4324 = vadd.f32 0.0, %v4323
  %v4325 = vpop.f32.mrb[0].mxu0
  %4326 = vmatprep.mubr.bf16.mxu0 0
  %4327 = vmatmul.mubr.bf16.gmra.mrb[0].mxu0 %v1654
  %v4328 = vpop.f32.mrb[0].mxu0
  %v4329 = vadd.f32 0.0, %v4328
  %v4330 = vpop.f32.mrb[0].mxu0
  %v4331 = vpop.f32.mrb[0].mxu0
  %v4332 = vadd.f32 0.0, %v4331
  %v4333 = vpop.f32.mrb[0].mxu0
  %4334 = vmatprep.mubr.bf16.mxu0 0
  %4335 = vmatmul.mubr.bf16.gmra.mrb[0].mxu0 %v1657
  %v4336 = vpop.f32.mrb[0].mxu0
  %v4337 = vadd.f32 0.0, %v4336
  %v4338 = vpop.f32.mrb[0].mxu0
  %v4339 = vpop.f32.mrb[0].mxu0
  %v4340 = vpop.f32.mrb[0].mxu0
  %4341 = vdwg.mxu0
  %v4342 = vadd.f32 %v4241, %v4289
  %v4343 = vadd.f32 %v4242, %v4292
  %v4344 = vadd.f32 %v4243, %v4297
  %v4345 = vadd.f32 %v4244, %v4300
  %v4346 = vadd.f32 %v4245, %v4305
  %v4347 = vadd.f32 %v4246, %v4308
  %v4348 = vadd.f32 %v4247, %v4313
  %v4349 = vadd.f32 %v4248, %v4316
  %v4350 = vadd.f32 %v4249, %v4321
  %v4351 = vadd.f32 %v4250, %v4324
  %v4352 = vadd.f32 %v4251, %v4329
  %v4353 = vadd.f32 %v4252, %v4332
  %v4354 = vadd.f32 %v4253, %v4337
  %4355 = vmatprep.subr.bf16.mxu0 0
  %4356 = vmatpush1.bf16.msra.mxu0 %v1133
  %4357 = vmatprep.subr.bf16.mxu0 0
  %4358 = vmatpush1.bf16.msra.mxu0 %v1134
  %4359 = vmatprep.subr.bf16.mxu0 0
  %4360 = vmatpush1.bf16.msra.mxu0 0
  %4361 = vmatprep.subr.bf16.mxu0 0
  %4362 = vmatpush1.bf16.msra.mxu0 0
  %4363 = vmatprep.subr.bf16.mxu0 0
  %4364 = vmatpush1.bf16.msra.mxu0 0
  %4365 = vmatprep.subr.bf16.mxu0 0
  %4366 = vmatpush1.bf16.msra.mxu0 0
  %4367 = vmatprep.subr.bf16.mxu0 0
  %4368 = vmatpush1.bf16.msra.mxu0 0
  %4369 = vmatprep.subr.bf16.mxu0 0
  %4370 = vmatpush1.bf16.msra.mxu0 0
  %4371 = vmatprep.subr.bf16.mxu0 0
  %4372 = vmatpush1.bf16.msra.mxu0 0
  %4373 = vmatprep.subr.bf16.mxu0 0
  %4374 = vmatpush1.bf16.msra.mxu0 0
  %4375 = vmatprep.subr.bf16.mxu0 0
  %4376 = vmatpush1.bf16.msra.mxu0 0
  %4377 = vmatprep.subr.bf16.mxu0 0
  %4378 = vmatpush1.bf16.msra.mxu0 0
  %4379 = vmatprep.subr.bf16.mxu0 0
  %4380 = vmatpush1.bf16.msra.mxu0 0
  %4381 = vmatprep.subr.bf16.mxu0 0
  %4382 = vmatpush1.bf16.msra.mxu0 0
  %4383 = vmatprep.subr.bf16.mxu0 0
  %4384 = vmatpush1.bf16.msra.mxu0 0
  %4385 = vmatprep.subr.bf16.mxu0 0
  %4386 = vmatpush1.bf16.msra.mxu0 0
  %4387 = vmatprep.mubr.bf16.mxu0 0
  %4388 = vmatmul.mubr.bf16.gmra.mrb[0].mxu0 %v2684
  %v4389 = vpop.f32.mrb[0].mxu0
  %v4390 = vadd.f32 0.0, %v4389
  %v4391 = vpop.f32.mrb[0].mxu0
  %v4392 = vpop.f32.mrb[0].mxu0
  %v4393 = vadd.f32 0.0, %v4392
  %v4394 = vpop.f32.mrb[0].mxu0
  %4395 = vmatprep.mubr.bf16.mxu0 0
  %4396 = vmatmul.mubr.bf16.gmra.mrb[0].mxu0 %v2687
  %v4397 = vpop.f32.mrb[0].mxu0
  %v4398 = vadd.f32 0.0, %v4397
  %v4399 = vpop.f32.mrb[0].mxu0
  %v4400 = vpop.f32.mrb[0].mxu0
  %v4401 = vadd.f32 0.0, %v4400
  %v4402 = vpop.f32.mrb[0].mxu0
  %4403 = vmatprep.mubr.bf16.mxu0 0
  %4404 = vmatmul.mubr.bf16.gmra.mrb[0].mxu0 %v2690
  %v4405 = vpop.f32.mrb[0].mxu0
  %v4406 = vadd.f32 0.0, %v4405
  %v4407 = vpop.f32.mrb[0].mxu0
  %v4408 = vpop.f32.mrb[0].mxu0
  %v4409 = vadd.f32 0.0, %v4408
  %v4410 = vpop.f32.mrb[0].mxu0
  %4411 = vmatprep.mubr.bf16.mxu0 0
  %4412 = vmatmul.mubr.bf16.gmra.mrb[0].mxu0 %v2693
  %v4413 = vpop.f32.mrb[0].mxu0
  %v4414 = vadd.f32 0.0, %v4413
  %v4415 = vpop.f32.mrb[0].mxu0
  %v4416 = vpop.f32.mrb[0].mxu0
  %v4417 = vadd.f32 0.0, %v4416
  %v4418 = vpop.f32.mrb[0].mxu0
  %4419 = vmatprep.mubr.bf16.mxu0 0
  %4420 = vmatmul.mubr.bf16.gmra.mrb[0].mxu0 %v2696
  %v4421 = vpop.f32.mrb[0].mxu0
  %v4422 = vadd.f32 0.0, %v4421
  %v4423 = vpop.f32.mrb[0].mxu0
  %v4424 = vpop.f32.mrb[0].mxu0
  %v4425 = vadd.f32 0.0, %v4424
  %v4426 = vpop.f32.mrb[0].mxu0
  %4427 = vmatprep.mubr.bf16.mxu0 0
  %4428 = vmatmul.mubr.bf16.gmra.mrb[0].mxu0 %v2699
  %v4429 = vpop.f32.mrb[0].mxu0
  %v4430 = vadd.f32 0.0, %v4429
  %v4431 = vpop.f32.mrb[0].mxu0
  %v4432 = vpop.f32.mrb[0].mxu0
  %v4433 = vadd.f32 0.0, %v4432
  %v4434 = vpop.f32.mrb[0].mxu0
  %4435 = vmatprep.mubr.bf16.mxu0 0
  %4436 = vmatmul.mubr.bf16.gmra.mrb[0].mxu0 %v2702
  %v4437 = vpop.f32.mrb[0].mxu0
  %v4438 = vadd.f32 0.0, %v4437
  %v4439 = vpop.f32.mrb[0].mxu0
  %v4440 = vpop.f32.mrb[0].mxu0
  %v4441 = vpop.f32.mrb[0].mxu0
  %4442 = vdwg.mxu0
  %v4443 = vadd.f32 %v4342, %v4390
  %v4444 = vadd.f32 %v4343, %v4393
  %v4445 = vadd.f32 %v4344, %v4398
  %v4446 = vadd.f32 %v4345, %v4401
  %v4447 = vadd.f32 %v4346, %v4406
  %v4448 = vadd.f32 %v4347, %v4409
  %v4449 = vadd.f32 %v4348, %v4414
  %v4450 = vadd.f32 %v4349, %v4417
  %v4451 = vadd.f32 %v4350, %v4422
  %v4452 = vadd.f32 %v4351, %v4425
  %v4453 = vadd.f32 %v4352, %v4430
  %v4454 = vadd.f32 %v4353, %v4433
  %v4455 = vadd.f32 %v4354, %v4438
  %4456 = vmatprep.subr.bf16.mxu0 0
  %4457 = vmatpush1.bf16.msra.mxu0 %v1300
  %4458 = vmatprep.subr.bf16.mxu0 0
  %4459 = vmatpush1.bf16.msra.mxu0 %v1301
  %4460 = vmatprep.subr.bf16.mxu0 0
  %4461 = vmatpush1.bf16.msra.mxu0 0
  %4462 = vmatprep.subr.bf16.mxu0 0
  %4463 = vmatpush1.bf16.msra.mxu0 0
  %4464 = vmatprep.subr.bf16.mxu0 0
  %4465 = vmatpush1.bf16.msra.mxu0 0
  %4466 = vmatprep.subr.bf16.mxu0 0
  %4467 = vmatpush1.bf16.msra.mxu0 0
  %4468 = vmatprep.subr.bf16.mxu0 0
  %4469 = vmatpush1.bf16.msra.mxu0 0
  %4470 = vmatprep.subr.bf16.mxu0 0
  %4471 = vmatpush1.bf16.msra.mxu0 0
  %4472 = vmatprep.subr.bf16.mxu0 0
  %4473 = vmatpush1.bf16.msra.mxu0 0
  %4474 = vmatprep.subr.bf16.mxu0 0
  %4475 = vmatpush1.bf16.msra.mxu0 0
  %4476 = vmatprep.subr.bf16.mxu0 0
  %4477 = vmatpush1.bf16.msra.mxu0 0
  %4478 = vmatprep.subr.bf16.mxu0 0
  %4479 = vmatpush1.bf16.msra.mxu0 0
  %4480 = vmatprep.subr.bf16.mxu0 0
  %4481 = vmatpush1.bf16.msra.mxu0 0
  %4482 = vmatprep.subr.bf16.mxu0 0
  %4483 = vmatpush1.bf16.msra.mxu0 0
  %4484 = vmatprep.subr.bf16.mxu0 0
  %4485 = vmatpush1.bf16.msra.mxu0 0
  %4486 = vmatprep.subr.bf16.mxu0 0
  %4487 = vmatpush1.bf16.msra.mxu0 0
  %4488 = vmatprep.mubr.bf16.mxu0 0
  %4489 = vmatmul.mubr.bf16.gmra.mrb[0].mxu0 %v3587
  %v4490 = vpop.f32.mrb[0].mxu0
  %v4491 = vadd.f32 0.0, %v4490
  %v4492 = vpop.f32.mrb[0].mxu0
  %v4493 = vpop.f32.mrb[0].mxu0
  %v4494 = vadd.f32 0.0, %v4493
  %v4495 = vpop.f32.mrb[0].mxu0
  %4496 = vmatprep.mubr.bf16.mxu0 0
  %4497 = vmatmul.mubr.bf16.gmra.mrb[0].mxu0 %v3590
  %v4498 = vpop.f32.mrb[0].mxu0
  %v4499 = vadd.f32 0.0, %v4498
  %v4500 = vpop.f32.mrb[0].mxu0
  %v4501 = vpop.f32.mrb[0].mxu0
  %v4502 = vadd.f32 0.0, %v4501
  %v4503 = vpop.f32.mrb[0].mxu0
  %4504 = vmatprep.mubr.bf16.mxu0 0
  %4505 = vmatmul.mubr.bf16.gmra.mrb[0].mxu0 %v3593
  %v4506 = vpop.f32.mrb[0].mxu0
  %v4507 = vadd.f32 0.0, %v4506
  %v4508 = vpop.f32.mrb[0].mxu0
  %v4509 = vpop.f32.mrb[0].mxu0
  %v4510 = vadd.f32 0.0, %v4509
  %v4511 = vpop.f32.mrb[0].mxu0
  %4512 = vmatprep.mubr.bf16.mxu0 0
  %4513 = vmatmul.mubr.bf16.gmra.mrb[0].mxu0 %v3596
  %v4514 = vpop.f32.mrb[0].mxu0
  %v4515 = vadd.f32 0.0, %v4514
  %v4516 = vpop.f32.mrb[0].mxu0
  %v4517 = vpop.f32.mrb[0].mxu0
  %v4518 = vadd.f32 0.0, %v4517
  %v4519 = vpop.f32.mrb[0].mxu0
  %4520 = vmatprep.mubr.bf16.mxu0 0
  %4521 = vmatmul.mubr.bf16.gmra.mrb[0].mxu0 %v3599
  %v4522 = vpop.f32.mrb[0].mxu0
  %v4523 = vadd.f32 0.0, %v4522
  %v4524 = vpop.f32.mrb[0].mxu0
  %v4525 = vpop.f32.mrb[0].mxu0
  %v4526 = vadd.f32 0.0, %v4525
  %v4527 = vpop.f32.mrb[0].mxu0
  %4528 = vmatprep.mubr.bf16.mxu0 0
  %4529 = vmatmul.mubr.bf16.gmra.mrb[0].mxu0 %v3602
  %v4530 = vpop.f32.mrb[0].mxu0
  %v4531 = vadd.f32 0.0, %v4530
  %v4532 = vpop.f32.mrb[0].mxu0
  %v4533 = vpop.f32.mrb[0].mxu0
  %v4534 = vadd.f32 0.0, %v4533
  %v4535 = vpop.f32.mrb[0].mxu0
  %4536 = vmatprep.mubr.bf16.mxu0 0
  %4537 = vmatmul.mubr.bf16.gmra.mrb[0].mxu0 %v3605
  %v4538 = vpop.f32.mrb[0].mxu0
  %v4539 = vadd.f32 0.0, %v4538
  %v4540 = vpop.f32.mrb[0].mxu0
  %v4541 = vpop.f32.mrb[0].mxu0
  %v4542 = vpop.f32.mrb[0].mxu0
  %4543 = vdwg.mxu0
  %v4544 = vadd.f32 %v4443, %v4491
  %v4545 = vadd.f32 %v4444, %v4494
  %v4546 = vadd.f32 %v4445, %v4499
  %v4547 = vadd.f32 %v4446, %v4502
  %v4548 = vadd.f32 %v4447, %v4507
  %v4549 = vadd.f32 %v4448, %v4510
  %v4550 = vadd.f32 %v4449, %v4515
  %v4551 = vadd.f32 %v4450, %v4518
  %v4552 = vadd.f32 %v4451, %v4523
  %v4553 = vadd.f32 %v4452, %v4526
  %v4554 = vadd.f32 %v4453, %v4531
  %v4555 = vadd.f32 %v4454, %v4534
  %v4556 = vadd.f32 %v4455, %v4539
  %4557 = vmatprep.subr.bf16.mxu0 0
  %4558 = vmatpush1.bf16.msra.mxu0 %v1467
  %4559 = vmatprep.subr.bf16.mxu0 0
  %4560 = vmatpush1.bf16.msra.mxu0 %v1468
  %4561 = vmatprep.subr.bf16.mxu0 0
  %4562 = vmatpush1.bf16.msra.mxu0 0
  %4563 = vmatprep.subr.bf16.mxu0 0
  %4564 = vmatpush1.bf16.msra.mxu0 0
  %4565 = vmatprep.subr.bf16.mxu0 0
  %4566 = vmatpush1.bf16.msra.mxu0 0
  %4567 = vmatprep.subr.bf16.mxu0 0
  %4568 = vmatpush1.bf16.msra.mxu0 0
  %4569 = vmatprep.subr.bf16.mxu0 0
  %4570 = vmatpush1.bf16.msra.mxu0 0
  %4571 = vmatprep.subr.bf16.mxu0 0
  %4572 = vmatpush1.bf16.msra.mxu0 0
  %4573 = vmatprep.subr.bf16.mxu0 0
  %4574 = vmatpush1.bf16.msra.mxu0 0
  %4575 = vmatprep.subr.bf16.mxu0 0
  %4576 = vmatpush1.bf16.msra.mxu0 0
  %4577 = vmatprep.subr.bf16.mxu0 0
  %4578 = vmatpush1.bf16.msra.mxu0 0
  %4579 = vmatprep.subr.bf16.mxu0 0
  %4580 = vmatpush1.bf16.msra.mxu0 0
  %4581 = vmatprep.subr.bf16.mxu0 0
  %4582 = vmatpush1.bf16.msra.mxu0 0
  %4583 = vmatprep.subr.bf16.mxu0 0
  %4584 = vmatpush1.bf16.msra.mxu0 0
  %4585 = vmatprep.subr.bf16.mxu0 0
  %4586 = vmatpush1.bf16.msra.mxu0 0
  %4587 = vmatprep.subr.bf16.mxu0 0
  %4588 = vmatpush1.bf16.msra.mxu0 0
  %4589 = vmatprep.mubr.bf16.mxu0 0
  %4590 = vmatmul.mubr.bf16.gmra.mrb[0].mxu0 %v3742
  %v4591 = vpop.f32.mrb[0].mxu0
  %v4592 = vadd.f32 0.0, %v4591
  %v4593 = vpop.f32.mrb[0].mxu0
  %v4594 = vpop.f32.mrb[0].mxu0
  %v4595 = vadd.f32 0.0, %v4594
  %v4596 = vpop.f32.mrb[0].mxu0
  %4597 = vmatprep.mubr.bf16.mxu0 0
  %4598 = vmatmul.mubr.bf16.gmra.mrb[0].mxu0 %v3745
  %v4599 = vpop.f32.mrb[0].mxu0
  %v4600 = vadd.f32 0.0, %v4599
  %v4601 = vpop.f32.mrb[0].mxu0
  %v4602 = vpop.f32.mrb[0].mxu0
  %v4603 = vadd.f32 0.0, %v4602
  %v4604 = vpop.f32.mrb[0].mxu0
  %4605 = vmatprep.mubr.bf16.mxu0 0
  %4606 = vmatmul.mubr.bf16.gmra.mrb[0].mxu0 %v3748
  %v4607 = vpop.f32.mrb[0].mxu0
  %v4608 = vadd.f32 0.0, %v4607
  %v4609 = vpop.f32.mrb[0].mxu0
  %v4610 = vpop.f32.mrb[0].mxu0
  %v4611 = vadd.f32 0.0, %v4610
  %v4612 = vpop.f32.mrb[0].mxu0
  %4613 = vmatprep.mubr.bf16.mxu0 0
  %4614 = vmatmul.mubr.bf16.gmra.mrb[0].mxu0 %v3751
  %v4615 = vpop.f32.mrb[0].mxu0
  %v4616 = vadd.f32 0.0, %v4615
  %v4617 = vpop.f32.mrb[0].mxu0
  %v4618 = vpop.f32.mrb[0].mxu0
  %v4619 = vadd.f32 0.0, %v4618
  %v4620 = vpop.f32.mrb[0].mxu0
  %4621 = vmatprep.mubr.bf16.mxu0 0
  %4622 = vmatmul.mubr.bf16.gmra.mrb[0].mxu0 %v3754
  %v4623 = vpop.f32.mrb[0].mxu0
  %v4624 = vadd.f32 0.0, %v4623
  %v4625 = vpop.f32.mrb[0].mxu0
  %v4626 = vpop.f32.mrb[0].mxu0
  %v4627 = vadd.f32 0.0, %v4626
  %v4628 = vpop.f32.mrb[0].mxu0
  %4629 = vmatprep.mubr.bf16.mxu0 0
  %4630 = vmatmul.mubr.bf16.gmra.mrb[0].mxu0 %v3757
  %v4631 = vpop.f32.mrb[0].mxu0
  %v4632 = vadd.f32 0.0, %v4631
  %v4633 = vpop.f32.mrb[0].mxu0
  %v4634 = vpop.f32.mrb[0].mxu0
  %v4635 = vadd.f32 0.0, %v4634
  %v4636 = vpop.f32.mrb[0].mxu0
  %4637 = vmatprep.mubr.bf16.mxu0 0
  %4638 = vmatmul.mubr.bf16.gmra.mrb[0].mxu0 %v3760
  %v4639 = vpop.f32.mrb[0].mxu0
  %v4640 = vadd.f32 0.0, %v4639
  %v4641 = vpop.f32.mrb[0].mxu0
  %v4642 = vpop.f32.mrb[0].mxu0
  %v4643 = vpop.f32.mrb[0].mxu0
  %4644 = vdwg.mxu0
  %v4645 = vadd.f32 %v4544, %v4592
  %v4646 = vadd.f32 %v4545, %v4595
  %v4647 = vadd.f32 %v4546, %v4600
  %v4648 = vadd.f32 %v4547, %v4603
  %v4649 = vadd.f32 %v4548, %v4608
  %v4650 = vadd.f32 %v4549, %v4611
  %v4651 = vadd.f32 %v4550, %v4616
  %v4652 = vadd.f32 %v4551, %v4619
  %v4653 = vadd.f32 %v4552, %v4624
  %v4654 = vadd.f32 %v4553, %v4627
  %v4655 = vadd.f32 %v4554, %v4632
  %v4656 = vadd.f32 %v4555, %v4635
  %v4657 = vadd.f32 %v4556, %v4640
  %v4671 = vunpack.c.l.b16 %v225
  %v4672 = vunpack.c.l.b16 %v226
  %v4673 = vunpack.c.l.b16 %v227
  %v4674 = vunpack.c.l.b16 %v228
  %v4675 = vunpack.c.l.b16 %v229
  %v4676 = vunpack.c.l.b16 %v230
  %v4677 = vunpack.c.l.b16 %v231
  %v4678 = vunpack.c.l.b16 %v232
  %v4679 = vunpack.c.l.b16 %v233
  %v4680 = vunpack.c.l.b16 %v234
  %v4681 = vunpack.c.l.b16 %v235
  %v4682 = vunpack.c.l.b16 %v236
  %v4683 = vunpack.c.l.b16 %v237
  %v4684 = vpack.c.b16 %v4672, %v4671
  %v4685 = vpack.c.b16 %v4674, %v4673
  %v4686 = vpack.c.b16 %v4676, %v4675
  %v4687 = vpack.c.b16 %v4678, %v4677
  %v4688 = vpack.c.b16 %v4680, %v4679
  %v4689 = vpack.c.b16 %v4682, %v4681
  %v4690 = vpack.c.b16 %v4683, %v4683
  %v4692 = vsel %vm327, %v4684, 0
  %v4695 = vsel %vm327, %v4685, 0
  %v4698 = vsel %vm327, %v4686, 0
  %v4701 = vsel %vm327, %v4687, 0
  %v4704 = vsel %vm327, %v4688, 0
  %v4707 = vsel %vm327, %v4689, 0
  %v4710 = vsel %vm327, %v4690, 0
  %4712 = vmatprep.subr.bf16.mxu0 0
  %4713 = vmatpush1.bf16.msra.mxu0 %v1634
  %4714 = vmatprep.subr.bf16.mxu0 0
  %4715 = vmatpush1.bf16.msra.mxu0 %v1635
  %4716 = vmatprep.subr.bf16.mxu0 0
  %4717 = vmatpush1.bf16.msra.mxu0 0
  %4718 = vmatprep.subr.bf16.mxu0 0
  %4719 = vmatpush1.bf16.msra.mxu0 0
  %4720 = vmatprep.subr.bf16.mxu0 0
  %4721 = vmatpush1.bf16.msra.mxu0 0
  %4722 = vmatprep.subr.bf16.mxu0 0
  %4723 = vmatpush1.bf16.msra.mxu0 0
  %4724 = vmatprep.subr.bf16.mxu0 0
  %4725 = vmatpush1.bf16.msra.mxu0 0
  %4726 = vmatprep.subr.bf16.mxu0 0
  %4727 = vmatpush1.bf16.msra.mxu0 0
  %4728 = vmatprep.subr.bf16.mxu0 0
  %4729 = vmatpush1.bf16.msra.mxu0 0
  %4730 = vmatprep.subr.bf16.mxu0 0
  %4731 = vmatpush1.bf16.msra.mxu0 0
  %4732 = vmatprep.subr.bf16.mxu0 0
  %4733 = vmatpush1.bf16.msra.mxu0 0
  %4734 = vmatprep.subr.bf16.mxu0 0
  %4735 = vmatpush1.bf16.msra.mxu0 0
  %4736 = vmatprep.subr.bf16.mxu0 0
  %4737 = vmatpush1.bf16.msra.mxu0 0
  %4738 = vmatprep.subr.bf16.mxu0 0
  %4739 = vmatpush1.bf16.msra.mxu0 0
  %4740 = vmatprep.subr.bf16.mxu0 0
  %4741 = vmatpush1.bf16.msra.mxu0 0
  %4742 = vmatprep.subr.bf16.mxu0 0
  %4743 = vmatpush1.bf16.msra.mxu0 0
  %4744 = vmatprep.mubr.bf16.mxu0 0
  %4745 = vmatmul.mubr.bf16.gmra.mrb[0].mxu0 %v4692
  %v4746 = vpop.f32.mrb[0].mxu0
  %v4747 = vadd.f32 0.0, %v4746
  %v4748 = vpop.f32.mrb[0].mxu0
  %v4749 = vpop.f32.mrb[0].mxu0
  %v4750 = vadd.f32 0.0, %v4749
  %v4751 = vpop.f32.mrb[0].mxu0
  %4752 = vmatprep.mubr.bf16.mxu0 0
  %4753 = vmatmul.mubr.bf16.gmra.mrb[0].mxu0 %v4695
  %v4754 = vpop.f32.mrb[0].mxu0
  %v4755 = vadd.f32 0.0, %v4754
  %v4756 = vpop.f32.mrb[0].mxu0
  %v4757 = vpop.f32.mrb[0].mxu0
  %v4758 = vadd.f32 0.0, %v4757
  %v4759 = vpop.f32.mrb[0].mxu0
  %4760 = vmatprep.mubr.bf16.mxu0 0
  %4761 = vmatmul.mubr.bf16.gmra.mrb[0].mxu0 %v4698
  %v4762 = vpop.f32.mrb[0].mxu0
  %v4763 = vadd.f32 0.0, %v4762
  %v4764 = vpop.f32.mrb[0].mxu0
  %v4765 = vpop.f32.mrb[0].mxu0
  %v4766 = vadd.f32 0.0, %v4765
  %v4767 = vpop.f32.mrb[0].mxu0
  %4768 = vmatprep.mubr.bf16.mxu0 0
  %4769 = vmatmul.mubr.bf16.gmra.mrb[0].mxu0 %v4701
  %v4770 = vpop.f32.mrb[0].mxu0
  %v4771 = vadd.f32 0.0, %v4770
  %v4772 = vpop.f32.mrb[0].mxu0
  %v4773 = vpop.f32.mrb[0].mxu0
  %v4774 = vadd.f32 0.0, %v4773
  %v4775 = vpop.f32.mrb[0].mxu0
  %4776 = vmatprep.mubr.bf16.mxu0 0
  %4777 = vmatmul.mubr.bf16.gmra.mrb[0].mxu0 %v4704
  %v4778 = vpop.f32.mrb[0].mxu0
  %v4779 = vadd.f32 0.0, %v4778
  %v4780 = vpop.f32.mrb[0].mxu0
  %v4781 = vpop.f32.mrb[0].mxu0
  %v4782 = vadd.f32 0.0, %v4781
  %v4783 = vpop.f32.mrb[0].mxu0
  %4784 = vmatprep.mubr.bf16.mxu0 0
  %4785 = vmatmul.mubr.bf16.gmra.mrb[0].mxu0 %v4707
  %v4786 = vpop.f32.mrb[0].mxu0
  %v4787 = vadd.f32 0.0, %v4786
  %v4788 = vpop.f32.mrb[0].mxu0
  %v4789 = vpop.f32.mrb[0].mxu0
  %v4790 = vadd.f32 0.0, %v4789
  %v4791 = vpop.f32.mrb[0].mxu0
  %4792 = vmatprep.mubr.bf16.mxu0 0
  %4793 = vmatmul.mubr.bf16.gmra.mrb[0].mxu0 %v4710
  %v4794 = vpop.f32.mrb[0].mxu0
  %v4795 = vadd.f32 0.0, %v4794
  %v4796 = vpop.f32.mrb[0].mxu0
  %v4797 = vpop.f32.mrb[0].mxu0
  %v4798 = vpop.f32.mrb[0].mxu0
  %4799 = vdwg.mxu0
  %v4800 = vadd.f32 %v4645, %v4747
  %v4801 = vadd.f32 %v4646, %v4750
  %v4802 = vadd.f32 %v4647, %v4755
  %v4803 = vadd.f32 %v4648, %v4758
  %v4804 = vadd.f32 %v4649, %v4763
  %v4805 = vadd.f32 %v4650, %v4766
  %v4806 = vadd.f32 %v4651, %v4771
  %v4807 = vadd.f32 %v4652, %v4774
  %v4808 = vadd.f32 %v4653, %v4779
  %v4809 = vadd.f32 %v4654, %v4782
  %v4810 = vadd.f32 %v4655, %v4787
  %v4811 = vadd.f32 %v4656, %v4790
  %v4812 = vadd.f32 %v4657, %v4795
  %v4813 = vmax.f32 %v3863, %v4800
  %v4814 = vmax.f32 %v3864, %v4801
  %v4815 = vmax.f32 %v3865, %v4802
  %v4816 = vmax.f32 %v3866, %v4803
  %v4817 = vmax.f32 %v3867, %v4804
  %v4818 = vmax.f32 %v3868, %v4805
  %v4819 = vmax.f32 %v3869, %v4806
  %v4820 = vmax.f32 %v3870, %v4807
  %v4821 = vmax.f32 %v3871, %v4808
  %v4822 = vmax.f32 %v3872, %v4809
  %v4823 = vmax.f32 %v3873, %v4810
  %v4824 = vmax.f32 %v3874, %v4811
  %v4825 = vmax.f32 %v3875, %v4812
  %v4826 = vld [vmem:[%s2] sm:$0x1]
  %v4828 = vlaneseq
  %v4829 = vshrl.u32 %v4828, 7
  %v4830 = vsub.s32 0, %v4829
  %v4831 = vrot.slane %v4826, %v4830
  %v4833 = vadd.f32 %v4813, %v4831
  %v4834 = vadd.f32 %v4814, %v4831
  %v4835 = vadd.f32 %v4815, %v4831
  %v4836 = vadd.f32 %v4816, %v4831
  %v4837 = vadd.f32 %v4817, %v4831
  %v4838 = vadd.f32 %v4818, %v4831
  %v4839 = vadd.f32 %v4819, %v4831
  %v4840 = vadd.f32 %v4820, %v4831
  %v4841 = vadd.f32 %v4821, %v4831
  %v4842 = vadd.f32 %v4822, %v4831
  %v4843 = vadd.f32 %v4823, %v4831
  %v4844 = vadd.f32 %v4824, %v4831
  %v4845 = vadd.f32 %v4825, %v4831
  %v4846 = vmax.f32 %v4833, 0.0
  %v4847 = vmax.f32 %v4834, 0.0
  %v4848 = vmax.f32 %v4835, 0.0
  %v4849 = vmax.f32 %v4836, 0.0
  %v4850 = vmax.f32 %v4837, 0.0
  %v4851 = vmax.f32 %v4838, 0.0
  %v4852 = vmax.f32 %v4839, 0.0
  %v4853 = vmax.f32 %v4840, 0.0
  %v4854 = vmax.f32 %v4841, 0.0
  %v4855 = vmax.f32 %v4842, 0.0
  %v4856 = vmax.f32 %v4843, 0.0
  %v4857 = vmax.f32 %v4844, 0.0
  %v4858 = vmax.f32 %v4845, 0.0
  %v4859 = vpack.c.bf16 %v4847, %v4846
  %v4860 = vpack.c.bf16 %v4849, %v4848
  %v4861 = vpack.c.bf16 %v4851, %v4850
  %v4862 = vpack.c.bf16 %v4853, %v4852
  %v4863 = vpack.c.bf16 %v4855, %v4854
  %v4864 = vpack.c.bf16 %v4857, %v4856
  %v4865 = vpack.c.bf16 %v4858, %v4858
  %v4873 = vunpack.c.l.b16 %v4859
  %v4874 = vunpack.c.h.b16 %v4859
  %v4875 = vunpack.c.l.b16 %v4860
  %v4876 = vunpack.c.h.b16 %v4860
  %v4877 = vunpack.c.l.b16 %v4861
  %v4878 = vunpack.c.h.b16 %v4861
  %v4879 = vunpack.c.l.b16 %v4862
  %v4880 = vunpack.c.h.b16 %v4862
  %v4881 = vunpack.c.l.b16 %v4863
  %v4882 = vunpack.c.h.b16 %v4863
  %v4883 = vunpack.c.l.b16 %v4864
  %v4884 = vunpack.c.h.b16 %v4864
  %v4885 = vunpack.c.l.b16 %v4865
  %v4886 = vpack.c.b16 %v4873, %v4873
  %v4887 = vpack.c.b16 %v4874, %v4874
  %v4888 = vpack.c.b16 %v4875, %v4875
  %v4889 = vpack.c.b16 %v4876, %v4876
  %v4890 = vpack.c.b16 %v4877, %v4877
  %v4891 = vpack.c.b16 %v4878, %v4878
  %v4892 = vpack.c.b16 %v4879, %v4879
  %v4893 = vpack.c.b16 %v4880, %v4880
  %v4894 = vpack.c.b16 %v4881, %v4881
  %v4895 = vpack.c.b16 %v4882, %v4882
  %v4896 = vpack.c.b16 %v4883, %v4883
  %v4897 = vpack.c.b16 %v4884, %v4884
  %v4898 = vpack.c.b16 %v4885, %v4885
  %vm4912 = vcmask 519168
  %4913 = vst.msk [vmem:[%s3] sm:$0xf] %vm4912, %v4886
  %4914 = vst.msk [vmem:[%s3 + $0x4] sm:$0xf] %vm4912, %v4887
  %4915 = vst.msk [vmem:[%s3 + $0x8] sm:$0xf] %vm4912, %v4888
  %4916 = vst.msk [vmem:[%s3 + $0xc] sm:$0xf] %vm4912, %v4889
  %4917 = vst.msk [vmem:[%s3 + $0x10] sm:$0xf] %vm4912, %v4890
  %4918 = vst.msk [vmem:[%s3 + $0x14] sm:$0xf] %vm4912, %v4891
  %4919 = vst.msk [vmem:[%s3 + $0x18] sm:$0xf] %vm4912, %v4892
  %4920 = vst.msk [vmem:[%s3 + $0x1c] sm:$0xf] %vm4912, %v4893
  %4921 = vst.msk [vmem:[%s3 + $0x20] sm:$0xf] %vm4912, %v4894
  %4922 = vst.msk [vmem:[%s3 + $0x24] sm:$0xf] %vm4912, %v4895
  %4923 = vst.msk [vmem:[%s3 + $0x28] sm:$0xf] %vm4912, %v4896
  %4924 = vst.msk [vmem:[%s3 + $0x2c] sm:$0xf] %vm4912, %v4897
  %4925 = vst.msk [vmem:[%s3 + $0x30] sm:$0xf] %vm4912, %v4898
  // Predicated region
  $region14: #{cnn_forward.4} parent=0 // pred_check
    _
  $region15: #{cnn_forward.4} parent=0 // pred_check_branch
    %4927 = sbr.rel (0) target = $region17
  $region16: #{cnn_forward.4} parent=0 // pred_region
    _
  $region17: #{cnn_forward.4} parent=0 // pred_fallthru
    _
  // Predicated region
  $region18: #{cnn_forward.4} parent=0 // pred_check
    _
  $region19: #{cnn_forward.4} parent=0 // pred_check_branch
    %4929 = sbr.rel (0) target = $region21
  $region20: #{cnn_forward.4} parent=0 // pred_region
    _
  $region21: #{cnn_forward.4} parent=0 // pred_fallthru
    _

</llo_original>
